<compile_context>
chip_gen: v5e
topology: v5e:2x2
jax: 0.10.0
libtpu: 0.0.40
codegen_flags: <defaults>
</compile_context>

<pallas_src>
import math
from functools import partial

import numpy as np
import jax
import jax.numpy as jnp
from jax import lax
from jax.experimental import pallas as pl
from jax.experimental.pallas import tpu as pltpu

# ----------------------- config consistent with the module --------------------
IMG_SIZE = 32
PATCH_SIZE = 4
IN_CHANS = 3
EMBED_DIM = 32
DEPTHS = (2, 2)
NUM_HEADS = (2, 4)
WINDOW_SIZE = 4
MLP_RATIO = 4.0
PROMPT_NUM = 10          # SwinTransformerBlock.num
SHARE_LATENT = 10        # share_MLP.latent_dim
EPS = 1e-5
NEG_INF = -1e9

VMEM = pl.BlockSpec(memory_space=pltpu.MemorySpace.VMEM)


# ------------------------------ in-kernel helpers ------------------------------
def _ln(x, g, b):
    x = x.astype(jnp.float32)
    mu = jnp.mean(x, axis=-1, keepdims=True)
    var = jnp.mean(jnp.square(x - mu), axis=-1, keepdims=True)
    return (x - mu) * lax.rsqrt(var + EPS) * g + b


def _softmax_rows(s):
    s = s - jnp.max(s, axis=-1, keepdims=True)
    e = jnp.exp(s)
    return e * pl.reciprocal(jnp.sum(e, axis=-1, keepdims=True), approx=True)


# ------------------------------ Pallas kernels ---------------------------------
def _embed_kernel(p_ref, w_ref, b_ref, g_ref, nb_ref, o_ref):
    # patch pixels -> embed dim, + LayerNorm (patch_norm=True), fully fused
    y = jnp.dot(p_ref[...], w_ref[...], preferred_element_type=jnp.float32) + b_ref[...]
    o_ref[...] = _ln(y, g_ref[...], nb_ref[...]).astype(o_ref.dtype)


def _block_kernel(x_ref, n1g_ref, n1b_ref,
                  qw_ref, qb_ref, kw_ref, kb_ref, vw_ref, vb_ref,
                  bias_ref, pw_ref, pb_ref,
                  prm_ref, pbias_ref, inj_ref,
                  n2g_ref, n2b_ref, f1w_ref, f1b_ref, f2w_ref, f2b_ref,
                  dw_ref, db_ref, uw_ref, ub_ref, gate_ref,
                  o_ref, *, heads, attn_scale, prompt_scale):
    # x_ref: (M, C) tokens, M = B*L, batch-major / row-major spatial order.
    x = x_ref[...].astype(jnp.float32)
    xn = _ln(x, n1g_ref[...], n1b_ref[...])

    # ---- window attention: dense masked attention, one pass per head.
    # bias_ref[h] already contains rel-pos bias + shift mask, and -1e9 for
    # cross-window / cross-batch pairs, so softmax over the full row is exactly
    # the per-window softmax of the reference module.
    attn = None
    for h in range(heads):
        q = jnp.dot(xn, qw_ref[h], preferred_element_type=jnp.float32) + qb_ref[h]
        k = jnp.dot(xn, kw_ref[h], preferred_element_type=jnp.float32) + kb_ref[h]
        v = jnp.dot(xn, vw_ref[h], preferred_element_type=jnp.float32) + vb_ref[h]
        s = lax.dot_general(q, k, (((1,), (1,)), ((), ())),
                            preferred_element_type=jnp.float32) * attn_scale
        p = _softmax_rows(s + bias_ref[h])
        oh = jnp.dot(p, v, preferred_element_type=jnp.float32)          # (M, hd)
        c = jnp.dot(oh, pw_ref[h], preferred_element_type=jnp.float32)  # (M, C) head's proj slice
        attn = c if attn is None else attn + c
    x2 = attn + pb_ref[...]                                             # token order

    # ---- prompt attention (batched): prm is prompt tiled per batch, pbias
    # masks cross-batch columns, inj scatters the result onto the first
    # PROMPT_NUM tokens of each batch image.
    s = lax.dot_general(prm_ref[...], x2, (((1,), (1,)), ((), ())),
                        preferred_element_type=jnp.float32) * prompt_scale
    a = _softmax_rows(s + pbias_ref[...])
    pout = jnp.dot(a, x2, preferred_element_type=jnp.float32)           # (B*num, C)
    x2 = x2 + jnp.dot(inj_ref[...], pout, preferred_element_type=jnp.float32)

    xr = x + x2                                                         # shortcut + x

    # ---- MLP branch (exact GELU)
    xn2 = _ln(xr, n2g_ref[...], n2b_ref[...])
    h1 = jnp.dot(xn2, f1w_ref[...], preferred_element_type=jnp.float32) + f1b_ref[...]
    h1 = 0.5 * h1 * (1.0 + lax.erf(h1 * 0.7071067811865476))
    mlp = jnp.dot(h1, f2w_ref[...], preferred_element_type=jnp.float32) + f2b_ref[...]

    # ---- shared prompt_proj (share_MLP): u(QuickGELU(d(x))) * gate
    sd = jnp.dot(xr, dw_ref[...], preferred_element_type=jnp.float32) + db_ref[...]
    sd = sd * jax.nn.sigmoid(1.702 * sd)
    su = (jnp.dot(sd, uw_ref[...], preferred_element_type=jnp.float32) + ub_ref[...]) * gate_ref[...]

    o_ref[...] = (xr + mlp + su).astype(o_ref.dtype)


def _merge_kernel(x_ref, g_ref, b_ref, w_ref, o_ref):
    # PatchMerging: LayerNorm(4C) + bias-free reduction Linear, fused.
    xn = _ln(x_ref[...], g_ref[...], b_ref[...])
    o_ref[...] = jnp.dot(xn, w_ref[...], preferred_element_type=jnp.float32).astype(o_ref.dtype)


def _head_kernel(x_ref, g_ref, b_ref, pool_ref, o_ref):
    # Final LayerNorm + AdaptiveAvgPool1d(1) (as a pooling matmul).
    xn = _ln(x_ref[...], g_ref[...], b_ref[...])
    o_ref[...] = jnp.dot(pool_ref[...], xn, preferred_element_type=jnp.float32).astype(o_ref.dtype)


# ------------------------------ host-side precompute ---------------------------
def _rel_pos_index(ws):
    coords = np.stack(np.meshgrid(np.arange(ws), np.arange(ws), indexing="ij"))
    cf = coords.reshape(2, -1)
    rel = (cf[:, :, None] - cf[:, None, :]).transpose(1, 2, 0).astype(np.int64)
    rel[:, :, 0] += ws - 1
    rel[:, :, 1] += ws - 1
    rel[:, :, 0] *= 2 * ws - 1
    return rel.sum(-1).astype(np.int32)               # (ws*ws, ws*ws)


def _np_window_partition(x, ws):
    B, H, W, C = x.shape
    x = x.reshape(B, H // ws, ws, W // ws, ws, C)
    return x.transpose(0, 1, 3, 2, 4, 5).reshape(-1, ws, ws, C)


def _attn_mask(H, W, ws, shift):
    # exactly the reference construction (label image is NOT rolled)
    img = np.zeros((1, H, W, 1), np.float32)
    cnt = 0
    slices = (slice(0, -ws), slice(-ws, -shift), slice(-shift, None))
    for h in slices:
        for w in slices:
            img[:, h, w, :] = cnt
            cnt += 1
    mw = _np_window_partition(img, ws).reshape(-1, ws * ws)
    am = mw[:, None, :] - mw[:, :, None]
    return np.where(am != 0, -100.0, 0.0).astype(np.float32)   # (nW, N, N)


def _token_attn_bias(rel_table, H, W, ws, shift, heads, batch):
    """Dense additive attention bias in ORIGINAL token order.

    bias[h, t1, t2] = rel_pos_bias + shift_mask  if t1,t2 land in the same
    shifted window of the same batch image, else -1e9 (== excluded).  Applying
    this to a full (B*L, B*L) score matrix reproduces window attention exactly
    and removes roll / window_partition / window_reverse from the forward.
    """
    N = ws * ws
    L = H * W
    nW = (H // ws) * (W // ws)
    idx = _rel_pos_index(ws)
    table = np.asarray(rel_table)                                  # ((2ws-1)^2, heads)
    rel = table[idx.reshape(-1)].reshape(N, N, heads).transpose(2, 0, 1)   # (heads, N, N)
    mask = _attn_mask(H, W, ws, shift) if shift > 0 else np.zeros((nW, N, N), np.float32)

    rr = (np.arange(H) - shift) % H                  # shifted row of original row
    cc = (np.arange(W) - shift) % W
    wid = ((rr[:, None] // ws) * (W // ws) + (cc[None, :] // ws)).reshape(L)
    pos = ((rr[:, None] % ws) * ws + (cc[None, :] % ws)).reshape(L)

    same = wid[:, None] == wid[None, :]
    vals = rel[:, pos[:, None], pos[None, :]] + mask[wid[:, None], pos[:, None], pos[None, :]][None]
    bias_img = np.where(same[None], vals, np.float32(NEG_INF)).astype(np.float32)   # (heads, L, L)

    big = np.full((heads, batch * L, batch * L), NEG_INF, np.float32)
    for b in range(batch):
        big[:, b * L:(b + 1) * L, b * L:(b + 1) * L] = bias_img
    return jnp.asarray(big)


# ------------------------------ model -----------------------------------------
def swin_block(tok, bp, heads):
    M, C = tok.shape
    hd = C // heads
    args = (tok, bp["n1g"], bp["n1b"],
            bp["qw"], bp["qb"], bp["kw"], bp["kb"], bp["vw"], bp["vb"],
            bp["attn_bias"], bp["pw"], bp["pb"],
            bp["prompt_stacked"], bp["pbias"], bp["inj"],
            bp["n2g"], bp["n2b"], bp["f1w"], bp["f1b"], bp["f2w"], bp["f2b"],
            bp["dw"], bp["db"], bp["uw"], bp["ub"], bp["gate"])
    return pl.pallas_call(
        partial(_block_kernel, heads=heads,
                attn_scale=hd ** (-0.5), prompt_scale=float(C) ** (-0.5)),
        out_shape=jax.ShapeDtypeStruct((M, C), tok.dtype),
        in_specs=[VMEM] * len(args),
        out_specs=VMEM,
    )(*args)


def swin_forward(params, x):
    B = x.shape[0]
    Hp = IMG_SIZE // PATCH_SIZE
    # PatchEmbed: Conv2d(k=stride=patch)  ==  non-overlapping patch extraction + matmul
    p = x.reshape(B, IN_CHANS, Hp, PATCH_SIZE, Hp, PATCH_SIZE)
    p = p.transpose(0, 2, 4, 1, 3, 5).reshape(B * Hp * Hp, IN_CHANS * PATCH_SIZE * PATCH_SIZE)
    pe = params["patch_embed"]
    tok = pl.pallas_call(
        _embed_kernel,
        out_shape=jax.ShapeDtypeStruct((B * Hp * Hp, EMBED_DIM), x.dtype),
        in_specs=[VMEM] * 5, out_specs=VMEM,
    )(p, pe["w"], pe["b"], pe["ng"], pe["nb"])
    # ape=False, pos_drop identity

    for li, lp in enumerate(params["layers"]):
        heads = NUM_HEADS[li]
        for bp in lp["blocks"]:
            tok = swin_block(tok, bp, heads)
        if lp["downsample"] is not None:
            dp = lp["downsample"]
            H = W = Hp // (2 ** li)
            C = EMBED_DIM * 2 ** li
            xi = tok.reshape(B, H, W, C)
            x0 = xi[:, 0::2, 0::2, :]
            x1 = xi[:, 1::2, 0::2, :]
            x2 = xi[:, 0::2, 1::2, :]
            x3 = xi[:, 1::2, 1::2, :]
            xc = jnp.concatenate([x0, x1, x2, x3], axis=-1).reshape(
                B * (H // 2) * (W // 2), 4 * C)
            tok = pl.pallas_call(
                _merge_kernel,
                out_shape=jax.ShapeDtypeStruct((xc.shape[0], 2 * C), x.dtype),
                in_specs=[VMEM] * 4, out_specs=VMEM,
            )(xc, dp["ng"], dp["nb"], dp["red_w"])

    Cf = tok.shape[1]
    return pl.pallas_call(
        _head_kernel,
        out_shape=jax.ShapeDtypeStruct((B, Cf), x.dtype),
        in_specs=[VMEM] * 4, out_specs=VMEM,
    )(tok, params["ng"], params["nb"], params["pool"])


# ------------------------------ parameter init ---------------------------------
def init_model(key, batch):
    kit = iter(jax.random.split(key, 512))

    def dense(shape):
        return (0.02 * jax.random.normal(next(kit), shape)).astype(jnp.float32)

    def tnorm(shape):
        return (0.02 * jax.random.truncated_normal(next(kit), -2.0, 2.0, shape)).astype(jnp.float32)

    Hp = IMG_SIZE // PATCH_SIZE
    nf = EMBED_DIM * 2 ** (len(DEPTHS) - 1)
    Lf = (Hp // 2 ** (len(DEPTHS) - 1)) ** 2
    pool = np.zeros((batch, batch * Lf), np.float32)
    for b in range(batch):
        pool[b, b * Lf:(b + 1) * Lf] = 1.0 / Lf

    params = {
        "patch_embed": {
            "w": dense((IN_CHANS * PATCH_SIZE * PATCH_SIZE, EMBED_DIM)),
            "b": dense((1, EMBED_DIM)),
            "ng": jnp.ones((1, EMBED_DIM), jnp.float32),
            "nb": jnp.zeros((1, EMBED_DIM), jnp.float32),
        },
        "layers": [],
        "ng": jnp.ones((1, nf), jnp.float32),
        "nb": jnp.zeros((1, nf), jnp.float32),
        "pool": jnp.asarray(pool),
    }

    for li, depth in enumerate(DEPTHS):
        dim = EMBED_DIM * 2 ** li
        res = Hp // 2 ** li
        heads = NUM_HEADS[li]
        hd = dim // heads
        hidden = int(dim * MLP_RATIO)
        L = res * res
        M = batch * L
        layer = {"blocks": [], "downsample": None}
        share = None
        for bi in range(depth):
            if bi % 3 == 0:    # one share_MLP shared by up to 3 consecutive blocks
                share = {
                    "dw": dense((dim, SHARE_LATENT)), "db": dense((1, SHARE_LATENT)),
                    "uw": dense((SHARE_LATENT, dim)), "ub": dense((1, dim)),
                    "gate": jnp.zeros((1, 1), jnp.float32),   # prompt_gate init = 0
                }
            if res <= WINDOW_SIZE:
                ws, shift = res, 0
            else:
                ws = WINDOW_SIZE
                shift = 0 if bi % 2 == 0 else WINDOW_SIZE // 2

            # torch-layout parameters
            qkv_w = dense((dim, 3 * dim))
            qkv_b = dense((1, 3 * dim))
            proj_w = dense((dim, dim))
            proj_b = dense((1, dim))
            rel_table = tnorm(((2 * ws - 1) ** 2, heads))
            prompt = tnorm((PROMPT_NUM, dim))

            # kernel-ready repack: per-head weight slabs (avoids in-kernel lane slicing)
            qw = qkv_w[:, 0 * dim:1 * dim].reshape(dim, heads, hd).transpose(1, 0, 2)
            kw = qkv_w[:, 1 * dim:2 * dim].reshape(dim, heads, hd).transpose(1, 0, 2)
            vw = qkv_w[:, 2 * dim:3 * dim].reshape(dim, heads, hd).transpose(1, 0, 2)
            qb = qkv_b[0, 0 * dim:1 * dim].reshape(heads, 1, hd)
            kb = qkv_b[0, 1 * dim:2 * dim].reshape(heads, 1, hd)
            vb = qkv_b[0, 2 * dim:3 * dim].reshape(heads, 1, hd)
            pw = proj_w.reshape(heads, hd, dim)

            # prompt packing: tiled prompt, batch-block softmax mask, injection matrix
            prm = jnp.tile(prompt, (batch, 1))                      # (B*num, C)
            pbias = np.full((batch * PROMPT_NUM, M), NEG_INF, np.float32)
            inj = np.zeros((M, batch * PROMPT_NUM), np.float32)
            for b in range(batch):
                pbias[b * PROMPT_NUM:(b + 1) * PROMPT_NUM, b * L:(b + 1) * L] = 0.0
                for i in range(PROMPT_NUM):
                    inj[b * L + i, b * PROMPT_NUM + i] = 1.0

            bp = {
                "n1g": jnp.ones((1, dim), jnp.float32), "n1b": jnp.zeros((1, dim), jnp.float32),
                "qw": qw, "qb": qb, "kw": kw, "kb": kb, "vw": vw, "vb": vb,
                "attn_bias": _token_attn_bias(rel_table, res, res, ws, shift, heads, batch),
                "pw": pw, "pb": proj_b,
                "prompt_stacked": prm, "pbias": jnp.asarray(pbias), "inj": jnp.asarray(inj),
                "n2g": jnp.ones((1, dim), jnp.float32), "n2b": jnp.zeros((1, dim), jnp.float32),
                "f1w": dense((dim, hidden)), "f1b": dense((1, hidden)),
                "f2w": dense((hidden, dim)), "f2b": dense((1, dim)),
                **share,
            }
            layer["blocks"].append(bp)
        if li < len(DEPTHS) - 1:
            layer["downsample"] = {
                "ng": jnp.ones((1, 4 * dim), jnp.float32),
                "nb": jnp.zeros((1, 4 * dim), jnp.float32),
                "red_w": dense((4 * dim, 2 * dim)),   # Linear(bias=False)
            }
        params["layers"].append(layer)
    return params


# ----------------------------------- main --------------------------------------
if __name__ == "__main__":
    # TODO(synk): Dropout / DropPath / gradient checkpointing have no effect at
    # inference and are treated as identity.
    root = jax.random.PRNGKey(0)
    kp, kx = jax.random.split(root)
    B = 2
    params = init_model(kp, B)
    x = jax.random.normal(kx, (B, IN_CHANS, IMG_SIZE, IMG_SIZE), jnp.float32)

    fwd = jax.jit(swin_forward)
    out = fwd(params, x)
    jax.block_until_ready(out)

    expected = (B, EMBED_DIM * 2 ** (len(DEPTHS) - 1))
    assert out.shape == expected, (out.shape, expected)
    assert bool(jnp.all(jnp.isfinite(out)))
    print("KERNEL_OK")
</pallas_src>

<mosaic_0001>
module attributes {stable_mosaic.version = 11 : i64} {
  func.func @_embed_kernel(%arg0: memref<128x48xf32, #tpu.memory_space<vmem>>, %arg1: memref<48x32xf32, #tpu.memory_space<vmem>>, %arg2: memref<1x32xf32, #tpu.memory_space<vmem>>, %arg3: memref<1x32xf32, #tpu.memory_space<vmem>>, %arg4: memref<1x32xf32, #tpu.memory_space<vmem>>, %arg5: memref<128x32xf32, #tpu.memory_space<vmem>>) attributes {dimension_semantics = [], scalar_prefetch = 0 : i64, scratch_operands = 0 : i64, tpu.core_type = #tpu.core_type<tc>} {
    %c0 = arith.constant 0 : index
    %c0_0 = arith.constant 0 : index
    %0 = vector.load %arg0[%c0, %c0_0] : memref<128x48xf32, #tpu.memory_space<vmem>>, vector<128x48xf32>
    %c0_1 = arith.constant 0 : index
    %c0_2 = arith.constant 0 : index
    %1 = vector.load %arg1[%c0_1, %c0_2] : memref<48x32xf32, #tpu.memory_space<vmem>>, vector<48x32xf32>
    %cst = arith.constant dense<0.000000e+00> : vector<128x32xf32>
    %2 = tpu.matmul %0, %1, %cst {dimension_numbers = #tpu.dot_dimension_numbers<[1], [0], [0], [1], [0, 0, 1, 1], [], []>} : vector<128x48xf32>, vector<48x32xf32>, vector<128x32xf32> -> vector<128x32xf32>
    %c0_3 = arith.constant 0 : index
    %c0_4 = arith.constant 0 : index
    %3 = vector.load %arg2[%c0_3, %c0_4] : memref<1x32xf32, #tpu.memory_space<vmem>>, vector<1x32xf32>
    %4 = vector.broadcast %3 : vector<1x32xf32> to vector<128x32xf32>
    %5 = arith.addf %2, %4 : vector<128x32xf32>
    %c0_5 = arith.constant 0 : index
    %c0_6 = arith.constant 0 : index
    %6 = vector.load %arg3[%c0_5, %c0_6] : memref<1x32xf32, #tpu.memory_space<vmem>>, vector<1x32xf32>
    %c0_7 = arith.constant 0 : index
    %c0_8 = arith.constant 0 : index
    %7 = vector.load %arg4[%c0_7, %c0_8] : memref<1x32xf32, #tpu.memory_space<vmem>>, vector<1x32xf32>
    %cst_9 = arith.constant dense<0.000000e+00> : vector<128xf32>
    %8 = vector.multi_reduction <add>, %5, %cst_9 [1] : vector<128x32xf32> to vector<128xf32>
    %9 = vector.shape_cast %8 : vector<128xf32> to vector<128x1xf32>
    %cst_10 = arith.constant 3.200000e+01 : f32
    %10 = vector.broadcast %cst_10 : f32 to vector<128x1xf32>
    %11 = arith.divf %9, %10 : vector<128x1xf32>
    %12 = vector.broadcast %11 : vector<128x1xf32> to vector<128x32xf32>
    %13 = arith.subf %5, %12 : vector<128x32xf32>
    %14 = arith.mulf %13, %13 : vector<128x32xf32>
    %cst_11 = arith.constant dense<0.000000e+00> : vector<128xf32>
    %15 = vector.multi_reduction <add>, %14, %cst_11 [1] : vector<128x32xf32> to vector<128xf32>
    %16 = vector.shape_cast %15 : vector<128xf32> to vector<128x1xf32>
    %cst_12 = arith.constant 3.200000e+01 : f32
    %17 = vector.broadcast %cst_12 : f32 to vector<128x1xf32>
    %18 = arith.divf %16, %17 : vector<128x1xf32>
    %19 = vector.broadcast %11 : vector<128x1xf32> to vector<128x32xf32>
    %20 = arith.subf %5, %19 : vector<128x32xf32>
    %cst_13 = arith.constant 9.99999974E-6 : f32
    %21 = vector.broadcast %cst_13 : f32 to vector<128x1xf32>
    %22 = arith.addf %18, %21 : vector<128x1xf32>
    %23 = math.rsqrt %22 : vector<128x1xf32>
    %24 = vector.broadcast %23 : vector<128x1xf32> to vector<128x32xf32>
    %25 = arith.mulf %20, %24 : vector<128x32xf32>
    %26 = vector.broadcast %6 : vector<1x32xf32> to vector<128x32xf32>
    %27 = arith.mulf %25, %26 : vector<128x32xf32>
    %28 = vector.broadcast %7 : vector<1x32xf32> to vector<128x32xf32>
    %29 = arith.addf %27, %28 : vector<128x32xf32>
    %c0_14 = arith.constant 0 : index
    %c0_15 = arith.constant 0 : index
    %30 = vector.load %arg5[%c0_14, %c0_15] : memref<128x32xf32, #tpu.memory_space<vmem>>, vector<128x32xf32>
    tpu.vector_store %arg5[%c0_14, %c0_15], %29 {strides = array<i32>} : memref<128x32xf32, #tpu.memory_space<vmem>>, vector<128x32xf32>,
    return
  }
}

module attributes {stable_mosaic.version = 11 : i64} {
  func.func @_block_kernel(%arg0: memref<128x32xf32, #tpu.memory_space<vmem>>, %arg1: memref<1x32xf32, #tpu.memory_space<vmem>>, %arg2: memref<1x32xf32, #tpu.memory_space<vmem>>, %arg3: memref<2x32x16xf32, #tpu.memory_space<vmem>>, %arg4: memref<2x1x16xf32, #tpu.memory_space<vmem>>, %arg5: memref<2x32x16xf32, #tpu.memory_space<vmem>>, %arg6: memref<2x1x16xf32, #tpu.memory_space<vmem>>, %arg7: memref<2x32x16xf32, #tpu.memory_space<vmem>>, %arg8: memref<2x1x16xf32, #tpu.memory_space<vmem>>, %arg9: memref<2x128x128xf32, #tpu.memory_space<vmem>>, %arg10: memref<2x16x32xf32, #tpu.memory_space<vmem>>, %arg11: memref<1x32xf32, #tpu.memory_space<vmem>>, %arg12: memref<20x32xf32, #tpu.memory_space<vmem>>, %arg13: memref<20x128xf32, #tpu.memory_space<vmem>>, %arg14: memref<128x20xf32, #tpu.memory_space<vmem>>, %arg15: memref<1x32xf32, #tpu.memory_space<vmem>>, %arg16: memref<1x32xf32, #tpu.memory_space<vmem>>, %arg17: memref<32x128xf32, #tpu.memory_space<vmem>>, %arg18: memref<1x128xf32, #tpu.memory_space<vmem>>, %arg19: memref<128x32xf32, #tpu.memory_space<vmem>>, %arg20: memref<1x32xf32, #tpu.memory_space<vmem>>, %arg21: memref<32x10xf32, #tpu.memory_space<vmem>>, %arg22: memref<1x10xf32, #tpu.memory_space<vmem>>, %arg23: memref<10x32xf32, #tpu.memory_space<vmem>>, %arg24: memref<1x32xf32, #tpu.memory_space<vmem>>, %arg25: memref<1x1xf32, #tpu.memory_space<vmem>>, %arg26: memref<128x32xf32, #tpu.memory_space<vmem>>) attributes {dimension_semantics = [], scalar_prefetch = 0 : i64, scratch_operands = 0 : i64, tpu.core_type = #tpu.core_type<tc>} {
    %c0 = arith.constant 0 : index
    %c0_0 = arith.constant 0 : index
    %0 = vector.load %arg0[%c0, %c0_0] : memref<128x32xf32, #tpu.memory_space<vmem>>, vector<128x32xf32>
    %c0_1 = arith.constant 0 : index
    %c0_2 = arith.constant 0 : index
    %1 = vector.load %arg1[%c0_1, %c0_2] : memref<1x32xf32, #tpu.memory_space<vmem>>, vector<1x32xf32>
    %c0_3 = arith.constant 0 : index
    %c0_4 = arith.constant 0 : index
    %2 = vector.load %arg2[%c0_3, %c0_4] : memref<1x32xf32, #tpu.memory_space<vmem>>, vector<1x32xf32>
    %cst = arith.constant dense<0.000000e+00> : vector<128xf32>
    %3 = vector.multi_reduction <add>, %0, %cst [1] : vector<128x32xf32> to vector<128xf32>
    %4 = vector.shape_cast %3 : vector<128xf32> to vector<128x1xf32>
    %cst_5 = arith.constant 3.200000e+01 : f32
    %5 = vector.broadcast %cst_5 : f32 to vector<128x1xf32>
    %6 = arith.divf %4, %5 : vector<128x1xf32>
    %7 = vector.broadcast %6 : vector<128x1xf32> to vector<128x32xf32>
    %8 = arith.subf %0, %7 : vector<128x32xf32>
    %9 = arith.mulf %8, %8 : vector<128x32xf32>
    %cst_6 = arith.constant dense<0.000000e+00> : vector<128xf32>
    %10 = vector.multi_reduction <add>, %9, %cst_6 [1] : vector<128x32xf32> to vector<128xf32>
    %11 = vector.shape_cast %10 : vector<128xf32> to vector<128x1xf32>
    %cst_7 = arith.constant 3.200000e+01 : f32
    %12 = vector.broadcast %cst_7 : f32 to vector<128x1xf32>
    %13 = arith.divf %11, %12 : vector<128x1xf32>
    %14 = vector.broadcast %6 : vector<128x1xf32> to vector<128x32xf32>
    %15 = arith.subf %0, %14 : vector<128x32xf32>
    %cst_8 = arith.constant 9.99999974E-6 : f32
    %16 = vector.broadcast %cst_8 : f32 to vector<128x1xf32>
    %17 = arith.addf %13, %16 : vector<128x1xf32>
    %18 = math.rsqrt %17 : vector<128x1xf32>
    %19 = vector.broadcast %18 : vector<128x1xf32> to vector<128x32xf32>
    %20 = arith.mulf %15, %19 : vector<128x32xf32>
    %21 = vector.broadcast %1 : vector<1x32xf32> to vector<128x32xf32>
    %22 = arith.mulf %20, %21 : vector<128x32xf32>
    %23 = vector.broadcast %2 : vector<1x32xf32> to vector<128x32xf32>
    %24 = arith.addf %22, %23 : vector<128x32xf32>
    %c0_9 = arith.constant 0 : index
    %c0_10 = arith.constant 0 : index
    %c0_11 = arith.constant 0 : index
    %25 = vector.load %arg3[%c0_9, %c0_10, %c0_11] : memref<2x32x16xf32, #tpu.memory_space<vmem>>, vector<1x32x16xf32>
    %26 = vector.shape_cast %25 : vector<1x32x16xf32> to vector<32x16xf32>
    %cst_12 = arith.constant dense<0.000000e+00> : vector<128x16xf32>
    %27 = tpu.matmul %24, %26, %cst_12 {dimension_numbers = #tpu.dot_dimension_numbers<[1], [0], [0], [1], [0, 0, 1, 1], [], []>} : vector<128x32xf32>, vector<32x16xf32>, vector<128x16xf32> -> vector<128x16xf32>
    %c0_13 = arith.constant 0 : index
    %c0_14 = arith.constant 0 : index
    %c0_15 = arith.constant 0 : index
    %28 = vector.load %arg4[%c0_13, %c0_14, %c0_15] : memref<2x1x16xf32, #tpu.memory_space<vmem>>, vector<1x1x16xf32>
    %29 = vector.shape_cast %28 : vector<1x1x16xf32> to vector<1x16xf32>
    %30 = vector.broadcast %29 : vector<1x16xf32> to vector<128x16xf32>
    %31 = arith.addf %27, %30 : vector<128x16xf32>
    %c0_16 = arith.constant 0 : index
    %c0_17 = arith.constant 0 : index
    %c0_18 = arith.constant 0 : index
    %32 = vector.load %arg5[%c0_16, %c0_17, %c0_18] : memref<2x32x16xf32, #tpu.memory_space<vmem>>, vector<1x32x16xf32>
    %33 = vector.shape_cast %32 : vector<1x32x16xf32> to vector<32x16xf32>
    %cst_19 = arith.constant dense<0.000000e+00> : vector<128x16xf32>
    %34 = tpu.matmul %24, %33, %cst_19 {dimension_numbers = #tpu.dot_dimension_numbers<[1], [0], [0], [1], [0, 0, 1, 1], [], []>} : vector<128x32xf32>, vector<32x16xf32>, vector<128x16xf32> -> vector<128x16xf32>
    %c0_20 = arith.constant 0 : index
    %c0_21 = arith.constant 0 : index
    %c0_22 = arith.constant 0 : index
    %35 = vector.load %arg6[%c0_20, %c0_21, %c0_22] : memref<2x1x16xf32, #tpu.memory_space<vmem>>, vector<1x1x16xf32>
    %36 = vector.shape_cast %35 : vector<1x1x16xf32> to vector<1x16xf32>
    %37 = vector.broadcast %36 : vector<1x16xf32> to vector<128x16xf32>
    %38 = arith.addf %34, %37 : vector<128x16xf32>
    %c0_23 = arith.constant 0 : index
    %c0_24 = arith.constant 0 : index
    %c0_25 = arith.constant 0 : index
    %39 = vector.load %arg7[%c0_23, %c0_24, %c0_25] : memref<2x32x16xf32, #tpu.memory_space<vmem>>, vector<1x32x16xf32>
    %40 = vector.shape_cast %39 : vector<1x32x16xf32> to vector<32x16xf32>
    %cst_26 = arith.constant dense<0.000000e+00> : vector<128x16xf32>
    %41 = tpu.matmul %24, %40, %cst_26 {dimension_numbers = #tpu.dot_dimension_numbers<[1], [0], [0], [1], [0, 0, 1, 1], [], []>} : vector<128x32xf32>, vector<32x16xf32>, vector<128x16xf32> -> vector<128x16xf32>
    %c0_27 = arith.constant 0 : index
    %c0_28 = arith.constant 0 : index
    %c0_29 = arith.constant 0 : index
    %42 = vector.load %arg8[%c0_27, %c0_28, %c0_29] : memref<2x1x16xf32, #tpu.memory_space<vmem>>, vector<1x1x16xf32>
    %43 = vector.shape_cast %42 : vector<1x1x16xf32> to vector<1x16xf32>
    %44 = vector.broadcast %43 : vector<1x16xf32> to vector<128x16xf32>
    %45 = arith.addf %41, %44 : vector<128x16xf32>
    %cst_30 = arith.constant dense<0.000000e+00> : vector<128x128xf32>
    %46 = tpu.matmul %31, %38, %cst_30 {dimension_numbers = #tpu.dot_dimension_numbers<[1], [1], [0], [0], [0, 0, 1, 0], [], []>} : vector<128x16xf32>, vector<128x16xf32>, vector<128x128xf32> -> vector<128x128xf32>
    %cst_31 = arith.constant 2.500000e-01 : f32
    %47 = vector.broadcast %cst_31 : f32 to vector<128x128xf32>
    %48 = arith.mulf %46, %47 : vector<128x128xf32>
    %c0_32 = arith.constant 0 : index
    %c0_33 = arith.constant 0 : index
    %c0_34 = arith.constant 0 : index
    %49 = vector.load %arg9[%c0_32, %c0_33, %c0_34] : memref<2x128x128xf32, #tpu.memory_space<vmem>>, vector<1x128x128xf32>
    %50 = vector.shape_cast %49 : vector<1x128x128xf32> to vector<128x128xf32>
    %51 = arith.addf %48, %50 : vector<128x128xf32>
    %cst_35 = arith.constant dense<0xFF800000> : vector<128xf32>
    %52 = vector.multi_reduction <maximumf>, %51, %cst_35 [1] : vector<128x128xf32> to vector<128xf32>
    %53 = vector.shape_cast %52 : vector<128xf32> to vector<128x1xf32>
    %54 = vector.broadcast %53 : vector<128x1xf32> to vector<128x128xf32>
    %55 = arith.subf %51, %54 : vector<128x128xf32>
    %56 = math.exp %55 : vector<128x128xf32>
    %cst_36 = arith.constant dense<0.000000e+00> : vector<128xf32>
    %57 = vector.multi_reduction <add>, %56, %cst_36 [1] : vector<128x128xf32> to vector<128xf32>
    %58 = vector.shape_cast %57 : vector<128xf32> to vector<128x1xf32>
    %59 = tpu.reciprocal %58 {approx = true} : vector<128x1xf32> -> vector<128x1xf32>
    %60 = vector.broadcast %59 : vector<128x1xf32> to vector<128x128xf32>
    %61 = arith.mulf %56, %60 : vector<128x128xf32>
    %cst_37 = arith.constant dense<0.000000e+00> : vector<128x16xf32>
    %62 = tpu.matmul %61, %45, %cst_37 {dimension_numbers = #tpu.dot_dimension_numbers<[1], [0], [0], [1], [0, 0, 1, 1], [], []>} : vector<128x128xf32>, vector<128x16xf32>, vector<128x16xf32> -> vector<128x16xf32>
    %c0_38 = arith.constant 0 : index
    %c0_39 = arith.constant 0 : index
    %c0_40 = arith.constant 0 : index
    %63 = vector.load %arg10[%c0_38, %c0_39, %c0_40] : memref<2x16x32xf32, #tpu.memory_space<vmem>>, vector<1x16x32xf32>
    %64 = vector.shape_cast %63 : vector<1x16x32xf32> to vector<16x32xf32>
    %cst_41 = arith.constant dense<0.000000e+00> : vector<128x32xf32>
    %65 = tpu.matmul %62, %64, %cst_41 {dimension_numbers = #tpu.dot_dimension_numbers<[1], [0], [0], [1], [0, 0, 1, 1], [], []>} : vector<128x16xf32>, vector<16x32xf32>, vector<128x32xf32> -> vector<128x32xf32>
    %c1 = arith.constant 1 : index
    %c0_42 = arith.constant 0 : index
    %c0_43 = arith.constant 0 : index
    %66 = vector.load %arg3[%c1, %c0_42, %c0_43] : memref<2x32x16xf32, #tpu.memory_space<vmem>>, vector<1x32x16xf32>
    %67 = vector.shape_cast %66 : vector<1x32x16xf32> to vector<32x16xf32>
    %cst_44 = arith.constant dense<0.000000e+00> : vector<128x16xf32>
    %68 = tpu.matmul %24, %67, %cst_44 {dimension_numbers = #tpu.dot_dimension_numbers<[1], [0], [0], [1], [0, 0, 1, 1], [], []>} : vector<128x32xf32>, vector<32x16xf32>, vector<128x16xf32> -> vector<128x16xf32>
    %c1_45 = arith.constant 1 : index
    %c0_46 = arith.constant 0 : index
    %c0_47 = arith.constant 0 : index
    %69 = vector.load %arg4[%c1_45, %c0_46, %c0_47] : memref<2x1x16xf32, #tpu.memory_space<vmem>>, vector<1x1x16xf32>
    %70 = vector.shape_cast %69 : vector<1x1x16xf32> to vector<1x16xf32>
    %71 = vector.broadcast %70 : vector<1x16xf32> to vector<128x16xf32>
    %72 = arith.addf %68, %71 : vector<128x16xf32>
    %c1_48 = arith.constant 1 : index
    %c0_49 = arith.constant 0 : index
    %c0_50 = arith.constant 0 : index
    %73 = vector.load %arg5[%c1_48, %c0_49, %c0_50] : memref<2x32x16xf32, #tpu.memory_space<vmem>>, vector<1x32x16xf32>
    %74 = vector.shape_cast %73 : vector<1x32x16xf32> to vector<32x16xf32>
    %cst_51 = arith.constant dense<0.000000e+00> : vector<128x16xf32>
    %75 = tpu.matmul %24, %74, %cst_51 {dimension_numbers = #tpu.dot_dimension_numbers<[1], [0], [0], [1], [0, 0, 1, 1], [], []>} : vector<128x32xf32>, vector<32x16xf32>, vector<128x16xf32> -> vector<128x16xf32>
    %c1_52 = arith.constant 1 : index
    %c0_53 = arith.constant 0 : index
    %c0_54 = arith.constant 0 : index
    %76 = vector.load %arg6[%c1_52, %c0_53, %c0_54] : memref<2x1x16xf32, #tpu.memory_space<vmem>>, vector<1x1x16xf32>
    %77 = vector.shape_cast %76 : vector<1x1x16xf32> to vector<1x16xf32>
    %78 = vector.broadcast %77 : vector<1x16xf32> to vector<128x16xf32>
    %79 = arith.addf %75, %78 : vector<128x16xf32>
    %c1_55 = arith.constant 1 : index
    %c0_56 = arith.constant 0 : index
    %c0_57 = arith.constant 0 : index
    %80 = vector.load %arg7[%c1_55, %c0_56, %c0_57] : memref<2x32x16xf32, #tpu.memory_space<vmem>>, vector<1x32x16xf32>
    %81 = vector.shape_cast %80 : vector<1x32x16xf32> to vector<32x16xf32>
    %cst_58 = arith.constant dense<0.000000e+00> : vector<128x16xf32>
    %82 = tpu.matmul %24, %81, %cst_58 {dimension_numbers = #tpu.dot_dimension_numbers<[1], [0], [0], [1], [0, 0, 1, 1], [], []>} : vector<128x32xf32>, vector<32x16xf32>, vector<128x16xf32> -> vector<128x16xf32>
    %c1_59 = arith.constant 1 : index
    %c0_60 = arith.constant 0 : index
    %c0_61 = arith.constant 0 : index
    %83 = vector.load %arg8[%c1_59, %c0_60, %c0_61] : memref<2x1x16xf32, #tpu.memory_space<vmem>>, vector<1x1x16xf32>
    %84 = vector.shape_cast %83 : vector<1x1x16xf32> to vector<1x16xf32>
    %85 = vector.broadcast %84 : vector<1x16xf32> to vector<128x16xf32>
    %86 = arith.addf %82, %85 : vector<128x16xf32>
    %cst_62 = arith.constant dense<0.000000e+00> : vector<128x128xf32>
    %87 = tpu.matmul %72, %79, %cst_62 {dimension_numbers = #tpu.dot_dimension_numbers<[1], [1], [0], [0], [0, 0, 1, 0], [], []>} : vector<128x16xf32>, vector<128x16xf32>, vector<128x128xf32> -> vector<128x128xf32>
    %cst_63 = arith.constant 2.500000e-01 : f32
    %88 = vector.broadcast %cst_63 : f32 to vector<128x128xf32>
    %89 = arith.mulf %87, %88 : vector<128x128xf32>
    %c1_64 = arith.constant 1 : index
    %c0_65 = arith.constant 0 : index
    %c0_66 = arith.constant 0 : index
    %90 = vector.load %arg9[%c1_64, %c0_65, %c0_66] : memref<2x128x128xf32, #tpu.memory_space<vmem>>, vector<1x128x128xf32>
    %91 = vector.shape_cast %90 : vector<1x128x128xf32> to vector<128x128xf32>
    %92 = arith.addf %89, %91 : vector<128x128xf32>
    %cst_67 = arith.constant dense<0xFF800000> : vector<128xf32>
    %93 = vector.multi_reduction <maximumf>, %92, %cst_67 [1] : vector<128x128xf32> to vector<128xf32>
    %94 = vector.shape_cast %93 : vector<128xf32> to vector<128x1xf32>
    %95 = vector.broadcast %94 : vector<128x1xf32> to vector<128x128xf32>
    %96 = arith.subf %92, %95 : vector<128x128xf32>
    %97 = math.exp %96 : vector<128x128xf32>
    %cst_68 = arith.constant dense<0.000000e+00> : vector<128xf32>
    %98 = vector.multi_reduction <add>, %97, %cst_68 [1] : vector<128x128xf32> to vector<128xf32>
    %99 = vector.shape_cast %98 : vector<128xf32> to vector<128x1xf32>
    %100 = tpu.reciprocal %99 {approx = true} : vector<128x1xf32> -> vector<128x1xf32>
    %101 = vector.broadcast %100 : vector<128x1xf32> to vector<128x128xf32>
    %102 = arith.mulf %97, %101 : vector<128x128xf32>
    %cst_69 = arith.constant dense<0.000000e+00> : vector<128x16xf32>
    %103 = tpu.matmul %102, %86, %cst_69 {dimension_numbers = #tpu.dot_dimension_numbers<[1], [0], [0], [1], [0, 0, 1, 1], [], []>} : vector<128x128xf32>, vector<128x16xf32>, vector<128x16xf32> -> vector<128x16xf32>
    %c1_70 = arith.constant 1 : index
    %c0_71 = arith.constant 0 : index
    %c0_72 = arith.constant 0 : index
    %104 = vector.load %arg10[%c1_70, %c0_71, %c0_72] : memref<2x16x32xf32, #tpu.memory_space<vmem>>, vector<1x16x32xf32>
    %105 = vector.shape_cast %104 : vector<1x16x32xf32> to vector<16x32xf32>
    %cst_73 = arith.constant dense<0.000000e+00> : vector<128x32xf32>
    %106 = tpu.matmul %103, %105, %cst_73 {dimension_numbers = #tpu.dot_dimension_numbers<[1], [0], [0], [1], [0, 0, 1, 1], [], []>} : vector<128x16xf32>, vector<16x32xf32>, vector<128x32xf32> -> vector<128x32xf32>
    %107 = arith.addf %65, %106 : vector<128x32xf32>
    %c0_74 = arith.constant 0 : index
    %c0_75 = arith.constant 0 : index
    %108 = vector.load %arg11[%c0_74, %c0_75] : memref<1x32xf32, #tpu.memory_space<vmem>>, vector<1x32xf32>
    %109 = vector.broadcast %108 : vector<1x32xf32> to vector<128x32xf32>
    %110 = arith.addf %107, %109 : vector<128x32xf32>
    %c0_76 = arith.constant 0 : index
    %c0_77 = arith.constant 0 : index
    %111 = vector.load %arg12[%c0_76, %c0_77] : memref<20x32xf32, #tpu.memory_space<vmem>>, vector<20x32xf32>
    %cst_78 = arith.constant dense<0.000000e+00> : vector<20x128xf32>
    %112 = tpu.matmul %111, %110, %cst_78 {dimension_numbers = #tpu.dot_dimension_numbers<[1], [1], [0], [0], [0, 0, 1, 0], [], []>} : vector<20x32xf32>, vector<128x32xf32>, vector<20x128xf32> -> vector<20x128xf32>
    %cst_79 = arith.constant 0.176776692 : f32
    %113 = vector.broadcast %cst_79 : f32 to vector<20x128xf32>
    %114 = arith.mulf %112, %113 : vector<20x128xf32>
    %c0_80 = arith.constant 0 : index
    %c0_81 = arith.constant 0 : index
    %115 = vector.load %arg13[%c0_80, %c0_81] : memref<20x128xf32, #tpu.memory_space<vmem>>, vector<20x128xf32>
    %116 = arith.addf %114, %115 : vector<20x128xf32>
    %cst_82 = arith.constant dense<0xFF800000> : vector<20xf32>
    %117 = vector.multi_reduction <maximumf>, %116, %cst_82 [1] : vector<20x128xf32> to vector<20xf32>
    %118 = vector.shape_cast %117 : vector<20xf32> to vector<20x1xf32>
    %119 = vector.broadcast %118 : vector<20x1xf32> to vector<20x128xf32>
    %120 = arith.subf %116, %119 : vector<20x128xf32>
    %121 = math.exp %120 : vector<20x128xf32>
    %cst_83 = arith.constant dense<0.000000e+00> : vector<20xf32>
    %122 = vector.multi_reduction <add>, %121, %cst_83 [1] : vector<20x128xf32> to vector<20xf32>
    %123 = vector.shape_cast %122 : vector<20xf32> to vector<20x1xf32>
    %124 = tpu.reciprocal %123 {approx = true} : vector<20x1xf32> -> vector<20x1xf32>
    %125 = vector.broadcast %124 : vector<20x1xf32> to vector<20x128xf32>
    %126 = arith.mulf %121, %125 : vector<20x128xf32>
    %cst_84 = arith.constant dense<0.000000e+00> : vector<20x32xf32>
    %127 = tpu.matmul %126, %110, %cst_84 {dimension_numbers = #tpu.dot_dimension_numbers<[1], [0], [0], [1], [0, 0, 1, 1], [], []>} : vector<20x128xf32>, vector<128x32xf32>, vector<20x32xf32> -> vector<20x32xf32>
    %c0_85 = arith.constant 0 : index
    %c0_86 = arith.constant 0 : index
    %128 = vector.load %arg14[%c0_85, %c0_86] : memref<128x20xf32, #tpu.memory_space<vmem>>, vector<128x20xf32>
    %cst_87 = arith.constant dense<0.000000e+00> : vector<128x32xf32>
    %129 = tpu.matmul %128, %127, %cst_87 {dimension_numbers = #tpu.dot_dimension_numbers<[1], [0], [0], [1], [0, 0, 1, 1], [], []>} : vector<128x20xf32>, vector<20x32xf32>, vector<128x32xf32> -> vector<128x32xf32>
    %130 = arith.addf %110, %129 : vector<128x32xf32>
    %131 = arith.addf %0, %130 : vector<128x32xf32>
    %c0_88 = arith.constant 0 : index
    %c0_89 = arith.constant 0 : index
    %132 = vector.load %arg15[%c0_88, %c0_89] : memref<1x32xf32, #tpu.memory_space<vmem>>, vector<1x32xf32>
    %c0_90 = arith.constant 0 : index
    %c0_91 = arith.constant 0 : index
    %133 = vector.load %arg16[%c0_90, %c0_91] : memref<1x32xf32, #tpu.memory_space<vmem>>, vector<1x32xf32>
    %cst_92 = arith.constant dense<0.000000e+00> : vector<128xf32>
    %134 = vector.multi_reduction <add>, %131, %cst_92 [1] : vector<128x32xf32> to vector<128xf32>
    %135 = vector.shape_cast %134 : vector<128xf32> to vector<128x1xf32>
    %cst_93 = arith.constant 3.200000e+01 : f32
    %136 = vector.broadcast %cst_93 : f32 to vector<128x1xf32>
    %137 = arith.divf %135, %136 : vector<128x1xf32>
    %138 = vector.broadcast %137 : vector<128x1xf32> to vector<128x32xf32>
    %139 = arith.subf %131, %138 : vector<128x32xf32>
    %140 = arith.mulf %139, %139 : vector<128x32xf32>
    %cst_94 = arith.constant dense<0.000000e+00> : vector<128xf32>
    %141 = vector.multi_reduction <add>, %140, %cst_94 [1] : vector<128x32xf32> to vector<128xf32>
    %142 = vector.shape_cast %141 : vector<128xf32> to vector<128x1xf32>
    %cst_95 = arith.constant 3.200000e+01 : f32
    %143 = vector.broadcast %cst_95 : f32 to vector<128x1xf32>
    %144 = arith.divf %142, %143 : vector<128x1xf32>
    %145 = vector.broadcast %137 : vector<128x1xf32> to vector<128x32xf32>
    %146 = arith.subf %131, %145 : vector<128x32xf32>
    %cst_96 = arith.constant 9.99999974E-6 : f32
    %147 = vector.broadcast %cst_96 : f32 to vector<128x1xf32>
    %148 = arith.addf %144, %147 : vector<128x1xf32>
    %149 = math.rsqrt %148 : vector<128x1xf32>
    %150 = vector.broadcast %149 : vector<128x1xf32> to vector<128x32xf32>
    %151 = arith.mulf %146, %150 : vector<128x32xf32>
    %152 = vector.broadcast %132 : vector<1x32xf32> to vector<128x32xf32>
    %153 = arith.mulf %151, %152 : vector<128x32xf32>
    %154 = vector.broadcast %133 : vector<1x32xf32> to vector<128x32xf32>
    %155 = arith.addf %153, %154 : vector<128x32xf32>
    %c0_97 = arith.constant 0 : index
    %c0_98 = arith.constant 0 : index
    %156 = vector.load %arg17[%c0_97, %c0_98] : memref<32x128xf32, #tpu.memory_space<vmem>>, vector<32x128xf32>
    %cst_99 = arith.constant dense<0.000000e+00> : vector<128x128xf32>
    %157 = tpu.matmul %155, %156, %cst_99 {dimension_numbers = #tpu.dot_dimension_numbers<[1], [0], [0], [1], [0, 0, 1, 1], [], []>} : vector<128x32xf32>, vector<32x128xf32>, vector<128x128xf32> -> vector<128x128xf32>
    %c0_100 = arith.constant 0 : index
    %c0_101 = arith.constant 0 : index
    %158 = vector.load %arg18[%c0_100, %c0_101] : memref<1x128xf32, #tpu.memory_space<vmem>>, vector<1x128xf32>
    %159 = vector.broadcast %158 : vector<1x128xf32> to vector<128x128xf32>
    %160 = arith.addf %157, %159 : vector<128x128xf32>
    %cst_102 = arith.constant 5.000000e-01 : f32
    %161 = vector.broadcast %cst_102 : f32 to vector<128x128xf32>
    %162 = arith.mulf %161, %160 : vector<128x128xf32>
    %cst_103 = arith.constant 0.707106769 : f32
    %163 = vector.broadcast %cst_103 : f32 to vector<128x128xf32>
    %164 = arith.mulf %160, %163 : vector<128x128xf32>
    %165 = math.erf %164 : vector<128x128xf32>
    %cst_104 = arith.constant 1.000000e+00 : f32
    %166 = vector.broadcast %cst_104 : f32 to vector<128x128xf32>
    %167 = arith.addf %166, %165 : vector<128x128xf32>
    %168 = arith.mulf %162, %167 : vector<128x128xf32>
    %c0_105 = arith.constant 0 : index
    %c0_106 = arith.constant 0 : index
    %169 = vector.load %arg19[%c0_105, %c0_106] : memref<128x32xf32, #tpu.memory_space<vmem>>, vector<128x32xf32>
    %cst_107 = arith.constant dense<0.000000e+00> : vector<128x32xf32>
    %170 = tpu.matmul %168, %169, %cst_107 {dimension_numbers = #tpu.dot_dimension_numbers<[1], [0], [0], [1], [0, 0, 1, 1], [], []>} : vector<128x128xf32>, vector<128x32xf32>, vector<128x32xf32> -> vector<128x32xf32>
    %c0_108 = arith.constant 0 : index
    %c0_109 = arith.constant 0 : index
    %171 = vector.load %arg20[%c0_108, %c0_109] : memref<1x32xf32, #tpu.memory_space<vmem>>, vector<1x32xf32>
    %172 = vector.broadcast %171 : vector<1x32xf32> to vector<128x32xf32>
    %173 = arith.addf %170, %172 : vector<128x32xf32>
    %c0_110 = arith.constant 0 : index
    %c0_111 = arith.constant 0 : index
    %174 = vector.load %arg21[%c0_110, %c0_111] : memref<32x10xf32, #tpu.memory_space<vmem>>, vector<32x10xf32>
    %cst_112 = arith.constant dense<0.000000e+00> : vector<128x10xf32>
    %175 = tpu.matmul %131, %174, %cst_112 {dimension_numbers = #tpu.dot_dimension_numbers<[1], [0], [0], [1], [0, 0, 1, 1], [], []>} : vector<128x32xf32>, vector<32x10xf32>, vector<128x10xf32> -> vector<128x10xf32>
    %c0_113 = arith.constant 0 : index
    %c0_114 = arith.constant 0 : index
    %176 = vector.load %arg22[%c0_113, %c0_114] : memref<1x10xf32, #tpu.memory_space<vmem>>, vector<1x10xf32>
    %177 = vector.broadcast %176 : vector<1x10xf32> to vector<128x10xf32>
    %178 = arith.addf %175, %177 : vector<128x10xf32>
    %cst_115 = arith.constant 1.702000e+00 : f32
    %179 = vector.broadcast %cst_115 : f32 to vector<128x10xf32>
    %180 = arith.mulf %179, %178 : vector<128x10xf32>
    %181 = arith.negf %180 : vector<128x10xf32>
    %182 = math.exp %181 : vector<128x10xf32>
    %cst_116 = arith.constant 1.000000e+00 : f32
    %183 = vector.broadcast %cst_116 : f32 to vector<128x10xf32>
    %184 = arith.addf %183, %182 : vector<128x10xf32>
    %185 = arith.divf %183, %184 : vector<128x10xf32>
    %186 = arith.mulf %178, %185 : vector<128x10xf32>
    %c0_117 = arith.constant 0 : index
    %c0_118 = arith.constant 0 : index
    %187 = vector.load %arg23[%c0_117, %c0_118] : memref<10x32xf32, #tpu.memory_space<vmem>>, vector<10x32xf32>
    %cst_119 = arith.constant dense<0.000000e+00> : vector<128x32xf32>
    %188 = tpu.matmul %186, %187, %cst_119 {dimension_numbers = #tpu.dot_dimension_numbers<[1], [0], [0], [1], [0, 0, 1, 1], [], []>} : vector<128x10xf32>, vector<10x32xf32>, vector<128x32xf32> -> vector<128x32xf32>
    %c0_120 = arith.constant 0 : index
    %c0_121 = arith.constant 0 : index
    %189 = vector.load %arg24[%c0_120, %c0_121] : memref<1x32xf32, #tpu.memory_space<vmem>>, vector<1x32xf32>
    %190 = vector.broadcast %189 : vector<1x32xf32> to vector<128x32xf32>
    %191 = arith.addf %188, %190 : vector<128x32xf32>
    %c0_122 = arith.constant 0 : index
    %c0_123 = arith.constant 0 : index
    %192 = vector.load %arg25[%c0_122, %c0_123] : memref<1x1xf32, #tpu.memory_space<vmem>>, vector<1x1xf32>
    %193 = vector.broadcast %192 : vector<1x1xf32> to vector<128x32xf32>
    %194 = arith.mulf %191, %193 : vector<128x32xf32>
    %195 = arith.addf %131, %173 : vector<128x32xf32>
    %196 = arith.addf %195, %194 : vector<128x32xf32>
    %c0_124 = arith.constant 0 : index
    %c0_125 = arith.constant 0 : index
    %197 = vector.load %arg26[%c0_124, %c0_125] : memref<128x32xf32, #tpu.memory_space<vmem>>, vector<128x32xf32>
    tpu.vector_store %arg26[%c0_124, %c0_125], %196 {strides = array<i32>} : memref<128x32xf32, #tpu.memory_space<vmem>>, vector<128x32xf32>,
    return
  }
}

module attributes {stable_mosaic.version = 11 : i64} {
  func.func @_merge_kernel(%arg0: memref<32x128xf32, #tpu.memory_space<vmem>>, %arg1: memref<1x128xf32, #tpu.memory_space<vmem>>, %arg2: memref<1x128xf32, #tpu.memory_space<vmem>>, %arg3: memref<128x64xf32, #tpu.memory_space<vmem>>, %arg4: memref<32x64xf32, #tpu.memory_space<vmem>>) attributes {dimension_semantics = [], scalar_prefetch = 0 : i64, scratch_operands = 0 : i64, tpu.core_type = #tpu.core_type<tc>} {
    %c0 = arith.constant 0 : index
    %c0_0 = arith.constant 0 : index
    %0 = vector.load %arg0[%c0, %c0_0] : memref<32x128xf32, #tpu.memory_space<vmem>>, vector<32x128xf32>
    %c0_1 = arith.constant 0 : index
    %c0_2 = arith.constant 0 : index
    %1 = vector.load %arg1[%c0_1, %c0_2] : memref<1x128xf32, #tpu.memory_space<vmem>>, vector<1x128xf32>
    %c0_3 = arith.constant 0 : index
    %c0_4 = arith.constant 0 : index
    %2 = vector.load %arg2[%c0_3, %c0_4] : memref<1x128xf32, #tpu.memory_space<vmem>>, vector<1x128xf32>
    %cst = arith.constant dense<0.000000e+00> : vector<32xf32>
    %3 = vector.multi_reduction <add>, %0, %cst [1] : vector<32x128xf32> to vector<32xf32>
    %4 = vector.shape_cast %3 : vector<32xf32> to vector<32x1xf32>
    %cst_5 = arith.constant 1.280000e+02 : f32
    %5 = vector.broadcast %cst_5 : f32 to vector<32x1xf32>
    %6 = arith.divf %4, %5 : vector<32x1xf32>
    %7 = vector.broadcast %6 : vector<32x1xf32> to vector<32x128xf32>
    %8 = arith.subf %0, %7 : vector<32x128xf32>
    %9 = arith.mulf %8, %8 : vector<32x128xf32>
    %cst_6 = arith.constant dense<0.000000e+00> : vector<32xf32>
    %10 = vector.multi_reduction <add>, %9, %cst_6 [1] : vector<32x128xf32> to vector<32xf32>
    %11 = vector.shape_cast %10 : vector<32xf32> to vector<32x1xf32>
    %cst_7 = arith.constant 1.280000e+02 : f32
    %12 = vector.broadcast %cst_7 : f32 to vector<32x1xf32>
    %13 = arith.divf %11, %12 : vector<32x1xf32>
    %14 = vector.broadcast %6 : vector<32x1xf32> to vector<32x128xf32>
    %15 = arith.subf %0, %14 : vector<32x128xf32>
    %cst_8 = arith.constant 9.99999974E-6 : f32
    %16 = vector.broadcast %cst_8 : f32 to vector<32x1xf32>
    %17 = arith.addf %13, %16 : vector<32x1xf32>
    %18 = math.rsqrt %17 : vector<32x1xf32>
    %19 = vector.broadcast %18 : vector<32x1xf32> to vector<32x128xf32>
    %20 = arith.mulf %15, %19 : vector<32x128xf32>
    %21 = vector.broadcast %1 : vector<1x128xf32> to vector<32x128xf32>
    %22 = arith.mulf %20, %21 : vector<32x128xf32>
    %23 = vector.broadcast %2 : vector<1x128xf32> to vector<32x128xf32>
    %24 = arith.addf %22, %23 : vector<32x128xf32>
    %c0_9 = arith.constant 0 : index
    %c0_10 = arith.constant 0 : index
    %25 = vector.load %arg3[%c0_9, %c0_10] : memref<128x64xf32, #tpu.memory_space<vmem>>, vector<128x64xf32>
    %cst_11 = arith.constant dense<0.000000e+00> : vector<32x64xf32>
    %26 = tpu.matmul %24, %25, %cst_11 {dimension_numbers = #tpu.dot_dimension_numbers<[1], [0], [0], [1], [0, 0, 1, 1], [], []>} : vector<32x128xf32>, vector<128x64xf32>, vector<32x64xf32> -> vector<32x64xf32>
    %c0_12 = arith.constant 0 : index
    %c0_13 = arith.constant 0 : index
    %27 = vector.load %arg4[%c0_12, %c0_13] : memref<32x64xf32, #tpu.memory_space<vmem>>, vector<32x64xf32>
    tpu.vector_store %arg4[%c0_12, %c0_13], %26 {strides = array<i32>} : memref<32x64xf32, #tpu.memory_space<vmem>>, vector<32x64xf32>,
    return
  }
}

module attributes {stable_mosaic.version = 11 : i64} {
  func.func @_head_kernel(%arg0: memref<32x64xf32, #tpu.memory_space<vmem>>, %arg1: memref<1x64xf32, #tpu.memory_space<vmem>>, %arg2: memref<1x64xf32, #tpu.memory_space<vmem>>, %arg3: memref<2x32xf32, #tpu.memory_space<vmem>>, %arg4: memref<2x64xf32, #tpu.memory_space<vmem>>) attributes {dimension_semantics = [], scalar_prefetch = 0 : i64, scratch_operands = 0 : i64, tpu.core_type = #tpu.core_type<tc>} {
    %c0 = arith.constant 0 : index
    %c0_0 = arith.constant 0 : index
    %0 = vector.load %arg0[%c0, %c0_0] : memref<32x64xf32, #tpu.memory_space<vmem>>, vector<32x64xf32>
    %c0_1 = arith.constant 0 : index
    %c0_2 = arith.constant 0 : index
    %1 = vector.load %arg1[%c0_1, %c0_2] : memref<1x64xf32, #tpu.memory_space<vmem>>, vector<1x64xf32>
    %c0_3 = arith.constant 0 : index
    %c0_4 = arith.constant 0 : index
    %2 = vector.load %arg2[%c0_3, %c0_4] : memref<1x64xf32, #tpu.memory_space<vmem>>, vector<1x64xf32>
    %cst = arith.constant dense<0.000000e+00> : vector<32xf32>
    %3 = vector.multi_reduction <add>, %0, %cst [1] : vector<32x64xf32> to vector<32xf32>
    %4 = vector.shape_cast %3 : vector<32xf32> to vector<32x1xf32>
    %cst_5 = arith.constant 6.400000e+01 : f32
    %5 = vector.broadcast %cst_5 : f32 to vector<32x1xf32>
    %6 = arith.divf %4, %5 : vector<32x1xf32>
    %7 = vector.broadcast %6 : vector<32x1xf32> to vector<32x64xf32>
    %8 = arith.subf %0, %7 : vector<32x64xf32>
    %9 = arith.mulf %8, %8 : vector<32x64xf32>
    %cst_6 = arith.constant dense<0.000000e+00> : vector<32xf32>
    %10 = vector.multi_reduction <add>, %9, %cst_6 [1] : vector<32x64xf32> to vector<32xf32>
    %11 = vector.shape_cast %10 : vector<32xf32> to vector<32x1xf32>
    %cst_7 = arith.constant 6.400000e+01 : f32
    %12 = vector.broadcast %cst_7 : f32 to vector<32x1xf32>
    %13 = arith.divf %11, %12 : vector<32x1xf32>
    %14 = vector.broadcast %6 : vector<32x1xf32> to vector<32x64xf32>
    %15 = arith.subf %0, %14 : vector<32x64xf32>
    %cst_8 = arith.constant 9.99999974E-6 : f32
    %16 = vector.broadcast %cst_8 : f32 to vector<32x1xf32>
    %17 = arith.addf %13, %16 : vector<32x1xf32>
    %18 = math.rsqrt %17 : vector<32x1xf32>
    %19 = vector.broadcast %18 : vector<32x1xf32> to vector<32x64xf32>
    %20 = arith.mulf %15, %19 : vector<32x64xf32>
    %21 = vector.broadcast %1 : vector<1x64xf32> to vector<32x64xf32>
    %22 = arith.mulf %20, %21 : vector<32x64xf32>
    %23 = vector.broadcast %2 : vector<1x64xf32> to vector<32x64xf32>
    %24 = arith.addf %22, %23 : vector<32x64xf32>
    %c0_9 = arith.constant 0 : index
    %c0_10 = arith.constant 0 : index
    %25 = vector.load %arg3[%c0_9, %c0_10] : memref<2x32xf32, #tpu.memory_space<vmem>>, vector<2x32xf32>
    %cst_11 = arith.constant dense<0.000000e+00> : vector<2x64xf32>
    %26 = tpu.matmul %25, %24, %cst_11 {dimension_numbers = #tpu.dot_dimension_numbers<[1], [0], [0], [1], [0, 0, 1, 1], [], []>} : vector<2x32xf32>, vector<32x64xf32>, vector<2x64xf32> -> vector<2x64xf32>
    %c0_12 = arith.constant 0 : index
    %c0_13 = arith.constant 0 : index
    %27 = vector.load %arg4[%c0_12, %c0_13] : memref<2x64xf32, #tpu.memory_space<vmem>>, vector<2x64xf32>
    tpu.vector_store %arg4[%c0_12, %c0_13], %26 {strides = array<i32>} : memref<2x64xf32, #tpu.memory_space<vmem>>, vector<2x64xf32>,
    return
  }
}

module attributes {stable_mosaic.version = 11 : i64} {
  func.func @_block_kernel(%arg0: memref<32x64xf32, #tpu.memory_space<vmem>>, %arg1: memref<1x64xf32, #tpu.memory_space<vmem>>, %arg2: memref<1x64xf32, #tpu.memory_space<vmem>>, %arg3: memref<4x64x16xf32, #tpu.memory_space<vmem>>, %arg4: memref<4x1x16xf32, #tpu.memory_space<vmem>>, %arg5: memref<4x64x16xf32, #tpu.memory_space<vmem>>, %arg6: memref<4x1x16xf32, #tpu.memory_space<vmem>>, %arg7: memref<4x64x16xf32, #tpu.memory_space<vmem>>, %arg8: memref<4x1x16xf32, #tpu.memory_space<vmem>>, %arg9: memref<4x32x32xf32, #tpu.memory_space<vmem>>, %arg10: memref<4x16x64xf32, #tpu.memory_space<vmem>>, %arg11: memref<1x64xf32, #tpu.memory_space<vmem>>, %arg12: memref<20x64xf32, #tpu.memory_space<vmem>>, %arg13: memref<20x32xf32, #tpu.memory_space<vmem>>, %arg14: memref<32x20xf32, #tpu.memory_space<vmem>>, %arg15: memref<1x64xf32, #tpu.memory_space<vmem>>, %arg16: memref<1x64xf32, #tpu.memory_space<vmem>>, %arg17: memref<64x256xf32, #tpu.memory_space<vmem>>, %arg18: memref<1x256xf32, #tpu.memory_space<vmem>>, %arg19: memref<256x64xf32, #tpu.memory_space<vmem>>, %arg20: memref<1x64xf32, #tpu.memory_space<vmem>>, %arg21: memref<64x10xf32, #tpu.memory_space<vmem>>, %arg22: memref<1x10xf32, #tpu.memory_space<vmem>>, %arg23: memref<10x64xf32, #tpu.memory_space<vmem>>, %arg24: memref<1x64xf32, #tpu.memory_space<vmem>>, %arg25: memref<1x1xf32, #tpu.memory_space<vmem>>, %arg26: memref<32x64xf32, #tpu.memory_space<vmem>>) attributes {dimension_semantics = [], scalar_prefetch = 0 : i64, scratch_operands = 0 : i64, tpu.core_type = #tpu.core_type<tc>} {
    %c0 = arith.constant 0 : index
    %c0_0 = arith.constant 0 : index
    %0 = vector.load %arg0[%c0, %c0_0] : memref<32x64xf32, #tpu.memory_space<vmem>>, vector<32x64xf32>
    %c0_1 = arith.constant 0 : index
    %c0_2 = arith.constant 0 : index
    %1 = vector.load %arg1[%c0_1, %c0_2] : memref<1x64xf32, #tpu.memory_space<vmem>>, vector<1x64xf32>
    %c0_3 = arith.constant 0 : index
    %c0_4 = arith.constant 0 : index
    %2 = vector.load %arg2[%c0_3, %c0_4] : memref<1x64xf32, #tpu.memory_space<vmem>>, vector<1x64xf32>
    %cst = arith.constant dense<0.000000e+00> : vector<32xf32>
    %3 = vector.multi_reduction <add>, %0, %cst [1] : vector<32x64xf32> to vector<32xf32>
    %4 = vector.shape_cast %3 : vector<32xf32> to vector<32x1xf32>
    %cst_5 = arith.constant 6.400000e+01 : f32
    %5 = vector.broadcast %cst_5 : f32 to vector<32x1xf32>
    %6 = arith.divf %4, %5 : vector<32x1xf32>
    %7 = vector.broadcast %6 : vector<32x1xf32> to vector<32x64xf32>
    %8 = arith.subf %0, %7 : vector<32x64xf32>
    %9 = arith.mulf %8, %8 : vector<32x64xf32>
    %cst_6 = arith.constant dense<0.000000e+00> : vector<32xf32>
    %10 = vector.multi_reduction <add>, %9, %cst_6 [1] : vector<32x64xf32> to vector<32xf32>
    %11 = vector.shape_cast %10 : vector<32xf32> to vector<32x1xf32>
    %cst_7 = arith.constant 6.400000e+01 : f32
    %12 = vector.broadcast %cst_7 : f32 to vector<32x1xf32>
    %13 = arith.divf %11, %12 : vector<32x1xf32>
    %14 = vector.broadcast %6 : vector<32x1xf32> to vector<32x64xf32>
    %15 = arith.subf %0, %14 : vector<32x64xf32>
    %cst_8 = arith.constant 9.99999974E-6 : f32
    %16 = vector.broadcast %cst_8 : f32 to vector<32x1xf32>
    %17 = arith.addf %13, %16 : vector<32x1xf32>
    %18 = math.rsqrt %17 : vector<32x1xf32>
    %19 = vector.broadcast %18 : vector<32x1xf32> to vector<32x64xf32>
    %20 = arith.mulf %15, %19 : vector<32x64xf32>
    %21 = vector.broadcast %1 : vector<1x64xf32> to vector<32x64xf32>
    %22 = arith.mulf %20, %21 : vector<32x64xf32>
    %23 = vector.broadcast %2 : vector<1x64xf32> to vector<32x64xf32>
    %24 = arith.addf %22, %23 : vector<32x64xf32>
    %c0_9 = arith.constant 0 : index
    %c0_10 = arith.constant 0 : index
    %c0_11 = arith.constant 0 : index
    %25 = vector.load %arg3[%c0_9, %c0_10, %c0_11] : memref<4x64x16xf32, #tpu.memory_space<vmem>>, vector<1x64x16xf32>
    %26 = vector.shape_cast %25 : vector<1x64x16xf32> to vector<64x16xf32>
    %cst_12 = arith.constant dense<0.000000e+00> : vector<32x16xf32>
    %27 = tpu.matmul %24, %26, %cst_12 {dimension_numbers = #tpu.dot_dimension_numbers<[1], [0], [0], [1], [0, 0, 1, 1], [], []>} : vector<32x64xf32>, vector<64x16xf32>, vector<32x16xf32> -> vector<32x16xf32>
    %c0_13 = arith.constant 0 : index
    %c0_14 = arith.constant 0 : index
    %c0_15 = arith.constant 0 : index
    %28 = vector.load %arg4[%c0_13, %c0_14, %c0_15] : memref<4x1x16xf32, #tpu.memory_space<vmem>>, vector<1x1x16xf32>
    %29 = vector.shape_cast %28 : vector<1x1x16xf32> to vector<1x16xf32>
    %30 = vector.broadcast %29 : vector<1x16xf32> to vector<32x16xf32>
    %31 = arith.addf %27, %30 : vector<32x16xf32>
    %c0_16 = arith.constant 0 : index
    %c0_17 = arith.constant 0 : index
    %c0_18 = arith.constant 0 : index
    %32 = vector.load %arg5[%c0_16, %c0_17, %c0_18] : memref<4x64x16xf32, #tpu.memory_space<vmem>>, vector<1x64x16xf32>
    %33 = vector.shape_cast %32 : vector<1x64x16xf32> to vector<64x16xf32>
    %cst_19 = arith.constant dense<0.000000e+00> : vector<32x16xf32>
    %34 = tpu.matmul %24, %33, %cst_19 {dimension_numbers = #tpu.dot_dimension_numbers<[1], [0], [0], [1], [0, 0, 1, 1], [], []>} : vector<32x64xf32>, vector<64x16xf32>, vector<32x16xf32> -> vector<32x16xf32>
    %c0_20 = arith.constant 0 : index
    %c0_21 = arith.constant 0 : index
    %c0_22 = arith.constant 0 : index
    %35 = vector.load %arg6[%c0_20, %c0_21, %c0_22] : memref<4x1x16xf32, #tpu.memory_space<vmem>>, vector<1x1x16xf32>
    %36 = vector.shape_cast %35 : vector<1x1x16xf32> to vector<1x16xf32>
    %37 = vector.broadcast %36 : vector<1x16xf32> to vector<32x16xf32>
    %38 = arith.addf %34, %37 : vector<32x16xf32>
    %c0_23 = arith.constant 0 : index
    %c0_24 = arith.constant 0 : index
    %c0_25 = arith.constant 0 : index
    %39 = vector.load %arg7[%c0_23, %c0_24, %c0_25] : memref<4x64x16xf32, #tpu.memory_space<vmem>>, vector<1x64x16xf32>
    %40 = vector.shape_cast %39 : vector<1x64x16xf32> to vector<64x16xf32>
    %cst_26 = arith.constant dense<0.000000e+00> : vector<32x16xf32>
    %41 = tpu.matmul %24, %40, %cst_26 {dimension_numbers = #tpu.dot_dimension_numbers<[1], [0], [0], [1], [0, 0, 1, 1], [], []>} : vector<32x64xf32>, vector<64x16xf32>, vector<32x16xf32> -> vector<32x16xf32>
    %c0_27 = arith.constant 0 : index
    %c0_28 = arith.constant 0 : index
    %c0_29 = arith.constant 0 : index
    %42 = vector.load %arg8[%c0_27, %c0_28, %c0_29] : memref<4x1x16xf32, #tpu.memory_space<vmem>>, vector<1x1x16xf32>
    %43 = vector.shape_cast %42 : vector<1x1x16xf32> to vector<1x16xf32>
    %44 = vector.broadcast %43 : vector<1x16xf32> to vector<32x16xf32>
    %45 = arith.addf %41, %44 : vector<32x16xf32>
    %cst_30 = arith.constant dense<0.000000e+00> : vector<32x32xf32>
    %46 = tpu.matmul %31, %38, %cst_30 {dimension_numbers = #tpu.dot_dimension_numbers<[1], [1], [0], [0], [0, 0, 1, 0], [], []>} : vector<32x16xf32>, vector<32x16xf32>, vector<32x32xf32> -> vector<32x32xf32>
    %cst_31 = arith.constant 2.500000e-01 : f32
    %47 = vector.broadcast %cst_31 : f32 to vector<32x32xf32>
    %48 = arith.mulf %46, %47 : vector<32x32xf32>
    %c0_32 = arith.constant 0 : index
    %c0_33 = arith.constant 0 : index
    %c0_34 = arith.constant 0 : index
    %49 = vector.load %arg9[%c0_32, %c0_33, %c0_34] : memref<4x32x32xf32, #tpu.memory_space<vmem>>, vector<1x32x32xf32>
    %50 = vector.shape_cast %49 : vector<1x32x32xf32> to vector<32x32xf32>
    %51 = arith.addf %48, %50 : vector<32x32xf32>
    %cst_35 = arith.constant dense<0xFF800000> : vector<32xf32>
    %52 = vector.multi_reduction <maximumf>, %51, %cst_35 [1] : vector<32x32xf32> to vector<32xf32>
    %53 = vector.shape_cast %52 : vector<32xf32> to vector<32x1xf32>
    %54 = vector.broadcast %53 : vector<32x1xf32> to vector<32x32xf32>
    %55 = arith.subf %51, %54 : vector<32x32xf32>
    %56 = math.exp %55 : vector<32x32xf32>
    %cst_36 = arith.constant dense<0.000000e+00> : vector<32xf32>
    %57 = vector.multi_reduction <add>, %56, %cst_36 [1] : vector<32x32xf32> to vector<32xf32>
    %58 = vector.shape_cast %57 : vector<32xf32> to vector<32x1xf32>
    %59 = tpu.reciprocal %58 {approx = true} : vector<32x1xf32> -> vector<32x1xf32>
    %60 = vector.broadcast %59 : vector<32x1xf32> to vector<32x32xf32>
    %61 = arith.mulf %56, %60 : vector<32x32xf32>
    %cst_37 = arith.constant dense<0.000000e+00> : vector<32x16xf32>
    %62 = tpu.matmul %61, %45, %cst_37 {dimension_numbers = #tpu.dot_dimension_numbers<[1], [0], [0], [1], [0, 0, 1, 1], [], []>} : vector<32x32xf32>, vector<32x16xf32>, vector<32x16xf32> -> vector<32x16xf32>
    %c0_38 = arith.constant 0 : index
    %c0_39 = arith.constant 0 : index
    %c0_40 = arith.constant 0 : index
    %63 = vector.load %arg10[%c0_38, %c0_39, %c0_40] : memref<4x16x64xf32, #tpu.memory_space<vmem>>, vector<1x16x64xf32>
    %64 = vector.shape_cast %63 : vector<1x16x64xf32> to vector<16x64xf32>
    %cst_41 = arith.constant dense<0.000000e+00> : vector<32x64xf32>
    %65 = tpu.matmul %62, %64, %cst_41 {dimension_numbers = #tpu.dot_dimension_numbers<[1], [0], [0], [1], [0, 0, 1, 1], [], []>} : vector<32x16xf32>, vector<16x64xf32>, vector<32x64xf32> -> vector<32x64xf32>
    %c1 = arith.constant 1 : index
    %c0_42 = arith.constant 0 : index
    %c0_43 = arith.constant 0 : index
    %66 = vector.load %arg3[%c1, %c0_42, %c0_43] : memref<4x64x16xf32, #tpu.memory_space<vmem>>, vector<1x64x16xf32>
    %67 = vector.shape_cast %66 : vector<1x64x16xf32> to vector<64x16xf32>
    %cst_44 = arith.constant dense<0.000000e+00> : vector<32x16xf32>
    %68 = tpu.matmul %24, %67, %cst_44 {dimension_numbers = #tpu.dot_dimension_numbers<[1], [0], [0], [1], [0, 0, 1, 1], [], []>} : vector<32x64xf32>, vector<64x16xf32>, vector<32x16xf32> -> vector<32x16xf32>
    %c1_45 = arith.constant 1 : index
    %c0_46 = arith.constant 0 : index
    %c0_47 = arith.constant 0 : index
    %69 = vector.load %arg4[%c1_45, %c0_46, %c0_47] : memref<4x1x16xf32, #tpu.memory_space<vmem>>, vector<1x1x16xf32>
    %70 = vector.shape_cast %69 : vector<1x1x16xf32> to vector<1x16xf32>
    %71 = vector.broadcast %70 : vector<1x16xf32> to vector<32x16xf32>
    %72 = arith.addf %68, %71 : vector<32x16xf32>
    %c1_48 = arith.constant 1 : index
    %c0_49 = arith.constant 0 : index
    %c0_50 = arith.constant 0 : index
    %73 = vector.load %arg5[%c1_48, %c0_49, %c0_50] : memref<4x64x16xf32, #tpu.memory_space<vmem>>, vector<1x64x16xf32>
    %74 = vector.shape_cast %73 : vector<1x64x16xf32> to vector<64x16xf32>
    %cst_51 = arith.constant dense<0.000000e+00> : vector<32x16xf32>
    %75 = tpu.matmul %24, %74, %cst_51 {dimension_numbers = #tpu.dot_dimension_numbers<[1], [0], [0], [1], [0, 0, 1, 1], [], []>} : vector<32x64xf32>, vector<64x16xf32>, vector<32x16xf32> -> vector<32x16xf32>
    %c1_52 = arith.constant 1 : index
    %c0_53 = arith.constant 0 : index
    %c0_54 = arith.constant 0 : index
    %76 = vector.load %arg6[%c1_52, %c0_53, %c0_54] : memref<4x1x16xf32, #tpu.memory_space<vmem>>, vector<1x1x16xf32>
    %77 = vector.shape_cast %76 : vector<1x1x16xf32> to vector<1x16xf32>
    %78 = vector.broadcast %77 : vector<1x16xf32> to vector<32x16xf32>
    %79 = arith.addf %75, %78 : vector<32x16xf32>
    %c1_55 = arith.constant 1 : index
    %c0_56 = arith.constant 0 : index
    %c0_57 = arith.constant 0 : index
    %80 = vector.load %arg7[%c1_55, %c0_56, %c0_57] : memref<4x64x16xf32, #tpu.memory_space<vmem>>, vector<1x64x16xf32>
    %81 = vector.shape_cast %80 : vector<1x64x16xf32> to vector<64x16xf32>
    %cst_58 = arith.constant dense<0.000000e+00> : vector<32x16xf32>
    %82 = tpu.matmul %24, %81, %cst_58 {dimension_numbers = #tpu.dot_dimension_numbers<[1], [0], [0], [1], [0, 0, 1, 1], [], []>} : vector<32x64xf32>, vector<64x16xf32>, vector<32x16xf32> -> vector<32x16xf32>
    %c1_59 = arith.constant 1 : index
    %c0_60 = arith.constant 0 : index
    %c0_61 = arith.constant 0 : index
    %83 = vector.load %arg8[%c1_59, %c0_60, %c0_61] : memref<4x1x16xf32, #tpu.memory_space<vmem>>, vector<1x1x16xf32>
    %84 = vector.shape_cast %83 : vector<1x1x16xf32> to vector<1x16xf32>
    %85 = vector.broadcast %84 : vector<1x16xf32> to vector<32x16xf32>
    %86 = arith.addf %82, %85 : vector<32x16xf32>
    %cst_62 = arith.constant dense<0.000000e+00> : vector<32x32xf32>
    %87 = tpu.matmul %72, %79, %cst_62 {dimension_numbers = #tpu.dot_dimension_numbers<[1], [1], [0], [0], [0, 0, 1, 0], [], []>} : vector<32x16xf32>, vector<32x16xf32>, vector<32x32xf32> -> vector<32x32xf32>
    %cst_63 = arith.constant 2.500000e-01 : f32
    %88 = vector.broadcast %cst_63 : f32 to vector<32x32xf32>
    %89 = arith.mulf %87, %88 : vector<32x32xf32>
    %c1_64 = arith.constant 1 : index
    %c0_65 = arith.constant 0 : index
    %c0_66 = arith.constant 0 : index
    %90 = vector.load %arg9[%c1_64, %c0_65, %c0_66] : memref<4x32x32xf32, #tpu.memory_space<vmem>>, vector<1x32x32xf32>
    %91 = vector.shape_cast %90 : vector<1x32x32xf32> to vector<32x32xf32>
    %92 = arith.addf %89, %91 : vector<32x32xf32>
    %cst_67 = arith.constant dense<0xFF800000> : vector<32xf32>
    %93 = vector.multi_reduction <maximumf>, %92, %cst_67 [1] : vector<32x32xf32> to vector<32xf32>
    %94 = vector.shape_cast %93 : vector<32xf32> to vector<32x1xf32>
    %95 = vector.broadcast %94 : vector<32x1xf32> to vector<32x32xf32>
    %96 = arith.subf %92, %95 : vector<32x32xf32>
    %97 = math.exp %96 : vector<32x32xf32>
    %cst_68 = arith.constant dense<0.000000e+00> : vector<32xf32>
    %98 = vector.multi_reduction <add>, %97, %cst_68 [1] : vector<32x32xf32> to vector<32xf32>
    %99 = vector.shape_cast %98 : vector<32xf32> to vector<32x1xf32>
    %100 = tpu.reciprocal %99 {approx = true} : vector<32x1xf32> -> vector<32x1xf32>
    %101 = vector.broadcast %100 : vector<32x1xf32> to vector<32x32xf32>
    %102 = arith.mulf %97, %101 : vector<32x32xf32>
    %cst_69 = arith.constant dense<0.000000e+00> : vector<32x16xf32>
    %103 = tpu.matmul %102, %86, %cst_69 {dimension_numbers = #tpu.dot_dimension_numbers<[1], [0], [0], [1], [0, 0, 1, 1], [], []>} : vector<32x32xf32>, vector<32x16xf32>, vector<32x16xf32> -> vector<32x16xf32>
    %c1_70 = arith.constant 1 : index
    %c0_71 = arith.constant 0 : index
    %c0_72 = arith.constant 0 : index
    %104 = vector.load %arg10[%c1_70, %c0_71, %c0_72] : memref<4x16x64xf32, #tpu.memory_space<vmem>>, vector<1x16x64xf32>
    %105 = vector.shape_cast %104 : vector<1x16x64xf32> to vector<16x64xf32>
    %cst_73 = arith.constant dense<0.000000e+00> : vector<32x64xf32>
    %106 = tpu.matmul %103, %105, %cst_73 {dimension_numbers = #tpu.dot_dimension_numbers<[1], [0], [0], [1], [0, 0, 1, 1], [], []>} : vector<32x16xf32>, vector<16x64xf32>, vector<32x64xf32> -> vector<32x64xf32>
    %107 = arith.addf %65, %106 : vector<32x64xf32>
    %c2 = arith.constant 2 : index
    %c0_74 = arith.constant 0 : index
    %c0_75 = arith.constant 0 : index
    %108 = vector.load %arg3[%c2, %c0_74, %c0_75] : memref<4x64x16xf32, #tpu.memory_space<vmem>>, vector<1x64x16xf32>
    %109 = vector.shape_cast %108 : vector<1x64x16xf32> to vector<64x16xf32>
    %cst_76 = arith.constant dense<0.000000e+00> : vector<32x16xf32>
    %110 = tpu.matmul %24, %109, %cst_76 {dimension_numbers = #tpu.dot_dimension_numbers<[1], [0], [0], [1], [0, 0, 1, 1], [], []>} : vector<32x64xf32>, vector<64x16xf32>, vector<32x16xf32> -> vector<32x16xf32>
    %c2_77 = arith.constant 2 : index
    %c0_78 = arith.constant 0 : index
    %c0_79 = arith.constant 0 : index
    %111 = vector.load %arg4[%c2_77, %c0_78, %c0_79] : memref<4x1x16xf32, #tpu.memory_space<vmem>>, vector<1x1x16xf32>
    %112 = vector.shape_cast %111 : vector<1x1x16xf32> to vector<1x16xf32>
    %113 = vector.broadcast %112 : vector<1x16xf32> to vector<32x16xf32>
    %114 = arith.addf %110, %113 : vector<32x16xf32>
    %c2_80 = arith.constant 2 : index
    %c0_81 = arith.constant 0 : index
    %c0_82 = arith.constant 0 : index
    %115 = vector.load %arg5[%c2_80, %c0_81, %c0_82] : memref<4x64x16xf32, #tpu.memory_space<vmem>>, vector<1x64x16xf32>
    %116 = vector.shape_cast %115 : vector<1x64x16xf32> to vector<64x16xf32>
    %cst_83 = arith.constant dense<0.000000e+00> : vector<32x16xf32>
    %117 = tpu.matmul %24, %116, %cst_83 {dimension_numbers = #tpu.dot_dimension_numbers<[1], [0], [0], [1], [0, 0, 1, 1], [], []>} : vector<32x64xf32>, vector<64x16xf32>, vector<32x16xf32> -> vector<32x16xf32>
    %c2_84 = arith.constant 2 : index
    %c0_85 = arith.constant 0 : index
    %c0_86 = arith.constant 0 : index
    %118 = vector.load %arg6[%c2_84, %c0_85, %c0_86] : memref<4x1x16xf32, #tpu.memory_space<vmem>>, vector<1x1x16xf32>
    %119 = vector.shape_cast %118 : vector<1x1x16xf32> to vector<1x16xf32>
    %120 = vector.broadcast %119 : vector<1x16xf32> to vector<32x16xf32>
    %121 = arith.addf %117, %120 : vector<32x16xf32>
    %c2_87 = arith.constant 2 : index
    %c0_88 = arith.constant 0 : index
    %c0_89 = arith.constant 0 : index
    %122 = vector.load %arg7[%c2_87, %c0_88, %c0_89] : memref<4x64x16xf32, #tpu.memory_space<vmem>>, vector<1x64x16xf32>
    %123 = vector.shape_cast %122 : vector<1x64x16xf32> to vector<64x16xf32>
    %cst_90 = arith.constant dense<0.000000e+00> : vector<32x16xf32>
    %124 = tpu.matmul %24, %123, %cst_90 {dimension_numbers = #tpu.dot_dimension_numbers<[1], [0], [0], [1], [0, 0, 1, 1], [], []>} : vector<32x64xf32>, vector<64x16xf32>, vector<32x16xf32> -> vector<32x16xf32>
    %c2_91 = arith.constant 2 : index
    %c0_92 = arith.constant 0 : index
    %c0_93 = arith.constant 0 : index
    %125 = vector.load %arg8[%c2_91, %c0_92, %c0_93] : memref<4x1x16xf32, #tpu.memory_space<vmem>>, vector<1x1x16xf32>
    %126 = vector.shape_cast %125 : vector<1x1x16xf32> to vector<1x16xf32>
    %127 = vector.broadcast %126 : vector<1x16xf32> to vector<32x16xf32>
    %128 = arith.addf %124, %127 : vector<32x16xf32>
    %cst_94 = arith.constant dense<0.000000e+00> : vector<32x32xf32>
    %129 = tpu.matmul %114, %121, %cst_94 {dimension_numbers = #tpu.dot_dimension_numbers<[1], [1], [0], [0], [0, 0, 1, 0], [], []>} : vector<32x16xf32>, vector<32x16xf32>, vector<32x32xf32> -> vector<32x32xf32>
    %cst_95 = arith.constant 2.500000e-01 : f32
    %130 = vector.broadcast %cst_95 : f32 to vector<32x32xf32>
    %131 = arith.mulf %129, %130 : vector<32x32xf32>
    %c2_96 = arith.constant 2 : index
    %c0_97 = arith.constant 0 : index
    %c0_98 = arith.constant 0 : index
    %132 = vector.load %arg9[%c2_96, %c0_97, %c0_98] : memref<4x32x32xf32, #tpu.memory_space<vmem>>, vector<1x32x32xf32>
    %133 = vector.shape_cast %132 : vector<1x32x32xf32> to vector<32x32xf32>
    %134 = arith.addf %131, %133 : vector<32x32xf32>
    %cst_99 = arith.constant dense<0xFF800000> : vector<32xf32>
    %135 = vector.multi_reduction <maximumf>, %134, %cst_99 [1] : vector<32x32xf32> to vector<32xf32>
    %136 = vector.shape_cast %135 : vector<32xf32> to vector<32x1xf32>
    %137 = vector.broadcast %136 : vector<32x1xf32> to vector<32x32xf32>
    %138 = arith.subf %134, %137 : vector<32x32xf32>
    %139 = math.exp %138 : vector<32x32xf32>
    %cst_100 = arith.constant dense<0.000000e+00> : vector<32xf32>
    %140 = vector.multi_reduction <add>, %139, %cst_100 [1] : vector<32x32xf32> to vector<32xf32>
    %141 = vector.shape_cast %140 : vector<32xf32> to vector<32x1xf32>
    %142 = tpu.reciprocal %141 {approx = true} : vector<32x1xf32> -> vector<32x1xf32>
    %143 = vector.broadcast %142 : vector<32x1xf32> to vector<32x32xf32>
    %144 = arith.mulf %139, %143 : vector<32x32xf32>
    %cst_101 = arith.constant dense<0.000000e+00> : vector<32x16xf32>
    %145 = tpu.matmul %144, %128, %cst_101 {dimension_numbers = #tpu.dot_dimension_numbers<[1], [0], [0], [1], [0, 0, 1, 1], [], []>} : vector<32x32xf32>, vector<32x16xf32>, vector<32x16xf32> -> vector<32x16xf32>
    %c2_102 = arith.constant 2 : index
    %c0_103 = arith.constant 0 : index
    %c0_104 = arith.constant 0 : index
    %146 = vector.load %arg10[%c2_102, %c0_103, %c0_104] : memref<4x16x64xf32, #tpu.memory_space<vmem>>, vector<1x16x64xf32>
    %147 = vector.shape_cast %146 : vector<1x16x64xf32> to vector<16x64xf32>
    %cst_105 = arith.constant dense<0.000000e+00> : vector<32x64xf32>
    %148 = tpu.matmul %145, %147, %cst_105 {dimension_numbers = #tpu.dot_dimension_numbers<[1], [0], [0], [1], [0, 0, 1, 1], [], []>} : vector<32x16xf32>, vector<16x64xf32>, vector<32x64xf32> -> vector<32x64xf32>
    %149 = arith.addf %107, %148 : vector<32x64xf32>
    %c3 = arith.constant 3 : index
    %c0_106 = arith.constant 0 : index
    %c0_107 = arith.constant 0 : index
    %150 = vector.load %arg3[%c3, %c0_106, %c0_107] : memref<4x64x16xf32, #tpu.memory_space<vmem>>, vector<1x64x16xf32>
    %151 = vector.shape_cast %150 : vector<1x64x16xf32> to vector<64x16xf32>
    %cst_108 = arith.constant dense<0.000000e+00> : vector<32x16xf32>
    %152 = tpu.matmul %24, %151, %cst_108 {dimension_numbers = #tpu.dot_dimension_numbers<[1], [0], [0], [1], [0, 0, 1, 1], [], []>} : vector<32x64xf32>, vector<64x16xf32>, vector<32x16xf32> -> vector<32x16xf32>
    %c3_109 = arith.constant 3 : index
    %c0_110 = arith.constant 0 : index
    %c0_111 = arith.constant 0 : index
    %153 = vector.load %arg4[%c3_109, %c0_110, %c0_111] : memref<4x1x16xf32, #tpu.memory_space<vmem>>, vector<1x1x16xf32>
    %154 = vector.shape_cast %153 : vector<1x1x16xf32> to vector<1x16xf32>
    %155 = vector.broadcast %154 : vector<1x16xf32> to vector<32x16xf32>
    %156 = arith.addf %152, %155 : vector<32x16xf32>
    %c3_112 = arith.constant 3 : index
    %c0_113 = arith.constant 0 : index
    %c0_114 = arith.constant 0 : index
    %157 = vector.load %arg5[%c3_112, %c0_113, %c0_114] : memref<4x64x16xf32, #tpu.memory_space<vmem>>, vector<1x64x16xf32>
    %158 = vector.shape_cast %157 : vector<1x64x16xf32> to vector<64x16xf32>
    %cst_115 = arith.constant dense<0.000000e+00> : vector<32x16xf32>
    %159 = tpu.matmul %24, %158, %cst_115 {dimension_numbers = #tpu.dot_dimension_numbers<[1], [0], [0], [1], [0, 0, 1, 1], [], []>} : vector<32x64xf32>, vector<64x16xf32>, vector<32x16xf32> -> vector<32x16xf32>
    %c3_116 = arith.constant 3 : index
    %c0_117 = arith.constant 0 : index
    %c0_118 = arith.constant 0 : index
    %160 = vector.load %arg6[%c3_116, %c0_117, %c0_118] : memref<4x1x16xf32, #tpu.memory_space<vmem>>, vector<1x1x16xf32>
    %161 = vector.shape_cast %160 : vector<1x1x16xf32> to vector<1x16xf32>
    %162 = vector.broadcast %161 : vector<1x16xf32> to vector<32x16xf32>
    %163 = arith.addf %159, %162 : vector<32x16xf32>
    %c3_119 = arith.constant 3 : index
    %c0_120 = arith.constant 0 : index
    %c0_121 = arith.constant 0 : index
    %164 = vector.load %arg7[%c3_119, %c0_120, %c0_121] : memref<4x64x16xf32, #tpu.memory_space<vmem>>, vector<1x64x16xf32>
    %165 = vector.shape_cast %164 : vector<1x64x16xf32> to vector<64x16xf32>
    %cst_122 = arith.constant dense<0.000000e+00> : vector<32x16xf32>
    %166 = tpu.matmul %24, %165, %cst_122 {dimension_numbers = #tpu.dot_dimension_numbers<[1], [0], [0], [1], [0, 0, 1, 1], [], []>} : vector<32x64xf32>, vector<64x16xf32>, vector<32x16xf32> -> vector<32x16xf32>
    %c3_123 = arith.constant 3 : index
    %c0_124 = arith.constant 0 : index
    %c0_125 = arith.constant 0 : index
    %167 = vector.load %arg8[%c3_123, %c0_124, %c0_125] : memref<4x1x16xf32, #tpu.memory_space<vmem>>, vector<1x1x16xf32>
    %168 = vector.shape_cast %167 : vector<1x1x16xf32> to vector<1x16xf32>
    %169 = vector.broadcast %168 : vector<1x16xf32> to vector<32x16xf32>
    %170 = arith.addf %166, %169 : vector<32x16xf32>
    %cst_126 = arith.constant dense<0.000000e+00> : vector<32x32xf32>
    %171 = tpu.matmul %156, %163, %cst_126 {dimension_numbers = #tpu.dot_dimension_numbers<[1], [1], [0], [0], [0, 0, 1, 0], [], []>} : vector<32x16xf32>, vector<32x16xf32>, vector<32x32xf32> -> vector<32x32xf32>
    %cst_127 = arith.constant 2.500000e-01 : f32
    %172 = vector.broadcast %cst_127 : f32 to vector<32x32xf32>
    %173 = arith.mulf %171, %172 : vector<32x32xf32>
    %c3_128 = arith.constant 3 : index
    %c0_129 = arith.constant 0 : index
    %c0_130 = arith.constant 0 : index
    %174 = vector.load %arg9[%c3_128, %c0_129, %c0_130] : memref<4x32x32xf32, #tpu.memory_space<vmem>>, vector<1x32x32xf32>
    %175 = vector.shape_cast %174 : vector<1x32x32xf32> to vector<32x32xf32>
    %176 = arith.addf %173, %175 : vector<32x32xf32>
    %cst_131 = arith.constant dense<0xFF800000> : vector<32xf32>
    %177 = vector.multi_reduction <maximumf>, %176, %cst_131 [1] : vector<32x32xf32> to vector<32xf32>
    %178 = vector.shape_cast %177 : vector<32xf32> to vector<32x1xf32>
    %179 = vector.broadcast %178 : vector<32x1xf32> to vector<32x32xf32>
    %180 = arith.subf %176, %179 : vector<32x32xf32>
    %181 = math.exp %180 : vector<32x32xf32>
    %cst_132 = arith.constant dense<0.000000e+00> : vector<32xf32>
    %182 = vector.multi_reduction <add>, %181, %cst_132 [1] : vector<32x32xf32> to vector<32xf32>
    %183 = vector.shape_cast %182 : vector<32xf32> to vector<32x1xf32>
    %184 = tpu.reciprocal %183 {approx = true} : vector<32x1xf32> -> vector<32x1xf32>
    %185 = vector.broadcast %184 : vector<32x1xf32> to vector<32x32xf32>
    %186 = arith.mulf %181, %185 : vector<32x32xf32>
    %cst_133 = arith.constant dense<0.000000e+00> : vector<32x16xf32>
    %187 = tpu.matmul %186, %170, %cst_133 {dimension_numbers = #tpu.dot_dimension_numbers<[1], [0], [0], [1], [0, 0, 1, 1], [], []>} : vector<32x32xf32>, vector<32x16xf32>, vector<32x16xf32> -> vector<32x16xf32>
    %c3_134 = arith.constant 3 : index
    %c0_135 = arith.constant 0 : index
    %c0_136 = arith.constant 0 : index
    %188 = vector.load %arg10[%c3_134, %c0_135, %c0_136] : memref<4x16x64xf32, #tpu.memory_space<vmem>>, vector<1x16x64xf32>
    %189 = vector.shape_cast %188 : vector<1x16x64xf32> to vector<16x64xf32>
    %cst_137 = arith.constant dense<0.000000e+00> : vector<32x64xf32>
    %190 = tpu.matmul %187, %189, %cst_137 {dimension_numbers = #tpu.dot_dimension_numbers<[1], [0], [0], [1], [0, 0, 1, 1], [], []>} : vector<32x16xf32>, vector<16x64xf32>, vector<32x64xf32> -> vector<32x64xf32>
    %191 = arith.addf %149, %190 : vector<32x64xf32>
    %c0_138 = arith.constant 0 : index
    %c0_139 = arith.constant 0 : index
    %192 = vector.load %arg11[%c0_138, %c0_139] : memref<1x64xf32, #tpu.memory_space<vmem>>, vector<1x64xf32>
    %193 = vector.broadcast %192 : vector<1x64xf32> to vector<32x64xf32>
    %194 = arith.addf %191, %193 : vector<32x64xf32>
    %c0_140 = arith.constant 0 : index
    %c0_141 = arith.constant 0 : index
    %195 = vector.load %arg12[%c0_140, %c0_141] : memref<20x64xf32, #tpu.memory_space<vmem>>, vector<20x64xf32>
    %cst_142 = arith.constant dense<0.000000e+00> : vector<20x32xf32>
    %196 = tpu.matmul %195, %194, %cst_142 {dimension_numbers = #tpu.dot_dimension_numbers<[1], [1], [0], [0], [0, 0, 1, 0], [], []>} : vector<20x64xf32>, vector<32x64xf32>, vector<20x32xf32> -> vector<20x32xf32>
    %cst_143 = arith.constant 1.250000e-01 : f32
    %197 = vector.broadcast %cst_143 : f32 to vector<20x32xf32>
    %198 = arith.mulf %196, %197 : vector<20x32xf32>
    %c0_144 = arith.constant 0 : index
    %c0_145 = arith.constant 0 : index
    %199 = vector.load %arg13[%c0_144, %c0_145] : memref<20x32xf32, #tpu.memory_space<vmem>>, vector<20x32xf32>
    %200 = arith.addf %198, %199 : vector<20x32xf32>
    %cst_146 = arith.constant dense<0xFF800000> : vector<20xf32>
    %201 = vector.multi_reduction <maximumf>, %200, %cst_146 [1] : vector<20x32xf32> to vector<20xf32>
    %202 = vector.shape_cast %201 : vector<20xf32> to vector<20x1xf32>
    %203 = vector.broadcast %202 : vector<20x1xf32> to vector<20x32xf32>
    %204 = arith.subf %200, %203 : vector<20x32xf32>
    %205 = math.exp %204 : vector<20x32xf32>
    %cst_147 = arith.constant dense<0.000000e+00> : vector<20xf32>
    %206 = vector.multi_reduction <add>, %205, %cst_147 [1] : vector<20x32xf32> to vector<20xf32>
    %207 = vector.shape_cast %206 : vector<20xf32> to vector<20x1xf32>
    %208 = tpu.reciprocal %207 {approx = true} : vector<20x1xf32> -> vector<20x1xf32>
    %209 = vector.broadcast %208 : vector<20x1xf32> to vector<20x32xf32>
    %210 = arith.mulf %205, %209 : vector<20x32xf32>
    %cst_148 = arith.constant dense<0.000000e+00> : vector<20x64xf32>
    %211 = tpu.matmul %210, %194, %cst_148 {dimension_numbers = #tpu.dot_dimension_numbers<[1], [0], [0], [1], [0, 0, 1, 1], [], []>} : vector<20x32xf32>, vector<32x64xf32>, vector<20x64xf32> -> vector<20x64xf32>
    %c0_149 = arith.constant 0 : index
    %c0_150 = arith.constant 0 : index
    %212 = vector.load %arg14[%c0_149, %c0_150] : memref<32x20xf32, #tpu.memory_space<vmem>>, vector<32x20xf32>
    %cst_151 = arith.constant dense<0.000000e+00> : vector<32x64xf32>
    %213 = tpu.matmul %212, %211, %cst_151 {dimension_numbers = #tpu.dot_dimension_numbers<[1], [0], [0], [1], [0, 0, 1, 1], [], []>} : vector<32x20xf32>, vector<20x64xf32>, vector<32x64xf32> -> vector<32x64xf32>
    %214 = arith.addf %194, %213 : vector<32x64xf32>
    %215 = arith.addf %0, %214 : vector<32x64xf32>
    %c0_152 = arith.constant 0 : index
    %c0_153 = arith.constant 0 : index
    %216 = vector.load %arg15[%c0_152, %c0_153] : memref<1x64xf32, #tpu.memory_space<vmem>>, vector<1x64xf32>
    %c0_154 = arith.constant 0 : index
    %c0_155 = arith.constant 0 : index
    %217 = vector.load %arg16[%c0_154, %c0_155] : memref<1x64xf32, #tpu.memory_space<vmem>>, vector<1x64xf32>
    %cst_156 = arith.constant dense<0.000000e+00> : vector<32xf32>
    %218 = vector.multi_reduction <add>, %215, %cst_156 [1] : vector<32x64xf32> to vector<32xf32>
    %219 = vector.shape_cast %218 : vector<32xf32> to vector<32x1xf32>
    %cst_157 = arith.constant 6.400000e+01 : f32
    %220 = vector.broadcast %cst_157 : f32 to vector<32x1xf32>
    %221 = arith.divf %219, %220 : vector<32x1xf32>
    %222 = vector.broadcast %221 : vector<32x1xf32> to vector<32x64xf32>
    %223 = arith.subf %215, %222 : vector<32x64xf32>
    %224 = arith.mulf %223, %223 : vector<32x64xf32>
    %cst_158 = arith.constant dense<0.000000e+00> : vector<32xf32>
    %225 = vector.multi_reduction <add>, %224, %cst_158 [1] : vector<32x64xf32> to vector<32xf32>
    %226 = vector.shape_cast %225 : vector<32xf32> to vector<32x1xf32>
    %cst_159 = arith.constant 6.400000e+01 : f32
    %227 = vector.broadcast %cst_159 : f32 to vector<32x1xf32>
    %228 = arith.divf %226, %227 : vector<32x1xf32>
    %229 = vector.broadcast %221 : vector<32x1xf32> to vector<32x64xf32>
    %230 = arith.subf %215, %229 : vector<32x64xf32>
    %cst_160 = arith.constant 9.99999974E-6 : f32
    %231 = vector.broadcast %cst_160 : f32 to vector<32x1xf32>
    %232 = arith.addf %228, %231 : vector<32x1xf32>
    %233 = math.rsqrt %232 : vector<32x1xf32>
    %234 = vector.broadcast %233 : vector<32x1xf32> to vector<32x64xf32>
    %235 = arith.mulf %230, %234 : vector<32x64xf32>
    %236 = vector.broadcast %216 : vector<1x64xf32> to vector<32x64xf32>
    %237 = arith.mulf %235, %236 : vector<32x64xf32>
    %238 = vector.broadcast %217 : vector<1x64xf32> to vector<32x64xf32>
    %239 = arith.addf %237, %238 : vector<32x64xf32>
    %c0_161 = arith.constant 0 : index
    %c0_162 = arith.constant 0 : index
    %240 = vector.load %arg17[%c0_161, %c0_162] : memref<64x256xf32, #tpu.memory_space<vmem>>, vector<64x256xf32>
    %cst_163 = arith.constant dense<0.000000e+00> : vector<32x256xf32>
    %241 = tpu.matmul %239, %240, %cst_163 {dimension_numbers = #tpu.dot_dimension_numbers<[1], [0], [0], [1], [0, 0, 1, 1], [], []>} : vector<32x64xf32>, vector<64x256xf32>, vector<32x256xf32> -> vector<32x256xf32>
    %c0_164 = arith.constant 0 : index
    %c0_165 = arith.constant 0 : index
    %242 = vector.load %arg18[%c0_164, %c0_165] : memref<1x256xf32, #tpu.memory_space<vmem>>, vector<1x256xf32>
    %243 = vector.broadcast %242 : vector<1x256xf32> to vector<32x256xf32>
    %244 = arith.addf %241, %243 : vector<32x256xf32>
    %cst_166 = arith.constant 5.000000e-01 : f32
    %245 = vector.broadcast %cst_166 : f32 to vector<32x256xf32>
    %246 = arith.mulf %245, %244 : vector<32x256xf32>
    %cst_167 = arith.constant 0.707106769 : f32
    %247 = vector.broadcast %cst_167 : f32 to vector<32x256xf32>
    %248 = arith.mulf %244, %247 : vector<32x256xf32>
    %249 = math.erf %248 : vector<32x256xf32>
    %cst_168 = arith.constant 1.000000e+00 : f32
    %250 = vector.broadcast %cst_168 : f32 to vector<32x256xf32>
    %251 = arith.addf %250, %249 : vector<32x256xf32>
    %252 = arith.mulf %246, %251 : vector<32x256xf32>
    %c0_169 = arith.constant 0 : index
    %c0_170 = arith.constant 0 : index
    %253 = vector.load %arg19[%c0_169, %c0_170] : memref<256x64xf32, #tpu.memory_space<vmem>>, vector<256x64xf32>
    %cst_171 = arith.constant dense<0.000000e+00> : vector<32x64xf32>
    %254 = tpu.matmul %252, %253, %cst_171 {dimension_numbers = #tpu.dot_dimension_numbers<[1], [0], [0], [1], [0, 0, 1, 1], [], []>} : vector<32x256xf32>, vector<256x64xf32>, vector<32x64xf32> -> vector<32x64xf32>
    %c0_172 = arith.constant 0 : index
    %c0_173 = arith.constant 0 : index
    %255 = vector.load %arg20[%c0_172, %c0_173] : memref<1x64xf32, #tpu.memory_space<vmem>>, vector<1x64xf32>
    %256 = vector.broadcast %255 : vector<1x64xf32> to vector<32x64xf32>
    %257 = arith.addf %254, %256 : vector<32x64xf32>
    %c0_174 = arith.constant 0 : index
    %c0_175 = arith.constant 0 : index
    %258 = vector.load %arg21[%c0_174, %c0_175] : memref<64x10xf32, #tpu.memory_space<vmem>>, vector<64x10xf32>
    %cst_176 = arith.constant dense<0.000000e+00> : vector<32x10xf32>
    %259 = tpu.matmul %215, %258, %cst_176 {dimension_numbers = #tpu.dot_dimension_numbers<[1], [0], [0], [1], [0, 0, 1, 1], [], []>} : vector<32x64xf32>, vector<64x10xf32>, vector<32x10xf32> -> vector<32x10xf32>
    %c0_177 = arith.constant 0 : index
    %c0_178 = arith.constant 0 : index
    %260 = vector.load %arg22[%c0_177, %c0_178] : memref<1x10xf32, #tpu.memory_space<vmem>>, vector<1x10xf32>
    %261 = vector.broadcast %260 : vector<1x10xf32> to vector<32x10xf32>
    %262 = arith.addf %259, %261 : vector<32x10xf32>
    %cst_179 = arith.constant 1.702000e+00 : f32
    %263 = vector.broadcast %cst_179 : f32 to vector<32x10xf32>
    %264 = arith.mulf %263, %262 : vector<32x10xf32>
    %265 = arith.negf %264 : vector<32x10xf32>
    %266 = math.exp %265 : vector<32x10xf32>
    %cst_180 = arith.constant 1.000000e+00 : f32
    %267 = vector.broadcast %cst_180 : f32 to vector<32x10xf32>
    %268 = arith.addf %267, %266 : vector<32x10xf32>
    %269 = arith.divf %267, %268 : vector<32x10xf32>
    %270 = arith.mulf %262, %269 : vector<32x10xf32>
    %c0_181 = arith.constant 0 : index
    %c0_182 = arith.constant 0 : index
    %271 = vector.load %arg23[%c0_181, %c0_182] : memref<10x64xf32, #tpu.memory_space<vmem>>, vector<10x64xf32>
    %cst_183 = arith.constant dense<0.000000e+00> : vector<32x64xf32>
    %272 = tpu.matmul %270, %271, %cst_183 {dimension_numbers = #tpu.dot_dimension_numbers<[1], [0], [0], [1], [0, 0, 1, 1], [], []>} : vector<32x10xf32>, vector<10x64xf32>, vector<32x64xf32> -> vector<32x64xf32>
    %c0_184 = arith.constant 0 : index
    %c0_185 = arith.constant 0 : index
    %273 = vector.load %arg24[%c0_184, %c0_185] : memref<1x64xf32, #tpu.memory_space<vmem>>, vector<1x64xf32>
    %274 = vector.broadcast %273 : vector<1x64xf32> to vector<32x64xf32>
    %275 = arith.addf %272, %274 : vector<32x64xf32>
    %c0_186 = arith.constant 0 : index
    %c0_187 = arith.constant 0 : index
    %276 = vector.load %arg25[%c0_186, %c0_187] : memref<1x1xf32, #tpu.memory_space<vmem>>, vector<1x1xf32>
    %277 = vector.broadcast %276 : vector<1x1xf32> to vector<32x64xf32>
    %278 = arith.mulf %275, %277 : vector<32x64xf32>
    %279 = arith.addf %215, %257 : vector<32x64xf32>
    %280 = arith.addf %279, %278 : vector<32x64xf32>
    %c0_188 = arith.constant 0 : index
    %c0_189 = arith.constant 0 : index
    %281 = vector.load %arg26[%c0_188, %c0_189] : memref<32x64xf32, #tpu.memory_space<vmem>>, vector<32x64xf32>
    tpu.vector_store %arg26[%c0_188, %c0_189], %280 {strides = array<i32>} : memref<32x64xf32, #tpu.memory_space<vmem>>, vector<32x64xf32>,
    return
  }
}

</mosaic_0001>

<llo_original>
// kernel: swin_forward.7
$region0: #{swin_forward.7}
  #allocation0 [shape = 'u32[]', space=smem, size = 0x4, offset = 0x4, fixed_abs, tag = 'smem constant byte address 0x4 - core index']
  #allocation1 [shape = 'u32[72,128]{1,0:T(1,128)}', space=vmem, size = 0x9000, scoped, tag = 'internal scratch']
  %s0 = inlined_call_operand.vmem [shape: f32[128,48], index: 0, kind: input, shape index: {}]
  %s1 = inlined_call_operand.vmem [shape: f32[48,32], index: 1, kind: input, shape index: {}]
  %s2 = inlined_call_operand.vmem [shape: f32[1,32], index: 2, kind: input, shape index: {}]
  %s3 = inlined_call_operand.vmem [shape: f32[1,32], index: 3, kind: input, shape index: {}]
  %s4 = inlined_call_operand.vmem [shape: f32[1,32], index: 4, kind: input, shape index: {}]
  %s5 = inlined_call_operand.vmem [shape: f32[128,32], index: 5, kind: output, shape index: {}]
  %s6 = sld [smem:[#allocation0]]
  $region30: #{swin_forward.7} parent=0
    _
  %s8 = ssub.s32 1, %s6
  %s9 = scalar_select 0, %s8, %s6
  // Predicated region
  $region2: #{swin_forward.7} parent=0 // pred_check
    _
  $region3: #{swin_forward.7} parent=0 // pred_check_branch
    %11 = sbr.rel (0) target = $region5
  $region4: #{swin_forward.7} parent=0 // pred_region
    _
  $region5: #{swin_forward.7} parent=0 // pred_fallthru
    _
  // Predicated region
  $region6: #{swin_forward.7} parent=0 // pred_check
    _
  $region7: #{swin_forward.7} parent=0 // pred_check_branch
    %13 = sbr.rel (0) target = $region9
  $region8: #{swin_forward.7} parent=0 // pred_region
    _
  $region9: #{swin_forward.7} parent=0 // pred_fallthru
    _
  // Predicated region
  $region10: #{swin_forward.7} parent=0 // pred_check
    _
  $region11: #{swin_forward.7} parent=0 // pred_check_branch
    %15 = sbr.rel (0) target = $region13
  $region12: #{swin_forward.7} parent=0 // pred_region
    _
  $region13: #{swin_forward.7} parent=0 // pred_fallthru
    _
  // Predicated region
  $region14: #{swin_forward.7} parent=0 // pred_check
    _
  $region15: #{swin_forward.7} parent=0 // pred_check_branch
    %17 = sbr.rel (0) target = $region17
  $region16: #{swin_forward.7} parent=0 // pred_region
    _
  $region17: #{swin_forward.7} parent=0 // pred_fallthru
    _
  // Predicated region
  $region18: #{swin_forward.7} parent=0 // pred_check
    _
  $region19: #{swin_forward.7} parent=0 // pred_check_branch
    %19 = sbr.rel (0) target = $region21
  $region20: #{swin_forward.7} parent=0 // pred_region
    _
  $region21: #{swin_forward.7} parent=0 // pred_fallthru
    _
  %v20 = vld [vmem:[%s0] sm:$0xff]
  %v21 = vld [vmem:[%s0 + $0x8] sm:$0xff]
  %v22 = vld [vmem:[%s0 + $0x10] sm:$0xff]
  %v23 = vld [vmem:[%s0 + $0x18] sm:$0xff]
  %v24 = vld [vmem:[%s0 + $0x20] sm:$0xff]
  %v25 = vld [vmem:[%s0 + $0x28] sm:$0xff]
  %v26 = vld [vmem:[%s0 + $0x30] sm:$0xff]
  %v27 = vld [vmem:[%s0 + $0x38] sm:$0xff]
  %v28 = vld [vmem:[%s0 + $0x40] sm:$0xff]
  %v29 = vld [vmem:[%s0 + $0x48] sm:$0xff]
  %v30 = vld [vmem:[%s0 + $0x50] sm:$0xff]
  %v31 = vld [vmem:[%s0 + $0x58] sm:$0xff]
  %v32 = vld [vmem:[%s0 + $0x60] sm:$0xff]
  %v33 = vld [vmem:[%s0 + $0x68] sm:$0xff]
  %v34 = vld [vmem:[%s0 + $0x70] sm:$0xff]
  %v35 = vld [vmem:[%s0 + $0x78] sm:$0xff]
  %v36 = vld [vmem:[%s1] sm:$0xff]
  %v37 = vld [vmem:[%s1 + $0x8] sm:$0xff]
  %v38 = vld [vmem:[%s1 + $0x10] sm:$0xff]
  %v39 = vld [vmem:[%s1 + $0x18] sm:$0xff]
  %v40 = vld [vmem:[%s1 + $0x20] sm:$0xff]
  %v41 = vld [vmem:[%s1 + $0x28] sm:$0xff]
  %v42 = vld [vmem:[%s2] sm:$0x1]
  %v44 = vperm.slane %v42, 0
  %vm46 = vcmask 392192
  %v48 = vsel %vm46, %v20, 0
  %v51 = vsel %vm46, %v21, 0
  %v54 = vsel %vm46, %v22, 0
  %v57 = vsel %vm46, %v23, 0
  %v60 = vsel %vm46, %v24, 0
  %v63 = vsel %vm46, %v25, 0
  %v66 = vsel %vm46, %v26, 0
  %v69 = vsel %vm46, %v27, 0
  %v72 = vsel %vm46, %v28, 0
  %v75 = vsel %vm46, %v29, 0
  %v78 = vsel %vm46, %v30, 0
  %v81 = vsel %vm46, %v31, 0
  %v84 = vsel %vm46, %v32, 0
  %v87 = vsel %vm46, %v33, 0
  %v90 = vsel %vm46, %v34, 0
  %v93 = vsel %vm46, %v35, 0
  %95 = vmatpush.msra.mxu0 0.0
  %96 = vmatpush.msra.mxu0 0.0
  %97 = vmatpush.msra.mxu0 0.0
  %98 = vmatpush.msra.mxu0 0.0
  %99 = vmatpush.msra.mxu0 0.0
  %100 = vmatpush.msra.mxu0 0.0
  %101 = vmatpush.msra.mxu0 0.0
  %102 = vmatpush.msra.mxu0 0.0
  %103 = vmatpush.msra.mxu0 0.0
  %104 = vmatpush.msra.mxu0 0.0
  %105 = vmatpush.msra.mxu0 %v41
  %106 = vmatpush.msra.mxu0 %v40
  %107 = vmatpush.msra.mxu0 %v39
  %108 = vmatpush.msra.mxu0 %v38
  %109 = vmatpush.msra.mxu0 %v37
  %110 = vmatpush.msra.mxu0 %v36
  %111 = vmatmul.f32.gmra.mxu0 %v48
  %v112 = vpop.f32.mrf.mxu0
  %v113 = vadd.f32 %v44, %v112
  %114 = vmatmul.f32.gmra.mxu0 %v51
  %v115 = vpop.f32.mrf.mxu0
  %v116 = vadd.f32 %v44, %v115
  %117 = vmatmul.f32.gmra.mxu0 %v54
  %v118 = vpop.f32.mrf.mxu0
  %v119 = vadd.f32 %v44, %v118
  %120 = vmatmul.f32.gmra.mxu0 %v57
  %v121 = vpop.f32.mrf.mxu0
  %v122 = vadd.f32 %v44, %v121
  %123 = vmatmul.f32.gmra.mxu0 %v60
  %v124 = vpop.f32.mrf.mxu0
  %v125 = vadd.f32 %v44, %v124
  %126 = vmatmul.f32.gmra.mxu0 %v63
  %v127 = vpop.f32.mrf.mxu0
  %v128 = vadd.f32 %v44, %v127
  %129 = vmatmul.f32.gmra.mxu0 %v66
  %v130 = vpop.f32.mrf.mxu0
  %v131 = vadd.f32 %v44, %v130
  %132 = vmatmul.f32.gmra.mxu0 %v69
  %v133 = vpop.f32.mrf.mxu0
  %v134 = vadd.f32 %v44, %v133
  %135 = vmatmul.f32.gmra.mxu0 %v72
  %v136 = vpop.f32.mrf.mxu0
  %v137 = vadd.f32 %v44, %v136
  %138 = vmatmul.f32.gmra.mxu0 %v75
  %v139 = vpop.f32.mrf.mxu0
  %v140 = vadd.f32 %v44, %v139
  %141 = vmatmul.f32.gmra.mxu0 %v78
  %v142 = vpop.f32.mrf.mxu0
  %v143 = vadd.f32 %v44, %v142
  %144 = vmatmul.f32.gmra.mxu0 %v81
  %v145 = vpop.f32.mrf.mxu0
  %v146 = vadd.f32 %v44, %v145
  %147 = vmatmul.f32.gmra.mxu0 %v84
  %v148 = vpop.f32.mrf.mxu0
  %v149 = vadd.f32 %v44, %v148
  %150 = vmatmul.f32.gmra.mxu0 %v87
  %v151 = vpop.f32.mrf.mxu0
  %v152 = vadd.f32 %v44, %v151
  %153 = vmatmul.f32.gmra.mxu0 %v90
  %v154 = vpop.f32.mrf.mxu0
  %v155 = vadd.f32 %v44, %v154
  %156 = vmatmul.f32.gmra.mxu0 %v93
  %v157 = vpop.f32.mrf.mxu0
  %v158 = vadd.f32 %v44, %v157
  %159 = vdwg.mxu0
  %v160 = vld [vmem:[%s3] sm:$0x1]
  %v161 = vld [vmem:[%s4] sm:$0x1]
  %vm162 = vcmask 261120
  %v163 = vsel %vm162, %v113, 0.0
  %164 = vadd.xlane.f32.xlu0 %v163
  %v165 = vpop.xlane.xlu0 %164
  %v166 = vsel %vm162, %v116, 0.0
  %167 = vadd.xlane.f32.xlu0 %v166
  %v168 = vpop.xlane.xlu0 %167
  %v169 = vsel %vm162, %v119, 0.0
  %170 = vadd.xlane.f32.xlu0 %v169
  %v171 = vpop.xlane.xlu0 %170
  %v172 = vsel %vm162, %v122, 0.0
  %173 = vadd.xlane.f32.xlu0 %v172
  %v174 = vpop.xlane.xlu0 %173
  %v175 = vsel %vm162, %v125, 0.0
  %176 = vadd.xlane.f32.xlu0 %v175
  %v177 = vpop.xlane.xlu0 %176
  %v178 = vsel %vm162, %v128, 0.0
  %179 = vadd.xlane.f32.xlu0 %v178
  %v180 = vpop.xlane.xlu0 %179
  %v181 = vsel %vm162, %v131, 0.0
  %182 = vadd.xlane.f32.xlu0 %v181
  %v183 = vpop.xlane.xlu0 %182
  %v184 = vsel %vm162, %v134, 0.0
  %185 = vadd.xlane.f32.xlu0 %v184
  %v186 = vpop.xlane.xlu0 %185
  %v187 = vsel %vm162, %v137, 0.0
  %188 = vadd.xlane.f32.xlu0 %v187
  %v189 = vpop.xlane.xlu0 %188
  %v190 = vsel %vm162, %v140, 0.0
  %191 = vadd.xlane.f32.xlu0 %v190
  %v192 = vpop.xlane.xlu0 %191
  %v193 = vsel %vm162, %v143, 0.0
  %194 = vadd.xlane.f32.xlu0 %v193
  %v195 = vpop.xlane.xlu0 %194
  %v196 = vsel %vm162, %v146, 0.0
  %197 = vadd.xlane.f32.xlu0 %v196
  %v198 = vpop.xlane.xlu0 %197
  %v199 = vsel %vm162, %v149, 0.0
  %200 = vadd.xlane.f32.xlu0 %v199
  %v201 = vpop.xlane.xlu0 %200
  %v202 = vsel %vm162, %v152, 0.0
  %203 = vadd.xlane.f32.xlu0 %v202
  %v204 = vpop.xlane.xlu0 %203
  %v205 = vsel %vm162, %v155, 0.0
  %206 = vadd.xlane.f32.xlu0 %v205
  %v207 = vpop.xlane.xlu0 %206
  %v208 = vsel %vm162, %v158, 0.0
  %209 = vadd.xlane.f32.xlu0 %v208
  %v210 = vpop.xlane.xlu0 %209
  %v211 = vrcp.pop 32.0
  %v212 = vmul.f32 32.0, %v211
  %v213 = vsub.f32 1.0, %v212
  %v214 = vmul.f32 %v211, %v213
  %v215 = vadd.f32 %v211, %v214
  %vm216 = vweird.f32 %v211
  %v217 = vsel %vm216, %v211, %v215
  %v218 = vmul.f32 %v165, %v217
  %v219 = vmul.f32 %v168, %v217
  %v220 = vmul.f32 %v171, %v217
  %v221 = vmul.f32 %v174, %v217
  %v222 = vmul.f32 %v177, %v217
  %v223 = vmul.f32 %v180, %v217
  %v224 = vmul.f32 %v183, %v217
  %v225 = vmul.f32 %v186, %v217
  %v226 = vmul.f32 %v189, %v217
  %v227 = vmul.f32 %v192, %v217
  %v228 = vmul.f32 %v195, %v217
  %v229 = vmul.f32 %v198, %v217
  %v230 = vmul.f32 %v201, %v217
  %v231 = vmul.f32 %v204, %v217
  %v232 = vmul.f32 %v207, %v217
  %v233 = vmul.f32 %v210, %v217
  %v234 = vsub.f32 %v113, %v218
  %v235 = vsub.f32 %v116, %v219
  %v236 = vsub.f32 %v119, %v220
  %v237 = vsub.f32 %v122, %v221
  %v238 = vsub.f32 %v125, %v222
  %v239 = vsub.f32 %v128, %v223
  %v240 = vsub.f32 %v131, %v224
  %v241 = vsub.f32 %v134, %v225
  %v242 = vsub.f32 %v137, %v226
  %v243 = vsub.f32 %v140, %v227
  %v244 = vsub.f32 %v143, %v228
  %v245 = vsub.f32 %v146, %v229
  %v246 = vsub.f32 %v149, %v230
  %v247 = vsub.f32 %v152, %v231
  %v248 = vsub.f32 %v155, %v232
  %v249 = vsub.f32 %v158, %v233
  %v250 = vmul.f32 %v234, %v234
  %v251 = vmul.f32 %v235, %v235
  %v252 = vmul.f32 %v236, %v236
  %v253 = vmul.f32 %v237, %v237
  %v254 = vmul.f32 %v238, %v238
  %v255 = vmul.f32 %v239, %v239
  %v256 = vmul.f32 %v240, %v240
  %v257 = vmul.f32 %v241, %v241
  %v258 = vmul.f32 %v242, %v242
  %v259 = vmul.f32 %v243, %v243
  %v260 = vmul.f32 %v244, %v244
  %v261 = vmul.f32 %v245, %v245
  %v262 = vmul.f32 %v246, %v246
  %v263 = vmul.f32 %v247, %v247
  %v264 = vmul.f32 %v248, %v248
  %v265 = vmul.f32 %v249, %v249
  %v266 = vsel %vm162, %v250, 0.0
  %267 = vadd.xlane.f32.xlu0 %v266
  %v268 = vpop.xlane.xlu0 %267
  %v269 = vsel %vm162, %v251, 0.0
  %270 = vadd.xlane.f32.xlu0 %v269
  %v271 = vpop.xlane.xlu0 %270
  %v272 = vsel %vm162, %v252, 0.0
  %273 = vadd.xlane.f32.xlu0 %v272
  %v274 = vpop.xlane.xlu0 %273
  %v275 = vsel %vm162, %v253, 0.0
  %276 = vadd.xlane.f32.xlu0 %v275
  %v277 = vpop.xlane.xlu0 %276
  %v278 = vsel %vm162, %v254, 0.0
  %279 = vadd.xlane.f32.xlu0 %v278
  %v280 = vpop.xlane.xlu0 %279
  %v281 = vsel %vm162, %v255, 0.0
  %282 = vadd.xlane.f32.xlu0 %v281
  %v283 = vpop.xlane.xlu0 %282
  %v284 = vsel %vm162, %v256, 0.0
  %285 = vadd.xlane.f32.xlu0 %v284
  %v286 = vpop.xlane.xlu0 %285
  %v287 = vsel %vm162, %v257, 0.0
  %288 = vadd.xlane.f32.xlu0 %v287
  %v289 = vpop.xlane.xlu0 %288
  %v290 = vsel %vm162, %v258, 0.0
  %291 = vadd.xlane.f32.xlu0 %v290
  %v292 = vpop.xlane.xlu0 %291
  %v293 = vsel %vm162, %v259, 0.0
  %294 = vadd.xlane.f32.xlu0 %v293
  %v295 = vpop.xlane.xlu0 %294
  %v296 = vsel %vm162, %v260, 0.0
  %297 = vadd.xlane.f32.xlu0 %v296
  %v298 = vpop.xlane.xlu0 %297
  %v299 = vsel %vm162, %v261, 0.0
  %300 = vadd.xlane.f32.xlu0 %v299
  %v301 = vpop.xlane.xlu0 %300
  %v302 = vsel %vm162, %v262, 0.0
  %303 = vadd.xlane.f32.xlu0 %v302
  %v304 = vpop.xlane.xlu0 %303
  %v305 = vsel %vm162, %v263, 0.0
  %306 = vadd.xlane.f32.xlu0 %v305
  %v307 = vpop.xlane.xlu0 %306
  %v308 = vsel %vm162, %v264, 0.0
  %309 = vadd.xlane.f32.xlu0 %v308
  %v310 = vpop.xlane.xlu0 %309
  %v311 = vsel %vm162, %v265, 0.0
  %312 = vadd.xlane.f32.xlu0 %v311
  %v313 = vpop.xlane.xlu0 %312
  %v314 = vmul.f32 %v268, %v217
  %v315 = vmul.f32 %v271, %v217
  %v316 = vmul.f32 %v274, %v217
  %v317 = vmul.f32 %v277, %v217
  %v318 = vmul.f32 %v280, %v217
  %v319 = vmul.f32 %v283, %v217
  %v320 = vmul.f32 %v286, %v217
  %v321 = vmul.f32 %v289, %v217
  %v322 = vmul.f32 %v292, %v217
  %v323 = vmul.f32 %v295, %v217
  %v324 = vmul.f32 %v298, %v217
  %v325 = vmul.f32 %v301, %v217
  %v326 = vmul.f32 %v304, %v217
  %v327 = vmul.f32 %v307, %v217
  %v328 = vmul.f32 %v310, %v217
  %v329 = vmul.f32 %v313, %v217
  %v330 = vadd.f32 %v314, 1e-05
  %v331 = vadd.f32 %v315, 1e-05
  %v332 = vadd.f32 %v316, 1e-05
  %v333 = vadd.f32 %v317, 1e-05
  %v334 = vadd.f32 %v318, 1e-05
  %v335 = vadd.f32 %v319, 1e-05
  %v336 = vadd.f32 %v320, 1e-05
  %v337 = vadd.f32 %v321, 1e-05
  %v338 = vadd.f32 %v322, 1e-05
  %v339 = vadd.f32 %v323, 1e-05
  %v340 = vadd.f32 %v324, 1e-05
  %v341 = vadd.f32 %v325, 1e-05
  %v342 = vadd.f32 %v326, 1e-05
  %v343 = vadd.f32 %v327, 1e-05
  %v344 = vadd.f32 %v328, 1e-05
  %v345 = vadd.f32 %v329, 1e-05
  %v346 = vrsqrt.pop %v330
  %v347 = vmul.f32 %v346, %v330
  %v348 = vmul.f32 %v347, %v346
  %v349 = vmul.f32 0.5, %v348
  %v350 = vsub.f32 1.5, %v349
  %v351 = vmul.f32 %v346, %v350
  %vm352 = vweird.f32 %v330
  %vm353 = vweird.f32 %v346
  %vm354 = vmor %vm352, %vm353
  %v355 = vsel %vm354, %v346, %v351
  %v356 = vrsqrt.pop %v331
  %v357 = vmul.f32 %v356, %v331
  %v358 = vmul.f32 %v357, %v356
  %v359 = vmul.f32 0.5, %v358
  %v360 = vsub.f32 1.5, %v359
  %v361 = vmul.f32 %v356, %v360
  %vm362 = vweird.f32 %v331
  %vm363 = vweird.f32 %v356
  %vm364 = vmor %vm362, %vm363
  %v365 = vsel %vm364, %v356, %v361
  %v366 = vrsqrt.pop %v332
  %v367 = vmul.f32 %v366, %v332
  %v368 = vmul.f32 %v367, %v366
  %v369 = vmul.f32 0.5, %v368
  %v370 = vsub.f32 1.5, %v369
  %v371 = vmul.f32 %v366, %v370
  %vm372 = vweird.f32 %v332
  %vm373 = vweird.f32 %v366
  %vm374 = vmor %vm372, %vm373
  %v375 = vsel %vm374, %v366, %v371
  %v376 = vrsqrt.pop %v333
  %v377 = vmul.f32 %v376, %v333
  %v378 = vmul.f32 %v377, %v376
  %v379 = vmul.f32 0.5, %v378
  %v380 = vsub.f32 1.5, %v379
  %v381 = vmul.f32 %v376, %v380
  %vm382 = vweird.f32 %v333
  %vm383 = vweird.f32 %v376
  %vm384 = vmor %vm382, %vm383
  %v385 = vsel %vm384, %v376, %v381
  %v386 = vrsqrt.pop %v334
  %v387 = vmul.f32 %v386, %v334
  %v388 = vmul.f32 %v387, %v386
  %v389 = vmul.f32 0.5, %v388
  %v390 = vsub.f32 1.5, %v389
  %v391 = vmul.f32 %v386, %v390
  %vm392 = vweird.f32 %v334
  %vm393 = vweird.f32 %v386
  %vm394 = vmor %vm392, %vm393
  %v395 = vsel %vm394, %v386, %v391
  %v396 = vrsqrt.pop %v335
  %v397 = vmul.f32 %v396, %v335
  %v398 = vmul.f32 %v397, %v396
  %v399 = vmul.f32 0.5, %v398
  %v400 = vsub.f32 1.5, %v399
  %v401 = vmul.f32 %v396, %v400
  %vm402 = vweird.f32 %v335
  %vm403 = vweird.f32 %v396
  %vm404 = vmor %vm402, %vm403
  %v405 = vsel %vm404, %v396, %v401
  %v406 = vrsqrt.pop %v336
  %v407 = vmul.f32 %v406, %v336
  %v408 = vmul.f32 %v407, %v406
  %v409 = vmul.f32 0.5, %v408
  %v410 = vsub.f32 1.5, %v409
  %v411 = vmul.f32 %v406, %v410
  %vm412 = vweird.f32 %v336
  %vm413 = vweird.f32 %v406
  %vm414 = vmor %vm412, %vm413
  %v415 = vsel %vm414, %v406, %v411
  %v416 = vrsqrt.pop %v337
  %v417 = vmul.f32 %v416, %v337
  %v418 = vmul.f32 %v417, %v416
  %v419 = vmul.f32 0.5, %v418
  %v420 = vsub.f32 1.5, %v419
  %v421 = vmul.f32 %v416, %v420
  %vm422 = vweird.f32 %v337
  %vm423 = vweird.f32 %v416
  %vm424 = vmor %vm422, %vm423
  %v425 = vsel %vm424, %v416, %v421
  %v426 = vrsqrt.pop %v338
  %v427 = vmul.f32 %v426, %v338
  %v428 = vmul.f32 %v427, %v426
  %v429 = vmul.f32 0.5, %v428
  %v430 = vsub.f32 1.5, %v429
  %v431 = vmul.f32 %v426, %v430
  %vm432 = vweird.f32 %v338
  %vm433 = vweird.f32 %v426
  %vm434 = vmor %vm432, %vm433
  %v435 = vsel %vm434, %v426, %v431
  %v436 = vrsqrt.pop %v339
  %v437 = vmul.f32 %v436, %v339
  %v438 = vmul.f32 %v437, %v436
  %v439 = vmul.f32 0.5, %v438
  %v440 = vsub.f32 1.5, %v439
  %v441 = vmul.f32 %v436, %v440
  %vm442 = vweird.f32 %v339
  %vm443 = vweird.f32 %v436
  %vm444 = vmor %vm442, %vm443
  %v445 = vsel %vm444, %v436, %v441
  %v446 = vrsqrt.pop %v340
  %v447 = vmul.f32 %v446, %v340
  %v448 = vmul.f32 %v447, %v446
  %v449 = vmul.f32 0.5, %v448
  %v450 = vsub.f32 1.5, %v449
  %v451 = vmul.f32 %v446, %v450
  %vm452 = vweird.f32 %v340
  %vm453 = vweird.f32 %v446
  %vm454 = vmor %vm452, %vm453
  %v455 = vsel %vm454, %v446, %v451
  %v456 = vrsqrt.pop %v341
  %v457 = vmul.f32 %v456, %v341
  %v458 = vmul.f32 %v457, %v456
  %v459 = vmul.f32 0.5, %v458
  %v460 = vsub.f32 1.5, %v459
  %v461 = vmul.f32 %v456, %v460
  %vm462 = vweird.f32 %v341
  %vm463 = vweird.f32 %v456
  %vm464 = vmor %vm462, %vm463
  %v465 = vsel %vm464, %v456, %v461
  %v466 = vrsqrt.pop %v342
  %v467 = vmul.f32 %v466, %v342
  %v468 = vmul.f32 %v467, %v466
  %v469 = vmul.f32 0.5, %v468
  %v470 = vsub.f32 1.5, %v469
  %v471 = vmul.f32 %v466, %v470
  %vm472 = vweird.f32 %v342
  %vm473 = vweird.f32 %v466
  %vm474 = vmor %vm472, %vm473
  %v475 = vsel %vm474, %v466, %v471
  %v476 = vrsqrt.pop %v343
  %v477 = vmul.f32 %v476, %v343
  %v478 = vmul.f32 %v477, %v476
  %v479 = vmul.f32 0.5, %v478
  %v480 = vsub.f32 1.5, %v479
  %v481 = vmul.f32 %v476, %v480
  %vm482 = vweird.f32 %v343
  %vm483 = vweird.f32 %v476
  %vm484 = vmor %vm482, %vm483
  %v485 = vsel %vm484, %v476, %v481
  %v486 = vrsqrt.pop %v344
  %v487 = vmul.f32 %v486, %v344
  %v488 = vmul.f32 %v487, %v486
  %v489 = vmul.f32 0.5, %v488
  %v490 = vsub.f32 1.5, %v489
  %v491 = vmul.f32 %v486, %v490
  %vm492 = vweird.f32 %v344
  %vm493 = vweird.f32 %v486
  %vm494 = vmor %vm492, %vm493
  %v495 = vsel %vm494, %v486, %v491
  %v496 = vrsqrt.pop %v345
  %v497 = vmul.f32 %v496, %v345
  %v498 = vmul.f32 %v497, %v496
  %v499 = vmul.f32 0.5, %v498
  %v500 = vsub.f32 1.5, %v499
  %v501 = vmul.f32 %v496, %v500
  %vm502 = vweird.f32 %v345
  %vm503 = vweird.f32 %v496
  %vm504 = vmor %vm502, %vm503
  %v505 = vsel %vm504, %v496, %v501
  %v506 = vmul.f32 %v234, %v355
  %v507 = vmul.f32 %v235, %v365
  %v508 = vmul.f32 %v236, %v375
  %v509 = vmul.f32 %v237, %v385
  %v510 = vmul.f32 %v238, %v395
  %v511 = vmul.f32 %v239, %v405
  %v512 = vmul.f32 %v240, %v415
  %v513 = vmul.f32 %v241, %v425
  %v514 = vmul.f32 %v242, %v435
  %v515 = vmul.f32 %v243, %v445
  %v516 = vmul.f32 %v244, %v455
  %v517 = vmul.f32 %v245, %v465
  %v518 = vmul.f32 %v246, %v475
  %v519 = vmul.f32 %v247, %v485
  %v520 = vmul.f32 %v248, %v495
  %v521 = vmul.f32 %v249, %v505
  %v523 = vperm.slane %v160, 0
  %v525 = vmul.f32 %v506, %v523
  %v526 = vmul.f32 %v507, %v523
  %v527 = vmul.f32 %v508, %v523
  %v528 = vmul.f32 %v509, %v523
  %v529 = vmul.f32 %v510, %v523
  %v530 = vmul.f32 %v511, %v523
  %v531 = vmul.f32 %v512, %v523
  %v532 = vmul.f32 %v513, %v523
  %v533 = vmul.f32 %v514, %v523
  %v534 = vmul.f32 %v515, %v523
  %v535 = vmul.f32 %v516, %v523
  %v536 = vmul.f32 %v517, %v523
  %v537 = vmul.f32 %v518, %v523
  %v538 = vmul.f32 %v519, %v523
  %v539 = vmul.f32 %v520, %v523
  %v540 = vmul.f32 %v521, %v523
  %v542 = vperm.slane %v161, 0
  %v544 = vadd.f32 %v525, %v542
  %v545 = vadd.f32 %v526, %v542
  %v546 = vadd.f32 %v527, %v542
  %v547 = vadd.f32 %v528, %v542
  %v548 = vadd.f32 %v529, %v542
  %v549 = vadd.f32 %v530, %v542
  %v550 = vadd.f32 %v531, %v542
  %v551 = vadd.f32 %v532, %v542
  %v552 = vadd.f32 %v533, %v542
  %v553 = vadd.f32 %v534, %v542
  %v554 = vadd.f32 %v535, %v542
  %v555 = vadd.f32 %v536, %v542
  %v556 = vadd.f32 %v537, %v542
  %v557 = vadd.f32 %v538, %v542
  %v558 = vadd.f32 %v539, %v542
  %v559 = vadd.f32 %v540, %v542
  %560 = vst.msk [vmem:[%s5] sm:$0xff] %vm162, %v544
  %561 = vst.msk [vmem:[%s5 + $0x8] sm:$0xff] %vm162, %v545
  %562 = vst.msk [vmem:[%s5 + $0x10] sm:$0xff] %vm162, %v546
  %563 = vst.msk [vmem:[%s5 + $0x18] sm:$0xff] %vm162, %v547
  %564 = vst.msk [vmem:[%s5 + $0x20] sm:$0xff] %vm162, %v548
  %565 = vst.msk [vmem:[%s5 + $0x28] sm:$0xff] %vm162, %v549
  %566 = vst.msk [vmem:[%s5 + $0x30] sm:$0xff] %vm162, %v550
  %567 = vst.msk [vmem:[%s5 + $0x38] sm:$0xff] %vm162, %v551
  %568 = vst.msk [vmem:[%s5 + $0x40] sm:$0xff] %vm162, %v552
  %569 = vst.msk [vmem:[%s5 + $0x48] sm:$0xff] %vm162, %v553
  %570 = vst.msk [vmem:[%s5 + $0x50] sm:$0xff] %vm162, %v554
  %571 = vst.msk [vmem:[%s5 + $0x58] sm:$0xff] %vm162, %v555
  %572 = vst.msk [vmem:[%s5 + $0x60] sm:$0xff] %vm162, %v556
  %573 = vst.msk [vmem:[%s5 + $0x68] sm:$0xff] %vm162, %v557
  %574 = vst.msk [vmem:[%s5 + $0x70] sm:$0xff] %vm162, %v558
  %575 = vst.msk [vmem:[%s5 + $0x78] sm:$0xff] %vm162, %v559
  // Predicated region
  $region22: #{swin_forward.7} parent=0 // pred_check
    _
  $region23: #{swin_forward.7} parent=0 // pred_check_branch
    %577 = sbr.rel (0) target = $region25
  $region24: #{swin_forward.7} parent=0 // pred_region
    _
  $region25: #{swin_forward.7} parent=0 // pred_fallthru
    _
  // Predicated region
  $region26: #{swin_forward.7} parent=0 // pred_check
    _
  $region27: #{swin_forward.7} parent=0 // pred_check_branch
    %579 = sbr.rel (0) target = $region29
  $region28: #{swin_forward.7} parent=0 // pred_region
    _
  $region29: #{swin_forward.7} parent=0 // pred_fallthru
    _

// kernel: swin_forward.10
$region0: #{swin_forward.10}
  #allocation0 [shape = 'u32[]', space=smem, size = 0x4, offset = 0x4, fixed_abs, tag = 'smem constant byte address 0x4 - core index']
  #allocation1 [shape = 'u32[72,128]{1,0:T(1,128)}', space=vmem, size = 0x9000, scoped, tag = 'internal scratch']
  %s0 = inlined_call_operand.vmem [shape: f32[32,128], index: 0, kind: input, shape index: {}]
  %s1 = inlined_call_operand.vmem [shape: f32[1,128], index: 1, kind: input, shape index: {}]
  %s2 = inlined_call_operand.vmem [shape: f32[1,128], index: 2, kind: input, shape index: {}]
  %s3 = inlined_call_operand.vmem [shape: f32[128,64], index: 3, kind: input, shape index: {}]
  %s4 = inlined_call_operand.vmem [shape: f32[32,64], index: 4, kind: output, shape index: {}]
  %s5 = sld [smem:[#allocation0]]
  $region26: #{swin_forward.10} parent=0
    _
  %s7 = ssub.s32 1, %s5
  %s8 = scalar_select 0, %s7, %s5
  // Predicated region
  $region2: #{swin_forward.10} parent=0 // pred_check
    _
  $region3: #{swin_forward.10} parent=0 // pred_check_branch
    %10 = sbr.rel (0) target = $region5
  $region4: #{swin_forward.10} parent=0 // pred_region
    _
  $region5: #{swin_forward.10} parent=0 // pred_fallthru
    _
  // Predicated region
  $region6: #{swin_forward.10} parent=0 // pred_check
    _
  $region7: #{swin_forward.10} parent=0 // pred_check_branch
    %12 = sbr.rel (0) target = $region9
  $region8: #{swin_forward.10} parent=0 // pred_region
    _
  $region9: #{swin_forward.10} parent=0 // pred_fallthru
    _
  // Predicated region
  $region10: #{swin_forward.10} parent=0 // pred_check
    _
  $region11: #{swin_forward.10} parent=0 // pred_check_branch
    %14 = sbr.rel (0) target = $region13
  $region12: #{swin_forward.10} parent=0 // pred_region
    _
  $region13: #{swin_forward.10} parent=0 // pred_fallthru
    _
  // Predicated region
  $region14: #{swin_forward.10} parent=0 // pred_check
    _
  $region15: #{swin_forward.10} parent=0 // pred_check_branch
    %16 = sbr.rel (0) target = $region17
  $region16: #{swin_forward.10} parent=0 // pred_region
    _
  $region17: #{swin_forward.10} parent=0 // pred_fallthru
    _
  %v17 = vld [vmem:[%s0] sm:$0xff]
  %v18 = vld [vmem:[%s0 + $0x8] sm:$0xff]
  %v19 = vld [vmem:[%s0 + $0x10] sm:$0xff]
  %v20 = vld [vmem:[%s0 + $0x18] sm:$0xff]
  %v21 = vld [vmem:[%s1] sm:$0x1]
  %v22 = vld [vmem:[%s2] sm:$0x1]
  %23 = vadd.xlane.f32.xlu0 %v17
  %v24 = vpop.xlane.xlu0 %23
  %25 = vadd.xlane.f32.xlu0 %v18
  %v26 = vpop.xlane.xlu0 %25
  %27 = vadd.xlane.f32.xlu0 %v19
  %v28 = vpop.xlane.xlu0 %27
  %29 = vadd.xlane.f32.xlu0 %v20
  %v30 = vpop.xlane.xlu0 %29
  %v31 = vrcp.pop 128.0
  %v32 = vmul.f32 128.0, %v31
  %v33 = vsub.f32 1.0, %v32
  %v34 = vmul.f32 %v31, %v33
  %v35 = vadd.f32 %v31, %v34
  %vm36 = vweird.f32 %v31
  %v37 = vsel %vm36, %v31, %v35
  %v38 = vmul.f32 %v24, %v37
  %v39 = vmul.f32 %v26, %v37
  %v40 = vmul.f32 %v28, %v37
  %v41 = vmul.f32 %v30, %v37
  %v42 = vsub.f32 %v17, %v38
  %v43 = vsub.f32 %v18, %v39
  %v44 = vsub.f32 %v19, %v40
  %v45 = vsub.f32 %v20, %v41
  %v46 = vmul.f32 %v42, %v42
  %v47 = vmul.f32 %v43, %v43
  %v48 = vmul.f32 %v44, %v44
  %v49 = vmul.f32 %v45, %v45
  %50 = vadd.xlane.f32.xlu0 %v46
  %v51 = vpop.xlane.xlu0 %50
  %52 = vadd.xlane.f32.xlu0 %v47
  %v53 = vpop.xlane.xlu0 %52
  %54 = vadd.xlane.f32.xlu0 %v48
  %v55 = vpop.xlane.xlu0 %54
  %56 = vadd.xlane.f32.xlu0 %v49
  %v57 = vpop.xlane.xlu0 %56
  %v58 = vmul.f32 %v51, %v37
  %v59 = vmul.f32 %v53, %v37
  %v60 = vmul.f32 %v55, %v37
  %v61 = vmul.f32 %v57, %v37
  %v62 = vadd.f32 %v58, 1e-05
  %v63 = vadd.f32 %v59, 1e-05
  %v64 = vadd.f32 %v60, 1e-05
  %v65 = vadd.f32 %v61, 1e-05
  %v66 = vrsqrt.pop %v62
  %v67 = vmul.f32 %v66, %v62
  %v68 = vmul.f32 %v67, %v66
  %v69 = vmul.f32 0.5, %v68
  %v70 = vsub.f32 1.5, %v69
  %v71 = vmul.f32 %v66, %v70
  %vm72 = vweird.f32 %v62
  %vm73 = vweird.f32 %v66
  %vm74 = vmor %vm72, %vm73
  %v75 = vsel %vm74, %v66, %v71
  %v76 = vrsqrt.pop %v63
  %v77 = vmul.f32 %v76, %v63
  %v78 = vmul.f32 %v77, %v76
  %v79 = vmul.f32 0.5, %v78
  %v80 = vsub.f32 1.5, %v79
  %v81 = vmul.f32 %v76, %v80
  %vm82 = vweird.f32 %v63
  %vm83 = vweird.f32 %v76
  %vm84 = vmor %vm82, %vm83
  %v85 = vsel %vm84, %v76, %v81
  %v86 = vrsqrt.pop %v64
  %v87 = vmul.f32 %v86, %v64
  %v88 = vmul.f32 %v87, %v86
  %v89 = vmul.f32 0.5, %v88
  %v90 = vsub.f32 1.5, %v89
  %v91 = vmul.f32 %v86, %v90
  %vm92 = vweird.f32 %v64
  %vm93 = vweird.f32 %v86
  %vm94 = vmor %vm92, %vm93
  %v95 = vsel %vm94, %v86, %v91
  %v96 = vrsqrt.pop %v65
  %v97 = vmul.f32 %v96, %v65
  %v98 = vmul.f32 %v97, %v96
  %v99 = vmul.f32 0.5, %v98
  %v100 = vsub.f32 1.5, %v99
  %v101 = vmul.f32 %v96, %v100
  %vm102 = vweird.f32 %v65
  %vm103 = vweird.f32 %v96
  %vm104 = vmor %vm102, %vm103
  %v105 = vsel %vm104, %v96, %v101
  %v106 = vmul.f32 %v42, %v75
  %v107 = vmul.f32 %v43, %v85
  %v108 = vmul.f32 %v44, %v95
  %v109 = vmul.f32 %v45, %v105
  %v111 = vperm.slane %v21, 0
  %v113 = vmul.f32 %v106, %v111
  %v114 = vmul.f32 %v107, %v111
  %v115 = vmul.f32 %v108, %v111
  %v116 = vmul.f32 %v109, %v111
  %v118 = vperm.slane %v22, 0
  %v120 = vadd.f32 %v113, %v118
  %v121 = vadd.f32 %v114, %v118
  %v122 = vadd.f32 %v115, %v118
  %v123 = vadd.f32 %v116, %v118
  %v124 = vld [vmem:[%s3] sm:$0xff]
  %v125 = vld [vmem:[%s3 + $0x8] sm:$0xff]
  %v126 = vld [vmem:[%s3 + $0x10] sm:$0xff]
  %v127 = vld [vmem:[%s3 + $0x18] sm:$0xff]
  %v128 = vld [vmem:[%s3 + $0x20] sm:$0xff]
  %v129 = vld [vmem:[%s3 + $0x28] sm:$0xff]
  %v130 = vld [vmem:[%s3 + $0x30] sm:$0xff]
  %v131 = vld [vmem:[%s3 + $0x38] sm:$0xff]
  %v132 = vld [vmem:[%s3 + $0x40] sm:$0xff]
  %v133 = vld [vmem:[%s3 + $0x48] sm:$0xff]
  %v134 = vld [vmem:[%s3 + $0x50] sm:$0xff]
  %v135 = vld [vmem:[%s3 + $0x58] sm:$0xff]
  %v136 = vld [vmem:[%s3 + $0x60] sm:$0xff]
  %v137 = vld [vmem:[%s3 + $0x68] sm:$0xff]
  %v138 = vld [vmem:[%s3 + $0x70] sm:$0xff]
  %v139 = vld [vmem:[%s3 + $0x78] sm:$0xff]
  %140 = vmatpush.msra.mxu0 %v139
  %141 = vmatpush.msra.mxu0 %v138
  %142 = vmatpush.msra.mxu0 %v137
  %143 = vmatpush.msra.mxu0 %v136
  %144 = vmatpush.msra.mxu0 %v135
  %145 = vmatpush.msra.mxu0 %v134
  %146 = vmatpush.msra.mxu0 %v133
  %147 = vmatpush.msra.mxu0 %v132
  %148 = vmatpush.msra.mxu0 %v131
  %149 = vmatpush.msra.mxu0 %v130
  %150 = vmatpush.msra.mxu0 %v129
  %151 = vmatpush.msra.mxu0 %v128
  %152 = vmatpush.msra.mxu0 %v127
  %153 = vmatpush.msra.mxu0 %v126
  %154 = vmatpush.msra.mxu0 %v125
  %155 = vmatpush.msra.mxu0 %v124
  %156 = vmatmul.f32.gmra.mxu0 %v120
  %v157 = vpop.f32.mrf.mxu0
  %v158 = vadd.f32 0.0, %v157
  %159 = vmatmul.f32.gmra.mxu0 %v121
  %v160 = vpop.f32.mrf.mxu0
  %v161 = vadd.f32 0.0, %v160
  %162 = vmatmul.f32.gmra.mxu0 %v122
  %v163 = vpop.f32.mrf.mxu0
  %v164 = vadd.f32 0.0, %v163
  %165 = vmatmul.f32.gmra.mxu0 %v123
  %v166 = vpop.f32.mrf.mxu0
  %v167 = vadd.f32 0.0, %v166
  %168 = vdwg.mxu0
  %vm169 = vcmask 523264
  %170 = vst.msk [vmem:[%s4] sm:$0xff] %vm169, %v158
  %171 = vst.msk [vmem:[%s4 + $0x8] sm:$0xff] %vm169, %v161
  %172 = vst.msk [vmem:[%s4 + $0x10] sm:$0xff] %vm169, %v164
  %173 = vst.msk [vmem:[%s4 + $0x18] sm:$0xff] %vm169, %v167
  // Predicated region
  $region18: #{swin_forward.10} parent=0 // pred_check
    _
  $region19: #{swin_forward.10} parent=0 // pred_check_branch
    %175 = sbr.rel (0) target = $region21
  $region20: #{swin_forward.10} parent=0 // pred_region
    _
  $region21: #{swin_forward.10} parent=0 // pred_fallthru
    _
  // Predicated region
  $region22: #{swin_forward.10} parent=0 // pred_check
    _
  $region23: #{swin_forward.10} parent=0 // pred_check_branch
    %177 = sbr.rel (0) target = $region25
  $region24: #{swin_forward.10} parent=0 // pred_region
    _
  $region25: #{swin_forward.10} parent=0 // pred_fallthru
    _

// kernel: swin_forward.13
$region0: #{swin_forward.13}
  #allocation0 [shape = 'u32[]', space=smem, size = 0x4, offset = 0x4, fixed_abs, tag = 'smem constant byte address 0x4 - core index']
  #allocation1 [shape = 'u32[72,128]{1,0:T(1,128)}', space=vmem, size = 0x9000, scoped, tag = 'internal scratch']
  %s0 = inlined_call_operand.vmem [shape: f32[32,64], index: 0, kind: input, shape index: {}]
  %s1 = inlined_call_operand.vmem [shape: f32[1,64], index: 1, kind: input, shape index: {}]
  %s2 = inlined_call_operand.vmem [shape: f32[1,64], index: 2, kind: input, shape index: {}]
  %s3 = inlined_call_operand.vmem [shape: f32[2,32], index: 3, kind: input, shape index: {}]
  %s4 = inlined_call_operand.hbm [shape: f32[2,64], index: 4, kind: output, shape index: {}]
  %s5 = sld [smem:[#allocation0]]
  $region26: #{swin_forward.13} parent=0
    _
  %s7 = ssub.s32 1, %s5
  %s8 = scalar_select 0, %s7, %s5
  $region1: #{swin_forward.13} parent=0
    #allocation2 [shape = 'u8[1024]{0}', space=vmem, size = 0x400, scoped, tag = 'output window, operand 0, single buffered']
    #allocation3 [shape = 's32[1]{0}', space=sflag, size = 0x4, scoped, tag = 'scoped memory for swin_forward.13']
    %9 = vsyncpa [#allocation3], 0
    // Predicated region
    $region2: #{swin_forward.13} parent=1 // pred_check
      _
    $region3: #{swin_forward.13} parent=1 // pred_check_branch
      %11 = sbr.rel (0) target = $region5
    $region4: #{swin_forward.13} parent=1 // pred_region
      _
    $region5: #{swin_forward.13} parent=1 // pred_fallthru
      _
    // Predicated region
    $region6: #{swin_forward.13} parent=1 // pred_check
      _
    $region7: #{swin_forward.13} parent=1 // pred_check_branch
      %13 = sbr.rel (0) target = $region9
    $region8: #{swin_forward.13} parent=1 // pred_region
      _
    $region9: #{swin_forward.13} parent=1 // pred_fallthru
      _
    // Predicated region
    $region10: #{swin_forward.13} parent=1 // pred_check
      _
    $region11: #{swin_forward.13} parent=1 // pred_check_branch
      %15 = sbr.rel (0) target = $region13
    $region12: #{swin_forward.13} parent=1 // pred_region
      _
    $region13: #{swin_forward.13} parent=1 // pred_fallthru
      _
    // Predicated region
    $region14: #{swin_forward.13} parent=1 // pred_check
      _
    $region15: #{swin_forward.13} parent=1 // pred_check_branch
      %17 = sbr.rel (0) target = $region17
    $region16: #{swin_forward.13} parent=1 // pred_region
      _
    $region17: #{swin_forward.13} parent=1 // pred_fallthru
      _
    %v18 = vld [vmem:[%s0] sm:$0xff]
    %v19 = vld [vmem:[%s0 + $0x8] sm:$0xff]
    %v20 = vld [vmem:[%s0 + $0x10] sm:$0xff]
    %v21 = vld [vmem:[%s0 + $0x18] sm:$0xff]
    %v22 = vld [vmem:[%s1] sm:$0x1]
    %v23 = vld [vmem:[%s2] sm:$0x1]
    %vm24 = vcmask 523264
    %v25 = vsel %vm24, %v18, 0.0
    %26 = vadd.xlane.f32.xlu0 %v25
    %v27 = vpop.xlane.xlu0 %26
    %v28 = vsel %vm24, %v19, 0.0
    %29 = vadd.xlane.f32.xlu0 %v28
    %v30 = vpop.xlane.xlu0 %29
    %v31 = vsel %vm24, %v20, 0.0
    %32 = vadd.xlane.f32.xlu0 %v31
    %v33 = vpop.xlane.xlu0 %32
    %v34 = vsel %vm24, %v21, 0.0
    %35 = vadd.xlane.f32.xlu0 %v34
    %v36 = vpop.xlane.xlu0 %35
    %v37 = vrcp.pop 64.0
    %v38 = vmul.f32 64.0, %v37
    %v39 = vsub.f32 1.0, %v38
    %v40 = vmul.f32 %v37, %v39
    %v41 = vadd.f32 %v37, %v40
    %vm42 = vweird.f32 %v37
    %v43 = vsel %vm42, %v37, %v41
    %v44 = vmul.f32 %v27, %v43
    %v45 = vmul.f32 %v30, %v43
    %v46 = vmul.f32 %v33, %v43
    %v47 = vmul.f32 %v36, %v43
    %v48 = vsub.f32 %v18, %v44
    %v49 = vsub.f32 %v19, %v45
    %v50 = vsub.f32 %v20, %v46
    %v51 = vsub.f32 %v21, %v47
    %v52 = vmul.f32 %v48, %v48
    %v53 = vmul.f32 %v49, %v49
    %v54 = vmul.f32 %v50, %v50
    %v55 = vmul.f32 %v51, %v51
    %v56 = vsel %vm24, %v52, 0.0
    %57 = vadd.xlane.f32.xlu0 %v56
    %v58 = vpop.xlane.xlu0 %57
    %v59 = vsel %vm24, %v53, 0.0
    %60 = vadd.xlane.f32.xlu0 %v59
    %v61 = vpop.xlane.xlu0 %60
    %v62 = vsel %vm24, %v54, 0.0
    %63 = vadd.xlane.f32.xlu0 %v62
    %v64 = vpop.xlane.xlu0 %63
    %v65 = vsel %vm24, %v55, 0.0
    %66 = vadd.xlane.f32.xlu0 %v65
    %v67 = vpop.xlane.xlu0 %66
    %v68 = vmul.f32 %v58, %v43
    %v69 = vmul.f32 %v61, %v43
    %v70 = vmul.f32 %v64, %v43
    %v71 = vmul.f32 %v67, %v43
    %v72 = vadd.f32 %v68, 1e-05
    %v73 = vadd.f32 %v69, 1e-05
    %v74 = vadd.f32 %v70, 1e-05
    %v75 = vadd.f32 %v71, 1e-05
    %v76 = vrsqrt.pop %v72
    %v77 = vmul.f32 %v76, %v72
    %v78 = vmul.f32 %v77, %v76
    %v79 = vmul.f32 0.5, %v78
    %v80 = vsub.f32 1.5, %v79
    %v81 = vmul.f32 %v76, %v80
    %vm82 = vweird.f32 %v72
    %vm83 = vweird.f32 %v76
    %vm84 = vmor %vm82, %vm83
    %v85 = vsel %vm84, %v76, %v81
    %v86 = vrsqrt.pop %v73
    %v87 = vmul.f32 %v86, %v73
    %v88 = vmul.f32 %v87, %v86
    %v89 = vmul.f32 0.5, %v88
    %v90 = vsub.f32 1.5, %v89
    %v91 = vmul.f32 %v86, %v90
    %vm92 = vweird.f32 %v73
    %vm93 = vweird.f32 %v86
    %vm94 = vmor %vm92, %vm93
    %v95 = vsel %vm94, %v86, %v91
    %v96 = vrsqrt.pop %v74
    %v97 = vmul.f32 %v96, %v74
    %v98 = vmul.f32 %v97, %v96
    %v99 = vmul.f32 0.5, %v98
    %v100 = vsub.f32 1.5, %v99
    %v101 = vmul.f32 %v96, %v100
    %vm102 = vweird.f32 %v74
    %vm103 = vweird.f32 %v96
    %vm104 = vmor %vm102, %vm103
    %v105 = vsel %vm104, %v96, %v101
    %v106 = vrsqrt.pop %v75
    %v107 = vmul.f32 %v106, %v75
    %v108 = vmul.f32 %v107, %v106
    %v109 = vmul.f32 0.5, %v108
    %v110 = vsub.f32 1.5, %v109
    %v111 = vmul.f32 %v106, %v110
    %vm112 = vweird.f32 %v75
    %vm113 = vweird.f32 %v106
    %vm114 = vmor %vm112, %vm113
    %v115 = vsel %vm114, %v106, %v111
    %v116 = vmul.f32 %v48, %v85
    %v117 = vmul.f32 %v49, %v95
    %v118 = vmul.f32 %v50, %v105
    %v119 = vmul.f32 %v51, %v115
    %v121 = vperm.slane %v22, 0
    %v123 = vmul.f32 %v116, %v121
    %v124 = vmul.f32 %v117, %v121
    %v125 = vmul.f32 %v118, %v121
    %v126 = vmul.f32 %v119, %v121
    %v128 = vperm.slane %v23, 0
    %v130 = vadd.f32 %v123, %v128
    %v131 = vadd.f32 %v124, %v128
    %v132 = vadd.f32 %v125, %v128
    %v133 = vadd.f32 %v126, %v128
    %v134 = vld [vmem:[%s3] sm:$0x3]
    %vm135 = vcmask 261120
    %v137 = vsel %vm135, %v134, 0
    %139 = vmatpush.msra.mxu0 0.0
    %140 = vmatpush.msra.mxu0 0.0
    %141 = vmatpush.msra.mxu0 0.0
    %142 = vmatpush.msra.mxu0 0.0
    %143 = vmatpush.msra.mxu0 0.0
    %144 = vmatpush.msra.mxu0 0.0
    %145 = vmatpush.msra.mxu0 0.0
    %146 = vmatpush.msra.mxu0 0.0
    %147 = vmatpush.msra.mxu0 0.0
    %148 = vmatpush.msra.mxu0 0.0
    %149 = vmatpush.msra.mxu0 0.0
    %150 = vmatpush.msra.mxu0 0.0
    %151 = vmatpush.msra.mxu0 %v133
    %152 = vmatpush.msra.mxu0 %v132
    %153 = vmatpush.msra.mxu0 %v131
    %154 = vmatpush.msra.mxu0 %v130
    %155 = vmatmul.f32.gmra.mxu0 %v137
    %v156 = vpop.f32.mrf.mxu0
    %v157 = vadd.f32 0.0, %v156
    %158 = vdwg.mxu0
    %vm159 = vcmask 517120
    %160 = vst.msk [vmem:[#allocation2] sm:$0x3] %vm159, %v157
    // Predicated region
    $region18: #{swin_forward.13} parent=1 // pred_check
      _
    $region19: #{swin_forward.13} parent=1 // pred_check_branch
      %162 = sbr.rel (0) target = $region21
    $region20: #{swin_forward.13} parent=1 // pred_region
      %164 = vsyncadd [#allocation3], 0
      %s166 = sshll.u32 [#allocation2], 4
      %s167 = int_to_ptr.vmem [resolvable:$true] %s166
      %s168 = sshll.u32 %s4, 4
      %s169 = int_to_ptr.hbm [resolvable:$true] %s168
      %171 = dma.vmem_to_hbm [thread:$0]  %s167, 32, %s169, [#allocation3]
    $region21: #{swin_forward.13} parent=1 // pred_fallthru
      _
    // Predicated region
    $region22: #{swin_forward.13} parent=1 // pred_check
      _
    $region23: #{swin_forward.13} parent=1 // pred_check_branch
      %173 = sbr.rel (0) target = $region25
    $region24: #{swin_forward.13} parent=1 // pred_region
      %175 = dma.done [#allocation3], 32
    $region25: #{swin_forward.13} parent=1 // pred_fallthru
      _
    %176 = vsyncpa [#allocation3], 1

// kernel: swin_forward.8
$region0: #{swin_forward.8}
  #allocation0 [shape = 'u32[]', space=smem, size = 0x4, offset = 0x4, fixed_abs, tag = 'smem constant byte address 0x4 - core index']
  #allocation1 [shape = 'u32[72,128]{1,0:T(1,128)}', space=vmem, size = 0x9000, scoped, tag = 'internal scratch']
  #allocation2 [shape = 'f32[1,1]{1,0:T(1,128)S(1)}', space=vmem, size = 0x200, scoped, tag = 'scoped memory for swin_forward.8']
  %s0 = inlined_call_operand.vmem [shape: f32[128,32], index: 0, kind: input, shape index: {}]
  %s1 = inlined_call_operand.vmem [shape: f32[1,32], index: 1, kind: input, shape index: {}]
  %s2 = inlined_call_operand.vmem [shape: f32[1,32], index: 2, kind: input, shape index: {}]
  %s3 = inlined_call_operand.vmem [shape: f32[2,32,16], index: 3, kind: input, shape index: {}]
  %s4 = inlined_call_operand.vmem [shape: f32[2,1,16], index: 4, kind: input, shape index: {}]
  %s5 = inlined_call_operand.vmem [shape: f32[2,32,16], index: 5, kind: input, shape index: {}]
  %s6 = inlined_call_operand.vmem [shape: f32[2,1,16], index: 6, kind: input, shape index: {}]
  %s7 = inlined_call_operand.vmem [shape: f32[2,32,16], index: 7, kind: input, shape index: {}]
  %s8 = inlined_call_operand.vmem [shape: f32[2,1,16], index: 8, kind: input, shape index: {}]
  %s9 = inlined_call_operand.vmem [shape: f32[2,128,128], index: 9, kind: input, shape index: {}]
  %s10 = inlined_call_operand.vmem [shape: f32[2,16,32], index: 10, kind: input, shape index: {}]
  %s11 = inlined_call_operand.vmem [shape: f32[1,32], index: 11, kind: input, shape index: {}]
  %s12 = inlined_call_operand.vmem [shape: f32[20,32], index: 12, kind: input, shape index: {}]
  %s13 = inlined_call_operand.vmem [shape: f32[20,128], index: 13, kind: input, shape index: {}]
  %s14 = inlined_call_operand.vmem [shape: f32[128,20], index: 14, kind: input, shape index: {}]
  %s15 = inlined_call_operand.vmem [shape: f32[1,32], index: 15, kind: input, shape index: {}]
  %s16 = inlined_call_operand.vmem [shape: f32[1,32], index: 16, kind: input, shape index: {}]
  %s17 = inlined_call_operand.vmem [shape: f32[32,128], index: 17, kind: input, shape index: {}]
  %s18 = inlined_call_operand.vmem [shape: f32[1,128], index: 18, kind: input, shape index: {}]
  %s19 = inlined_call_operand.vmem [shape: f32[128,32], index: 19, kind: input, shape index: {}]
  %s20 = inlined_call_operand.vmem [shape: f32[1,32], index: 20, kind: input, shape index: {}]
  %s21 = inlined_call_operand.vmem [shape: f32[32,10], index: 21, kind: input, shape index: {}]
  %s22 = inlined_call_operand.vmem [shape: f32[1,10], index: 22, kind: input, shape index: {}]
  %s23 = inlined_call_operand.vmem [shape: f32[10,32], index: 23, kind: input, shape index: {}]
  %s24 = inlined_call_operand.vmem [shape: f32[1,32], index: 24, kind: input, shape index: {}]
  %s25 = inlined_call_operand.<no memory space> [shape: f32[1,1], index: 25, kind: input, shape index: {}]
  %s26 = inlined_call_operand.vmem [shape: f32[128,32], index: 26, kind: output, shape index: {}]
  %s27 = sld [smem:[#allocation0]]
  $region114: #{swin_forward.8} parent=0
    _
  %s29 = ssub.s32 1, %s27
  %s30 = scalar_select 0, %s29, %s27
  %v31 = vstv %s25
  %32 = vst [vmem:[#allocation2] sm:$0x1] %v31
  // Predicated region
  $region2: #{swin_forward.8} parent=0 // pred_check
    _
  $region3: #{swin_forward.8} parent=0 // pred_check_branch
    %34 = sbr.rel (0) target = $region5
  $region4: #{swin_forward.8} parent=0 // pred_region
    _
  $region5: #{swin_forward.8} parent=0 // pred_fallthru
    _
  // Predicated region
  $region6: #{swin_forward.8} parent=0 // pred_check
    _
  $region7: #{swin_forward.8} parent=0 // pred_check_branch
    %36 = sbr.rel (0) target = $region9
  $region8: #{swin_forward.8} parent=0 // pred_region
    _
  $region9: #{swin_forward.8} parent=0 // pred_fallthru
    _
  // Predicated region
  $region10: #{swin_forward.8} parent=0 // pred_check
    _
  $region11: #{swin_forward.8} parent=0 // pred_check_branch
    %38 = sbr.rel (0) target = $region13
  $region12: #{swin_forward.8} parent=0 // pred_region
    _
  $region13: #{swin_forward.8} parent=0 // pred_fallthru
    _
  // Predicated region
  $region14: #{swin_forward.8} parent=0 // pred_check
    _
  $region15: #{swin_forward.8} parent=0 // pred_check_branch
    %40 = sbr.rel (0) target = $region17
  $region16: #{swin_forward.8} parent=0 // pred_region
    _
  $region17: #{swin_forward.8} parent=0 // pred_fallthru
    _
  // Predicated region
  $region18: #{swin_forward.8} parent=0 // pred_check
    _
  $region19: #{swin_forward.8} parent=0 // pred_check_branch
    %42 = sbr.rel (0) target = $region21
  $region20: #{swin_forward.8} parent=0 // pred_region
    _
  $region21: #{swin_forward.8} parent=0 // pred_fallthru
    _
  // Predicated region
  $region22: #{swin_forward.8} parent=0 // pred_check
    _
  $region23: #{swin_forward.8} parent=0 // pred_check_branch
    %44 = sbr.rel (0) target = $region25
  $region24: #{swin_forward.8} parent=0 // pred_region
    _
  $region25: #{swin_forward.8} parent=0 // pred_fallthru
    _
  // Predicated region
  $region26: #{swin_forward.8} parent=0 // pred_check
    _
  $region27: #{swin_forward.8} parent=0 // pred_check_branch
    %46 = sbr.rel (0) target = $region29
  $region28: #{swin_forward.8} parent=0 // pred_region
    _
  $region29: #{swin_forward.8} parent=0 // pred_fallthru
    _
  // Predicated region
  $region30: #{swin_forward.8} parent=0 // pred_check
    _
  $region31: #{swin_forward.8} parent=0 // pred_check_branch
    %48 = sbr.rel (0) target = $region33
  $region32: #{swin_forward.8} parent=0 // pred_region
    _
  $region33: #{swin_forward.8} parent=0 // pred_fallthru
    _
  // Predicated region
  $region34: #{swin_forward.8} parent=0 // pred_check
    _
  $region35: #{swin_forward.8} parent=0 // pred_check_branch
    %50 = sbr.rel (0) target = $region37
  $region36: #{swin_forward.8} parent=0 // pred_region
    _
  $region37: #{swin_forward.8} parent=0 // pred_fallthru
    _
  // Predicated region
  $region38: #{swin_forward.8} parent=0 // pred_check
    _
  $region39: #{swin_forward.8} parent=0 // pred_check_branch
    %52 = sbr.rel (0) target = $region41
  $region40: #{swin_forward.8} parent=0 // pred_region
    _
  $region41: #{swin_forward.8} parent=0 // pred_fallthru
    _
  // Predicated region
  $region42: #{swin_forward.8} parent=0 // pred_check
    _
  $region43: #{swin_forward.8} parent=0 // pred_check_branch
    %54 = sbr.rel (0) target = $region45
  $region44: #{swin_forward.8} parent=0 // pred_region
    _
  $region45: #{swin_forward.8} parent=0 // pred_fallthru
    _
  // Predicated region
  $region46: #{swin_forward.8} parent=0 // pred_check
    _
  $region47: #{swin_forward.8} parent=0 // pred_check_branch
    %56 = sbr.rel (0) target = $region49
  $region48: #{swin_forward.8} parent=0 // pred_region
    _
  $region49: #{swin_forward.8} parent=0 // pred_fallthru
    _
  // Predicated region
  $region50: #{swin_forward.8} parent=0 // pred_check
    _
  $region51: #{swin_forward.8} parent=0 // pred_check_branch
    %58 = sbr.rel (0) target = $region53
  $region52: #{swin_forward.8} parent=0 // pred_region
    _
  $region53: #{swin_forward.8} parent=0 // pred_fallthru
    _
  // Predicated region
  $region54: #{swin_forward.8} parent=0 // pred_check
    _
  $region55: #{swin_forward.8} parent=0 // pred_check_branch
    %60 = sbr.rel (0) target = $region57
  $region56: #{swin_forward.8} parent=0 // pred_region
    _
  $region57: #{swin_forward.8} parent=0 // pred_fallthru
    _
  // Predicated region
  $region58: #{swin_forward.8} parent=0 // pred_check
    _
  $region59: #{swin_forward.8} parent=0 // pred_check_branch
    %62 = sbr.rel (0) target = $region61
  $region60: #{swin_forward.8} parent=0 // pred_region
    _
  $region61: #{swin_forward.8} parent=0 // pred_fallthru
    _
  // Predicated region
  $region62: #{swin_forward.8} parent=0 // pred_check
    _
  $region63: #{swin_forward.8} parent=0 // pred_check_branch
    %64 = sbr.rel (0) target = $region65
  $region64: #{swin_forward.8} parent=0 // pred_region
    _
  $region65: #{swin_forward.8} parent=0 // pred_fallthru
    _
  // Predicated region
  $region66: #{swin_forward.8} parent=0 // pred_check
    _
  $region67: #{swin_forward.8} parent=0 // pred_check_branch
    %66 = sbr.rel (0) target = $region69
  $region68: #{swin_forward.8} parent=0 // pred_region
    _
  $region69: #{swin_forward.8} parent=0 // pred_fallthru
    _
  // Predicated region
  $region70: #{swin_forward.8} parent=0 // pred_check
    _
  $region71: #{swin_forward.8} parent=0 // pred_check_branch
    %68 = sbr.rel (0) target = $region73
  $region72: #{swin_forward.8} parent=0 // pred_region
    _
  $region73: #{swin_forward.8} parent=0 // pred_fallthru
    _
  // Predicated region
  $region74: #{swin_forward.8} parent=0 // pred_check
    _
  $region75: #{swin_forward.8} parent=0 // pred_check_branch
    %70 = sbr.rel (0) target = $region77
  $region76: #{swin_forward.8} parent=0 // pred_region
    _
  $region77: #{swin_forward.8} parent=0 // pred_fallthru
    _
  // Predicated region
  $region78: #{swin_forward.8} parent=0 // pred_check
    _
  $region79: #{swin_forward.8} parent=0 // pred_check_branch
    %72 = sbr.rel (0) target = $region81
  $region80: #{swin_forward.8} parent=0 // pred_region
    _
  $region81: #{swin_forward.8} parent=0 // pred_fallthru
    _
  // Predicated region
  $region82: #{swin_forward.8} parent=0 // pred_check
    _
  $region83: #{swin_forward.8} parent=0 // pred_check_branch
    %74 = sbr.rel (0) target = $region85
  $region84: #{swin_forward.8} parent=0 // pred_region
    _
  $region85: #{swin_forward.8} parent=0 // pred_fallthru
    _
  // Predicated region
  $region86: #{swin_forward.8} parent=0 // pred_check
    _
  $region87: #{swin_forward.8} parent=0 // pred_check_branch
    %76 = sbr.rel (0) target = $region89
  $region88: #{swin_forward.8} parent=0 // pred_region
    _
  $region89: #{swin_forward.8} parent=0 // pred_fallthru
    _
  // Predicated region
  $region90: #{swin_forward.8} parent=0 // pred_check
    _
  $region91: #{swin_forward.8} parent=0 // pred_check_branch
    %78 = sbr.rel (0) target = $region93
  $region92: #{swin_forward.8} parent=0 // pred_region
    _
  $region93: #{swin_forward.8} parent=0 // pred_fallthru
    _
  // Predicated region
  $region94: #{swin_forward.8} parent=0 // pred_check
    _
  $region95: #{swin_forward.8} parent=0 // pred_check_branch
    %80 = sbr.rel (0) target = $region97
  $region96: #{swin_forward.8} parent=0 // pred_region
    _
  $region97: #{swin_forward.8} parent=0 // pred_fallthru
    _
  // Predicated region
  $region98: #{swin_forward.8} parent=0 // pred_check
    _
  $region99: #{swin_forward.8} parent=0 // pred_check_branch
    %82 = sbr.rel (0) target = $region101
  $region100: #{swin_forward.8} parent=0 // pred_region
    _
  $region101: #{swin_forward.8} parent=0 // pred_fallthru
    _
  // Predicated region
  $region102: #{swin_forward.8} parent=0 // pred_check
    _
  $region103: #{swin_forward.8} parent=0 // pred_check_branch
    %84 = sbr.rel (0) target = $region105
  $region104: #{swin_forward.8} parent=0 // pred_region
    _
  $region105: #{swin_forward.8} parent=0 // pred_fallthru
    _
  %v85 = vld [vmem:[%s0] sm:$0xff]
  %v86 = vld [vmem:[%s0 + $0x8] sm:$0xff]
  %v87 = vld [vmem:[%s0 + $0x10] sm:$0xff]
  %v88 = vld [vmem:[%s0 + $0x18] sm:$0xff]
  %v89 = vld [vmem:[%s0 + $0x20] sm:$0xff]
  %v90 = vld [vmem:[%s0 + $0x28] sm:$0xff]
  %v91 = vld [vmem:[%s0 + $0x30] sm:$0xff]
  %v92 = vld [vmem:[%s0 + $0x38] sm:$0xff]
  %v93 = vld [vmem:[%s0 + $0x40] sm:$0xff]
  %v94 = vld [vmem:[%s0 + $0x48] sm:$0xff]
  %v95 = vld [vmem:[%s0 + $0x50] sm:$0xff]
  %v96 = vld [vmem:[%s0 + $0x58] sm:$0xff]
  %v97 = vld [vmem:[%s0 + $0x60] sm:$0xff]
  %v98 = vld [vmem:[%s0 + $0x68] sm:$0xff]
  %v99 = vld [vmem:[%s0 + $0x70] sm:$0xff]
  %v100 = vld [vmem:[%s0 + $0x78] sm:$0xff]
  %v101 = vld [vmem:[%s1] sm:$0x1]
  %v102 = vld [vmem:[%s2] sm:$0x1]
  %vm103 = vcmask 261120
  %v104 = vsel %vm103, %v85, 0.0
  %105 = vadd.xlane.f32.xlu0 %v104
  %v106 = vpop.xlane.xlu0 %105
  %v107 = vsel %vm103, %v86, 0.0
  %108 = vadd.xlane.f32.xlu0 %v107
  %v109 = vpop.xlane.xlu0 %108
  %v110 = vsel %vm103, %v87, 0.0
  %111 = vadd.xlane.f32.xlu0 %v110
  %v112 = vpop.xlane.xlu0 %111
  %v113 = vsel %vm103, %v88, 0.0
  %114 = vadd.xlane.f32.xlu0 %v113
  %v115 = vpop.xlane.xlu0 %114
  %v116 = vsel %vm103, %v89, 0.0
  %117 = vadd.xlane.f32.xlu0 %v116
  %v118 = vpop.xlane.xlu0 %117
  %v119 = vsel %vm103, %v90, 0.0
  %120 = vadd.xlane.f32.xlu0 %v119
  %v121 = vpop.xlane.xlu0 %120
  %v122 = vsel %vm103, %v91, 0.0
  %123 = vadd.xlane.f32.xlu0 %v122
  %v124 = vpop.xlane.xlu0 %123
  %v125 = vsel %vm103, %v92, 0.0
  %126 = vadd.xlane.f32.xlu0 %v125
  %v127 = vpop.xlane.xlu0 %126
  %v128 = vsel %vm103, %v93, 0.0
  %129 = vadd.xlane.f32.xlu0 %v128
  %v130 = vpop.xlane.xlu0 %129
  %v131 = vsel %vm103, %v94, 0.0
  %132 = vadd.xlane.f32.xlu0 %v131
  %v133 = vpop.xlane.xlu0 %132
  %v134 = vsel %vm103, %v95, 0.0
  %135 = vadd.xlane.f32.xlu0 %v134
  %v136 = vpop.xlane.xlu0 %135
  %v137 = vsel %vm103, %v96, 0.0
  %138 = vadd.xlane.f32.xlu0 %v137
  %v139 = vpop.xlane.xlu0 %138
  %v140 = vsel %vm103, %v97, 0.0
  %141 = vadd.xlane.f32.xlu0 %v140
  %v142 = vpop.xlane.xlu0 %141
  %v143 = vsel %vm103, %v98, 0.0
  %144 = vadd.xlane.f32.xlu0 %v143
  %v145 = vpop.xlane.xlu0 %144
  %v146 = vsel %vm103, %v99, 0.0
  %147 = vadd.xlane.f32.xlu0 %v146
  %v148 = vpop.xlane.xlu0 %147
  %v149 = vsel %vm103, %v100, 0.0
  %150 = vadd.xlane.f32.xlu0 %v149
  %v151 = vpop.xlane.xlu0 %150
  %v152 = vrcp.pop 32.0
  %v153 = vmul.f32 32.0, %v152
  %v154 = vsub.f32 1.0, %v153
  %v155 = vmul.f32 %v152, %v154
  %v156 = vadd.f32 %v152, %v155
  %vm157 = vweird.f32 %v152
  %v158 = vsel %vm157, %v152, %v156
  %v159 = vmul.f32 %v106, %v158
  %v160 = vmul.f32 %v109, %v158
  %v161 = vmul.f32 %v112, %v158
  %v162 = vmul.f32 %v115, %v158
  %v163 = vmul.f32 %v118, %v158
  %v164 = vmul.f32 %v121, %v158
  %v165 = vmul.f32 %v124, %v158
  %v166 = vmul.f32 %v127, %v158
  %v167 = vmul.f32 %v130, %v158
  %v168 = vmul.f32 %v133, %v158
  %v169 = vmul.f32 %v136, %v158
  %v170 = vmul.f32 %v139, %v158
  %v171 = vmul.f32 %v142, %v158
  %v172 = vmul.f32 %v145, %v158
  %v173 = vmul.f32 %v148, %v158
  %v174 = vmul.f32 %v151, %v158
  %v175 = vsub.f32 %v85, %v159
  %v176 = vsub.f32 %v86, %v160
  %v177 = vsub.f32 %v87, %v161
  %v178 = vsub.f32 %v88, %v162
  %v179 = vsub.f32 %v89, %v163
  %v180 = vsub.f32 %v90, %v164
  %v181 = vsub.f32 %v91, %v165
  %v182 = vsub.f32 %v92, %v166
  %v183 = vsub.f32 %v93, %v167
  %v184 = vsub.f32 %v94, %v168
  %v185 = vsub.f32 %v95, %v169
  %v186 = vsub.f32 %v96, %v170
  %v187 = vsub.f32 %v97, %v171
  %v188 = vsub.f32 %v98, %v172
  %v189 = vsub.f32 %v99, %v173
  %v190 = vsub.f32 %v100, %v174
  %v191 = vmul.f32 %v175, %v175
  %v192 = vmul.f32 %v176, %v176
  %v193 = vmul.f32 %v177, %v177
  %v194 = vmul.f32 %v178, %v178
  %v195 = vmul.f32 %v179, %v179
  %v196 = vmul.f32 %v180, %v180
  %v197 = vmul.f32 %v181, %v181
  %v198 = vmul.f32 %v182, %v182
  %v199 = vmul.f32 %v183, %v183
  %v200 = vmul.f32 %v184, %v184
  %v201 = vmul.f32 %v185, %v185
  %v202 = vmul.f32 %v186, %v186
  %v203 = vmul.f32 %v187, %v187
  %v204 = vmul.f32 %v188, %v188
  %v205 = vmul.f32 %v189, %v189
  %v206 = vmul.f32 %v190, %v190
  %v207 = vsel %vm103, %v191, 0.0
  %208 = vadd.xlane.f32.xlu0 %v207
  %v209 = vpop.xlane.xlu0 %208
  %v210 = vsel %vm103, %v192, 0.0
  %211 = vadd.xlane.f32.xlu0 %v210
  %v212 = vpop.xlane.xlu0 %211
  %v213 = vsel %vm103, %v193, 0.0
  %214 = vadd.xlane.f32.xlu0 %v213
  %v215 = vpop.xlane.xlu0 %214
  %v216 = vsel %vm103, %v194, 0.0
  %217 = vadd.xlane.f32.xlu0 %v216
  %v218 = vpop.xlane.xlu0 %217
  %v219 = vsel %vm103, %v195, 0.0
  %220 = vadd.xlane.f32.xlu0 %v219
  %v221 = vpop.xlane.xlu0 %220
  %v222 = vsel %vm103, %v196, 0.0
  %223 = vadd.xlane.f32.xlu0 %v222
  %v224 = vpop.xlane.xlu0 %223
  %v225 = vsel %vm103, %v197, 0.0
  %226 = vadd.xlane.f32.xlu0 %v225
  %v227 = vpop.xlane.xlu0 %226
  %v228 = vsel %vm103, %v198, 0.0
  %229 = vadd.xlane.f32.xlu0 %v228
  %v230 = vpop.xlane.xlu0 %229
  %v231 = vsel %vm103, %v199, 0.0
  %232 = vadd.xlane.f32.xlu0 %v231
  %v233 = vpop.xlane.xlu0 %232
  %v234 = vsel %vm103, %v200, 0.0
  %235 = vadd.xlane.f32.xlu0 %v234
  %v236 = vpop.xlane.xlu0 %235
  %v237 = vsel %vm103, %v201, 0.0
  %238 = vadd.xlane.f32.xlu0 %v237
  %v239 = vpop.xlane.xlu0 %238
  %v240 = vsel %vm103, %v202, 0.0
  %241 = vadd.xlane.f32.xlu0 %v240
  %v242 = vpop.xlane.xlu0 %241
  %v243 = vsel %vm103, %v203, 0.0
  %244 = vadd.xlane.f32.xlu0 %v243
  %v245 = vpop.xlane.xlu0 %244
  %v246 = vsel %vm103, %v204, 0.0
  %247 = vadd.xlane.f32.xlu0 %v246
  %v248 = vpop.xlane.xlu0 %247
  %v249 = vsel %vm103, %v205, 0.0
  %250 = vadd.xlane.f32.xlu0 %v249
  %v251 = vpop.xlane.xlu0 %250
  %v252 = vsel %vm103, %v206, 0.0
  %253 = vadd.xlane.f32.xlu0 %v252
  %v254 = vpop.xlane.xlu0 %253
  %v255 = vmul.f32 %v209, %v158
  %v256 = vmul.f32 %v212, %v158
  %v257 = vmul.f32 %v215, %v158
  %v258 = vmul.f32 %v218, %v158
  %v259 = vmul.f32 %v221, %v158
  %v260 = vmul.f32 %v224, %v158
  %v261 = vmul.f32 %v227, %v158
  %v262 = vmul.f32 %v230, %v158
  %v263 = vmul.f32 %v233, %v158
  %v264 = vmul.f32 %v236, %v158
  %v265 = vmul.f32 %v239, %v158
  %v266 = vmul.f32 %v242, %v158
  %v267 = vmul.f32 %v245, %v158
  %v268 = vmul.f32 %v248, %v158
  %v269 = vmul.f32 %v251, %v158
  %v270 = vmul.f32 %v254, %v158
  %v271 = vadd.f32 %v255, 1e-05
  %v272 = vadd.f32 %v256, 1e-05
  %v273 = vadd.f32 %v257, 1e-05
  %v274 = vadd.f32 %v258, 1e-05
  %v275 = vadd.f32 %v259, 1e-05
  %v276 = vadd.f32 %v260, 1e-05
  %v277 = vadd.f32 %v261, 1e-05
  %v278 = vadd.f32 %v262, 1e-05
  %v279 = vadd.f32 %v263, 1e-05
  %v280 = vadd.f32 %v264, 1e-05
  %v281 = vadd.f32 %v265, 1e-05
  %v282 = vadd.f32 %v266, 1e-05
  %v283 = vadd.f32 %v267, 1e-05
  %v284 = vadd.f32 %v268, 1e-05
  %v285 = vadd.f32 %v269, 1e-05
  %v286 = vadd.f32 %v270, 1e-05
  %v287 = vrsqrt.pop %v271
  %v288 = vmul.f32 %v287, %v271
  %v289 = vmul.f32 %v288, %v287
  %v290 = vmul.f32 0.5, %v289
  %v291 = vsub.f32 1.5, %v290
  %v292 = vmul.f32 %v287, %v291
  %vm293 = vweird.f32 %v271
  %vm294 = vweird.f32 %v287
  %vm295 = vmor %vm293, %vm294
  %v296 = vsel %vm295, %v287, %v292
  %v297 = vrsqrt.pop %v272
  %v298 = vmul.f32 %v297, %v272
  %v299 = vmul.f32 %v298, %v297
  %v300 = vmul.f32 0.5, %v299
  %v301 = vsub.f32 1.5, %v300
  %v302 = vmul.f32 %v297, %v301
  %vm303 = vweird.f32 %v272
  %vm304 = vweird.f32 %v297
  %vm305 = vmor %vm303, %vm304
  %v306 = vsel %vm305, %v297, %v302
  %v307 = vrsqrt.pop %v273
  %v308 = vmul.f32 %v307, %v273
  %v309 = vmul.f32 %v308, %v307
  %v310 = vmul.f32 0.5, %v309
  %v311 = vsub.f32 1.5, %v310
  %v312 = vmul.f32 %v307, %v311
  %vm313 = vweird.f32 %v273
  %vm314 = vweird.f32 %v307
  %vm315 = vmor %vm313, %vm314
  %v316 = vsel %vm315, %v307, %v312
  %v317 = vrsqrt.pop %v274
  %v318 = vmul.f32 %v317, %v274
  %v319 = vmul.f32 %v318, %v317
  %v320 = vmul.f32 0.5, %v319
  %v321 = vsub.f32 1.5, %v320
  %v322 = vmul.f32 %v317, %v321
  %vm323 = vweird.f32 %v274
  %vm324 = vweird.f32 %v317
  %vm325 = vmor %vm323, %vm324
  %v326 = vsel %vm325, %v317, %v322
  %v327 = vrsqrt.pop %v275
  %v328 = vmul.f32 %v327, %v275
  %v329 = vmul.f32 %v328, %v327
  %v330 = vmul.f32 0.5, %v329
  %v331 = vsub.f32 1.5, %v330
  %v332 = vmul.f32 %v327, %v331
  %vm333 = vweird.f32 %v275
  %vm334 = vweird.f32 %v327
  %vm335 = vmor %vm333, %vm334
  %v336 = vsel %vm335, %v327, %v332
  %v337 = vrsqrt.pop %v276
  %v338 = vmul.f32 %v337, %v276
  %v339 = vmul.f32 %v338, %v337
  %v340 = vmul.f32 0.5, %v339
  %v341 = vsub.f32 1.5, %v340
  %v342 = vmul.f32 %v337, %v341
  %vm343 = vweird.f32 %v276
  %vm344 = vweird.f32 %v337
  %vm345 = vmor %vm343, %vm344
  %v346 = vsel %vm345, %v337, %v342
  %v347 = vrsqrt.pop %v277
  %v348 = vmul.f32 %v347, %v277
  %v349 = vmul.f32 %v348, %v347
  %v350 = vmul.f32 0.5, %v349
  %v351 = vsub.f32 1.5, %v350
  %v352 = vmul.f32 %v347, %v351
  %vm353 = vweird.f32 %v277
  %vm354 = vweird.f32 %v347
  %vm355 = vmor %vm353, %vm354
  %v356 = vsel %vm355, %v347, %v352
  %v357 = vrsqrt.pop %v278
  %v358 = vmul.f32 %v357, %v278
  %v359 = vmul.f32 %v358, %v357
  %v360 = vmul.f32 0.5, %v359
  %v361 = vsub.f32 1.5, %v360
  %v362 = vmul.f32 %v357, %v361
  %vm363 = vweird.f32 %v278
  %vm364 = vweird.f32 %v357
  %vm365 = vmor %vm363, %vm364
  %v366 = vsel %vm365, %v357, %v362
  %v367 = vrsqrt.pop %v279
  %v368 = vmul.f32 %v367, %v279
  %v369 = vmul.f32 %v368, %v367
  %v370 = vmul.f32 0.5, %v369
  %v371 = vsub.f32 1.5, %v370
  %v372 = vmul.f32 %v367, %v371
  %vm373 = vweird.f32 %v279
  %vm374 = vweird.f32 %v367
  %vm375 = vmor %vm373, %vm374
  %v376 = vsel %vm375, %v367, %v372
  %v377 = vrsqrt.pop %v280
  %v378 = vmul.f32 %v377, %v280
  %v379 = vmul.f32 %v378, %v377
  %v380 = vmul.f32 0.5, %v379
  %v381 = vsub.f32 1.5, %v380
  %v382 = vmul.f32 %v377, %v381
  %vm383 = vweird.f32 %v280
  %vm384 = vweird.f32 %v377
  %vm385 = vmor %vm383, %vm384
  %v386 = vsel %vm385, %v377, %v382
  %v387 = vrsqrt.pop %v281
  %v388 = vmul.f32 %v387, %v281
  %v389 = vmul.f32 %v388, %v387
  %v390 = vmul.f32 0.5, %v389
  %v391 = vsub.f32 1.5, %v390
  %v392 = vmul.f32 %v387, %v391
  %vm393 = vweird.f32 %v281
  %vm394 = vweird.f32 %v387
  %vm395 = vmor %vm393, %vm394
  %v396 = vsel %vm395, %v387, %v392
  %v397 = vrsqrt.pop %v282
  %v398 = vmul.f32 %v397, %v282
  %v399 = vmul.f32 %v398, %v397
  %v400 = vmul.f32 0.5, %v399
  %v401 = vsub.f32 1.5, %v400
  %v402 = vmul.f32 %v397, %v401
  %vm403 = vweird.f32 %v282
  %vm404 = vweird.f32 %v397
  %vm405 = vmor %vm403, %vm404
  %v406 = vsel %vm405, %v397, %v402
  %v407 = vrsqrt.pop %v283
  %v408 = vmul.f32 %v407, %v283
  %v409 = vmul.f32 %v408, %v407
  %v410 = vmul.f32 0.5, %v409
  %v411 = vsub.f32 1.5, %v410
  %v412 = vmul.f32 %v407, %v411
  %vm413 = vweird.f32 %v283
  %vm414 = vweird.f32 %v407
  %vm415 = vmor %vm413, %vm414
  %v416 = vsel %vm415, %v407, %v412
  %v417 = vrsqrt.pop %v284
  %v418 = vmul.f32 %v417, %v284
  %v419 = vmul.f32 %v418, %v417
  %v420 = vmul.f32 0.5, %v419
  %v421 = vsub.f32 1.5, %v420
  %v422 = vmul.f32 %v417, %v421
  %vm423 = vweird.f32 %v284
  %vm424 = vweird.f32 %v417
  %vm425 = vmor %vm423, %vm424
  %v426 = vsel %vm425, %v417, %v422
  %v427 = vrsqrt.pop %v285
  %v428 = vmul.f32 %v427, %v285
  %v429 = vmul.f32 %v428, %v427
  %v430 = vmul.f32 0.5, %v429
  %v431 = vsub.f32 1.5, %v430
  %v432 = vmul.f32 %v427, %v431
  %vm433 = vweird.f32 %v285
  %vm434 = vweird.f32 %v427
  %vm435 = vmor %vm433, %vm434
  %v436 = vsel %vm435, %v427, %v432
  %v437 = vrsqrt.pop %v286
  %v438 = vmul.f32 %v437, %v286
  %v439 = vmul.f32 %v438, %v437
  %v440 = vmul.f32 0.5, %v439
  %v441 = vsub.f32 1.5, %v440
  %v442 = vmul.f32 %v437, %v441
  %vm443 = vweird.f32 %v286
  %vm444 = vweird.f32 %v437
  %vm445 = vmor %vm443, %vm444
  %v446 = vsel %vm445, %v437, %v442
  %v447 = vmul.f32 %v175, %v296
  %v448 = vmul.f32 %v176, %v306
  %v449 = vmul.f32 %v177, %v316
  %v450 = vmul.f32 %v178, %v326
  %v451 = vmul.f32 %v179, %v336
  %v452 = vmul.f32 %v180, %v346
  %v453 = vmul.f32 %v181, %v356
  %v454 = vmul.f32 %v182, %v366
  %v455 = vmul.f32 %v183, %v376
  %v456 = vmul.f32 %v184, %v386
  %v457 = vmul.f32 %v185, %v396
  %v458 = vmul.f32 %v186, %v406
  %v459 = vmul.f32 %v187, %v416
  %v460 = vmul.f32 %v188, %v426
  %v461 = vmul.f32 %v189, %v436
  %v462 = vmul.f32 %v190, %v446
  %v464 = vperm.slane %v101, 0
  %v466 = vmul.f32 %v447, %v464
  %v467 = vmul.f32 %v448, %v464
  %v468 = vmul.f32 %v449, %v464
  %v469 = vmul.f32 %v450, %v464
  %v470 = vmul.f32 %v451, %v464
  %v471 = vmul.f32 %v452, %v464
  %v472 = vmul.f32 %v453, %v464
  %v473 = vmul.f32 %v454, %v464
  %v474 = vmul.f32 %v455, %v464
  %v475 = vmul.f32 %v456, %v464
  %v476 = vmul.f32 %v457, %v464
  %v477 = vmul.f32 %v458, %v464
  %v478 = vmul.f32 %v459, %v464
  %v479 = vmul.f32 %v460, %v464
  %v480 = vmul.f32 %v461, %v464
  %v481 = vmul.f32 %v462, %v464
  %v483 = vperm.slane %v102, 0
  %v485 = vadd.f32 %v466, %v483
  %v486 = vadd.f32 %v467, %v483
  %v487 = vadd.f32 %v468, %v483
  %v488 = vadd.f32 %v469, %v483
  %v489 = vadd.f32 %v470, %v483
  %v490 = vadd.f32 %v471, %v483
  %v491 = vadd.f32 %v472, %v483
  %v492 = vadd.f32 %v473, %v483
  %v493 = vadd.f32 %v474, %v483
  %v494 = vadd.f32 %v475, %v483
  %v495 = vadd.f32 %v476, %v483
  %v496 = vadd.f32 %v477, %v483
  %v497 = vadd.f32 %v478, %v483
  %v498 = vadd.f32 %v479, %v483
  %v499 = vadd.f32 %v480, %v483
  %v500 = vadd.f32 %v481, %v483
  %v501 = vld [vmem:[%s3] sm:$0xff]
  %v502 = vld [vmem:[%s3 + $0x8] sm:$0xff]
  %v503 = vld [vmem:[%s3 + $0x10] sm:$0xff]
  %v504 = vld [vmem:[%s3 + $0x18] sm:$0xff]
  %v505 = vld [vmem:[%s4] sm:$0x1]
  %v507 = vperm.slane %v505, 0
  %v510 = vsel %vm103, %v485, 0
  %v513 = vsel %vm103, %v486, 0
  %v516 = vsel %vm103, %v487, 0
  %v519 = vsel %vm103, %v488, 0
  %v522 = vsel %vm103, %v489, 0
  %v525 = vsel %vm103, %v490, 0
  %v528 = vsel %vm103, %v491, 0
  %v531 = vsel %vm103, %v492, 0
  %v534 = vsel %vm103, %v493, 0
  %v537 = vsel %vm103, %v494, 0
  %v540 = vsel %vm103, %v495, 0
  %v543 = vsel %vm103, %v496, 0
  %v546 = vsel %vm103, %v497, 0
  %v549 = vsel %vm103, %v498, 0
  %v552 = vsel %vm103, %v499, 0
  %v555 = vsel %vm103, %v500, 0
  %557 = vmatpush.msra.mxu0 0.0
  %558 = vmatpush.msra.mxu0 0.0
  %559 = vmatpush.msra.mxu0 0.0
  %560 = vmatpush.msra.mxu0 0.0
  %561 = vmatpush.msra.mxu0 0.0
  %562 = vmatpush.msra.mxu0 0.0
  %563 = vmatpush.msra.mxu0 0.0
  %564 = vmatpush.msra.mxu0 0.0
  %565 = vmatpush.msra.mxu0 0.0
  %566 = vmatpush.msra.mxu0 0.0
  %567 = vmatpush.msra.mxu0 0.0
  %568 = vmatpush.msra.mxu0 0.0
  %569 = vmatpush.msra.mxu0 %v504
  %570 = vmatpush.msra.mxu0 %v503
  %571 = vmatpush.msra.mxu0 %v502
  %572 = vmatpush.msra.mxu0 %v501
  %573 = vmatmul.f32.gmra.mxu0 %v510
  %v574 = vpop.f32.mrf.mxu0
  %v575 = vadd.f32 %v507, %v574
  %576 = vmatmul.f32.gmra.mxu0 %v513
  %v577 = vpop.f32.mrf.mxu0
  %v578 = vadd.f32 %v507, %v577
  %579 = vmatmul.f32.gmra.mxu0 %v516
  %v580 = vpop.f32.mrf.mxu0
  %v581 = vadd.f32 %v507, %v580
  %582 = vmatmul.f32.gmra.mxu0 %v519
  %v583 = vpop.f32.mrf.mxu0
  %v584 = vadd.f32 %v507, %v583
  %585 = vmatmul.f32.gmra.mxu0 %v522
  %v586 = vpop.f32.mrf.mxu0
  %v587 = vadd.f32 %v507, %v586
  %588 = vmatmul.f32.gmra.mxu0 %v525
  %v589 = vpop.f32.mrf.mxu0
  %v590 = vadd.f32 %v507, %v589
  %591 = vmatmul.f32.gmra.mxu0 %v528
  %v592 = vpop.f32.mrf.mxu0
  %v593 = vadd.f32 %v507, %v592
  %594 = vmatmul.f32.gmra.mxu0 %v531
  %v595 = vpop.f32.mrf.mxu0
  %v596 = vadd.f32 %v507, %v595
  %597 = vmatmul.f32.gmra.mxu0 %v534
  %v598 = vpop.f32.mrf.mxu0
  %v599 = vadd.f32 %v507, %v598
  %600 = vmatmul.f32.gmra.mxu0 %v537
  %v601 = vpop.f32.mrf.mxu0
  %v602 = vadd.f32 %v507, %v601
  %603 = vmatmul.f32.gmra.mxu0 %v540
  %v604 = vpop.f32.mrf.mxu0
  %v605 = vadd.f32 %v507, %v604
  %606 = vmatmul.f32.gmra.mxu0 %v543
  %v607 = vpop.f32.mrf.mxu0
  %v608 = vadd.f32 %v507, %v607
  %609 = vmatmul.f32.gmra.mxu0 %v546
  %v610 = vpop.f32.mrf.mxu0
  %v611 = vadd.f32 %v507, %v610
  %612 = vmatmul.f32.gmra.mxu0 %v549
  %v613 = vpop.f32.mrf.mxu0
  %v614 = vadd.f32 %v507, %v613
  %615 = vmatmul.f32.gmra.mxu0 %v552
  %v616 = vpop.f32.mrf.mxu0
  %v617 = vadd.f32 %v507, %v616
  %618 = vmatmul.f32.gmra.mxu0 %v555
  %v619 = vpop.f32.mrf.mxu0
  %v620 = vadd.f32 %v507, %v619
  %621 = vdwg.mxu0
  %v622 = vld [vmem:[%s5] sm:$0xff]
  %v623 = vld [vmem:[%s5 + $0x8] sm:$0xff]
  %v624 = vld [vmem:[%s5 + $0x10] sm:$0xff]
  %v625 = vld [vmem:[%s5 + $0x18] sm:$0xff]
  %v626 = vld [vmem:[%s6] sm:$0x1]
  %v628 = vperm.slane %v626, 0
  %630 = vmatpush.msra.mxu0 0.0
  %631 = vmatpush.msra.mxu0 0.0
  %632 = vmatpush.msra.mxu0 0.0
  %633 = vmatpush.msra.mxu0 0.0
  %634 = vmatpush.msra.mxu0 0.0
  %635 = vmatpush.msra.mxu0 0.0
  %636 = vmatpush.msra.mxu0 0.0
  %637 = vmatpush.msra.mxu0 0.0
  %638 = vmatpush.msra.mxu0 0.0
  %639 = vmatpush.msra.mxu0 0.0
  %640 = vmatpush.msra.mxu0 0.0
  %641 = vmatpush.msra.mxu0 0.0
  %642 = vmatpush.msra.mxu0 %v625
  %643 = vmatpush.msra.mxu0 %v624
  %644 = vmatpush.msra.mxu0 %v623
  %645 = vmatpush.msra.mxu0 %v622
  %646 = vmatmul.f32.gmra.mxu0 %v510
  %v647 = vpop.f32.mrf.mxu0
  %v648 = vadd.f32 %v628, %v647
  %649 = vmatmul.f32.gmra.mxu0 %v513
  %v650 = vpop.f32.mrf.mxu0
  %v651 = vadd.f32 %v628, %v650
  %652 = vmatmul.f32.gmra.mxu0 %v516
  %v653 = vpop.f32.mrf.mxu0
  %v654 = vadd.f32 %v628, %v653
  %655 = vmatmul.f32.gmra.mxu0 %v519
  %v656 = vpop.f32.mrf.mxu0
  %v657 = vadd.f32 %v628, %v656
  %658 = vmatmul.f32.gmra.mxu0 %v522
  %v659 = vpop.f32.mrf.mxu0
  %v660 = vadd.f32 %v628, %v659
  %661 = vmatmul.f32.gmra.mxu0 %v525
  %v662 = vpop.f32.mrf.mxu0
  %v663 = vadd.f32 %v628, %v662
  %664 = vmatmul.f32.gmra.mxu0 %v528
  %v665 = vpop.f32.mrf.mxu0
  %v666 = vadd.f32 %v628, %v665
  %667 = vmatmul.f32.gmra.mxu0 %v531
  %v668 = vpop.f32.mrf.mxu0
  %v669 = vadd.f32 %v628, %v668
  %670 = vmatmul.f32.gmra.mxu0 %v534
  %v671 = vpop.f32.mrf.mxu0
  %v672 = vadd.f32 %v628, %v671
  %673 = vmatmul.f32.gmra.mxu0 %v537
  %v674 = vpop.f32.mrf.mxu0
  %v675 = vadd.f32 %v628, %v674
  %676 = vmatmul.f32.gmra.mxu0 %v540
  %v677 = vpop.f32.mrf.mxu0
  %v678 = vadd.f32 %v628, %v677
  %679 = vmatmul.f32.gmra.mxu0 %v543
  %v680 = vpop.f32.mrf.mxu0
  %v681 = vadd.f32 %v628, %v680
  %682 = vmatmul.f32.gmra.mxu0 %v546
  %v683 = vpop.f32.mrf.mxu0
  %v684 = vadd.f32 %v628, %v683
  %685 = vmatmul.f32.gmra.mxu0 %v549
  %v686 = vpop.f32.mrf.mxu0
  %v687 = vadd.f32 %v628, %v686
  %688 = vmatmul.f32.gmra.mxu0 %v552
  %v689 = vpop.f32.mrf.mxu0
  %v690 = vadd.f32 %v628, %v689
  %691 = vmatmul.f32.gmra.mxu0 %v555
  %v692 = vpop.f32.mrf.mxu0
  %v693 = vadd.f32 %v628, %v692
  %694 = vdwg.mxu0
  %v695 = vld [vmem:[%s7] sm:$0xff]
  %v696 = vld [vmem:[%s7 + $0x8] sm:$0xff]
  %v697 = vld [vmem:[%s7 + $0x10] sm:$0xff]
  %v698 = vld [vmem:[%s7 + $0x18] sm:$0xff]
  %v699 = vld [vmem:[%s8] sm:$0x1]
  %v701 = vperm.slane %v699, 0
  %703 = vmatpush.msra.mxu0 0.0
  %704 = vmatpush.msra.mxu0 0.0
  %705 = vmatpush.msra.mxu0 0.0
  %706 = vmatpush.msra.mxu0 0.0
  %707 = vmatpush.msra.mxu0 0.0
  %708 = vmatpush.msra.mxu0 0.0
  %709 = vmatpush.msra.mxu0 0.0
  %710 = vmatpush.msra.mxu0 0.0
  %711 = vmatpush.msra.mxu0 0.0
  %712 = vmatpush.msra.mxu0 0.0
  %713 = vmatpush.msra.mxu0 0.0
  %714 = vmatpush.msra.mxu0 0.0
  %715 = vmatpush.msra.mxu0 %v698
  %716 = vmatpush.msra.mxu0 %v697
  %717 = vmatpush.msra.mxu0 %v696
  %718 = vmatpush.msra.mxu0 %v695
  %719 = vmatmul.f32.gmra.mxu0 %v510
  %v720 = vpop.f32.mrf.mxu0
  %v721 = vadd.f32 %v701, %v720
  %722 = vmatmul.f32.gmra.mxu0 %v513
  %v723 = vpop.f32.mrf.mxu0
  %v724 = vadd.f32 %v701, %v723
  %725 = vmatmul.f32.gmra.mxu0 %v516
  %v726 = vpop.f32.mrf.mxu0
  %v727 = vadd.f32 %v701, %v726
  %728 = vmatmul.f32.gmra.mxu0 %v519
  %v729 = vpop.f32.mrf.mxu0
  %v730 = vadd.f32 %v701, %v729
  %731 = vmatmul.f32.gmra.mxu0 %v522
  %v732 = vpop.f32.mrf.mxu0
  %v733 = vadd.f32 %v701, %v732
  %734 = vmatmul.f32.gmra.mxu0 %v525
  %v735 = vpop.f32.mrf.mxu0
  %v736 = vadd.f32 %v701, %v735
  %737 = vmatmul.f32.gmra.mxu0 %v528
  %v738 = vpop.f32.mrf.mxu0
  %v739 = vadd.f32 %v701, %v738
  %740 = vmatmul.f32.gmra.mxu0 %v531
  %v741 = vpop.f32.mrf.mxu0
  %v742 = vadd.f32 %v701, %v741
  %743 = vmatmul.f32.gmra.mxu0 %v534
  %v744 = vpop.f32.mrf.mxu0
  %v745 = vadd.f32 %v701, %v744
  %746 = vmatmul.f32.gmra.mxu0 %v537
  %v747 = vpop.f32.mrf.mxu0
  %v748 = vadd.f32 %v701, %v747
  %749 = vmatmul.f32.gmra.mxu0 %v540
  %v750 = vpop.f32.mrf.mxu0
  %v751 = vadd.f32 %v701, %v750
  %752 = vmatmul.f32.gmra.mxu0 %v543
  %v753 = vpop.f32.mrf.mxu0
  %v754 = vadd.f32 %v701, %v753
  %755 = vmatmul.f32.gmra.mxu0 %v546
  %v756 = vpop.f32.mrf.mxu0
  %v757 = vadd.f32 %v701, %v756
  %758 = vmatmul.f32.gmra.mxu0 %v549
  %v759 = vpop.f32.mrf.mxu0
  %v760 = vadd.f32 %v701, %v759
  %761 = vmatmul.f32.gmra.mxu0 %v552
  %v762 = vpop.f32.mrf.mxu0
  %v763 = vadd.f32 %v701, %v762
  %764 = vmatmul.f32.gmra.mxu0 %v555
  %v765 = vpop.f32.mrf.mxu0
  %v766 = vadd.f32 %v701, %v765
  %767 = vdwg.mxu0
  %vm768 = vcmask 130048
  %v770 = vsel %vm768, %v575, 0
  %v773 = vsel %vm768, %v578, 0
  %v776 = vsel %vm768, %v581, 0
  %v779 = vsel %vm768, %v584, 0
  %v782 = vsel %vm768, %v587, 0
  %v785 = vsel %vm768, %v590, 0
  %v788 = vsel %vm768, %v593, 0
  %v791 = vsel %vm768, %v596, 0
  %v794 = vsel %vm768, %v599, 0
  %v797 = vsel %vm768, %v602, 0
  %v800 = vsel %vm768, %v605, 0
  %v803 = vsel %vm768, %v608, 0
  %v806 = vsel %vm768, %v611, 0
  %v809 = vsel %vm768, %v614, 0
  %v812 = vsel %vm768, %v617, 0
  %v815 = vsel %vm768, %v620, 0
  %v818 = vsel %vm768, %v648, 0
  %v821 = vsel %vm768, %v651, 0
  %v824 = vsel %vm768, %v654, 0
  %v827 = vsel %vm768, %v657, 0
  %v830 = vsel %vm768, %v660, 0
  %v833 = vsel %vm768, %v663, 0
  %v836 = vsel %vm768, %v666, 0
  %v839 = vsel %vm768, %v669, 0
  %v842 = vsel %vm768, %v672, 0
  %v845 = vsel %vm768, %v675, 0
  %v848 = vsel %vm768, %v678, 0
  %v851 = vsel %vm768, %v681, 0
  %v854 = vsel %vm768, %v684, 0
  %v857 = vsel %vm768, %v687, 0
  %v860 = vsel %vm768, %v690, 0
  %v863 = vsel %vm768, %v693, 0
  %865 = vmatpush.xpose.msra.mxu0 %v863
  %866 = vmatpush.xpose.msra.mxu0 %v860
  %867 = vmatpush.xpose.msra.mxu0 %v857
  %868 = vmatpush.xpose.msra.mxu0 %v854
  %869 = vmatpush.xpose.msra.mxu0 %v851
  %870 = vmatpush.xpose.msra.mxu0 %v848
  %871 = vmatpush.xpose.msra.mxu0 %v845
  %872 = vmatpush.xpose.msra.mxu0 %v842
  %873 = vmatpush.xpose.msra.mxu0 %v839
  %874 = vmatpush.xpose.msra.mxu0 %v836
  %875 = vmatpush.xpose.msra.mxu0 %v833
  %876 = vmatpush.xpose.msra.mxu0 %v830
  %877 = vmatpush.xpose.msra.mxu0 %v827
  %878 = vmatpush.xpose.msra.mxu0 %v824
  %879 = vmatpush.xpose.msra.mxu0 %v821
  %880 = vmatpush.xpose.msra.mxu0 %v818
  %881 = vmatmul.f32.gmra.mxu0 %v770
  %v882 = vpop.f32.mrf.mxu0
  %v883 = vadd.f32 0.0, %v882
  %884 = vmatmul.f32.gmra.mxu0 %v773
  %v885 = vpop.f32.mrf.mxu0
  %v886 = vadd.f32 0.0, %v885
  %887 = vmatmul.f32.gmra.mxu0 %v776
  %v888 = vpop.f32.mrf.mxu0
  %v889 = vadd.f32 0.0, %v888
  %890 = vmatmul.f32.gmra.mxu0 %v779
  %v891 = vpop.f32.mrf.mxu0
  %v892 = vadd.f32 0.0, %v891
  %893 = vmatmul.f32.gmra.mxu0 %v782
  %v894 = vpop.f32.mrf.mxu0
  %v895 = vadd.f32 0.0, %v894
  %896 = vmatmul.f32.gmra.mxu0 %v785
  %v897 = vpop.f32.mrf.mxu0
  %v898 = vadd.f32 0.0, %v897
  %899 = vmatmul.f32.gmra.mxu0 %v788
  %v900 = vpop.f32.mrf.mxu0
  %v901 = vadd.f32 0.0, %v900
  %902 = vmatmul.f32.gmra.mxu0 %v791
  %v903 = vpop.f32.mrf.mxu0
  %v904 = vadd.f32 0.0, %v903
  %905 = vmatmul.f32.gmra.mxu0 %v794
  %v906 = vpop.f32.mrf.mxu0
  %v907 = vadd.f32 0.0, %v906
  %908 = vmatmul.f32.gmra.mxu0 %v797
  %v909 = vpop.f32.mrf.mxu0
  %v910 = vadd.f32 0.0, %v909
  %911 = vmatmul.f32.gmra.mxu0 %v800
  %v912 = vpop.f32.mrf.mxu0
  %v913 = vadd.f32 0.0, %v912
  %914 = vmatmul.f32.gmra.mxu0 %v803
  %v915 = vpop.f32.mrf.mxu0
  %v916 = vadd.f32 0.0, %v915
  %917 = vmatmul.f32.gmra.mxu0 %v806
  %v918 = vpop.f32.mrf.mxu0
  %v919 = vadd.f32 0.0, %v918
  %920 = vmatmul.f32.gmra.mxu0 %v809
  %v921 = vpop.f32.mrf.mxu0
  %v922 = vadd.f32 0.0, %v921
  %923 = vmatmul.f32.gmra.mxu0 %v812
  %v924 = vpop.f32.mrf.mxu0
  %v925 = vadd.f32 0.0, %v924
  %926 = vmatmul.f32.gmra.mxu0 %v815
  %v927 = vpop.f32.mrf.mxu0
  %v928 = vadd.f32 0.0, %v927
  %929 = vdwg.mxu0
  %v930 = vmul.f32 %v883, 0.25
  %v931 = vmul.f32 %v886, 0.25
  %v932 = vmul.f32 %v889, 0.25
  %v933 = vmul.f32 %v892, 0.25
  %v934 = vmul.f32 %v895, 0.25
  %v935 = vmul.f32 %v898, 0.25
  %v936 = vmul.f32 %v901, 0.25
  %v937 = vmul.f32 %v904, 0.25
  %v938 = vmul.f32 %v907, 0.25
  %v939 = vmul.f32 %v910, 0.25
  %v940 = vmul.f32 %v913, 0.25
  %v941 = vmul.f32 %v916, 0.25
  %v942 = vmul.f32 %v919, 0.25
  %v943 = vmul.f32 %v922, 0.25
  %v944 = vmul.f32 %v925, 0.25
  %v945 = vmul.f32 %v928, 0.25
  %v946 = vld [vmem:[%s9] sm:$0xff]
  %v947 = vld [vmem:[%s9 + $0x8] sm:$0xff]
  %v948 = vld [vmem:[%s9 + $0x10] sm:$0xff]
  %v949 = vld [vmem:[%s9 + $0x18] sm:$0xff]
  %v950 = vld [vmem:[%s9 + $0x20] sm:$0xff]
  %v951 = vld [vmem:[%s9 + $0x28] sm:$0xff]
  %v952 = vld [vmem:[%s9 + $0x30] sm:$0xff]
  %v953 = vld [vmem:[%s9 + $0x38] sm:$0xff]
  %v954 = vld [vmem:[%s9 + $0x40] sm:$0xff]
  %v955 = vld [vmem:[%s9 + $0x48] sm:$0xff]
  %v956 = vld [vmem:[%s9 + $0x50] sm:$0xff]
  %v957 = vld [vmem:[%s9 + $0x58] sm:$0xff]
  %v958 = vld [vmem:[%s9 + $0x60] sm:$0xff]
  %v959 = vld [vmem:[%s9 + $0x68] sm:$0xff]
  %v960 = vld [vmem:[%s9 + $0x70] sm:$0xff]
  %v961 = vld [vmem:[%s9 + $0x78] sm:$0xff]
  %v962 = vadd.f32 %v930, %v946
  %v963 = vadd.f32 %v931, %v947
  %v964 = vadd.f32 %v932, %v948
  %v965 = vadd.f32 %v933, %v949
  %v966 = vadd.f32 %v934, %v950
  %v967 = vadd.f32 %v935, %v951
  %v968 = vadd.f32 %v936, %v952
  %v969 = vadd.f32 %v937, %v953
  %v970 = vadd.f32 %v938, %v954
  %v971 = vadd.f32 %v939, %v955
  %v972 = vadd.f32 %v940, %v956
  %v973 = vadd.f32 %v941, %v957
  %v974 = vadd.f32 %v942, %v958
  %v975 = vadd.f32 %v943, %v959
  %v976 = vadd.f32 %v944, %v960
  %v977 = vadd.f32 %v945, %v961
  %978 = vmax.xlane.f32.xlu0 %v962
  %v979 = vpop.xlane.xlu0 %978
  %980 = vmax.xlane.f32.xlu0 %v963
  %v981 = vpop.xlane.xlu0 %980
  %982 = vmax.xlane.f32.xlu0 %v964
  %v983 = vpop.xlane.xlu0 %982
  %984 = vmax.xlane.f32.xlu0 %v965
  %v985 = vpop.xlane.xlu0 %984
  %986 = vmax.xlane.f32.xlu0 %v966
  %v987 = vpop.xlane.xlu0 %986
  %988 = vmax.xlane.f32.xlu0 %v967
  %v989 = vpop.xlane.xlu0 %988
  %990 = vmax.xlane.f32.xlu0 %v968
  %v991 = vpop.xlane.xlu0 %990
  %992 = vmax.xlane.f32.xlu0 %v969
  %v993 = vpop.xlane.xlu0 %992
  %994 = vmax.xlane.f32.xlu0 %v970
  %v995 = vpop.xlane.xlu0 %994
  %996 = vmax.xlane.f32.xlu0 %v971
  %v997 = vpop.xlane.xlu0 %996
  %998 = vmax.xlane.f32.xlu0 %v972
  %v999 = vpop.xlane.xlu0 %998
  %1000 = vmax.xlane.f32.xlu0 %v973
  %v1001 = vpop.xlane.xlu0 %1000
  %1002 = vmax.xlane.f32.xlu0 %v974
  %v1003 = vpop.xlane.xlu0 %1002
  %1004 = vmax.xlane.f32.xlu0 %v975
  %v1005 = vpop.xlane.xlu0 %1004
  %1006 = vmax.xlane.f32.xlu0 %v976
  %v1007 = vpop.xlane.xlu0 %1006
  %1008 = vmax.xlane.f32.xlu0 %v977
  %v1009 = vpop.xlane.xlu0 %1008
  %v1010 = vsub.f32 %v962, %v979
  %v1011 = vsub.f32 %v963, %v981
  %v1012 = vsub.f32 %v964, %v983
  %v1013 = vsub.f32 %v965, %v985
  %v1014 = vsub.f32 %v966, %v987
  %v1015 = vsub.f32 %v967, %v989
  %v1016 = vsub.f32 %v968, %v991
  %v1017 = vsub.f32 %v969, %v993
  %v1018 = vsub.f32 %v970, %v995
  %v1019 = vsub.f32 %v971, %v997
  %v1020 = vsub.f32 %v972, %v999
  %v1021 = vsub.f32 %v973, %v1001
  %v1022 = vsub.f32 %v974, %v1003
  %v1023 = vsub.f32 %v975, %v1005
  %v1024 = vsub.f32 %v976, %v1007
  %v1025 = vsub.f32 %v977, %v1009
  %v1026 = vmul.f32 %v1010, 1.442695
  %v1027 = vpow.pop %v1026
  %v1028 = vmul.f32 %v1011, 1.442695
  %v1029 = vpow.pop %v1028
  %v1030 = vmul.f32 %v1012, 1.442695
  %v1031 = vpow.pop %v1030
  %v1032 = vmul.f32 %v1013, 1.442695
  %v1033 = vpow.pop %v1032
  %v1034 = vmul.f32 %v1014, 1.442695
  %v1035 = vpow.pop %v1034
  %v1036 = vmul.f32 %v1015, 1.442695
  %v1037 = vpow.pop %v1036
  %v1038 = vmul.f32 %v1016, 1.442695
  %v1039 = vpow.pop %v1038
  %v1040 = vmul.f32 %v1017, 1.442695
  %v1041 = vpow.pop %v1040
  %v1042 = vmul.f32 %v1018, 1.442695
  %v1043 = vpow.pop %v1042
  %v1044 = vmul.f32 %v1019, 1.442695
  %v1045 = vpow.pop %v1044
  %v1046 = vmul.f32 %v1020, 1.442695
  %v1047 = vpow.pop %v1046
  %v1048 = vmul.f32 %v1021, 1.442695
  %v1049 = vpow.pop %v1048
  %v1050 = vmul.f32 %v1022, 1.442695
  %v1051 = vpow.pop %v1050
  %v1052 = vmul.f32 %v1023, 1.442695
  %v1053 = vpow.pop %v1052
  %v1054 = vmul.f32 %v1024, 1.442695
  %v1055 = vpow.pop %v1054
  %v1056 = vmul.f32 %v1025, 1.442695
  %v1057 = vpow.pop %v1056
  %1058 = vadd.xlane.f32.xlu0 %v1027
  %v1059 = vpop.xlane.xlu0 %1058
  %1060 = vadd.xlane.f32.xlu0 %v1029
  %v1061 = vpop.xlane.xlu0 %1060
  %1062 = vadd.xlane.f32.xlu0 %v1031
  %v1063 = vpop.xlane.xlu0 %1062
  %1064 = vadd.xlane.f32.xlu0 %v1033
  %v1065 = vpop.xlane.xlu0 %1064
  %1066 = vadd.xlane.f32.xlu0 %v1035
  %v1067 = vpop.xlane.xlu0 %1066
  %1068 = vadd.xlane.f32.xlu0 %v1037
  %v1069 = vpop.xlane.xlu0 %1068
  %1070 = vadd.xlane.f32.xlu0 %v1039
  %v1071 = vpop.xlane.xlu0 %1070
  %1072 = vadd.xlane.f32.xlu0 %v1041
  %v1073 = vpop.xlane.xlu0 %1072
  %1074 = vadd.xlane.f32.xlu0 %v1043
  %v1075 = vpop.xlane.xlu0 %1074
  %1076 = vadd.xlane.f32.xlu0 %v1045
  %v1077 = vpop.xlane.xlu0 %1076
  %1078 = vadd.xlane.f32.xlu0 %v1047
  %v1079 = vpop.xlane.xlu0 %1078
  %1080 = vadd.xlane.f32.xlu0 %v1049
  %v1081 = vpop.xlane.xlu0 %1080
  %1082 = vadd.xlane.f32.xlu0 %v1051
  %v1083 = vpop.xlane.xlu0 %1082
  %1084 = vadd.xlane.f32.xlu0 %v1053
  %v1085 = vpop.xlane.xlu0 %1084
  %1086 = vadd.xlane.f32.xlu0 %v1055
  %v1087 = vpop.xlane.xlu0 %1086
  %1088 = vadd.xlane.f32.xlu0 %v1057
  %v1089 = vpop.xlane.xlu0 %1088
  %v1090 = vrcp.pop %v1059
  %v1091 = vrcp.pop %v1061
  %v1092 = vrcp.pop %v1063
  %v1093 = vrcp.pop %v1065
  %v1094 = vrcp.pop %v1067
  %v1095 = vrcp.pop %v1069
  %v1096 = vrcp.pop %v1071
  %v1097 = vrcp.pop %v1073
  %v1098 = vrcp.pop %v1075
  %v1099 = vrcp.pop %v1077
  %v1100 = vrcp.pop %v1079
  %v1101 = vrcp.pop %v1081
  %v1102 = vrcp.pop %v1083
  %v1103 = vrcp.pop %v1085
  %v1104 = vrcp.pop %v1087
  %v1105 = vrcp.pop %v1089
  %v1106 = vmul.f32 %v1027, %v1090
  %v1107 = vmul.f32 %v1029, %v1091
  %v1108 = vmul.f32 %v1031, %v1092
  %v1109 = vmul.f32 %v1033, %v1093
  %v1110 = vmul.f32 %v1035, %v1094
  %v1111 = vmul.f32 %v1037, %v1095
  %v1112 = vmul.f32 %v1039, %v1096
  %v1113 = vmul.f32 %v1041, %v1097
  %v1114 = vmul.f32 %v1043, %v1098
  %v1115 = vmul.f32 %v1045, %v1099
  %v1116 = vmul.f32 %v1047, %v1100
  %v1117 = vmul.f32 %v1049, %v1101
  %v1118 = vmul.f32 %v1051, %v1102
  %v1119 = vmul.f32 %v1053, %v1103
  %v1120 = vmul.f32 %v1055, %v1104
  %v1121 = vmul.f32 %v1057, %v1105
  %1122 = vmatpush.msra.mxu0 %v766
  %1123 = vmatpush.msra.mxu0 %v763
  %1124 = vmatpush.msra.mxu0 %v760
  %1125 = vmatpush.msra.mxu0 %v757
  %1126 = vmatpush.msra.mxu0 %v754
  %1127 = vmatpush.msra.mxu0 %v751
  %1128 = vmatpush.msra.mxu0 %v748
  %1129 = vmatpush.msra.mxu0 %v745
  %1130 = vmatpush.msra.mxu0 %v742
  %1131 = vmatpush.msra.mxu0 %v739
  %1132 = vmatpush.msra.mxu0 %v736
  %1133 = vmatpush.msra.mxu0 %v733
  %1134 = vmatpush.msra.mxu0 %v730
  %1135 = vmatpush.msra.mxu0 %v727
  %1136 = vmatpush.msra.mxu0 %v724
  %1137 = vmatpush.msra.mxu0 %v721
  %1138 = vmatmul.f32.gmra.mxu0 %v1106
  %v1139 = vpop.f32.mrf.mxu0
  %v1140 = vadd.f32 0.0, %v1139
  %1141 = vmatmul.f32.gmra.mxu0 %v1107
  %v1142 = vpop.f32.mrf.mxu0
  %v1143 = vadd.f32 0.0, %v1142
  %1144 = vmatmul.f32.gmra.mxu0 %v1108
  %v1145 = vpop.f32.mrf.mxu0
  %v1146 = vadd.f32 0.0, %v1145
  %1147 = vmatmul.f32.gmra.mxu0 %v1109
  %v1148 = vpop.f32.mrf.mxu0
  %v1149 = vadd.f32 0.0, %v1148
  %1150 = vmatmul.f32.gmra.mxu0 %v1110
  %v1151 = vpop.f32.mrf.mxu0
  %v1152 = vadd.f32 0.0, %v1151
  %1153 = vmatmul.f32.gmra.mxu0 %v1111
  %v1154 = vpop.f32.mrf.mxu0
  %v1155 = vadd.f32 0.0, %v1154
  %1156 = vmatmul.f32.gmra.mxu0 %v1112
  %v1157 = vpop.f32.mrf.mxu0
  %v1158 = vadd.f32 0.0, %v1157
  %1159 = vmatmul.f32.gmra.mxu0 %v1113
  %v1160 = vpop.f32.mrf.mxu0
  %v1161 = vadd.f32 0.0, %v1160
  %1162 = vmatmul.f32.gmra.mxu0 %v1114
  %v1163 = vpop.f32.mrf.mxu0
  %v1164 = vadd.f32 0.0, %v1163
  %1165 = vmatmul.f32.gmra.mxu0 %v1115
  %v1166 = vpop.f32.mrf.mxu0
  %v1167 = vadd.f32 0.0, %v1166
  %1168 = vmatmul.f32.gmra.mxu0 %v1116
  %v1169 = vpop.f32.mrf.mxu0
  %v1170 = vadd.f32 0.0, %v1169
  %1171 = vmatmul.f32.gmra.mxu0 %v1117
  %v1172 = vpop.f32.mrf.mxu0
  %v1173 = vadd.f32 0.0, %v1172
  %1174 = vmatmul.f32.gmra.mxu0 %v1118
  %v1175 = vpop.f32.mrf.mxu0
  %v1176 = vadd.f32 0.0, %v1175
  %1177 = vmatmul.f32.gmra.mxu0 %v1119
  %v1178 = vpop.f32.mrf.mxu0
  %v1179 = vadd.f32 0.0, %v1178
  %1180 = vmatmul.f32.gmra.mxu0 %v1120
  %v1181 = vpop.f32.mrf.mxu0
  %v1182 = vadd.f32 0.0, %v1181
  %1183 = vmatmul.f32.gmra.mxu0 %v1121
  %v1184 = vpop.f32.mrf.mxu0
  %v1185 = vadd.f32 0.0, %v1184
  %1186 = vdwg.mxu0
  %v1187 = vld [vmem:[%s10] sm:$0xff]
  %v1188 = vld [vmem:[%s10 + $0x8] sm:$0xff]
  %s1189 = scalar_lea.vmem %s3, 32
  %v1190 = vld [vmem:[%s1189] sm:$0xff]
  %v1191 = vld [vmem:[%s1189 + $0x8] sm:$0xff]
  %v1192 = vld [vmem:[%s1189 + $0x10] sm:$0xff]
  %v1193 = vld [vmem:[%s1189 + $0x18] sm:$0xff]
  %s1194 = scalar_lea.vmem %s4, 1
  %v1195 = vld [vmem:[%s1194] sm:$0x1]
  %v1197 = vperm.slane %v1195, 0
  %1199 = vmatpush.msra.mxu0 0.0
  %1200 = vmatpush.msra.mxu0 0.0
  %1201 = vmatpush.msra.mxu0 0.0
  %1202 = vmatpush.msra.mxu0 0.0
  %1203 = vmatpush.msra.mxu0 0.0
  %1204 = vmatpush.msra.mxu0 0.0
  %1205 = vmatpush.msra.mxu0 0.0
  %1206 = vmatpush.msra.mxu0 0.0
  %1207 = vmatpush.msra.mxu0 0.0
  %1208 = vmatpush.msra.mxu0 0.0
  %1209 = vmatpush.msra.mxu0 0.0
  %1210 = vmatpush.msra.mxu0 0.0
  %1211 = vmatpush.msra.mxu0 %v1193
  %1212 = vmatpush.msra.mxu0 %v1192
  %1213 = vmatpush.msra.mxu0 %v1191
  %1214 = vmatpush.msra.mxu0 %v1190
  %1215 = vmatmul.f32.gmra.mxu0 %v510
  %v1216 = vpop.f32.mrf.mxu0
  %v1217 = vadd.f32 %v1197, %v1216
  %1218 = vmatmul.f32.gmra.mxu0 %v513
  %v1219 = vpop.f32.mrf.mxu0
  %v1220 = vadd.f32 %v1197, %v1219
  %1221 = vmatmul.f32.gmra.mxu0 %v516
  %v1222 = vpop.f32.mrf.mxu0
  %v1223 = vadd.f32 %v1197, %v1222
  %1224 = vmatmul.f32.gmra.mxu0 %v519
  %v1225 = vpop.f32.mrf.mxu0
  %v1226 = vadd.f32 %v1197, %v1225
  %1227 = vmatmul.f32.gmra.mxu0 %v522
  %v1228 = vpop.f32.mrf.mxu0
  %v1229 = vadd.f32 %v1197, %v1228
  %1230 = vmatmul.f32.gmra.mxu0 %v525
  %v1231 = vpop.f32.mrf.mxu0
  %v1232 = vadd.f32 %v1197, %v1231
  %1233 = vmatmul.f32.gmra.mxu0 %v528
  %v1234 = vpop.f32.mrf.mxu0
  %v1235 = vadd.f32 %v1197, %v1234
  %1236 = vmatmul.f32.gmra.mxu0 %v531
  %v1237 = vpop.f32.mrf.mxu0
  %v1238 = vadd.f32 %v1197, %v1237
  %1239 = vmatmul.f32.gmra.mxu0 %v534
  %v1240 = vpop.f32.mrf.mxu0
  %v1241 = vadd.f32 %v1197, %v1240
  %1242 = vmatmul.f32.gmra.mxu0 %v537
  %v1243 = vpop.f32.mrf.mxu0
  %v1244 = vadd.f32 %v1197, %v1243
  %1245 = vmatmul.f32.gmra.mxu0 %v540
  %v1246 = vpop.f32.mrf.mxu0
  %v1247 = vadd.f32 %v1197, %v1246
  %1248 = vmatmul.f32.gmra.mxu0 %v543
  %v1249 = vpop.f32.mrf.mxu0
  %v1250 = vadd.f32 %v1197, %v1249
  %1251 = vmatmul.f32.gmra.mxu0 %v546
  %v1252 = vpop.f32.mrf.mxu0
  %v1253 = vadd.f32 %v1197, %v1252
  %1254 = vmatmul.f32.gmra.mxu0 %v549
  %v1255 = vpop.f32.mrf.mxu0
  %v1256 = vadd.f32 %v1197, %v1255
  %1257 = vmatmul.f32.gmra.mxu0 %v552
  %v1258 = vpop.f32.mrf.mxu0
  %v1259 = vadd.f32 %v1197, %v1258
  %1260 = vmatmul.f32.gmra.mxu0 %v555
  %v1261 = vpop.f32.mrf.mxu0
  %v1262 = vadd.f32 %v1197, %v1261
  %1263 = vdwg.mxu0
  %s1264 = scalar_lea.vmem %s5, 32
  %v1265 = vld [vmem:[%s1264] sm:$0xff]
  %v1266 = vld [vmem:[%s1264 + $0x8] sm:$0xff]
  %v1267 = vld [vmem:[%s1264 + $0x10] sm:$0xff]
  %v1268 = vld [vmem:[%s1264 + $0x18] sm:$0xff]
  %s1269 = scalar_lea.vmem %s6, 1
  %v1270 = vld [vmem:[%s1269] sm:$0x1]
  %v1272 = vperm.slane %v1270, 0
  %1274 = vmatpush.msra.mxu0 0.0
  %1275 = vmatpush.msra.mxu0 0.0
  %1276 = vmatpush.msra.mxu0 0.0
  %1277 = vmatpush.msra.mxu0 0.0
  %1278 = vmatpush.msra.mxu0 0.0
  %1279 = vmatpush.msra.mxu0 0.0
  %1280 = vmatpush.msra.mxu0 0.0
  %1281 = vmatpush.msra.mxu0 0.0
  %1282 = vmatpush.msra.mxu0 0.0
  %1283 = vmatpush.msra.mxu0 0.0
  %1284 = vmatpush.msra.mxu0 0.0
  %1285 = vmatpush.msra.mxu0 0.0
  %1286 = vmatpush.msra.mxu0 %v1268
  %1287 = vmatpush.msra.mxu0 %v1267
  %1288 = vmatpush.msra.mxu0 %v1266
  %1289 = vmatpush.msra.mxu0 %v1265
  %1290 = vmatmul.f32.gmra.mxu0 %v510
  %v1291 = vpop.f32.mrf.mxu0
  %v1292 = vadd.f32 %v1272, %v1291
  %1293 = vmatmul.f32.gmra.mxu0 %v513
  %v1294 = vpop.f32.mrf.mxu0
  %v1295 = vadd.f32 %v1272, %v1294
  %1296 = vmatmul.f32.gmra.mxu0 %v516
  %v1297 = vpop.f32.mrf.mxu0
  %v1298 = vadd.f32 %v1272, %v1297
  %1299 = vmatmul.f32.gmra.mxu0 %v519
  %v1300 = vpop.f32.mrf.mxu0
  %v1301 = vadd.f32 %v1272, %v1300
  %1302 = vmatmul.f32.gmra.mxu0 %v522
  %v1303 = vpop.f32.mrf.mxu0
  %v1304 = vadd.f32 %v1272, %v1303
  %1305 = vmatmul.f32.gmra.mxu0 %v525
  %v1306 = vpop.f32.mrf.mxu0
  %v1307 = vadd.f32 %v1272, %v1306
  %1308 = vmatmul.f32.gmra.mxu0 %v528
  %v1309 = vpop.f32.mrf.mxu0
  %v1310 = vadd.f32 %v1272, %v1309
  %1311 = vmatmul.f32.gmra.mxu0 %v531
  %v1312 = vpop.f32.mrf.mxu0
  %v1313 = vadd.f32 %v1272, %v1312
  %1314 = vmatmul.f32.gmra.mxu0 %v534
  %v1315 = vpop.f32.mrf.mxu0
  %v1316 = vadd.f32 %v1272, %v1315
  %1317 = vmatmul.f32.gmra.mxu0 %v537
  %v1318 = vpop.f32.mrf.mxu0
  %v1319 = vadd.f32 %v1272, %v1318
  %1320 = vmatmul.f32.gmra.mxu0 %v540
  %v1321 = vpop.f32.mrf.mxu0
  %v1322 = vadd.f32 %v1272, %v1321
  %1323 = vmatmul.f32.gmra.mxu0 %v543
  %v1324 = vpop.f32.mrf.mxu0
  %v1325 = vadd.f32 %v1272, %v1324
  %1326 = vmatmul.f32.gmra.mxu0 %v546
  %v1327 = vpop.f32.mrf.mxu0
  %v1328 = vadd.f32 %v1272, %v1327
  %1329 = vmatmul.f32.gmra.mxu0 %v549
  %v1330 = vpop.f32.mrf.mxu0
  %v1331 = vadd.f32 %v1272, %v1330
  %1332 = vmatmul.f32.gmra.mxu0 %v552
  %v1333 = vpop.f32.mrf.mxu0
  %v1334 = vadd.f32 %v1272, %v1333
  %1335 = vmatmul.f32.gmra.mxu0 %v555
  %v1336 = vpop.f32.mrf.mxu0
  %v1337 = vadd.f32 %v1272, %v1336
  %1338 = vdwg.mxu0
  %s1339 = scalar_lea.vmem %s7, 32
  %v1340 = vld [vmem:[%s1339] sm:$0xff]
  %v1341 = vld [vmem:[%s1339 + $0x8] sm:$0xff]
  %v1342 = vld [vmem:[%s1339 + $0x10] sm:$0xff]
  %v1343 = vld [vmem:[%s1339 + $0x18] sm:$0xff]
  %s1344 = scalar_lea.vmem %s8, 1
  %v1345 = vld [vmem:[%s1344] sm:$0x1]
  %v1347 = vperm.slane %v1345, 0
  %1349 = vmatpush.msra.mxu0 0.0
  %1350 = vmatpush.msra.mxu0 0.0
  %1351 = vmatpush.msra.mxu0 0.0
  %1352 = vmatpush.msra.mxu0 0.0
  %1353 = vmatpush.msra.mxu0 0.0
  %1354 = vmatpush.msra.mxu0 0.0
  %1355 = vmatpush.msra.mxu0 0.0
  %1356 = vmatpush.msra.mxu0 0.0
  %1357 = vmatpush.msra.mxu0 0.0
  %1358 = vmatpush.msra.mxu0 0.0
  %1359 = vmatpush.msra.mxu0 0.0
  %1360 = vmatpush.msra.mxu0 0.0
  %1361 = vmatpush.msra.mxu0 %v1343
  %1362 = vmatpush.msra.mxu0 %v1342
  %1363 = vmatpush.msra.mxu0 %v1341
  %1364 = vmatpush.msra.mxu0 %v1340
  %1365 = vmatmul.f32.gmra.mxu0 %v510
  %v1366 = vpop.f32.mrf.mxu0
  %v1367 = vadd.f32 %v1347, %v1366
  %1368 = vmatmul.f32.gmra.mxu0 %v513
  %v1369 = vpop.f32.mrf.mxu0
  %v1370 = vadd.f32 %v1347, %v1369
  %1371 = vmatmul.f32.gmra.mxu0 %v516
  %v1372 = vpop.f32.mrf.mxu0
  %v1373 = vadd.f32 %v1347, %v1372
  %1374 = vmatmul.f32.gmra.mxu0 %v519
  %v1375 = vpop.f32.mrf.mxu0
  %v1376 = vadd.f32 %v1347, %v1375
  %1377 = vmatmul.f32.gmra.mxu0 %v522
  %v1378 = vpop.f32.mrf.mxu0
  %v1379 = vadd.f32 %v1347, %v1378
  %1380 = vmatmul.f32.gmra.mxu0 %v525
  %v1381 = vpop.f32.mrf.mxu0
  %v1382 = vadd.f32 %v1347, %v1381
  %1383 = vmatmul.f32.gmra.mxu0 %v528
  %v1384 = vpop.f32.mrf.mxu0
  %v1385 = vadd.f32 %v1347, %v1384
  %1386 = vmatmul.f32.gmra.mxu0 %v531
  %v1387 = vpop.f32.mrf.mxu0
  %v1388 = vadd.f32 %v1347, %v1387
  %1389 = vmatmul.f32.gmra.mxu0 %v534
  %v1390 = vpop.f32.mrf.mxu0
  %v1391 = vadd.f32 %v1347, %v1390
  %1392 = vmatmul.f32.gmra.mxu0 %v537
  %v1393 = vpop.f32.mrf.mxu0
  %v1394 = vadd.f32 %v1347, %v1393
  %1395 = vmatmul.f32.gmra.mxu0 %v540
  %v1396 = vpop.f32.mrf.mxu0
  %v1397 = vadd.f32 %v1347, %v1396
  %1398 = vmatmul.f32.gmra.mxu0 %v543
  %v1399 = vpop.f32.mrf.mxu0
  %v1400 = vadd.f32 %v1347, %v1399
  %1401 = vmatmul.f32.gmra.mxu0 %v546
  %v1402 = vpop.f32.mrf.mxu0
  %v1403 = vadd.f32 %v1347, %v1402
  %1404 = vmatmul.f32.gmra.mxu0 %v549
  %v1405 = vpop.f32.mrf.mxu0
  %v1406 = vadd.f32 %v1347, %v1405
  %1407 = vmatmul.f32.gmra.mxu0 %v552
  %v1408 = vpop.f32.mrf.mxu0
  %v1409 = vadd.f32 %v1347, %v1408
  %1410 = vmatmul.f32.gmra.mxu0 %v555
  %v1411 = vpop.f32.mrf.mxu0
  %v1412 = vadd.f32 %v1347, %v1411
  %1413 = vdwg.mxu0
  %v1415 = vsel %vm768, %v1217, 0
  %v1418 = vsel %vm768, %v1220, 0
  %v1421 = vsel %vm768, %v1223, 0
  %v1424 = vsel %vm768, %v1226, 0
  %v1427 = vsel %vm768, %v1229, 0
  %v1430 = vsel %vm768, %v1232, 0
  %v1433 = vsel %vm768, %v1235, 0
  %v1436 = vsel %vm768, %v1238, 0
  %v1439 = vsel %vm768, %v1241, 0
  %v1442 = vsel %vm768, %v1244, 0
  %v1445 = vsel %vm768, %v1247, 0
  %v1448 = vsel %vm768, %v1250, 0
  %v1451 = vsel %vm768, %v1253, 0
  %v1454 = vsel %vm768, %v1256, 0
  %v1457 = vsel %vm768, %v1259, 0
  %v1460 = vsel %vm768, %v1262, 0
  %v1463 = vsel %vm768, %v1292, 0
  %v1466 = vsel %vm768, %v1295, 0
  %v1469 = vsel %vm768, %v1298, 0
  %v1472 = vsel %vm768, %v1301, 0
  %v1475 = vsel %vm768, %v1304, 0
  %v1478 = vsel %vm768, %v1307, 0
  %v1481 = vsel %vm768, %v1310, 0
  %v1484 = vsel %vm768, %v1313, 0
  %v1487 = vsel %vm768, %v1316, 0
  %v1490 = vsel %vm768, %v1319, 0
  %v1493 = vsel %vm768, %v1322, 0
  %v1496 = vsel %vm768, %v1325, 0
  %v1499 = vsel %vm768, %v1328, 0
  %v1502 = vsel %vm768, %v1331, 0
  %v1505 = vsel %vm768, %v1334, 0
  %v1508 = vsel %vm768, %v1337, 0
  %1510 = vmatpush.xpose.msra.mxu0 %v1508
  %1511 = vmatpush.xpose.msra.mxu0 %v1505
  %1512 = vmatpush.xpose.msra.mxu0 %v1502
  %1513 = vmatpush.xpose.msra.mxu0 %v1499
  %1514 = vmatpush.xpose.msra.mxu0 %v1496
  %1515 = vmatpush.xpose.msra.mxu0 %v1493
  %1516 = vmatpush.xpose.msra.mxu0 %v1490
  %1517 = vmatpush.xpose.msra.mxu0 %v1487
  %1518 = vmatpush.xpose.msra.mxu0 %v1484
  %1519 = vmatpush.xpose.msra.mxu0 %v1481
  %1520 = vmatpush.xpose.msra.mxu0 %v1478
  %1521 = vmatpush.xpose.msra.mxu0 %v1475
  %1522 = vmatpush.xpose.msra.mxu0 %v1472
  %1523 = vmatpush.xpose.msra.mxu0 %v1469
  %1524 = vmatpush.xpose.msra.mxu0 %v1466
  %1525 = vmatpush.xpose.msra.mxu0 %v1463
  %1526 = vmatmul.f32.gmra.mxu0 %v1415
  %v1527 = vpop.f32.mrf.mxu0
  %v1528 = vadd.f32 0.0, %v1527
  %1529 = vmatmul.f32.gmra.mxu0 %v1418
  %v1530 = vpop.f32.mrf.mxu0
  %v1531 = vadd.f32 0.0, %v1530
  %1532 = vmatmul.f32.gmra.mxu0 %v1421
  %v1533 = vpop.f32.mrf.mxu0
  %v1534 = vadd.f32 0.0, %v1533
  %1535 = vmatmul.f32.gmra.mxu0 %v1424
  %v1536 = vpop.f32.mrf.mxu0
  %v1537 = vadd.f32 0.0, %v1536
  %1538 = vmatmul.f32.gmra.mxu0 %v1427
  %v1539 = vpop.f32.mrf.mxu0
  %v1540 = vadd.f32 0.0, %v1539
  %1541 = vmatmul.f32.gmra.mxu0 %v1430
  %v1542 = vpop.f32.mrf.mxu0
  %v1543 = vadd.f32 0.0, %v1542
  %1544 = vmatmul.f32.gmra.mxu0 %v1433
  %v1545 = vpop.f32.mrf.mxu0
  %v1546 = vadd.f32 0.0, %v1545
  %1547 = vmatmul.f32.gmra.mxu0 %v1436
  %v1548 = vpop.f32.mrf.mxu0
  %v1549 = vadd.f32 0.0, %v1548
  %1550 = vmatmul.f32.gmra.mxu0 %v1439
  %v1551 = vpop.f32.mrf.mxu0
  %v1552 = vadd.f32 0.0, %v1551
  %1553 = vmatmul.f32.gmra.mxu0 %v1442
  %v1554 = vpop.f32.mrf.mxu0
  %v1555 = vadd.f32 0.0, %v1554
  %1556 = vmatmul.f32.gmra.mxu0 %v1445
  %v1557 = vpop.f32.mrf.mxu0
  %v1558 = vadd.f32 0.0, %v1557
  %1559 = vmatmul.f32.gmra.mxu0 %v1448
  %v1560 = vpop.f32.mrf.mxu0
  %v1561 = vadd.f32 0.0, %v1560
  %1562 = vmatmul.f32.gmra.mxu0 %v1451
  %v1563 = vpop.f32.mrf.mxu0
  %v1564 = vadd.f32 0.0, %v1563
  %1565 = vmatmul.f32.gmra.mxu0 %v1454
  %v1566 = vpop.f32.mrf.mxu0
  %v1567 = vadd.f32 0.0, %v1566
  %1568 = vmatmul.f32.gmra.mxu0 %v1457
  %v1569 = vpop.f32.mrf.mxu0
  %v1570 = vadd.f32 0.0, %v1569
  %1571 = vmatmul.f32.gmra.mxu0 %v1460
  %v1572 = vpop.f32.mrf.mxu0
  %v1573 = vadd.f32 0.0, %v1572
  %1574 = vdwg.mxu0
  %v1575 = vmul.f32 %v1528, 0.25
  %v1576 = vmul.f32 %v1531, 0.25
  %v1577 = vmul.f32 %v1534, 0.25
  %v1578 = vmul.f32 %v1537, 0.25
  %v1579 = vmul.f32 %v1540, 0.25
  %v1580 = vmul.f32 %v1543, 0.25
  %v1581 = vmul.f32 %v1546, 0.25
  %v1582 = vmul.f32 %v1549, 0.25
  %v1583 = vmul.f32 %v1552, 0.25
  %v1584 = vmul.f32 %v1555, 0.25
  %v1585 = vmul.f32 %v1558, 0.25
  %v1586 = vmul.f32 %v1561, 0.25
  %v1587 = vmul.f32 %v1564, 0.25
  %v1588 = vmul.f32 %v1567, 0.25
  %v1589 = vmul.f32 %v1570, 0.25
  %v1590 = vmul.f32 %v1573, 0.25
  %s1591 = scalar_lea.vmem %s9, 128
  %v1592 = vld [vmem:[%s1591] sm:$0xff]
  %v1593 = vld [vmem:[%s1591 + $0x8] sm:$0xff]
  %v1594 = vld [vmem:[%s1591 + $0x10] sm:$0xff]
  %v1595 = vld [vmem:[%s1591 + $0x18] sm:$0xff]
  %v1596 = vld [vmem:[%s1591 + $0x20] sm:$0xff]
  %v1597 = vld [vmem:[%s1591 + $0x28] sm:$0xff]
  %v1598 = vld [vmem:[%s1591 + $0x30] sm:$0xff]
  %v1599 = vld [vmem:[%s1591 + $0x38] sm:$0xff]
  %v1600 = vld [vmem:[%s1591 + $0x40] sm:$0xff]
  %v1601 = vld [vmem:[%s1591 + $0x48] sm:$0xff]
  %v1602 = vld [vmem:[%s1591 + $0x50] sm:$0xff]
  %v1603 = vld [vmem:[%s1591 + $0x58] sm:$0xff]
  %v1604 = vld [vmem:[%s1591 + $0x60] sm:$0xff]
  %v1605 = vld [vmem:[%s1591 + $0x68] sm:$0xff]
  %v1606 = vld [vmem:[%s1591 + $0x70] sm:$0xff]
  %v1607 = vld [vmem:[%s1591 + $0x78] sm:$0xff]
  %v1608 = vadd.f32 %v1575, %v1592
  %v1609 = vadd.f32 %v1576, %v1593
  %v1610 = vadd.f32 %v1577, %v1594
  %v1611 = vadd.f32 %v1578, %v1595
  %v1612 = vadd.f32 %v1579, %v1596
  %v1613 = vadd.f32 %v1580, %v1597
  %v1614 = vadd.f32 %v1581, %v1598
  %v1615 = vadd.f32 %v1582, %v1599
  %v1616 = vadd.f32 %v1583, %v1600
  %v1617 = vadd.f32 %v1584, %v1601
  %v1618 = vadd.f32 %v1585, %v1602
  %v1619 = vadd.f32 %v1586, %v1603
  %v1620 = vadd.f32 %v1587, %v1604
  %v1621 = vadd.f32 %v1588, %v1605
  %v1622 = vadd.f32 %v1589, %v1606
  %v1623 = vadd.f32 %v1590, %v1607
  %1624 = vmax.xlane.f32.xlu0 %v1608
  %v1625 = vpop.xlane.xlu0 %1624
  %1626 = vmax.xlane.f32.xlu0 %v1609
  %v1627 = vpop.xlane.xlu0 %1626
  %1628 = vmax.xlane.f32.xlu0 %v1610
  %v1629 = vpop.xlane.xlu0 %1628
  %1630 = vmax.xlane.f32.xlu0 %v1611
  %v1631 = vpop.xlane.xlu0 %1630
  %1632 = vmax.xlane.f32.xlu0 %v1612
  %v1633 = vpop.xlane.xlu0 %1632
  %1634 = vmax.xlane.f32.xlu0 %v1613
  %v1635 = vpop.xlane.xlu0 %1634
  %1636 = vmax.xlane.f32.xlu0 %v1614
  %v1637 = vpop.xlane.xlu0 %1636
  %1638 = vmax.xlane.f32.xlu0 %v1615
  %v1639 = vpop.xlane.xlu0 %1638
  %1640 = vmax.xlane.f32.xlu0 %v1616
  %v1641 = vpop.xlane.xlu0 %1640
  %1642 = vmax.xlane.f32.xlu0 %v1617
  %v1643 = vpop.xlane.xlu0 %1642
  %1644 = vmax.xlane.f32.xlu0 %v1618
  %v1645 = vpop.xlane.xlu0 %1644
  %1646 = vmax.xlane.f32.xlu0 %v1619
  %v1647 = vpop.xlane.xlu0 %1646
  %1648 = vmax.xlane.f32.xlu0 %v1620
  %v1649 = vpop.xlane.xlu0 %1648
  %1650 = vmax.xlane.f32.xlu0 %v1621
  %v1651 = vpop.xlane.xlu0 %1650
  %1652 = vmax.xlane.f32.xlu0 %v1622
  %v1653 = vpop.xlane.xlu0 %1652
  %1654 = vmax.xlane.f32.xlu0 %v1623
  %v1655 = vpop.xlane.xlu0 %1654
  %v1656 = vsub.f32 %v1608, %v1625
  %v1657 = vsub.f32 %v1609, %v1627
  %v1658 = vsub.f32 %v1610, %v1629
  %v1659 = vsub.f32 %v1611, %v1631
  %v1660 = vsub.f32 %v1612, %v1633
  %v1661 = vsub.f32 %v1613, %v1635
  %v1662 = vsub.f32 %v1614, %v1637
  %v1663 = vsub.f32 %v1615, %v1639
  %v1664 = vsub.f32 %v1616, %v1641
  %v1665 = vsub.f32 %v1617, %v1643
  %v1666 = vsub.f32 %v1618, %v1645
  %v1667 = vsub.f32 %v1619, %v1647
  %v1668 = vsub.f32 %v1620, %v1649
  %v1669 = vsub.f32 %v1621, %v1651
  %v1670 = vsub.f32 %v1622, %v1653
  %v1671 = vsub.f32 %v1623, %v1655
  %v1672 = vmul.f32 %v1656, 1.442695
  %v1673 = vpow.pop %v1672
  %v1674 = vmul.f32 %v1657, 1.442695
  %v1675 = vpow.pop %v1674
  %v1676 = vmul.f32 %v1658, 1.442695
  %v1677 = vpow.pop %v1676
  %v1678 = vmul.f32 %v1659, 1.442695
  %v1679 = vpow.pop %v1678
  %v1680 = vmul.f32 %v1660, 1.442695
  %v1681 = vpow.pop %v1680
  %v1682 = vmul.f32 %v1661, 1.442695
  %v1683 = vpow.pop %v1682
  %v1684 = vmul.f32 %v1662, 1.442695
  %v1685 = vpow.pop %v1684
  %v1686 = vmul.f32 %v1663, 1.442695
  %v1687 = vpow.pop %v1686
  %v1688 = vmul.f32 %v1664, 1.442695
  %v1689 = vpow.pop %v1688
  %v1690 = vmul.f32 %v1665, 1.442695
  %v1691 = vpow.pop %v1690
  %v1692 = vmul.f32 %v1666, 1.442695
  %v1693 = vpow.pop %v1692
  %v1694 = vmul.f32 %v1667, 1.442695
  %v1695 = vpow.pop %v1694
  %v1696 = vmul.f32 %v1668, 1.442695
  %v1697 = vpow.pop %v1696
  %v1698 = vmul.f32 %v1669, 1.442695
  %v1699 = vpow.pop %v1698
  %v1700 = vmul.f32 %v1670, 1.442695
  %v1701 = vpow.pop %v1700
  %v1702 = vmul.f32 %v1671, 1.442695
  %v1703 = vpow.pop %v1702
  %1704 = vadd.xlane.f32.xlu0 %v1673
  %v1705 = vpop.xlane.xlu0 %1704
  %1706 = vadd.xlane.f32.xlu0 %v1675
  %v1707 = vpop.xlane.xlu0 %1706
  %1708 = vadd.xlane.f32.xlu0 %v1677
  %v1709 = vpop.xlane.xlu0 %1708
  %1710 = vadd.xlane.f32.xlu0 %v1679
  %v1711 = vpop.xlane.xlu0 %1710
  %1712 = vadd.xlane.f32.xlu0 %v1681
  %v1713 = vpop.xlane.xlu0 %1712
  %1714 = vadd.xlane.f32.xlu0 %v1683
  %v1715 = vpop.xlane.xlu0 %1714
  %1716 = vadd.xlane.f32.xlu0 %v1685
  %v1717 = vpop.xlane.xlu0 %1716
  %1718 = vadd.xlane.f32.xlu0 %v1687
  %v1719 = vpop.xlane.xlu0 %1718
  %1720 = vadd.xlane.f32.xlu0 %v1689
  %v1721 = vpop.xlane.xlu0 %1720
  %1722 = vadd.xlane.f32.xlu0 %v1691
  %v1723 = vpop.xlane.xlu0 %1722
  %1724 = vadd.xlane.f32.xlu0 %v1693
  %v1725 = vpop.xlane.xlu0 %1724
  %1726 = vadd.xlane.f32.xlu0 %v1695
  %v1727 = vpop.xlane.xlu0 %1726
  %1728 = vadd.xlane.f32.xlu0 %v1697
  %v1729 = vpop.xlane.xlu0 %1728
  %1730 = vadd.xlane.f32.xlu0 %v1699
  %v1731 = vpop.xlane.xlu0 %1730
  %1732 = vadd.xlane.f32.xlu0 %v1701
  %v1733 = vpop.xlane.xlu0 %1732
  %1734 = vadd.xlane.f32.xlu0 %v1703
  %v1735 = vpop.xlane.xlu0 %1734
  %v1736 = vrcp.pop %v1705
  %v1737 = vrcp.pop %v1707
  %v1738 = vrcp.pop %v1709
  %v1739 = vrcp.pop %v1711
  %v1740 = vrcp.pop %v1713
  %v1741 = vrcp.pop %v1715
  %v1742 = vrcp.pop %v1717
  %v1743 = vrcp.pop %v1719
  %v1744 = vrcp.pop %v1721
  %v1745 = vrcp.pop %v1723
  %v1746 = vrcp.pop %v1725
  %v1747 = vrcp.pop %v1727
  %v1748 = vrcp.pop %v1729
  %v1749 = vrcp.pop %v1731
  %v1750 = vrcp.pop %v1733
  %v1751 = vrcp.pop %v1735
  %v1752 = vmul.f32 %v1673, %v1736
  %v1753 = vmul.f32 %v1675, %v1737
  %v1754 = vmul.f32 %v1677, %v1738
  %v1755 = vmul.f32 %v1679, %v1739
  %v1756 = vmul.f32 %v1681, %v1740
  %v1757 = vmul.f32 %v1683, %v1741
  %v1758 = vmul.f32 %v1685, %v1742
  %v1759 = vmul.f32 %v1687, %v1743
  %v1760 = vmul.f32 %v1689, %v1744
  %v1761 = vmul.f32 %v1691, %v1745
  %v1762 = vmul.f32 %v1693, %v1746
  %v1763 = vmul.f32 %v1695, %v1747
  %v1764 = vmul.f32 %v1697, %v1748
  %v1765 = vmul.f32 %v1699, %v1749
  %v1766 = vmul.f32 %v1701, %v1750
  %v1767 = vmul.f32 %v1703, %v1751
  %1768 = vmatpush.msra.mxu0 %v1412
  %1769 = vmatpush.msra.mxu0 %v1409
  %1770 = vmatpush.msra.mxu0 %v1406
  %1771 = vmatpush.msra.mxu0 %v1403
  %1772 = vmatpush.msra.mxu0 %v1400
  %1773 = vmatpush.msra.mxu0 %v1397
  %1774 = vmatpush.msra.mxu0 %v1394
  %1775 = vmatpush.msra.mxu0 %v1391
  %1776 = vmatpush.msra.mxu0 %v1388
  %1777 = vmatpush.msra.mxu0 %v1385
  %1778 = vmatpush.msra.mxu0 %v1382
  %1779 = vmatpush.msra.mxu0 %v1379
  %1780 = vmatpush.msra.mxu0 %v1376
  %1781 = vmatpush.msra.mxu0 %v1373
  %1782 = vmatpush.msra.mxu0 %v1370
  %1783 = vmatpush.msra.mxu0 %v1367
  %1784 = vmatmul.f32.gmra.mxu0 %v1752
  %v1785 = vpop.f32.mrf.mxu0
  %v1786 = vadd.f32 0.0, %v1785
  %1787 = vmatmul.f32.gmra.mxu0 %v1753
  %v1788 = vpop.f32.mrf.mxu0
  %v1789 = vadd.f32 0.0, %v1788
  %1790 = vmatmul.f32.gmra.mxu0 %v1754
  %v1791 = vpop.f32.mrf.mxu0
  %v1792 = vadd.f32 0.0, %v1791
  %1793 = vmatmul.f32.gmra.mxu0 %v1755
  %v1794 = vpop.f32.mrf.mxu0
  %v1795 = vadd.f32 0.0, %v1794
  %1796 = vmatmul.f32.gmra.mxu0 %v1756
  %v1797 = vpop.f32.mrf.mxu0
  %v1798 = vadd.f32 0.0, %v1797
  %1799 = vmatmul.f32.gmra.mxu0 %v1757
  %v1800 = vpop.f32.mrf.mxu0
  %v1801 = vadd.f32 0.0, %v1800
  %1802 = vmatmul.f32.gmra.mxu0 %v1758
  %v1803 = vpop.f32.mrf.mxu0
  %v1804 = vadd.f32 0.0, %v1803
  %1805 = vmatmul.f32.gmra.mxu0 %v1759
  %v1806 = vpop.f32.mrf.mxu0
  %v1807 = vadd.f32 0.0, %v1806
  %1808 = vmatmul.f32.gmra.mxu0 %v1760
  %v1809 = vpop.f32.mrf.mxu0
  %v1810 = vadd.f32 0.0, %v1809
  %1811 = vmatmul.f32.gmra.mxu0 %v1761
  %v1812 = vpop.f32.mrf.mxu0
  %v1813 = vadd.f32 0.0, %v1812
  %1814 = vmatmul.f32.gmra.mxu0 %v1762
  %v1815 = vpop.f32.mrf.mxu0
  %v1816 = vadd.f32 0.0, %v1815
  %1817 = vmatmul.f32.gmra.mxu0 %v1763
  %v1818 = vpop.f32.mrf.mxu0
  %v1819 = vadd.f32 0.0, %v1818
  %1820 = vmatmul.f32.gmra.mxu0 %v1764
  %v1821 = vpop.f32.mrf.mxu0
  %v1822 = vadd.f32 0.0, %v1821
  %1823 = vmatmul.f32.gmra.mxu0 %v1765
  %v1824 = vpop.f32.mrf.mxu0
  %v1825 = vadd.f32 0.0, %v1824
  %1826 = vmatmul.f32.gmra.mxu0 %v1766
  %v1827 = vpop.f32.mrf.mxu0
  %v1828 = vadd.f32 0.0, %v1827
  %1829 = vmatmul.f32.gmra.mxu0 %v1767
  %v1830 = vpop.f32.mrf.mxu0
  %v1831 = vadd.f32 0.0, %v1830
  %1832 = vdwg.mxu0
  %s1833 = scalar_lea.vmem %s10, 16
  %v1834 = vld [vmem:[%s1833] sm:$0xff]
  %v1835 = vld [vmem:[%s1833 + $0x8] sm:$0xff]
  %v1837 = vsel %vm768, %v1786, 0
  %v1840 = vsel %vm768, %v1789, 0
  %v1843 = vsel %vm768, %v1792, 0
  %v1846 = vsel %vm768, %v1795, 0
  %v1849 = vsel %vm768, %v1798, 0
  %v1852 = vsel %vm768, %v1801, 0
  %v1855 = vsel %vm768, %v1804, 0
  %v1858 = vsel %vm768, %v1807, 0
  %v1861 = vsel %vm768, %v1810, 0
  %v1864 = vsel %vm768, %v1813, 0
  %v1867 = vsel %vm768, %v1816, 0
  %v1870 = vsel %vm768, %v1819, 0
  %v1873 = vsel %vm768, %v1822, 0
  %v1876 = vsel %vm768, %v1825, 0
  %v1879 = vsel %vm768, %v1828, 0
  %v1882 = vsel %vm768, %v1831, 0
  %1884 = vmatpush.msra.mxu0 0.0
  %1885 = vmatpush.msra.mxu0 0.0
  %1886 = vmatpush.msra.mxu0 0.0
  %1887 = vmatpush.msra.mxu0 0.0
  %1888 = vmatpush.msra.mxu0 0.0
  %1889 = vmatpush.msra.mxu0 0.0
  %1890 = vmatpush.msra.mxu0 0.0
  %1891 = vmatpush.msra.mxu0 0.0
  %1892 = vmatpush.msra.mxu0 0.0
  %1893 = vmatpush.msra.mxu0 0.0
  %1894 = vmatpush.msra.mxu0 0.0
  %1895 = vmatpush.msra.mxu0 0.0
  %1896 = vmatpush.msra.mxu0 0.0
  %1897 = vmatpush.msra.mxu0 0.0
  %1898 = vmatpush.msra.mxu0 %v1835
  %1899 = vmatpush.msra.mxu0 %v1834
  %1900 = vmatmul.f32.gmra.mxu0 %v1837
  %v1901 = vpop.f32.mrf.mxu0
  %v1902 = vadd.f32 0.0, %v1901
  %1903 = vmatmul.f32.gmra.mxu0 %v1840
  %v1904 = vpop.f32.mrf.mxu0
  %v1905 = vadd.f32 0.0, %v1904
  %1906 = vmatmul.f32.gmra.mxu0 %v1843
  %v1907 = vpop.f32.mrf.mxu0
  %v1908 = vadd.f32 0.0, %v1907
  %1909 = vmatmul.f32.gmra.mxu0 %v1846
  %v1910 = vpop.f32.mrf.mxu0
  %v1911 = vadd.f32 0.0, %v1910
  %1912 = vmatmul.f32.gmra.mxu0 %v1849
  %v1913 = vpop.f32.mrf.mxu0
  %v1914 = vadd.f32 0.0, %v1913
  %1915 = vmatmul.f32.gmra.mxu0 %v1852
  %v1916 = vpop.f32.mrf.mxu0
  %v1917 = vadd.f32 0.0, %v1916
  %1918 = vmatmul.f32.gmra.mxu0 %v1855
  %v1919 = vpop.f32.mrf.mxu0
  %v1920 = vadd.f32 0.0, %v1919
  %1921 = vmatmul.f32.gmra.mxu0 %v1858
  %v1922 = vpop.f32.mrf.mxu0
  %v1923 = vadd.f32 0.0, %v1922
  %1924 = vmatmul.f32.gmra.mxu0 %v1861
  %v1925 = vpop.f32.mrf.mxu0
  %v1926 = vadd.f32 0.0, %v1925
  %1927 = vmatmul.f32.gmra.mxu0 %v1864
  %v1928 = vpop.f32.mrf.mxu0
  %v1929 = vadd.f32 0.0, %v1928
  %1930 = vmatmul.f32.gmra.mxu0 %v1867
  %v1931 = vpop.f32.mrf.mxu0
  %v1932 = vadd.f32 0.0, %v1931
  %1933 = vmatmul.f32.gmra.mxu0 %v1870
  %v1934 = vpop.f32.mrf.mxu0
  %v1935 = vadd.f32 0.0, %v1934
  %1936 = vmatmul.f32.gmra.mxu0 %v1873
  %v1937 = vpop.f32.mrf.mxu0
  %v1938 = vadd.f32 0.0, %v1937
  %1939 = vmatmul.f32.gmra.mxu0 %v1876
  %v1940 = vpop.f32.mrf.mxu0
  %v1941 = vadd.f32 0.0, %v1940
  %1942 = vmatmul.f32.gmra.mxu0 %v1879
  %v1943 = vpop.f32.mrf.mxu0
  %v1944 = vadd.f32 0.0, %v1943
  %1945 = vmatmul.f32.gmra.mxu0 %v1882
  %v1946 = vpop.f32.mrf.mxu0
  %v1947 = vadd.f32 0.0, %v1946
  %1948 = vdwg.mxu0
  %v1950 = vsel %vm768, %v1140, 0
  %v1953 = vsel %vm768, %v1143, 0
  %v1956 = vsel %vm768, %v1146, 0
  %v1959 = vsel %vm768, %v1149, 0
  %v1962 = vsel %vm768, %v1152, 0
  %v1965 = vsel %vm768, %v1155, 0
  %v1968 = vsel %vm768, %v1158, 0
  %v1971 = vsel %vm768, %v1161, 0
  %v1974 = vsel %vm768, %v1164, 0
  %v1977 = vsel %vm768, %v1167, 0
  %v1980 = vsel %vm768, %v1170, 0
  %v1983 = vsel %vm768, %v1173, 0
  %v1986 = vsel %vm768, %v1176, 0
  %v1989 = vsel %vm768, %v1179, 0
  %v1992 = vsel %vm768, %v1182, 0
  %v1995 = vsel %vm768, %v1185, 0
  %1997 = vmatpush.msra.mxu0 0.0
  %1998 = vmatpush.msra.mxu0 0.0
  %1999 = vmatpush.msra.mxu0 0.0
  %2000 = vmatpush.msra.mxu0 0.0
  %2001 = vmatpush.msra.mxu0 0.0
  %2002 = vmatpush.msra.mxu0 0.0
  %2003 = vmatpush.msra.mxu0 0.0
  %2004 = vmatpush.msra.mxu0 0.0
  %2005 = vmatpush.msra.mxu0 0.0
  %2006 = vmatpush.msra.mxu0 0.0
  %2007 = vmatpush.msra.mxu0 0.0
  %2008 = vmatpush.msra.mxu0 0.0
  %2009 = vmatpush.msra.mxu0 0.0
  %2010 = vmatpush.msra.mxu0 0.0
  %2011 = vmatpush.msra.mxu0 %v1188
  %2012 = vmatpush.msra.mxu0 %v1187
  %2013 = vmatmul.f32.gmra.mxu0 %v1950
  %v2014 = vpop.f32.mrf.mxu0
  %v2015 = vadd.f32 %v1902, %v2014
  %2016 = vmatmul.f32.gmra.mxu0 %v1953
  %v2017 = vpop.f32.mrf.mxu0
  %v2018 = vadd.f32 %v1905, %v2017
  %2019 = vmatmul.f32.gmra.mxu0 %v1956
  %v2020 = vpop.f32.mrf.mxu0
  %v2021 = vadd.f32 %v1908, %v2020
  %2022 = vmatmul.f32.gmra.mxu0 %v1959
  %v2023 = vpop.f32.mrf.mxu0
  %v2024 = vadd.f32 %v1911, %v2023
  %2025 = vmatmul.f32.gmra.mxu0 %v1962
  %v2026 = vpop.f32.mrf.mxu0
  %v2027 = vadd.f32 %v1914, %v2026
  %2028 = vmatmul.f32.gmra.mxu0 %v1965
  %v2029 = vpop.f32.mrf.mxu0
  %v2030 = vadd.f32 %v1917, %v2029
  %2031 = vmatmul.f32.gmra.mxu0 %v1968
  %v2032 = vpop.f32.mrf.mxu0
  %v2033 = vadd.f32 %v1920, %v2032
  %2034 = vmatmul.f32.gmra.mxu0 %v1971
  %v2035 = vpop.f32.mrf.mxu0
  %v2036 = vadd.f32 %v1923, %v2035
  %2037 = vmatmul.f32.gmra.mxu0 %v1974
  %v2038 = vpop.f32.mrf.mxu0
  %v2039 = vadd.f32 %v1926, %v2038
  %2040 = vmatmul.f32.gmra.mxu0 %v1977
  %v2041 = vpop.f32.mrf.mxu0
  %v2042 = vadd.f32 %v1929, %v2041
  %2043 = vmatmul.f32.gmra.mxu0 %v1980
  %v2044 = vpop.f32.mrf.mxu0
  %v2045 = vadd.f32 %v1932, %v2044
  %2046 = vmatmul.f32.gmra.mxu0 %v1983
  %v2047 = vpop.f32.mrf.mxu0
  %v2048 = vadd.f32 %v1935, %v2047
  %2049 = vmatmul.f32.gmra.mxu0 %v1986
  %v2050 = vpop.f32.mrf.mxu0
  %v2051 = vadd.f32 %v1938, %v2050
  %2052 = vmatmul.f32.gmra.mxu0 %v1989
  %v2053 = vpop.f32.mrf.mxu0
  %v2054 = vadd.f32 %v1941, %v2053
  %2055 = vmatmul.f32.gmra.mxu0 %v1992
  %v2056 = vpop.f32.mrf.mxu0
  %v2057 = vadd.f32 %v1944, %v2056
  %2058 = vmatmul.f32.gmra.mxu0 %v1995
  %v2059 = vpop.f32.mrf.mxu0
  %v2060 = vadd.f32 %v1947, %v2059
  %2061 = vdwg.mxu0
  %v2062 = vld [vmem:[%s11] sm:$0x1]
  %v2064 = vperm.slane %v2062, 0
  %v2066 = vadd.f32 %v2015, %v2064
  %v2067 = vadd.f32 %v2018, %v2064
  %v2068 = vadd.f32 %v2021, %v2064
  %v2069 = vadd.f32 %v2024, %v2064
  %v2070 = vadd.f32 %v2027, %v2064
  %v2071 = vadd.f32 %v2030, %v2064
  %v2072 = vadd.f32 %v2033, %v2064
  %v2073 = vadd.f32 %v2036, %v2064
  %v2074 = vadd.f32 %v2039, %v2064
  %v2075 = vadd.f32 %v2042, %v2064
  %v2076 = vadd.f32 %v2045, %v2064
  %v2077 = vadd.f32 %v2048, %v2064
  %v2078 = vadd.f32 %v2051, %v2064
  %v2079 = vadd.f32 %v2054, %v2064
  %v2080 = vadd.f32 %v2057, %v2064
  %v2081 = vadd.f32 %v2060, %v2064
  %v2082 = vld [vmem:[%s12] sm:$0xff]
  %v2083 = vld [vmem:[%s12 + $0x8] sm:$0xff]
  %v2084 = vld [vmem:[%s12 + $0x10] sm:$0xf]
  %v2086 = vsel %vm103, %v2082, 0
  %v2089 = vsel %vm103, %v2083, 0
  %v2092 = vsel %vm103, %v2084, 0
  %v2095 = vsel %vm103, %v2066, 0
  %v2098 = vsel %vm103, %v2067, 0
  %v2101 = vsel %vm103, %v2068, 0
  %v2104 = vsel %vm103, %v2069, 0
  %v2107 = vsel %vm103, %v2070, 0
  %v2110 = vsel %vm103, %v2071, 0
  %v2113 = vsel %vm103, %v2072, 0
  %v2116 = vsel %vm103, %v2073, 0
  %v2119 = vsel %vm103, %v2074, 0
  %v2122 = vsel %vm103, %v2075, 0
  %v2125 = vsel %vm103, %v2076, 0
  %v2128 = vsel %vm103, %v2077, 0
  %v2131 = vsel %vm103, %v2078, 0
  %v2134 = vsel %vm103, %v2079, 0
  %v2137 = vsel %vm103, %v2080, 0
  %v2140 = vsel %vm103, %v2081, 0
  %2142 = vmatpush.xpose.msra.mxu0 %v2140
  %2143 = vmatpush.xpose.msra.mxu0 %v2137
  %2144 = vmatpush.xpose.msra.mxu0 %v2134
  %2145 = vmatpush.xpose.msra.mxu0 %v2131
  %2146 = vmatpush.xpose.msra.mxu0 %v2128
  %2147 = vmatpush.xpose.msra.mxu0 %v2125
  %2148 = vmatpush.xpose.msra.mxu0 %v2122
  %2149 = vmatpush.xpose.msra.mxu0 %v2119
  %2150 = vmatpush.xpose.msra.mxu0 %v2116
  %2151 = vmatpush.xpose.msra.mxu0 %v2113
  %2152 = vmatpush.xpose.msra.mxu0 %v2110
  %2153 = vmatpush.xpose.msra.mxu0 %v2107
  %2154 = vmatpush.xpose.msra.mxu0 %v2104
  %2155 = vmatpush.xpose.msra.mxu0 %v2101
  %2156 = vmatpush.xpose.msra.mxu0 %v2098
  %2157 = vmatpush.xpose.msra.mxu0 %v2095
  %2158 = vmatmul.f32.gmra.mxu0 %v2086
  %v2159 = vpop.f32.mrf.mxu0
  %v2160 = vadd.f32 0.0, %v2159
  %2161 = vmatmul.f32.gmra.mxu0 %v2089
  %v2162 = vpop.f32.mrf.mxu0
  %v2163 = vadd.f32 0.0, %v2162
  %2164 = vmatmul.f32.gmra.mxu0 %v2092
  %v2165 = vpop.f32.mrf.mxu0
  %v2166 = vadd.f32 0.0, %v2165
  %2167 = vdwg.mxu0
  %v2168 = vmul.f32 %v2160, 0.17677669
  %v2169 = vmul.f32 %v2163, 0.17677669
  %v2170 = vmul.f32 %v2166, 0.17677669
  %v2171 = vld [vmem:[%s13] sm:$0xff]
  %v2172 = vld [vmem:[%s13 + $0x8] sm:$0xff]
  %v2173 = vld [vmem:[%s13 + $0x10] sm:$0xf]
  %v2174 = vadd.f32 %v2168, %v2171
  %v2175 = vadd.f32 %v2169, %v2172
  %v2176 = vadd.f32 %v2170, %v2173
  %2177 = vmax.xlane.f32.xlu0 %v2174
  %v2178 = vpop.xlane.xlu0 %2177
  %2179 = vmax.xlane.f32.xlu0 %v2175
  %v2180 = vpop.xlane.xlu0 %2179
  %vm2181 = vcmask 1043456
  %v2182 = vsel %vm2181, %v2176, -inf
  %2183 = vmax.xlane.f32.xlu0 %v2182
  %v2184 = vpop.xlane.xlu0 %2183
  %v2185 = vsub.f32 %v2174, %v2178
  %v2186 = vsub.f32 %v2175, %v2180
  %v2187 = vsub.f32 %v2176, %v2184
  %v2188 = vmul.f32 %v2185, 1.442695
  %v2189 = vpow.pop %v2188
  %v2190 = vmul.f32 %v2186, 1.442695
  %v2191 = vpow.pop %v2190
  %v2192 = vmul.f32 %v2187, 1.442695
  %v2193 = vpow.pop %v2192
  %2194 = vadd.xlane.f32.xlu0 %v2189
  %v2195 = vpop.xlane.xlu0 %2194
  %2196 = vadd.xlane.f32.xlu0 %v2191
  %v2197 = vpop.xlane.xlu0 %2196
  %v2198 = vsel %vm2181, %v2193, 0.0
  %2199 = vadd.xlane.f32.xlu0 %v2198
  %v2200 = vpop.xlane.xlu0 %2199
  %v2201 = vrcp.pop %v2195
  %v2202 = vrcp.pop %v2197
  %v2203 = vrcp.pop %v2200
  %v2204 = vmul.f32 %v2189, %v2201
  %v2205 = vmul.f32 %v2191, %v2202
  %v2206 = vmul.f32 %v2193, %v2203
  %2207 = vmatpush.msra.mxu0 %v2081
  %2208 = vmatpush.msra.mxu0 %v2080
  %2209 = vmatpush.msra.mxu0 %v2079
  %2210 = vmatpush.msra.mxu0 %v2078
  %2211 = vmatpush.msra.mxu0 %v2077
  %2212 = vmatpush.msra.mxu0 %v2076
  %2213 = vmatpush.msra.mxu0 %v2075
  %2214 = vmatpush.msra.mxu0 %v2074
  %2215 = vmatpush.msra.mxu0 %v2073
  %2216 = vmatpush.msra.mxu0 %v2072
  %2217 = vmatpush.msra.mxu0 %v2071
  %2218 = vmatpush.msra.mxu0 %v2070
  %2219 = vmatpush.msra.mxu0 %v2069
  %2220 = vmatpush.msra.mxu0 %v2068
  %2221 = vmatpush.msra.mxu0 %v2067
  %2222 = vmatpush.msra.mxu0 %v2066
  %2223 = vmatmul.f32.gmra.mxu0 %v2204
  %v2224 = vpop.f32.mrf.mxu0
  %v2225 = vadd.f32 0.0, %v2224
  %2226 = vmatmul.f32.gmra.mxu0 %v2205
  %v2227 = vpop.f32.mrf.mxu0
  %v2228 = vadd.f32 0.0, %v2227
  %2229 = vmatmul.f32.gmra.mxu0 %v2206
  %v2230 = vpop.f32.mrf.mxu0
  %v2231 = vadd.f32 0.0, %v2230
  %2232 = vdwg.mxu0
  %v2233 = vld [vmem:[%s14] sm:$0xff]
  %v2234 = vld [vmem:[%s14 + $0x8] sm:$0xff]
  %v2235 = vld [vmem:[%s14 + $0x10] sm:$0xff]
  %v2236 = vld [vmem:[%s14 + $0x18] sm:$0xff]
  %v2237 = vld [vmem:[%s14 + $0x20] sm:$0xff]
  %v2238 = vld [vmem:[%s14 + $0x28] sm:$0xff]
  %v2239 = vld [vmem:[%s14 + $0x30] sm:$0xff]
  %v2240 = vld [vmem:[%s14 + $0x38] sm:$0xff]
  %v2241 = vld [vmem:[%s14 + $0x40] sm:$0xff]
  %v2242 = vld [vmem:[%s14 + $0x48] sm:$0xff]
  %v2243 = vld [vmem:[%s14 + $0x50] sm:$0xff]
  %v2244 = vld [vmem:[%s14 + $0x58] sm:$0xff]
  %v2245 = vld [vmem:[%s14 + $0x60] sm:$0xff]
  %v2246 = vld [vmem:[%s14 + $0x68] sm:$0xff]
  %v2247 = vld [vmem:[%s14 + $0x70] sm:$0xff]
  %v2248 = vld [vmem:[%s14 + $0x78] sm:$0xff]
  %vm2249 = vcmask 162816
  %v2251 = vsel %vm2249, %v2233, 0
  %v2254 = vsel %vm2249, %v2234, 0
  %v2257 = vsel %vm2249, %v2235, 0
  %v2260 = vsel %vm2249, %v2236, 0
  %v2263 = vsel %vm2249, %v2237, 0
  %v2266 = vsel %vm2249, %v2238, 0
  %v2269 = vsel %vm2249, %v2239, 0
  %v2272 = vsel %vm2249, %v2240, 0
  %v2275 = vsel %vm2249, %v2241, 0
  %v2278 = vsel %vm2249, %v2242, 0
  %v2281 = vsel %vm2249, %v2243, 0
  %v2284 = vsel %vm2249, %v2244, 0
  %v2287 = vsel %vm2249, %v2245, 0
  %v2290 = vsel %vm2249, %v2246, 0
  %v2293 = vsel %vm2249, %v2247, 0
  %v2296 = vsel %vm2249, %v2248, 0
  %v2299 = vsel %vm2181, %v2231, 0
  %2301 = vmatpush.msra.mxu0 0.0
  %2302 = vmatpush.msra.mxu0 0.0
  %2303 = vmatpush.msra.mxu0 0.0
  %2304 = vmatpush.msra.mxu0 0.0
  %2305 = vmatpush.msra.mxu0 0.0
  %2306 = vmatpush.msra.mxu0 0.0
  %2307 = vmatpush.msra.mxu0 0.0
  %2308 = vmatpush.msra.mxu0 0.0
  %2309 = vmatpush.msra.mxu0 0.0
  %2310 = vmatpush.msra.mxu0 0.0
  %2311 = vmatpush.msra.mxu0 0.0
  %2312 = vmatpush.msra.mxu0 0.0
  %2313 = vmatpush.msra.mxu0 0.0
  %2314 = vmatpush.msra.mxu0 %v2299
  %2315 = vmatpush.msra.mxu0 %v2228
  %2316 = vmatpush.msra.mxu0 %v2225
  %2317 = vmatmul.f32.gmra.mxu0 %v2251
  %v2318 = vpop.f32.mrf.mxu0
  %v2319 = vadd.f32 0.0, %v2318
  %2320 = vmatmul.f32.gmra.mxu0 %v2254
  %v2321 = vpop.f32.mrf.mxu0
  %v2322 = vadd.f32 0.0, %v2321
  %2323 = vmatmul.f32.gmra.mxu0 %v2257
  %v2324 = vpop.f32.mrf.mxu0
  %v2325 = vadd.f32 0.0, %v2324
  %2326 = vmatmul.f32.gmra.mxu0 %v2260
  %v2327 = vpop.f32.mrf.mxu0
  %v2328 = vadd.f32 0.0, %v2327
  %2329 = vmatmul.f32.gmra.mxu0 %v2263
  %v2330 = vpop.f32.mrf.mxu0
  %v2331 = vadd.f32 0.0, %v2330
  %2332 = vmatmul.f32.gmra.mxu0 %v2266
  %v2333 = vpop.f32.mrf.mxu0
  %v2334 = vadd.f32 0.0, %v2333
  %2335 = vmatmul.f32.gmra.mxu0 %v2269
  %v2336 = vpop.f32.mrf.mxu0
  %v2337 = vadd.f32 0.0, %v2336
  %2338 = vmatmul.f32.gmra.mxu0 %v2272
  %v2339 = vpop.f32.mrf.mxu0
  %v2340 = vadd.f32 0.0, %v2339
  %2341 = vmatmul.f32.gmra.mxu0 %v2275
  %v2342 = vpop.f32.mrf.mxu0
  %v2343 = vadd.f32 0.0, %v2342
  %2344 = vmatmul.f32.gmra.mxu0 %v2278
  %v2345 = vpop.f32.mrf.mxu0
  %v2346 = vadd.f32 0.0, %v2345
  %2347 = vmatmul.f32.gmra.mxu0 %v2281
  %v2348 = vpop.f32.mrf.mxu0
  %v2349 = vadd.f32 0.0, %v2348
  %2350 = vmatmul.f32.gmra.mxu0 %v2284
  %v2351 = vpop.f32.mrf.mxu0
  %v2352 = vadd.f32 0.0, %v2351
  %2353 = vmatmul.f32.gmra.mxu0 %v2287
  %v2354 = vpop.f32.mrf.mxu0
  %v2355 = vadd.f32 0.0, %v2354
  %2356 = vmatmul.f32.gmra.mxu0 %v2290
  %v2357 = vpop.f32.mrf.mxu0
  %v2358 = vadd.f32 0.0, %v2357
  %2359 = vmatmul.f32.gmra.mxu0 %v2293
  %v2360 = vpop.f32.mrf.mxu0
  %v2361 = vadd.f32 0.0, %v2360
  %2362 = vmatmul.f32.gmra.mxu0 %v2296
  %v2363 = vpop.f32.mrf.mxu0
  %v2364 = vadd.f32 0.0, %v2363
  %2365 = vdwg.mxu0
  %v2366 = vadd.f32 %v2066, %v2319
  %v2367 = vadd.f32 %v2067, %v2322
  %v2368 = vadd.f32 %v2068, %v2325
  %v2369 = vadd.f32 %v2069, %v2328
  %v2370 = vadd.f32 %v2070, %v2331
  %v2371 = vadd.f32 %v2071, %v2334
  %v2372 = vadd.f32 %v2072, %v2337
  %v2373 = vadd.f32 %v2073, %v2340
  %v2374 = vadd.f32 %v2074, %v2343
  %v2375 = vadd.f32 %v2075, %v2346
  %v2376 = vadd.f32 %v2076, %v2349
  %v2377 = vadd.f32 %v2077, %v2352
  %v2378 = vadd.f32 %v2078, %v2355
  %v2379 = vadd.f32 %v2079, %v2358
  %v2380 = vadd.f32 %v2080, %v2361
  %v2381 = vadd.f32 %v2081, %v2364
  %v2382 = vadd.f32 %v85, %v2366
  %v2383 = vadd.f32 %v86, %v2367
  %v2384 = vadd.f32 %v87, %v2368
  %v2385 = vadd.f32 %v88, %v2369
  %v2386 = vadd.f32 %v89, %v2370
  %v2387 = vadd.f32 %v90, %v2371
  %v2388 = vadd.f32 %v91, %v2372
  %v2389 = vadd.f32 %v92, %v2373
  %v2390 = vadd.f32 %v93, %v2374
  %v2391 = vadd.f32 %v94, %v2375
  %v2392 = vadd.f32 %v95, %v2376
  %v2393 = vadd.f32 %v96, %v2377
  %v2394 = vadd.f32 %v97, %v2378
  %v2395 = vadd.f32 %v98, %v2379
  %v2396 = vadd.f32 %v99, %v2380
  %v2397 = vadd.f32 %v100, %v2381
  %v2398 = vld [vmem:[%s15] sm:$0x1]
  %v2399 = vld [vmem:[%s16] sm:$0x1]
  %v2400 = vsel %vm103, %v2382, 0.0
  %2401 = vadd.xlane.f32.xlu0 %v2400
  %v2402 = vpop.xlane.xlu0 %2401
  %v2403 = vsel %vm103, %v2383, 0.0
  %2404 = vadd.xlane.f32.xlu0 %v2403
  %v2405 = vpop.xlane.xlu0 %2404
  %v2406 = vsel %vm103, %v2384, 0.0
  %2407 = vadd.xlane.f32.xlu0 %v2406
  %v2408 = vpop.xlane.xlu0 %2407
  %v2409 = vsel %vm103, %v2385, 0.0
  %2410 = vadd.xlane.f32.xlu0 %v2409
  %v2411 = vpop.xlane.xlu0 %2410
  %v2412 = vsel %vm103, %v2386, 0.0
  %2413 = vadd.xlane.f32.xlu0 %v2412
  %v2414 = vpop.xlane.xlu0 %2413
  %v2415 = vsel %vm103, %v2387, 0.0
  %2416 = vadd.xlane.f32.xlu0 %v2415
  %v2417 = vpop.xlane.xlu0 %2416
  %v2418 = vsel %vm103, %v2388, 0.0
  %2419 = vadd.xlane.f32.xlu0 %v2418
  %v2420 = vpop.xlane.xlu0 %2419
  %v2421 = vsel %vm103, %v2389, 0.0
  %2422 = vadd.xlane.f32.xlu0 %v2421
  %v2423 = vpop.xlane.xlu0 %2422
  %v2424 = vsel %vm103, %v2390, 0.0
  %2425 = vadd.xlane.f32.xlu0 %v2424
  %v2426 = vpop.xlane.xlu0 %2425
  %v2427 = vsel %vm103, %v2391, 0.0
  %2428 = vadd.xlane.f32.xlu0 %v2427
  %v2429 = vpop.xlane.xlu0 %2428
  %v2430 = vsel %vm103, %v2392, 0.0
  %2431 = vadd.xlane.f32.xlu0 %v2430
  %v2432 = vpop.xlane.xlu0 %2431
  %v2433 = vsel %vm103, %v2393, 0.0
  %2434 = vadd.xlane.f32.xlu0 %v2433
  %v2435 = vpop.xlane.xlu0 %2434
  %v2436 = vsel %vm103, %v2394, 0.0
  %2437 = vadd.xlane.f32.xlu0 %v2436
  %v2438 = vpop.xlane.xlu0 %2437
  %v2439 = vsel %vm103, %v2395, 0.0
  %2440 = vadd.xlane.f32.xlu0 %v2439
  %v2441 = vpop.xlane.xlu0 %2440
  %v2442 = vsel %vm103, %v2396, 0.0
  %2443 = vadd.xlane.f32.xlu0 %v2442
  %v2444 = vpop.xlane.xlu0 %2443
  %v2445 = vsel %vm103, %v2397, 0.0
  %2446 = vadd.xlane.f32.xlu0 %v2445
  %v2447 = vpop.xlane.xlu0 %2446
  %v2448 = vmul.f32 %v2402, %v158
  %v2449 = vmul.f32 %v2405, %v158
  %v2450 = vmul.f32 %v2408, %v158
  %v2451 = vmul.f32 %v2411, %v158
  %v2452 = vmul.f32 %v2414, %v158
  %v2453 = vmul.f32 %v2417, %v158
  %v2454 = vmul.f32 %v2420, %v158
  %v2455 = vmul.f32 %v2423, %v158
  %v2456 = vmul.f32 %v2426, %v158
  %v2457 = vmul.f32 %v2429, %v158
  %v2458 = vmul.f32 %v2432, %v158
  %v2459 = vmul.f32 %v2435, %v158
  %v2460 = vmul.f32 %v2438, %v158
  %v2461 = vmul.f32 %v2441, %v158
  %v2462 = vmul.f32 %v2444, %v158
  %v2463 = vmul.f32 %v2447, %v158
  %v2464 = vsub.f32 %v2382, %v2448
  %v2465 = vsub.f32 %v2383, %v2449
  %v2466 = vsub.f32 %v2384, %v2450
  %v2467 = vsub.f32 %v2385, %v2451
  %v2468 = vsub.f32 %v2386, %v2452
  %v2469 = vsub.f32 %v2387, %v2453
  %v2470 = vsub.f32 %v2388, %v2454
  %v2471 = vsub.f32 %v2389, %v2455
  %v2472 = vsub.f32 %v2390, %v2456
  %v2473 = vsub.f32 %v2391, %v2457
  %v2474 = vsub.f32 %v2392, %v2458
  %v2475 = vsub.f32 %v2393, %v2459
  %v2476 = vsub.f32 %v2394, %v2460
  %v2477 = vsub.f32 %v2395, %v2461
  %v2478 = vsub.f32 %v2396, %v2462
  %v2479 = vsub.f32 %v2397, %v2463
  %v2480 = vmul.f32 %v2464, %v2464
  %v2481 = vmul.f32 %v2465, %v2465
  %v2482 = vmul.f32 %v2466, %v2466
  %v2483 = vmul.f32 %v2467, %v2467
  %v2484 = vmul.f32 %v2468, %v2468
  %v2485 = vmul.f32 %v2469, %v2469
  %v2486 = vmul.f32 %v2470, %v2470
  %v2487 = vmul.f32 %v2471, %v2471
  %v2488 = vmul.f32 %v2472, %v2472
  %v2489 = vmul.f32 %v2473, %v2473
  %v2490 = vmul.f32 %v2474, %v2474
  %v2491 = vmul.f32 %v2475, %v2475
  %v2492 = vmul.f32 %v2476, %v2476
  %v2493 = vmul.f32 %v2477, %v2477
  %v2494 = vmul.f32 %v2478, %v2478
  %v2495 = vmul.f32 %v2479, %v2479
  %v2496 = vsel %vm103, %v2480, 0.0
  %2497 = vadd.xlane.f32.xlu0 %v2496
  %v2498 = vpop.xlane.xlu0 %2497
  %v2499 = vsel %vm103, %v2481, 0.0
  %2500 = vadd.xlane.f32.xlu0 %v2499
  %v2501 = vpop.xlane.xlu0 %2500
  %v2502 = vsel %vm103, %v2482, 0.0
  %2503 = vadd.xlane.f32.xlu0 %v2502
  %v2504 = vpop.xlane.xlu0 %2503
  %v2505 = vsel %vm103, %v2483, 0.0
  %2506 = vadd.xlane.f32.xlu0 %v2505
  %v2507 = vpop.xlane.xlu0 %2506
  %v2508 = vsel %vm103, %v2484, 0.0
  %2509 = vadd.xlane.f32.xlu0 %v2508
  %v2510 = vpop.xlane.xlu0 %2509
  %v2511 = vsel %vm103, %v2485, 0.0
  %2512 = vadd.xlane.f32.xlu0 %v2511
  %v2513 = vpop.xlane.xlu0 %2512
  %v2514 = vsel %vm103, %v2486, 0.0
  %2515 = vadd.xlane.f32.xlu0 %v2514
  %v2516 = vpop.xlane.xlu0 %2515
  %v2517 = vsel %vm103, %v2487, 0.0
  %2518 = vadd.xlane.f32.xlu0 %v2517
  %v2519 = vpop.xlane.xlu0 %2518
  %v2520 = vsel %vm103, %v2488, 0.0
  %2521 = vadd.xlane.f32.xlu0 %v2520
  %v2522 = vpop.xlane.xlu0 %2521
  %v2523 = vsel %vm103, %v2489, 0.0
  %2524 = vadd.xlane.f32.xlu0 %v2523
  %v2525 = vpop.xlane.xlu0 %2524
  %v2526 = vsel %vm103, %v2490, 0.0
  %2527 = vadd.xlane.f32.xlu0 %v2526
  %v2528 = vpop.xlane.xlu0 %2527
  %v2529 = vsel %vm103, %v2491, 0.0
  %2530 = vadd.xlane.f32.xlu0 %v2529
  %v2531 = vpop.xlane.xlu0 %2530
  %v2532 = vsel %vm103, %v2492, 0.0
  %2533 = vadd.xlane.f32.xlu0 %v2532
  %v2534 = vpop.xlane.xlu0 %2533
  %v2535 = vsel %vm103, %v2493, 0.0
  %2536 = vadd.xlane.f32.xlu0 %v2535
  %v2537 = vpop.xlane.xlu0 %2536
  %v2538 = vsel %vm103, %v2494, 0.0
  %2539 = vadd.xlane.f32.xlu0 %v2538
  %v2540 = vpop.xlane.xlu0 %2539
  %v2541 = vsel %vm103, %v2495, 0.0
  %2542 = vadd.xlane.f32.xlu0 %v2541
  %v2543 = vpop.xlane.xlu0 %2542
  %v2544 = vmul.f32 %v2498, %v158
  %v2545 = vmul.f32 %v2501, %v158
  %v2546 = vmul.f32 %v2504, %v158
  %v2547 = vmul.f32 %v2507, %v158
  %v2548 = vmul.f32 %v2510, %v158
  %v2549 = vmul.f32 %v2513, %v158
  %v2550 = vmul.f32 %v2516, %v158
  %v2551 = vmul.f32 %v2519, %v158
  %v2552 = vmul.f32 %v2522, %v158
  %v2553 = vmul.f32 %v2525, %v158
  %v2554 = vmul.f32 %v2528, %v158
  %v2555 = vmul.f32 %v2531, %v158
  %v2556 = vmul.f32 %v2534, %v158
  %v2557 = vmul.f32 %v2537, %v158
  %v2558 = vmul.f32 %v2540, %v158
  %v2559 = vmul.f32 %v2543, %v158
  %v2560 = vadd.f32 %v2544, 1e-05
  %v2561 = vadd.f32 %v2545, 1e-05
  %v2562 = vadd.f32 %v2546, 1e-05
  %v2563 = vadd.f32 %v2547, 1e-05
  %v2564 = vadd.f32 %v2548, 1e-05
  %v2565 = vadd.f32 %v2549, 1e-05
  %v2566 = vadd.f32 %v2550, 1e-05
  %v2567 = vadd.f32 %v2551, 1e-05
  %v2568 = vadd.f32 %v2552, 1e-05
  %v2569 = vadd.f32 %v2553, 1e-05
  %v2570 = vadd.f32 %v2554, 1e-05
  %v2571 = vadd.f32 %v2555, 1e-05
  %v2572 = vadd.f32 %v2556, 1e-05
  %v2573 = vadd.f32 %v2557, 1e-05
  %v2574 = vadd.f32 %v2558, 1e-05
  %v2575 = vadd.f32 %v2559, 1e-05
  %v2576 = vrsqrt.pop %v2560
  %v2577 = vmul.f32 %v2576, %v2560
  %v2578 = vmul.f32 %v2577, %v2576
  %v2579 = vmul.f32 0.5, %v2578
  %v2580 = vsub.f32 1.5, %v2579
  %v2581 = vmul.f32 %v2576, %v2580
  %vm2582 = vweird.f32 %v2560
  %vm2583 = vweird.f32 %v2576
  %vm2584 = vmor %vm2582, %vm2583
  %v2585 = vsel %vm2584, %v2576, %v2581
  %v2586 = vrsqrt.pop %v2561
  %v2587 = vmul.f32 %v2586, %v2561
  %v2588 = vmul.f32 %v2587, %v2586
  %v2589 = vmul.f32 0.5, %v2588
  %v2590 = vsub.f32 1.5, %v2589
  %v2591 = vmul.f32 %v2586, %v2590
  %vm2592 = vweird.f32 %v2561
  %vm2593 = vweird.f32 %v2586
  %vm2594 = vmor %vm2592, %vm2593
  %v2595 = vsel %vm2594, %v2586, %v2591
  %v2596 = vrsqrt.pop %v2562
  %v2597 = vmul.f32 %v2596, %v2562
  %v2598 = vmul.f32 %v2597, %v2596
  %v2599 = vmul.f32 0.5, %v2598
  %v2600 = vsub.f32 1.5, %v2599
  %v2601 = vmul.f32 %v2596, %v2600
  %vm2602 = vweird.f32 %v2562
  %vm2603 = vweird.f32 %v2596
  %vm2604 = vmor %vm2602, %vm2603
  %v2605 = vsel %vm2604, %v2596, %v2601
  %v2606 = vrsqrt.pop %v2563
  %v2607 = vmul.f32 %v2606, %v2563
  %v2608 = vmul.f32 %v2607, %v2606
  %v2609 = vmul.f32 0.5, %v2608
  %v2610 = vsub.f32 1.5, %v2609
  %v2611 = vmul.f32 %v2606, %v2610
  %vm2612 = vweird.f32 %v2563
  %vm2613 = vweird.f32 %v2606
  %vm2614 = vmor %vm2612, %vm2613
  %v2615 = vsel %vm2614, %v2606, %v2611
  %v2616 = vrsqrt.pop %v2564
  %v2617 = vmul.f32 %v2616, %v2564
  %v2618 = vmul.f32 %v2617, %v2616
  %v2619 = vmul.f32 0.5, %v2618
  %v2620 = vsub.f32 1.5, %v2619
  %v2621 = vmul.f32 %v2616, %v2620
  %vm2622 = vweird.f32 %v2564
  %vm2623 = vweird.f32 %v2616
  %vm2624 = vmor %vm2622, %vm2623
  %v2625 = vsel %vm2624, %v2616, %v2621
  %v2626 = vrsqrt.pop %v2565
  %v2627 = vmul.f32 %v2626, %v2565
  %v2628 = vmul.f32 %v2627, %v2626
  %v2629 = vmul.f32 0.5, %v2628
  %v2630 = vsub.f32 1.5, %v2629
  %v2631 = vmul.f32 %v2626, %v2630
  %vm2632 = vweird.f32 %v2565
  %vm2633 = vweird.f32 %v2626
  %vm2634 = vmor %vm2632, %vm2633
  %v2635 = vsel %vm2634, %v2626, %v2631
  %v2636 = vrsqrt.pop %v2566
  %v2637 = vmul.f32 %v2636, %v2566
  %v2638 = vmul.f32 %v2637, %v2636
  %v2639 = vmul.f32 0.5, %v2638
  %v2640 = vsub.f32 1.5, %v2639
  %v2641 = vmul.f32 %v2636, %v2640
  %vm2642 = vweird.f32 %v2566
  %vm2643 = vweird.f32 %v2636
  %vm2644 = vmor %vm2642, %vm2643
  %v2645 = vsel %vm2644, %v2636, %v2641
  %v2646 = vrsqrt.pop %v2567
  %v2647 = vmul.f32 %v2646, %v2567
  %v2648 = vmul.f32 %v2647, %v2646
  %v2649 = vmul.f32 0.5, %v2648
  %v2650 = vsub.f32 1.5, %v2649
  %v2651 = vmul.f32 %v2646, %v2650
  %vm2652 = vweird.f32 %v2567
  %vm2653 = vweird.f32 %v2646
  %vm2654 = vmor %vm2652, %vm2653
  %v2655 = vsel %vm2654, %v2646, %v2651
  %v2656 = vrsqrt.pop %v2568
  %v2657 = vmul.f32 %v2656, %v2568
  %v2658 = vmul.f32 %v2657, %v2656
  %v2659 = vmul.f32 0.5, %v2658
  %v2660 = vsub.f32 1.5, %v2659
  %v2661 = vmul.f32 %v2656, %v2660
  %vm2662 = vweird.f32 %v2568
  %vm2663 = vweird.f32 %v2656
  %vm2664 = vmor %vm2662, %vm2663
  %v2665 = vsel %vm2664, %v2656, %v2661
  %v2666 = vrsqrt.pop %v2569
  %v2667 = vmul.f32 %v2666, %v2569
  %v2668 = vmul.f32 %v2667, %v2666
  %v2669 = vmul.f32 0.5, %v2668
  %v2670 = vsub.f32 1.5, %v2669
  %v2671 = vmul.f32 %v2666, %v2670
  %vm2672 = vweird.f32 %v2569
  %vm2673 = vweird.f32 %v2666
  %vm2674 = vmor %vm2672, %vm2673
  %v2675 = vsel %vm2674, %v2666, %v2671
  %v2676 = vrsqrt.pop %v2570
  %v2677 = vmul.f32 %v2676, %v2570
  %v2678 = vmul.f32 %v2677, %v2676
  %v2679 = vmul.f32 0.5, %v2678
  %v2680 = vsub.f32 1.5, %v2679
  %v2681 = vmul.f32 %v2676, %v2680
  %vm2682 = vweird.f32 %v2570
  %vm2683 = vweird.f32 %v2676
  %vm2684 = vmor %vm2682, %vm2683
  %v2685 = vsel %vm2684, %v2676, %v2681
  %v2686 = vrsqrt.pop %v2571
  %v2687 = vmul.f32 %v2686, %v2571
  %v2688 = vmul.f32 %v2687, %v2686
  %v2689 = vmul.f32 0.5, %v2688
  %v2690 = vsub.f32 1.5, %v2689
  %v2691 = vmul.f32 %v2686, %v2690
  %vm2692 = vweird.f32 %v2571
  %vm2693 = vweird.f32 %v2686
  %vm2694 = vmor %vm2692, %vm2693
  %v2695 = vsel %vm2694, %v2686, %v2691
  %v2696 = vrsqrt.pop %v2572
  %v2697 = vmul.f32 %v2696, %v2572
  %v2698 = vmul.f32 %v2697, %v2696
  %v2699 = vmul.f32 0.5, %v2698
  %v2700 = vsub.f32 1.5, %v2699
  %v2701 = vmul.f32 %v2696, %v2700
  %vm2702 = vweird.f32 %v2572
  %vm2703 = vweird.f32 %v2696
  %vm2704 = vmor %vm2702, %vm2703
  %v2705 = vsel %vm2704, %v2696, %v2701
  %v2706 = vrsqrt.pop %v2573
  %v2707 = vmul.f32 %v2706, %v2573
  %v2708 = vmul.f32 %v2707, %v2706
  %v2709 = vmul.f32 0.5, %v2708
  %v2710 = vsub.f32 1.5, %v2709
  %v2711 = vmul.f32 %v2706, %v2710
  %vm2712 = vweird.f32 %v2573
  %vm2713 = vweird.f32 %v2706
  %vm2714 = vmor %vm2712, %vm2713
  %v2715 = vsel %vm2714, %v2706, %v2711
  %v2716 = vrsqrt.pop %v2574
  %v2717 = vmul.f32 %v2716, %v2574
  %v2718 = vmul.f32 %v2717, %v2716
  %v2719 = vmul.f32 0.5, %v2718
  %v2720 = vsub.f32 1.5, %v2719
  %v2721 = vmul.f32 %v2716, %v2720
  %vm2722 = vweird.f32 %v2574
  %vm2723 = vweird.f32 %v2716
  %vm2724 = vmor %vm2722, %vm2723
  %v2725 = vsel %vm2724, %v2716, %v2721
  %v2726 = vrsqrt.pop %v2575
  %v2727 = vmul.f32 %v2726, %v2575
  %v2728 = vmul.f32 %v2727, %v2726
  %v2729 = vmul.f32 0.5, %v2728
  %v2730 = vsub.f32 1.5, %v2729
  %v2731 = vmul.f32 %v2726, %v2730
  %vm2732 = vweird.f32 %v2575
  %vm2733 = vweird.f32 %v2726
  %vm2734 = vmor %vm2732, %vm2733
  %v2735 = vsel %vm2734, %v2726, %v2731
  %v2736 = vmul.f32 %v2464, %v2585
  %v2737 = vmul.f32 %v2465, %v2595
  %v2738 = vmul.f32 %v2466, %v2605
  %v2739 = vmul.f32 %v2467, %v2615
  %v2740 = vmul.f32 %v2468, %v2625
  %v2741 = vmul.f32 %v2469, %v2635
  %v2742 = vmul.f32 %v2470, %v2645
  %v2743 = vmul.f32 %v2471, %v2655
  %v2744 = vmul.f32 %v2472, %v2665
  %v2745 = vmul.f32 %v2473, %v2675
  %v2746 = vmul.f32 %v2474, %v2685
  %v2747 = vmul.f32 %v2475, %v2695
  %v2748 = vmul.f32 %v2476, %v2705
  %v2749 = vmul.f32 %v2477, %v2715
  %v2750 = vmul.f32 %v2478, %v2725
  %v2751 = vmul.f32 %v2479, %v2735
  %v2753 = vperm.slane %v2398, 0
  %v2755 = vmul.f32 %v2736, %v2753
  %v2756 = vmul.f32 %v2737, %v2753
  %v2757 = vmul.f32 %v2738, %v2753
  %v2758 = vmul.f32 %v2739, %v2753
  %v2759 = vmul.f32 %v2740, %v2753
  %v2760 = vmul.f32 %v2741, %v2753
  %v2761 = vmul.f32 %v2742, %v2753
  %v2762 = vmul.f32 %v2743, %v2753
  %v2763 = vmul.f32 %v2744, %v2753
  %v2764 = vmul.f32 %v2745, %v2753
  %v2765 = vmul.f32 %v2746, %v2753
  %v2766 = vmul.f32 %v2747, %v2753
  %v2767 = vmul.f32 %v2748, %v2753
  %v2768 = vmul.f32 %v2749, %v2753
  %v2769 = vmul.f32 %v2750, %v2753
  %v2770 = vmul.f32 %v2751, %v2753
  %v2772 = vperm.slane %v2399, 0
  %v2774 = vadd.f32 %v2755, %v2772
  %v2775 = vadd.f32 %v2756, %v2772
  %v2776 = vadd.f32 %v2757, %v2772
  %v2777 = vadd.f32 %v2758, %v2772
  %v2778 = vadd.f32 %v2759, %v2772
  %v2779 = vadd.f32 %v2760, %v2772
  %v2780 = vadd.f32 %v2761, %v2772
  %v2781 = vadd.f32 %v2762, %v2772
  %v2782 = vadd.f32 %v2763, %v2772
  %v2783 = vadd.f32 %v2764, %v2772
  %v2784 = vadd.f32 %v2765, %v2772
  %v2785 = vadd.f32 %v2766, %v2772
  %v2786 = vadd.f32 %v2767, %v2772
  %v2787 = vadd.f32 %v2768, %v2772
  %v2788 = vadd.f32 %v2769, %v2772
  %v2789 = vadd.f32 %v2770, %v2772
  %v2790 = vld [vmem:[%s17] sm:$0xff]
  %v2791 = vld [vmem:[%s17 + $0x8] sm:$0xff]
  %v2792 = vld [vmem:[%s17 + $0x10] sm:$0xff]
  %v2793 = vld [vmem:[%s17 + $0x18] sm:$0xff]
  %v2794 = vld [vmem:[%s18] sm:$0x1]
  %v2796 = vperm.slane %v2794, 0
  %v2799 = vsel %vm103, %v2774, 0
  %v2802 = vsel %vm103, %v2775, 0
  %v2805 = vsel %vm103, %v2776, 0
  %v2808 = vsel %vm103, %v2777, 0
  %v2811 = vsel %vm103, %v2778, 0
  %v2814 = vsel %vm103, %v2779, 0
  %v2817 = vsel %vm103, %v2780, 0
  %v2820 = vsel %vm103, %v2781, 0
  %v2823 = vsel %vm103, %v2782, 0
  %v2826 = vsel %vm103, %v2783, 0
  %v2829 = vsel %vm103, %v2784, 0
  %v2832 = vsel %vm103, %v2785, 0
  %v2835 = vsel %vm103, %v2786, 0
  %v2838 = vsel %vm103, %v2787, 0
  %v2841 = vsel %vm103, %v2788, 0
  %v2844 = vsel %vm103, %v2789, 0
  %2846 = vmatpush.msra.mxu0 0.0
  %2847 = vmatpush.msra.mxu0 0.0
  %2848 = vmatpush.msra.mxu0 0.0
  %2849 = vmatpush.msra.mxu0 0.0
  %2850 = vmatpush.msra.mxu0 0.0
  %2851 = vmatpush.msra.mxu0 0.0
  %2852 = vmatpush.msra.mxu0 0.0
  %2853 = vmatpush.msra.mxu0 0.0
  %2854 = vmatpush.msra.mxu0 0.0
  %2855 = vmatpush.msra.mxu0 0.0
  %2856 = vmatpush.msra.mxu0 0.0
  %2857 = vmatpush.msra.mxu0 0.0
  %2858 = vmatpush.msra.mxu0 %v2793
  %2859 = vmatpush.msra.mxu0 %v2792
  %2860 = vmatpush.msra.mxu0 %v2791
  %2861 = vmatpush.msra.mxu0 %v2790
  %2862 = vmatmul.f32.gmra.mxu0 %v2799
  %v2863 = vpop.f32.mrf.mxu0
  %v2864 = vadd.f32 %v2796, %v2863
  %2865 = vmatmul.f32.gmra.mxu0 %v2802
  %v2866 = vpop.f32.mrf.mxu0
  %v2867 = vadd.f32 %v2796, %v2866
  %2868 = vmatmul.f32.gmra.mxu0 %v2805
  %v2869 = vpop.f32.mrf.mxu0
  %v2870 = vadd.f32 %v2796, %v2869
  %2871 = vmatmul.f32.gmra.mxu0 %v2808
  %v2872 = vpop.f32.mrf.mxu0
  %v2873 = vadd.f32 %v2796, %v2872
  %2874 = vmatmul.f32.gmra.mxu0 %v2811
  %v2875 = vpop.f32.mrf.mxu0
  %v2876 = vadd.f32 %v2796, %v2875
  %2877 = vmatmul.f32.gmra.mxu0 %v2814
  %v2878 = vpop.f32.mrf.mxu0
  %v2879 = vadd.f32 %v2796, %v2878
  %2880 = vmatmul.f32.gmra.mxu0 %v2817
  %v2881 = vpop.f32.mrf.mxu0
  %v2882 = vadd.f32 %v2796, %v2881
  %2883 = vmatmul.f32.gmra.mxu0 %v2820
  %v2884 = vpop.f32.mrf.mxu0
  %v2885 = vadd.f32 %v2796, %v2884
  %2886 = vmatmul.f32.gmra.mxu0 %v2823
  %v2887 = vpop.f32.mrf.mxu0
  %v2888 = vadd.f32 %v2796, %v2887
  %2889 = vmatmul.f32.gmra.mxu0 %v2826
  %v2890 = vpop.f32.mrf.mxu0
  %v2891 = vadd.f32 %v2796, %v2890
  %2892 = vmatmul.f32.gmra.mxu0 %v2829
  %v2893 = vpop.f32.mrf.mxu0
  %v2894 = vadd.f32 %v2796, %v2893
  %2895 = vmatmul.f32.gmra.mxu0 %v2832
  %v2896 = vpop.f32.mrf.mxu0
  %v2897 = vadd.f32 %v2796, %v2896
  %2898 = vmatmul.f32.gmra.mxu0 %v2835
  %v2899 = vpop.f32.mrf.mxu0
  %v2900 = vadd.f32 %v2796, %v2899
  %2901 = vmatmul.f32.gmra.mxu0 %v2838
  %v2902 = vpop.f32.mrf.mxu0
  %v2903 = vadd.f32 %v2796, %v2902
  %2904 = vmatmul.f32.gmra.mxu0 %v2841
  %v2905 = vpop.f32.mrf.mxu0
  %v2906 = vadd.f32 %v2796, %v2905
  %2907 = vmatmul.f32.gmra.mxu0 %v2844
  %v2908 = vpop.f32.mrf.mxu0
  %v2909 = vadd.f32 %v2796, %v2908
  %2910 = vdwg.mxu0
  %v2911 = vmul.f32 %v2864, 0.5
  %v2912 = vmul.f32 %v2867, 0.5
  %v2913 = vmul.f32 %v2870, 0.5
  %v2914 = vmul.f32 %v2873, 0.5
  %v2915 = vmul.f32 %v2876, 0.5
  %v2916 = vmul.f32 %v2879, 0.5
  %v2917 = vmul.f32 %v2882, 0.5
  %v2918 = vmul.f32 %v2885, 0.5
  %v2919 = vmul.f32 %v2888, 0.5
  %v2920 = vmul.f32 %v2891, 0.5
  %v2921 = vmul.f32 %v2894, 0.5
  %v2922 = vmul.f32 %v2897, 0.5
  %v2923 = vmul.f32 %v2900, 0.5
  %v2924 = vmul.f32 %v2903, 0.5
  %v2925 = vmul.f32 %v2906, 0.5
  %v2926 = vmul.f32 %v2909, 0.5
  %v2927 = vmul.f32 %v2864, 0.70710677
  %v2928 = vmul.f32 %v2867, 0.70710677
  %v2929 = vmul.f32 %v2870, 0.70710677
  %v2930 = vmul.f32 %v2873, 0.70710677
  %v2931 = vmul.f32 %v2876, 0.70710677
  %v2932 = vmul.f32 %v2879, 0.70710677
  %v2933 = vmul.f32 %v2882, 0.70710677
  %v2934 = vmul.f32 %v2885, 0.70710677
  %v2935 = vmul.f32 %v2888, 0.70710677
  %v2936 = vmul.f32 %v2891, 0.70710677
  %v2937 = vmul.f32 %v2894, 0.70710677
  %v2938 = vmul.f32 %v2897, 0.70710677
  %v2939 = vmul.f32 %v2900, 0.70710677
  %v2940 = vmul.f32 %v2903, 0.70710677
  %v2941 = vmul.f32 %v2906, 0.70710677
  %v2942 = vmul.f32 %v2909, 0.70710677
  %v2943 = vmul.f32 %v2927, %v2927
  %v2944 = vmin.f32 16.0, %v2943
  %v2945 = vmul.f32 %v2944, 2.1237322e-06
  %v2946 = vadd.f32 %v2945, 0.00028619796
  %v2947 = vmul.f32 %v2944, %v2946
  %v2948 = vadd.f32 %v2947, 0.0036580483
  %v2949 = vmul.f32 %v2944, %v2948
  %v2950 = vadd.f32 %v2949, 0.05243302
  %v2951 = vmul.f32 %v2944, %v2950
  %v2952 = vadd.f32 %v2951, 0.18741608
  %v2953 = vmul.f32 %v2944, %v2952
  %v2954 = vadd.f32 %v2953, 1.1283791
  %v2955 = vmul.f32 %v2927, %v2954
  %v2956 = vmul.f32 %v2944, 3.8918573e-05
  %v2957 = vadd.f32 %v2956, 0.001143296
  %v2958 = vmul.f32 %v2944, %v2957
  %v2959 = vadd.f32 %v2958, 0.014752088
  %v2960 = vmul.f32 %v2944, %v2959
  %v2961 = vadd.f32 %v2960, 0.112945676
  %v2962 = vmul.f32 %v2944, %v2961
  %v2963 = vadd.f32 %v2962, 0.4994258
  %v2964 = vmul.f32 %v2944, %v2963
  %v2965 = vadd.f32 %v2964, 1.0
  %v2966 = vrcp.pop %v2965
  %v2967 = vmul.f32 %v2965, %v2966
  %v2968 = vsub.f32 1.0, %v2967
  %v2969 = vmul.f32 %v2966, %v2968
  %v2970 = vadd.f32 %v2966, %v2969
  %vm2971 = vweird.f32 %v2965
  %vm2972 = vweird.f32 %v2966
  %vm2973 = vmor %vm2971, %vm2972
  %v2974 = vsel %vm2973, %v2966, %v2970
  %v2975 = vand.u32 2147483647, %v2965
  %vm2976 = vcmp.eq.f32.partialorder %v2975, 8.507059e+37
  %v2977 = vand.u32 %v2965, 2147483648
  %v2978 = vor.u32 1.1754944e-38, %v2977
  %v2979 = vsel %vm2976, %v2978, %v2974
  %v2980 = vmul.f32 %v2955, %v2979
  %v2981 = vmin.f32 %v2980, 1.0
  %v2982 = vmax.f32 %v2981, -1.0
  %v2983 = vmul.f32 %v2928, %v2928
  %v2984 = vmin.f32 16.0, %v2983
  %v2985 = vmul.f32 %v2984, 2.1237322e-06
  %v2986 = vadd.f32 %v2985, 0.00028619796
  %v2987 = vmul.f32 %v2984, %v2986
  %v2988 = vadd.f32 %v2987, 0.0036580483
  %v2989 = vmul.f32 %v2984, %v2988
  %v2990 = vadd.f32 %v2989, 0.05243302
  %v2991 = vmul.f32 %v2984, %v2990
  %v2992 = vadd.f32 %v2991, 0.18741608
  %v2993 = vmul.f32 %v2984, %v2992
  %v2994 = vadd.f32 %v2993, 1.1283791
  %v2995 = vmul.f32 %v2928, %v2994
  %v2996 = vmul.f32 %v2984, 3.8918573e-05
  %v2997 = vadd.f32 %v2996, 0.001143296
  %v2998 = vmul.f32 %v2984, %v2997
  %v2999 = vadd.f32 %v2998, 0.014752088
  %v3000 = vmul.f32 %v2984, %v2999
  %v3001 = vadd.f32 %v3000, 0.112945676
  %v3002 = vmul.f32 %v2984, %v3001
  %v3003 = vadd.f32 %v3002, 0.4994258
  %v3004 = vmul.f32 %v2984, %v3003
  %v3005 = vadd.f32 %v3004, 1.0
  %v3006 = vrcp.pop %v3005
  %v3007 = vmul.f32 %v3005, %v3006
  %v3008 = vsub.f32 1.0, %v3007
  %v3009 = vmul.f32 %v3006, %v3008
  %v3010 = vadd.f32 %v3006, %v3009
  %vm3011 = vweird.f32 %v3005
  %vm3012 = vweird.f32 %v3006
  %vm3013 = vmor %vm3011, %vm3012
  %v3014 = vsel %vm3013, %v3006, %v3010
  %v3015 = vand.u32 2147483647, %v3005
  %vm3016 = vcmp.eq.f32.partialorder %v3015, 8.507059e+37
  %v3017 = vand.u32 %v3005, 2147483648
  %v3018 = vor.u32 1.1754944e-38, %v3017
  %v3019 = vsel %vm3016, %v3018, %v3014
  %v3020 = vmul.f32 %v2995, %v3019
  %v3021 = vmin.f32 %v3020, 1.0
  %v3022 = vmax.f32 %v3021, -1.0
  %v3023 = vmul.f32 %v2929, %v2929
  %v3024 = vmin.f32 16.0, %v3023
  %v3025 = vmul.f32 %v3024, 2.1237322e-06
  %v3026 = vadd.f32 %v3025, 0.00028619796
  %v3027 = vmul.f32 %v3024, %v3026
  %v3028 = vadd.f32 %v3027, 0.0036580483
  %v3029 = vmul.f32 %v3024, %v3028
  %v3030 = vadd.f32 %v3029, 0.05243302
  %v3031 = vmul.f32 %v3024, %v3030
  %v3032 = vadd.f32 %v3031, 0.18741608
  %v3033 = vmul.f32 %v3024, %v3032
  %v3034 = vadd.f32 %v3033, 1.1283791
  %v3035 = vmul.f32 %v2929, %v3034
  %v3036 = vmul.f32 %v3024, 3.8918573e-05
  %v3037 = vadd.f32 %v3036, 0.001143296
  %v3038 = vmul.f32 %v3024, %v3037
  %v3039 = vadd.f32 %v3038, 0.014752088
  %v3040 = vmul.f32 %v3024, %v3039
  %v3041 = vadd.f32 %v3040, 0.112945676
  %v3042 = vmul.f32 %v3024, %v3041
  %v3043 = vadd.f32 %v3042, 0.4994258
  %v3044 = vmul.f32 %v3024, %v3043
  %v3045 = vadd.f32 %v3044, 1.0
  %v3046 = vrcp.pop %v3045
  %v3047 = vmul.f32 %v3045, %v3046
  %v3048 = vsub.f32 1.0, %v3047
  %v3049 = vmul.f32 %v3046, %v3048
  %v3050 = vadd.f32 %v3046, %v3049
  %vm3051 = vweird.f32 %v3045
  %vm3052 = vweird.f32 %v3046
  %vm3053 = vmor %vm3051, %vm3052
  %v3054 = vsel %vm3053, %v3046, %v3050
  %v3055 = vand.u32 2147483647, %v3045
  %vm3056 = vcmp.eq.f32.partialorder %v3055, 8.507059e+37
  %v3057 = vand.u32 %v3045, 2147483648
  %v3058 = vor.u32 1.1754944e-38, %v3057
  %v3059 = vsel %vm3056, %v3058, %v3054
  %v3060 = vmul.f32 %v3035, %v3059
  %v3061 = vmin.f32 %v3060, 1.0
  %v3062 = vmax.f32 %v3061, -1.0
  %v3063 = vmul.f32 %v2930, %v2930
  %v3064 = vmin.f32 16.0, %v3063
  %v3065 = vmul.f32 %v3064, 2.1237322e-06
  %v3066 = vadd.f32 %v3065, 0.00028619796
  %v3067 = vmul.f32 %v3064, %v3066
  %v3068 = vadd.f32 %v3067, 0.0036580483
  %v3069 = vmul.f32 %v3064, %v3068
  %v3070 = vadd.f32 %v3069, 0.05243302
  %v3071 = vmul.f32 %v3064, %v3070
  %v3072 = vadd.f32 %v3071, 0.18741608
  %v3073 = vmul.f32 %v3064, %v3072
  %v3074 = vadd.f32 %v3073, 1.1283791
  %v3075 = vmul.f32 %v2930, %v3074
  %v3076 = vmul.f32 %v3064, 3.8918573e-05
  %v3077 = vadd.f32 %v3076, 0.001143296
  %v3078 = vmul.f32 %v3064, %v3077
  %v3079 = vadd.f32 %v3078, 0.014752088
  %v3080 = vmul.f32 %v3064, %v3079
  %v3081 = vadd.f32 %v3080, 0.112945676
  %v3082 = vmul.f32 %v3064, %v3081
  %v3083 = vadd.f32 %v3082, 0.4994258
  %v3084 = vmul.f32 %v3064, %v3083
  %v3085 = vadd.f32 %v3084, 1.0
  %v3086 = vrcp.pop %v3085
  %v3087 = vmul.f32 %v3085, %v3086
  %v3088 = vsub.f32 1.0, %v3087
  %v3089 = vmul.f32 %v3086, %v3088
  %v3090 = vadd.f32 %v3086, %v3089
  %vm3091 = vweird.f32 %v3085
  %vm3092 = vweird.f32 %v3086
  %vm3093 = vmor %vm3091, %vm3092
  %v3094 = vsel %vm3093, %v3086, %v3090
  %v3095 = vand.u32 2147483647, %v3085
  %vm3096 = vcmp.eq.f32.partialorder %v3095, 8.507059e+37
  %v3097 = vand.u32 %v3085, 2147483648
  %v3098 = vor.u32 1.1754944e-38, %v3097
  %v3099 = vsel %vm3096, %v3098, %v3094
  %v3100 = vmul.f32 %v3075, %v3099
  %v3101 = vmin.f32 %v3100, 1.0
  %v3102 = vmax.f32 %v3101, -1.0
  %v3103 = vmul.f32 %v2931, %v2931
  %v3104 = vmin.f32 16.0, %v3103
  %v3105 = vmul.f32 %v3104, 2.1237322e-06
  %v3106 = vadd.f32 %v3105, 0.00028619796
  %v3107 = vmul.f32 %v3104, %v3106
  %v3108 = vadd.f32 %v3107, 0.0036580483
  %v3109 = vmul.f32 %v3104, %v3108
  %v3110 = vadd.f32 %v3109, 0.05243302
  %v3111 = vmul.f32 %v3104, %v3110
  %v3112 = vadd.f32 %v3111, 0.18741608
  %v3113 = vmul.f32 %v3104, %v3112
  %v3114 = vadd.f32 %v3113, 1.1283791
  %v3115 = vmul.f32 %v2931, %v3114
  %v3116 = vmul.f32 %v3104, 3.8918573e-05
  %v3117 = vadd.f32 %v3116, 0.001143296
  %v3118 = vmul.f32 %v3104, %v3117
  %v3119 = vadd.f32 %v3118, 0.014752088
  %v3120 = vmul.f32 %v3104, %v3119
  %v3121 = vadd.f32 %v3120, 0.112945676
  %v3122 = vmul.f32 %v3104, %v3121
  %v3123 = vadd.f32 %v3122, 0.4994258
  %v3124 = vmul.f32 %v3104, %v3123
  %v3125 = vadd.f32 %v3124, 1.0
  %v3126 = vrcp.pop %v3125
  %v3127 = vmul.f32 %v3125, %v3126
  %v3128 = vsub.f32 1.0, %v3127
  %v3129 = vmul.f32 %v3126, %v3128
  %v3130 = vadd.f32 %v3126, %v3129
  %vm3131 = vweird.f32 %v3125
  %vm3132 = vweird.f32 %v3126
  %vm3133 = vmor %vm3131, %vm3132
  %v3134 = vsel %vm3133, %v3126, %v3130
  %v3135 = vand.u32 2147483647, %v3125
  %vm3136 = vcmp.eq.f32.partialorder %v3135, 8.507059e+37
  %v3137 = vand.u32 %v3125, 2147483648
  %v3138 = vor.u32 1.1754944e-38, %v3137
  %v3139 = vsel %vm3136, %v3138, %v3134
  %v3140 = vmul.f32 %v3115, %v3139
  %v3141 = vmin.f32 %v3140, 1.0
  %v3142 = vmax.f32 %v3141, -1.0
  %v3143 = vmul.f32 %v2932, %v2932
  %v3144 = vmin.f32 16.0, %v3143
  %v3145 = vmul.f32 %v3144, 2.1237322e-06
  %v3146 = vadd.f32 %v3145, 0.00028619796
  %v3147 = vmul.f32 %v3144, %v3146
  %v3148 = vadd.f32 %v3147, 0.0036580483
  %v3149 = vmul.f32 %v3144, %v3148
  %v3150 = vadd.f32 %v3149, 0.05243302
  %v3151 = vmul.f32 %v3144, %v3150
  %v3152 = vadd.f32 %v3151, 0.18741608
  %v3153 = vmul.f32 %v3144, %v3152
  %v3154 = vadd.f32 %v3153, 1.1283791
  %v3155 = vmul.f32 %v2932, %v3154
  %v3156 = vmul.f32 %v3144, 3.8918573e-05
  %v3157 = vadd.f32 %v3156, 0.001143296
  %v3158 = vmul.f32 %v3144, %v3157
  %v3159 = vadd.f32 %v3158, 0.014752088
  %v3160 = vmul.f32 %v3144, %v3159
  %v3161 = vadd.f32 %v3160, 0.112945676
  %v3162 = vmul.f32 %v3144, %v3161
  %v3163 = vadd.f32 %v3162, 0.4994258
  %v3164 = vmul.f32 %v3144, %v3163
  %v3165 = vadd.f32 %v3164, 1.0
  %v3166 = vrcp.pop %v3165
  %v3167 = vmul.f32 %v3165, %v3166
  %v3168 = vsub.f32 1.0, %v3167
  %v3169 = vmul.f32 %v3166, %v3168
  %v3170 = vadd.f32 %v3166, %v3169
  %vm3171 = vweird.f32 %v3165
  %vm3172 = vweird.f32 %v3166
  %vm3173 = vmor %vm3171, %vm3172
  %v3174 = vsel %vm3173, %v3166, %v3170
  %v3175 = vand.u32 2147483647, %v3165
  %vm3176 = vcmp.eq.f32.partialorder %v3175, 8.507059e+37
  %v3177 = vand.u32 %v3165, 2147483648
  %v3178 = vor.u32 1.1754944e-38, %v3177
  %v3179 = vsel %vm3176, %v3178, %v3174
  %v3180 = vmul.f32 %v3155, %v3179
  %v3181 = vmin.f32 %v3180, 1.0
  %v3182 = vmax.f32 %v3181, -1.0
  %v3183 = vmul.f32 %v2933, %v2933
  %v3184 = vmin.f32 16.0, %v3183
  %v3185 = vmul.f32 %v3184, 2.1237322e-06
  %v3186 = vadd.f32 %v3185, 0.00028619796
  %v3187 = vmul.f32 %v3184, %v3186
  %v3188 = vadd.f32 %v3187, 0.0036580483
  %v3189 = vmul.f32 %v3184, %v3188
  %v3190 = vadd.f32 %v3189, 0.05243302
  %v3191 = vmul.f32 %v3184, %v3190
  %v3192 = vadd.f32 %v3191, 0.18741608
  %v3193 = vmul.f32 %v3184, %v3192
  %v3194 = vadd.f32 %v3193, 1.1283791
  %v3195 = vmul.f32 %v2933, %v3194
  %v3196 = vmul.f32 %v3184, 3.8918573e-05
  %v3197 = vadd.f32 %v3196, 0.001143296
  %v3198 = vmul.f32 %v3184, %v3197
  %v3199 = vadd.f32 %v3198, 0.014752088
  %v3200 = vmul.f32 %v3184, %v3199
  %v3201 = vadd.f32 %v3200, 0.112945676
  %v3202 = vmul.f32 %v3184, %v3201
  %v3203 = vadd.f32 %v3202, 0.4994258
  %v3204 = vmul.f32 %v3184, %v3203
  %v3205 = vadd.f32 %v3204, 1.0
  %v3206 = vrcp.pop %v3205
  %v3207 = vmul.f32 %v3205, %v3206
  %v3208 = vsub.f32 1.0, %v3207
  %v3209 = vmul.f32 %v3206, %v3208
  %v3210 = vadd.f32 %v3206, %v3209
  %vm3211 = vweird.f32 %v3205
  %vm3212 = vweird.f32 %v3206
  %vm3213 = vmor %vm3211, %vm3212
  %v3214 = vsel %vm3213, %v3206, %v3210
  %v3215 = vand.u32 2147483647, %v3205
  %vm3216 = vcmp.eq.f32.partialorder %v3215, 8.507059e+37
  %v3217 = vand.u32 %v3205, 2147483648
  %v3218 = vor.u32 1.1754944e-38, %v3217
  %v3219 = vsel %vm3216, %v3218, %v3214
  %v3220 = vmul.f32 %v3195, %v3219
  %v3221 = vmin.f32 %v3220, 1.0
  %v3222 = vmax.f32 %v3221, -1.0
  %v3223 = vmul.f32 %v2934, %v2934
  %v3224 = vmin.f32 16.0, %v3223
  %v3225 = vmul.f32 %v3224, 2.1237322e-06
  %v3226 = vadd.f32 %v3225, 0.00028619796
  %v3227 = vmul.f32 %v3224, %v3226
  %v3228 = vadd.f32 %v3227, 0.0036580483
  %v3229 = vmul.f32 %v3224, %v3228
  %v3230 = vadd.f32 %v3229, 0.05243302
  %v3231 = vmul.f32 %v3224, %v3230
  %v3232 = vadd.f32 %v3231, 0.18741608
  %v3233 = vmul.f32 %v3224, %v3232
  %v3234 = vadd.f32 %v3233, 1.1283791
  %v3235 = vmul.f32 %v2934, %v3234
  %v3236 = vmul.f32 %v3224, 3.8918573e-05
  %v3237 = vadd.f32 %v3236, 0.001143296
  %v3238 = vmul.f32 %v3224, %v3237
  %v3239 = vadd.f32 %v3238, 0.014752088
  %v3240 = vmul.f32 %v3224, %v3239
  %v3241 = vadd.f32 %v3240, 0.112945676
  %v3242 = vmul.f32 %v3224, %v3241
  %v3243 = vadd.f32 %v3242, 0.4994258
  %v3244 = vmul.f32 %v3224, %v3243
  %v3245 = vadd.f32 %v3244, 1.0
  %v3246 = vrcp.pop %v3245
  %v3247 = vmul.f32 %v3245, %v3246
  %v3248 = vsub.f32 1.0, %v3247
  %v3249 = vmul.f32 %v3246, %v3248
  %v3250 = vadd.f32 %v3246, %v3249
  %vm3251 = vweird.f32 %v3245
  %vm3252 = vweird.f32 %v3246
  %vm3253 = vmor %vm3251, %vm3252
  %v3254 = vsel %vm3253, %v3246, %v3250
  %v3255 = vand.u32 2147483647, %v3245
  %vm3256 = vcmp.eq.f32.partialorder %v3255, 8.507059e+37
  %v3257 = vand.u32 %v3245, 2147483648
  %v3258 = vor.u32 1.1754944e-38, %v3257
  %v3259 = vsel %vm3256, %v3258, %v3254
  %v3260 = vmul.f32 %v3235, %v3259
  %v3261 = vmin.f32 %v3260, 1.0
  %v3262 = vmax.f32 %v3261, -1.0
  %v3263 = vmul.f32 %v2935, %v2935
  %v3264 = vmin.f32 16.0, %v3263
  %v3265 = vmul.f32 %v3264, 2.1237322e-06
  %v3266 = vadd.f32 %v3265, 0.00028619796
  %v3267 = vmul.f32 %v3264, %v3266
  %v3268 = vadd.f32 %v3267, 0.0036580483
  %v3269 = vmul.f32 %v3264, %v3268
  %v3270 = vadd.f32 %v3269, 0.05243302
  %v3271 = vmul.f32 %v3264, %v3270
  %v3272 = vadd.f32 %v3271, 0.18741608
  %v3273 = vmul.f32 %v3264, %v3272
  %v3274 = vadd.f32 %v3273, 1.1283791
  %v3275 = vmul.f32 %v2935, %v3274
  %v3276 = vmul.f32 %v3264, 3.8918573e-05
  %v3277 = vadd.f32 %v3276, 0.001143296
  %v3278 = vmul.f32 %v3264, %v3277
  %v3279 = vadd.f32 %v3278, 0.014752088
  %v3280 = vmul.f32 %v3264, %v3279
  %v3281 = vadd.f32 %v3280, 0.112945676
  %v3282 = vmul.f32 %v3264, %v3281
  %v3283 = vadd.f32 %v3282, 0.4994258
  %v3284 = vmul.f32 %v3264, %v3283
  %v3285 = vadd.f32 %v3284, 1.0
  %v3286 = vrcp.pop %v3285
  %v3287 = vmul.f32 %v3285, %v3286
  %v3288 = vsub.f32 1.0, %v3287
  %v3289 = vmul.f32 %v3286, %v3288
  %v3290 = vadd.f32 %v3286, %v3289
  %vm3291 = vweird.f32 %v3285
  %vm3292 = vweird.f32 %v3286
  %vm3293 = vmor %vm3291, %vm3292
  %v3294 = vsel %vm3293, %v3286, %v3290
  %v3295 = vand.u32 2147483647, %v3285
  %vm3296 = vcmp.eq.f32.partialorder %v3295, 8.507059e+37
  %v3297 = vand.u32 %v3285, 2147483648
  %v3298 = vor.u32 1.1754944e-38, %v3297
  %v3299 = vsel %vm3296, %v3298, %v3294
  %v3300 = vmul.f32 %v3275, %v3299
  %v3301 = vmin.f32 %v3300, 1.0
  %v3302 = vmax.f32 %v3301, -1.0
  %v3303 = vmul.f32 %v2936, %v2936
  %v3304 = vmin.f32 16.0, %v3303
  %v3305 = vmul.f32 %v3304, 2.1237322e-06
  %v3306 = vadd.f32 %v3305, 0.00028619796
  %v3307 = vmul.f32 %v3304, %v3306
  %v3308 = vadd.f32 %v3307, 0.0036580483
  %v3309 = vmul.f32 %v3304, %v3308
  %v3310 = vadd.f32 %v3309, 0.05243302
  %v3311 = vmul.f32 %v3304, %v3310
  %v3312 = vadd.f32 %v3311, 0.18741608
  %v3313 = vmul.f32 %v3304, %v3312
  %v3314 = vadd.f32 %v3313, 1.1283791
  %v3315 = vmul.f32 %v2936, %v3314
  %v3316 = vmul.f32 %v3304, 3.8918573e-05
  %v3317 = vadd.f32 %v3316, 0.001143296
  %v3318 = vmul.f32 %v3304, %v3317
  %v3319 = vadd.f32 %v3318, 0.014752088
  %v3320 = vmul.f32 %v3304, %v3319
  %v3321 = vadd.f32 %v3320, 0.112945676
  %v3322 = vmul.f32 %v3304, %v3321
  %v3323 = vadd.f32 %v3322, 0.4994258
  %v3324 = vmul.f32 %v3304, %v3323
  %v3325 = vadd.f32 %v3324, 1.0
  %v3326 = vrcp.pop %v3325
  %v3327 = vmul.f32 %v3325, %v3326
  %v3328 = vsub.f32 1.0, %v3327
  %v3329 = vmul.f32 %v3326, %v3328
  %v3330 = vadd.f32 %v3326, %v3329
  %vm3331 = vweird.f32 %v3325
  %vm3332 = vweird.f32 %v3326
  %vm3333 = vmor %vm3331, %vm3332
  %v3334 = vsel %vm3333, %v3326, %v3330
  %v3335 = vand.u32 2147483647, %v3325
  %vm3336 = vcmp.eq.f32.partialorder %v3335, 8.507059e+37
  %v3337 = vand.u32 %v3325, 2147483648
  %v3338 = vor.u32 1.1754944e-38, %v3337
  %v3339 = vsel %vm3336, %v3338, %v3334
  %v3340 = vmul.f32 %v3315, %v3339
  %v3341 = vmin.f32 %v3340, 1.0
  %v3342 = vmax.f32 %v3341, -1.0
  %v3343 = vmul.f32 %v2937, %v2937
  %v3344 = vmin.f32 16.0, %v3343
  %v3345 = vmul.f32 %v3344, 2.1237322e-06
  %v3346 = vadd.f32 %v3345, 0.00028619796
  %v3347 = vmul.f32 %v3344, %v3346
  %v3348 = vadd.f32 %v3347, 0.0036580483
  %v3349 = vmul.f32 %v3344, %v3348
  %v3350 = vadd.f32 %v3349, 0.05243302
  %v3351 = vmul.f32 %v3344, %v3350
  %v3352 = vadd.f32 %v3351, 0.18741608
  %v3353 = vmul.f32 %v3344, %v3352
  %v3354 = vadd.f32 %v3353, 1.1283791
  %v3355 = vmul.f32 %v2937, %v3354
  %v3356 = vmul.f32 %v3344, 3.8918573e-05
  %v3357 = vadd.f32 %v3356, 0.001143296
  %v3358 = vmul.f32 %v3344, %v3357
  %v3359 = vadd.f32 %v3358, 0.014752088
  %v3360 = vmul.f32 %v3344, %v3359
  %v3361 = vadd.f32 %v3360, 0.112945676
  %v3362 = vmul.f32 %v3344, %v3361
  %v3363 = vadd.f32 %v3362, 0.4994258
  %v3364 = vmul.f32 %v3344, %v3363
  %v3365 = vadd.f32 %v3364, 1.0
  %v3366 = vrcp.pop %v3365
  %v3367 = vmul.f32 %v3365, %v3366
  %v3368 = vsub.f32 1.0, %v3367
  %v3369 = vmul.f32 %v3366, %v3368
  %v3370 = vadd.f32 %v3366, %v3369
  %vm3371 = vweird.f32 %v3365
  %vm3372 = vweird.f32 %v3366
  %vm3373 = vmor %vm3371, %vm3372
  %v3374 = vsel %vm3373, %v3366, %v3370
  %v3375 = vand.u32 2147483647, %v3365
  %vm3376 = vcmp.eq.f32.partialorder %v3375, 8.507059e+37
  %v3377 = vand.u32 %v3365, 2147483648
  %v3378 = vor.u32 1.1754944e-38, %v3377
  %v3379 = vsel %vm3376, %v3378, %v3374
  %v3380 = vmul.f32 %v3355, %v3379
  %v3381 = vmin.f32 %v3380, 1.0
  %v3382 = vmax.f32 %v3381, -1.0
  %v3383 = vmul.f32 %v2938, %v2938
  %v3384 = vmin.f32 16.0, %v3383
  %v3385 = vmul.f32 %v3384, 2.1237322e-06
  %v3386 = vadd.f32 %v3385, 0.00028619796
  %v3387 = vmul.f32 %v3384, %v3386
  %v3388 = vadd.f32 %v3387, 0.0036580483
  %v3389 = vmul.f32 %v3384, %v3388
  %v3390 = vadd.f32 %v3389, 0.05243302
  %v3391 = vmul.f32 %v3384, %v3390
  %v3392 = vadd.f32 %v3391, 0.18741608
  %v3393 = vmul.f32 %v3384, %v3392
  %v3394 = vadd.f32 %v3393, 1.1283791
  %v3395 = vmul.f32 %v2938, %v3394
  %v3396 = vmul.f32 %v3384, 3.8918573e-05
  %v3397 = vadd.f32 %v3396, 0.001143296
  %v3398 = vmul.f32 %v3384, %v3397
  %v3399 = vadd.f32 %v3398, 0.014752088
  %v3400 = vmul.f32 %v3384, %v3399
  %v3401 = vadd.f32 %v3400, 0.112945676
  %v3402 = vmul.f32 %v3384, %v3401
  %v3403 = vadd.f32 %v3402, 0.4994258
  %v3404 = vmul.f32 %v3384, %v3403
  %v3405 = vadd.f32 %v3404, 1.0
  %v3406 = vrcp.pop %v3405
  %v3407 = vmul.f32 %v3405, %v3406
  %v3408 = vsub.f32 1.0, %v3407
  %v3409 = vmul.f32 %v3406, %v3408
  %v3410 = vadd.f32 %v3406, %v3409
  %vm3411 = vweird.f32 %v3405
  %vm3412 = vweird.f32 %v3406
  %vm3413 = vmor %vm3411, %vm3412
  %v3414 = vsel %vm3413, %v3406, %v3410
  %v3415 = vand.u32 2147483647, %v3405
  %vm3416 = vcmp.eq.f32.partialorder %v3415, 8.507059e+37
  %v3417 = vand.u32 %v3405, 2147483648
  %v3418 = vor.u32 1.1754944e-38, %v3417
  %v3419 = vsel %vm3416, %v3418, %v3414
  %v3420 = vmul.f32 %v3395, %v3419
  %v3421 = vmin.f32 %v3420, 1.0
  %v3422 = vmax.f32 %v3421, -1.0
  %v3423 = vmul.f32 %v2939, %v2939
  %v3424 = vmin.f32 16.0, %v3423
  %v3425 = vmul.f32 %v3424, 2.1237322e-06
  %v3426 = vadd.f32 %v3425, 0.00028619796
  %v3427 = vmul.f32 %v3424, %v3426
  %v3428 = vadd.f32 %v3427, 0.0036580483
  %v3429 = vmul.f32 %v3424, %v3428
  %v3430 = vadd.f32 %v3429, 0.05243302
  %v3431 = vmul.f32 %v3424, %v3430
  %v3432 = vadd.f32 %v3431, 0.18741608
  %v3433 = vmul.f32 %v3424, %v3432
  %v3434 = vadd.f32 %v3433, 1.1283791
  %v3435 = vmul.f32 %v2939, %v3434
  %v3436 = vmul.f32 %v3424, 3.8918573e-05
  %v3437 = vadd.f32 %v3436, 0.001143296
  %v3438 = vmul.f32 %v3424, %v3437
  %v3439 = vadd.f32 %v3438, 0.014752088
  %v3440 = vmul.f32 %v3424, %v3439
  %v3441 = vadd.f32 %v3440, 0.112945676
  %v3442 = vmul.f32 %v3424, %v3441
  %v3443 = vadd.f32 %v3442, 0.4994258
  %v3444 = vmul.f32 %v3424, %v3443
  %v3445 = vadd.f32 %v3444, 1.0
  %v3446 = vrcp.pop %v3445
  %v3447 = vmul.f32 %v3445, %v3446
  %v3448 = vsub.f32 1.0, %v3447
  %v3449 = vmul.f32 %v3446, %v3448
  %v3450 = vadd.f32 %v3446, %v3449
  %vm3451 = vweird.f32 %v3445
  %vm3452 = vweird.f32 %v3446
  %vm3453 = vmor %vm3451, %vm3452
  %v3454 = vsel %vm3453, %v3446, %v3450
  %v3455 = vand.u32 2147483647, %v3445
  %vm3456 = vcmp.eq.f32.partialorder %v3455, 8.507059e+37
  %v3457 = vand.u32 %v3445, 2147483648
  %v3458 = vor.u32 1.1754944e-38, %v3457
  %v3459 = vsel %vm3456, %v3458, %v3454
  %v3460 = vmul.f32 %v3435, %v3459
  %v3461 = vmin.f32 %v3460, 1.0
  %v3462 = vmax.f32 %v3461, -1.0
  %v3463 = vmul.f32 %v2940, %v2940
  %v3464 = vmin.f32 16.0, %v3463
  %v3465 = vmul.f32 %v3464, 2.1237322e-06
  %v3466 = vadd.f32 %v3465, 0.00028619796
  %v3467 = vmul.f32 %v3464, %v3466
  %v3468 = vadd.f32 %v3467, 0.0036580483
  %v3469 = vmul.f32 %v3464, %v3468
  %v3470 = vadd.f32 %v3469, 0.05243302
  %v3471 = vmul.f32 %v3464, %v3470
  %v3472 = vadd.f32 %v3471, 0.18741608
  %v3473 = vmul.f32 %v3464, %v3472
  %v3474 = vadd.f32 %v3473, 1.1283791
  %v3475 = vmul.f32 %v2940, %v3474
  %v3476 = vmul.f32 %v3464, 3.8918573e-05
  %v3477 = vadd.f32 %v3476, 0.001143296
  %v3478 = vmul.f32 %v3464, %v3477
  %v3479 = vadd.f32 %v3478, 0.014752088
  %v3480 = vmul.f32 %v3464, %v3479
  %v3481 = vadd.f32 %v3480, 0.112945676
  %v3482 = vmul.f32 %v3464, %v3481
  %v3483 = vadd.f32 %v3482, 0.4994258
  %v3484 = vmul.f32 %v3464, %v3483
  %v3485 = vadd.f32 %v3484, 1.0
  %v3486 = vrcp.pop %v3485
  %v3487 = vmul.f32 %v3485, %v3486
  %v3488 = vsub.f32 1.0, %v3487
  %v3489 = vmul.f32 %v3486, %v3488
  %v3490 = vadd.f32 %v3486, %v3489
  %vm3491 = vweird.f32 %v3485
  %vm3492 = vweird.f32 %v3486
  %vm3493 = vmor %vm3491, %vm3492
  %v3494 = vsel %vm3493, %v3486, %v3490
  %v3495 = vand.u32 2147483647, %v3485
  %vm3496 = vcmp.eq.f32.partialorder %v3495, 8.507059e+37
  %v3497 = vand.u32 %v3485, 2147483648
  %v3498 = vor.u32 1.1754944e-38, %v3497
  %v3499 = vsel %vm3496, %v3498, %v3494
  %v3500 = vmul.f32 %v3475, %v3499
  %v3501 = vmin.f32 %v3500, 1.0
  %v3502 = vmax.f32 %v3501, -1.0
  %v3503 = vmul.f32 %v2941, %v2941
  %v3504 = vmin.f32 16.0, %v3503
  %v3505 = vmul.f32 %v3504, 2.1237322e-06
  %v3506 = vadd.f32 %v3505, 0.00028619796
  %v3507 = vmul.f32 %v3504, %v3506
  %v3508 = vadd.f32 %v3507, 0.0036580483
  %v3509 = vmul.f32 %v3504, %v3508
  %v3510 = vadd.f32 %v3509, 0.05243302
  %v3511 = vmul.f32 %v3504, %v3510
  %v3512 = vadd.f32 %v3511, 0.18741608
  %v3513 = vmul.f32 %v3504, %v3512
  %v3514 = vadd.f32 %v3513, 1.1283791
  %v3515 = vmul.f32 %v2941, %v3514
  %v3516 = vmul.f32 %v3504, 3.8918573e-05
  %v3517 = vadd.f32 %v3516, 0.001143296
  %v3518 = vmul.f32 %v3504, %v3517
  %v3519 = vadd.f32 %v3518, 0.014752088
  %v3520 = vmul.f32 %v3504, %v3519
  %v3521 = vadd.f32 %v3520, 0.112945676
  %v3522 = vmul.f32 %v3504, %v3521
  %v3523 = vadd.f32 %v3522, 0.4994258
  %v3524 = vmul.f32 %v3504, %v3523
  %v3525 = vadd.f32 %v3524, 1.0
  %v3526 = vrcp.pop %v3525
  %v3527 = vmul.f32 %v3525, %v3526
  %v3528 = vsub.f32 1.0, %v3527
  %v3529 = vmul.f32 %v3526, %v3528
  %v3530 = vadd.f32 %v3526, %v3529
  %vm3531 = vweird.f32 %v3525
  %vm3532 = vweird.f32 %v3526
  %vm3533 = vmor %vm3531, %vm3532
  %v3534 = vsel %vm3533, %v3526, %v3530
  %v3535 = vand.u32 2147483647, %v3525
  %vm3536 = vcmp.eq.f32.partialorder %v3535, 8.507059e+37
  %v3537 = vand.u32 %v3525, 2147483648
  %v3538 = vor.u32 1.1754944e-38, %v3537
  %v3539 = vsel %vm3536, %v3538, %v3534
  %v3540 = vmul.f32 %v3515, %v3539
  %v3541 = vmin.f32 %v3540, 1.0
  %v3542 = vmax.f32 %v3541, -1.0
  %v3543 = vmul.f32 %v2942, %v2942
  %v3544 = vmin.f32 16.0, %v3543
  %v3545 = vmul.f32 %v3544, 2.1237322e-06
  %v3546 = vadd.f32 %v3545, 0.00028619796
  %v3547 = vmul.f32 %v3544, %v3546
  %v3548 = vadd.f32 %v3547, 0.0036580483
  %v3549 = vmul.f32 %v3544, %v3548
  %v3550 = vadd.f32 %v3549, 0.05243302
  %v3551 = vmul.f32 %v3544, %v3550
  %v3552 = vadd.f32 %v3551, 0.18741608
  %v3553 = vmul.f32 %v3544, %v3552
  %v3554 = vadd.f32 %v3553, 1.1283791
  %v3555 = vmul.f32 %v2942, %v3554
  %v3556 = vmul.f32 %v3544, 3.8918573e-05
  %v3557 = vadd.f32 %v3556, 0.001143296
  %v3558 = vmul.f32 %v3544, %v3557
  %v3559 = vadd.f32 %v3558, 0.014752088
  %v3560 = vmul.f32 %v3544, %v3559
  %v3561 = vadd.f32 %v3560, 0.112945676
  %v3562 = vmul.f32 %v3544, %v3561
  %v3563 = vadd.f32 %v3562, 0.4994258
  %v3564 = vmul.f32 %v3544, %v3563
  %v3565 = vadd.f32 %v3564, 1.0
  %v3566 = vrcp.pop %v3565
  %v3567 = vmul.f32 %v3565, %v3566
  %v3568 = vsub.f32 1.0, %v3567
  %v3569 = vmul.f32 %v3566, %v3568
  %v3570 = vadd.f32 %v3566, %v3569
  %vm3571 = vweird.f32 %v3565
  %vm3572 = vweird.f32 %v3566
  %vm3573 = vmor %vm3571, %vm3572
  %v3574 = vsel %vm3573, %v3566, %v3570
  %v3575 = vand.u32 2147483647, %v3565
  %vm3576 = vcmp.eq.f32.partialorder %v3575, 8.507059e+37
  %v3577 = vand.u32 %v3565, 2147483648
  %v3578 = vor.u32 1.1754944e-38, %v3577
  %v3579 = vsel %vm3576, %v3578, %v3574
  %v3580 = vmul.f32 %v3555, %v3579
  %v3581 = vmin.f32 %v3580, 1.0
  %v3582 = vmax.f32 %v3581, -1.0
  %v3583 = vadd.f32 %v2982, 1.0
  %v3584 = vadd.f32 %v3022, 1.0
  %v3585 = vadd.f32 %v3062, 1.0
  %v3586 = vadd.f32 %v3102, 1.0
  %v3587 = vadd.f32 %v3142, 1.0
  %v3588 = vadd.f32 %v3182, 1.0
  %v3589 = vadd.f32 %v3222, 1.0
  %v3590 = vadd.f32 %v3262, 1.0
  %v3591 = vadd.f32 %v3302, 1.0
  %v3592 = vadd.f32 %v3342, 1.0
  %v3593 = vadd.f32 %v3382, 1.0
  %v3594 = vadd.f32 %v3422, 1.0
  %v3595 = vadd.f32 %v3462, 1.0
  %v3596 = vadd.f32 %v3502, 1.0
  %v3597 = vadd.f32 %v3542, 1.0
  %v3598 = vadd.f32 %v3582, 1.0
  %v3599 = vmul.f32 %v2911, %v3583
  %v3600 = vmul.f32 %v2912, %v3584
  %v3601 = vmul.f32 %v2913, %v3585
  %v3602 = vmul.f32 %v2914, %v3586
  %v3603 = vmul.f32 %v2915, %v3587
  %v3604 = vmul.f32 %v2916, %v3588
  %v3605 = vmul.f32 %v2917, %v3589
  %v3606 = vmul.f32 %v2918, %v3590
  %v3607 = vmul.f32 %v2919, %v3591
  %v3608 = vmul.f32 %v2920, %v3592
  %v3609 = vmul.f32 %v2921, %v3593
  %v3610 = vmul.f32 %v2922, %v3594
  %v3611 = vmul.f32 %v2923, %v3595
  %v3612 = vmul.f32 %v2924, %v3596
  %v3613 = vmul.f32 %v2925, %v3597
  %v3614 = vmul.f32 %v2926, %v3598
  %v3615 = vld [vmem:[%s19] sm:$0xff]
  %v3616 = vld [vmem:[%s19 + $0x8] sm:$0xff]
  %v3617 = vld [vmem:[%s19 + $0x10] sm:$0xff]
  %v3618 = vld [vmem:[%s19 + $0x18] sm:$0xff]
  %v3619 = vld [vmem:[%s19 + $0x20] sm:$0xff]
  %v3620 = vld [vmem:[%s19 + $0x28] sm:$0xff]
  %v3621 = vld [vmem:[%s19 + $0x30] sm:$0xff]
  %v3622 = vld [vmem:[%s19 + $0x38] sm:$0xff]
  %v3623 = vld [vmem:[%s19 + $0x40] sm:$0xff]
  %v3624 = vld [vmem:[%s19 + $0x48] sm:$0xff]
  %v3625 = vld [vmem:[%s19 + $0x50] sm:$0xff]
  %v3626 = vld [vmem:[%s19 + $0x58] sm:$0xff]
  %v3627 = vld [vmem:[%s19 + $0x60] sm:$0xff]
  %v3628 = vld [vmem:[%s19 + $0x68] sm:$0xff]
  %v3629 = vld [vmem:[%s19 + $0x70] sm:$0xff]
  %v3630 = vld [vmem:[%s19 + $0x78] sm:$0xff]
  %v3631 = vld [vmem:[%s20] sm:$0x1]
  %v3633 = vperm.slane %v3631, 0
  %3635 = vmatpush.msra.mxu0 %v3630
  %3636 = vmatpush.msra.mxu0 %v3629
  %3637 = vmatpush.msra.mxu0 %v3628
  %3638 = vmatpush.msra.mxu0 %v3627
  %3639 = vmatpush.msra.mxu0 %v3626
  %3640 = vmatpush.msra.mxu0 %v3625
  %3641 = vmatpush.msra.mxu0 %v3624
  %3642 = vmatpush.msra.mxu0 %v3623
  %3643 = vmatpush.msra.mxu0 %v3622
  %3644 = vmatpush.msra.mxu0 %v3621
  %3645 = vmatpush.msra.mxu0 %v3620
  %3646 = vmatpush.msra.mxu0 %v3619
  %3647 = vmatpush.msra.mxu0 %v3618
  %3648 = vmatpush.msra.mxu0 %v3617
  %3649 = vmatpush.msra.mxu0 %v3616
  %3650 = vmatpush.msra.mxu0 %v3615
  %3651 = vmatmul.f32.gmra.mxu0 %v3599
  %v3652 = vpop.f32.mrf.mxu0
  %v3653 = vadd.f32 %v3633, %v3652
  %3654 = vmatmul.f32.gmra.mxu0 %v3600
  %v3655 = vpop.f32.mrf.mxu0
  %v3656 = vadd.f32 %v3633, %v3655
  %3657 = vmatmul.f32.gmra.mxu0 %v3601
  %v3658 = vpop.f32.mrf.mxu0
  %v3659 = vadd.f32 %v3633, %v3658
  %3660 = vmatmul.f32.gmra.mxu0 %v3602
  %v3661 = vpop.f32.mrf.mxu0
  %v3662 = vadd.f32 %v3633, %v3661
  %3663 = vmatmul.f32.gmra.mxu0 %v3603
  %v3664 = vpop.f32.mrf.mxu0
  %v3665 = vadd.f32 %v3633, %v3664
  %3666 = vmatmul.f32.gmra.mxu0 %v3604
  %v3667 = vpop.f32.mrf.mxu0
  %v3668 = vadd.f32 %v3633, %v3667
  %3669 = vmatmul.f32.gmra.mxu0 %v3605
  %v3670 = vpop.f32.mrf.mxu0
  %v3671 = vadd.f32 %v3633, %v3670
  %3672 = vmatmul.f32.gmra.mxu0 %v3606
  %v3673 = vpop.f32.mrf.mxu0
  %v3674 = vadd.f32 %v3633, %v3673
  %3675 = vmatmul.f32.gmra.mxu0 %v3607
  %v3676 = vpop.f32.mrf.mxu0
  %v3677 = vadd.f32 %v3633, %v3676
  %3678 = vmatmul.f32.gmra.mxu0 %v3608
  %v3679 = vpop.f32.mrf.mxu0
  %v3680 = vadd.f32 %v3633, %v3679
  %3681 = vmatmul.f32.gmra.mxu0 %v3609
  %v3682 = vpop.f32.mrf.mxu0
  %v3683 = vadd.f32 %v3633, %v3682
  %3684 = vmatmul.f32.gmra.mxu0 %v3610
  %v3685 = vpop.f32.mrf.mxu0
  %v3686 = vadd.f32 %v3633, %v3685
  %3687 = vmatmul.f32.gmra.mxu0 %v3611
  %v3688 = vpop.f32.mrf.mxu0
  %v3689 = vadd.f32 %v3633, %v3688
  %3690 = vmatmul.f32.gmra.mxu0 %v3612
  %v3691 = vpop.f32.mrf.mxu0
  %v3692 = vadd.f32 %v3633, %v3691
  %3693 = vmatmul.f32.gmra.mxu0 %v3613
  %v3694 = vpop.f32.mrf.mxu0
  %v3695 = vadd.f32 %v3633, %v3694
  %3696 = vmatmul.f32.gmra.mxu0 %v3614
  %v3697 = vpop.f32.mrf.mxu0
  %v3698 = vadd.f32 %v3633, %v3697
  %3699 = vdwg.mxu0
  %v3700 = vld [vmem:[%s21] sm:$0xff]
  %v3701 = vld [vmem:[%s21 + $0x8] sm:$0xff]
  %v3702 = vld [vmem:[%s21 + $0x10] sm:$0xff]
  %v3703 = vld [vmem:[%s21 + $0x18] sm:$0xff]
  %v3704 = vld [vmem:[%s22] sm:$0x1]
  %v3706 = vperm.slane %v3704, 0
  %v3709 = vsel %vm103, %v2382, 0
  %v3712 = vsel %vm103, %v2383, 0
  %v3715 = vsel %vm103, %v2384, 0
  %v3718 = vsel %vm103, %v2385, 0
  %v3721 = vsel %vm103, %v2386, 0
  %v3724 = vsel %vm103, %v2387, 0
  %v3727 = vsel %vm103, %v2388, 0
  %v3730 = vsel %vm103, %v2389, 0
  %v3733 = vsel %vm103, %v2390, 0
  %v3736 = vsel %vm103, %v2391, 0
  %v3739 = vsel %vm103, %v2392, 0
  %v3742 = vsel %vm103, %v2393, 0
  %v3745 = vsel %vm103, %v2394, 0
  %v3748 = vsel %vm103, %v2395, 0
  %v3751 = vsel %vm103, %v2396, 0
  %v3754 = vsel %vm103, %v2397, 0
  %3756 = vmatpush.msra.mxu0 0.0
  %3757 = vmatpush.msra.mxu0 0.0
  %3758 = vmatpush.msra.mxu0 0.0
  %3759 = vmatpush.msra.mxu0 0.0
  %3760 = vmatpush.msra.mxu0 0.0
  %3761 = vmatpush.msra.mxu0 0.0
  %3762 = vmatpush.msra.mxu0 0.0
  %3763 = vmatpush.msra.mxu0 0.0
  %3764 = vmatpush.msra.mxu0 0.0
  %3765 = vmatpush.msra.mxu0 0.0
  %3766 = vmatpush.msra.mxu0 0.0
  %3767 = vmatpush.msra.mxu0 0.0
  %3768 = vmatpush.msra.mxu0 %v3703
  %3769 = vmatpush.msra.mxu0 %v3702
  %3770 = vmatpush.msra.mxu0 %v3701
  %3771 = vmatpush.msra.mxu0 %v3700
  %3772 = vmatmul.f32.gmra.mxu0 %v3709
  %v3773 = vpop.f32.mrf.mxu0
  %v3774 = vadd.f32 %v3706, %v3773
  %3775 = vmatmul.f32.gmra.mxu0 %v3712
  %v3776 = vpop.f32.mrf.mxu0
  %v3777 = vadd.f32 %v3706, %v3776
  %3778 = vmatmul.f32.gmra.mxu0 %v3715
  %v3779 = vpop.f32.mrf.mxu0
  %v3780 = vadd.f32 %v3706, %v3779
  %3781 = vmatmul.f32.gmra.mxu0 %v3718
  %v3782 = vpop.f32.mrf.mxu0
  %v3783 = vadd.f32 %v3706, %v3782
  %3784 = vmatmul.f32.gmra.mxu0 %v3721
  %v3785 = vpop.f32.mrf.mxu0
  %v3786 = vadd.f32 %v3706, %v3785
  %3787 = vmatmul.f32.gmra.mxu0 %v3724
  %v3788 = vpop.f32.mrf.mxu0
  %v3789 = vadd.f32 %v3706, %v3788
  %3790 = vmatmul.f32.gmra.mxu0 %v3727
  %v3791 = vpop.f32.mrf.mxu0
  %v3792 = vadd.f32 %v3706, %v3791
  %3793 = vmatmul.f32.gmra.mxu0 %v3730
  %v3794 = vpop.f32.mrf.mxu0
  %v3795 = vadd.f32 %v3706, %v3794
  %3796 = vmatmul.f32.gmra.mxu0 %v3733
  %v3797 = vpop.f32.mrf.mxu0
  %v3798 = vadd.f32 %v3706, %v3797
  %3799 = vmatmul.f32.gmra.mxu0 %v3736
  %v3800 = vpop.f32.mrf.mxu0
  %v3801 = vadd.f32 %v3706, %v3800
  %3802 = vmatmul.f32.gmra.mxu0 %v3739
  %v3803 = vpop.f32.mrf.mxu0
  %v3804 = vadd.f32 %v3706, %v3803
  %3805 = vmatmul.f32.gmra.mxu0 %v3742
  %v3806 = vpop.f32.mrf.mxu0
  %v3807 = vadd.f32 %v3706, %v3806
  %3808 = vmatmul.f32.gmra.mxu0 %v3745
  %v3809 = vpop.f32.mrf.mxu0
  %v3810 = vadd.f32 %v3706, %v3809
  %3811 = vmatmul.f32.gmra.mxu0 %v3748
  %v3812 = vpop.f32.mrf.mxu0
  %v3813 = vadd.f32 %v3706, %v3812
  %3814 = vmatmul.f32.gmra.mxu0 %v3751
  %v3815 = vpop.f32.mrf.mxu0
  %v3816 = vadd.f32 %v3706, %v3815
  %3817 = vmatmul.f32.gmra.mxu0 %v3754
  %v3818 = vpop.f32.mrf.mxu0
  %v3819 = vadd.f32 %v3706, %v3818
  %3820 = vdwg.mxu0
  %v3821 = vmul.f32 %v3774, 1.702
  %v3822 = vmul.f32 %v3777, 1.702
  %v3823 = vmul.f32 %v3780, 1.702
  %v3824 = vmul.f32 %v3783, 1.702
  %v3825 = vmul.f32 %v3786, 1.702
  %v3826 = vmul.f32 %v3789, 1.702
  %v3827 = vmul.f32 %v3792, 1.702
  %v3828 = vmul.f32 %v3795, 1.702
  %v3829 = vmul.f32 %v3798, 1.702
  %v3830 = vmul.f32 %v3801, 1.702
  %v3831 = vmul.f32 %v3804, 1.702
  %v3832 = vmul.f32 %v3807, 1.702
  %v3833 = vmul.f32 %v3810, 1.702
  %v3834 = vmul.f32 %v3813, 1.702
  %v3835 = vmul.f32 %v3816, 1.702
  %v3836 = vmul.f32 %v3819, 1.702
  %v3837 = vxor.u32 %v3821, 2147483648
  %v3838 = vxor.u32 %v3822, 2147483648
  %v3839 = vxor.u32 %v3823, 2147483648
  %v3840 = vxor.u32 %v3824, 2147483648
  %v3841 = vxor.u32 %v3825, 2147483648
  %v3842 = vxor.u32 %v3826, 2147483648
  %v3843 = vxor.u32 %v3827, 2147483648
  %v3844 = vxor.u32 %v3828, 2147483648
  %v3845 = vxor.u32 %v3829, 2147483648
  %v3846 = vxor.u32 %v3830, 2147483648
  %v3847 = vxor.u32 %v3831, 2147483648
  %v3848 = vxor.u32 %v3832, 2147483648
  %v3849 = vxor.u32 %v3833, 2147483648
  %v3850 = vxor.u32 %v3834, 2147483648
  %v3851 = vxor.u32 %v3835, 2147483648
  %v3852 = vxor.u32 %v3836, 2147483648
  %v3853 = vmul.f32 %v3837, 1.442695
  %v3854 = vpow.pop %v3853
  %v3855 = vmul.f32 %v3838, 1.442695
  %v3856 = vpow.pop %v3855
  %v3857 = vmul.f32 %v3839, 1.442695
  %v3858 = vpow.pop %v3857
  %v3859 = vmul.f32 %v3840, 1.442695
  %v3860 = vpow.pop %v3859
  %v3861 = vmul.f32 %v3841, 1.442695
  %v3862 = vpow.pop %v3861
  %v3863 = vmul.f32 %v3842, 1.442695
  %v3864 = vpow.pop %v3863
  %v3865 = vmul.f32 %v3843, 1.442695
  %v3866 = vpow.pop %v3865
  %v3867 = vmul.f32 %v3844, 1.442695
  %v3868 = vpow.pop %v3867
  %v3869 = vmul.f32 %v3845, 1.442695
  %v3870 = vpow.pop %v3869
  %v3871 = vmul.f32 %v3846, 1.442695
  %v3872 = vpow.pop %v3871
  %v3873 = vmul.f32 %v3847, 1.442695
  %v3874 = vpow.pop %v3873
  %v3875 = vmul.f32 %v3848, 1.442695
  %v3876 = vpow.pop %v3875
  %v3877 = vmul.f32 %v3849, 1.442695
  %v3878 = vpow.pop %v3877
  %v3879 = vmul.f32 %v3850, 1.442695
  %v3880 = vpow.pop %v3879
  %v3881 = vmul.f32 %v3851, 1.442695
  %v3882 = vpow.pop %v3881
  %v3883 = vmul.f32 %v3852, 1.442695
  %v3884 = vpow.pop %v3883
  %v3885 = vadd.f32 %v3854, 1.0
  %v3886 = vadd.f32 %v3856, 1.0
  %v3887 = vadd.f32 %v3858, 1.0
  %v3888 = vadd.f32 %v3860, 1.0
  %v3889 = vadd.f32 %v3862, 1.0
  %v3890 = vadd.f32 %v3864, 1.0
  %v3891 = vadd.f32 %v3866, 1.0
  %v3892 = vadd.f32 %v3868, 1.0
  %v3893 = vadd.f32 %v3870, 1.0
  %v3894 = vadd.f32 %v3872, 1.0
  %v3895 = vadd.f32 %v3874, 1.0
  %v3896 = vadd.f32 %v3876, 1.0
  %v3897 = vadd.f32 %v3878, 1.0
  %v3898 = vadd.f32 %v3880, 1.0
  %v3899 = vadd.f32 %v3882, 1.0
  %v3900 = vadd.f32 %v3884, 1.0
  %v3901 = vrcp.pop %v3885
  %v3902 = vmul.f32 %v3885, %v3901
  %v3903 = vsub.f32 1.0, %v3902
  %v3904 = vmul.f32 %v3901, %v3903
  %v3905 = vadd.f32 %v3901, %v3904
  %vm3906 = vweird.f32 %v3885
  %vm3907 = vweird.f32 %v3901
  %vm3908 = vmor %vm3906, %vm3907
  %v3909 = vsel %vm3908, %v3901, %v3905
  %v3910 = vand.u32 2147483647, %v3885
  %vm3911 = vcmp.eq.f32.partialorder %v3910, 8.507059e+37
  %v3912 = vand.u32 %v3885, 2147483648
  %v3913 = vor.u32 1.1754944e-38, %v3912
  %v3914 = vsel %vm3911, %v3913, %v3909
  %v3915 = vmul.f32 1.0, %v3914
  %v3916 = vrcp.pop %v3886
  %v3917 = vmul.f32 %v3886, %v3916
  %v3918 = vsub.f32 1.0, %v3917
  %v3919 = vmul.f32 %v3916, %v3918
  %v3920 = vadd.f32 %v3916, %v3919
  %vm3921 = vweird.f32 %v3886
  %vm3922 = vweird.f32 %v3916
  %vm3923 = vmor %vm3921, %vm3922
  %v3924 = vsel %vm3923, %v3916, %v3920
  %v3925 = vand.u32 2147483647, %v3886
  %vm3926 = vcmp.eq.f32.partialorder %v3925, 8.507059e+37
  %v3927 = vand.u32 %v3886, 2147483648
  %v3928 = vor.u32 1.1754944e-38, %v3927
  %v3929 = vsel %vm3926, %v3928, %v3924
  %v3930 = vmul.f32 1.0, %v3929
  %v3931 = vrcp.pop %v3887
  %v3932 = vmul.f32 %v3887, %v3931
  %v3933 = vsub.f32 1.0, %v3932
  %v3934 = vmul.f32 %v3931, %v3933
  %v3935 = vadd.f32 %v3931, %v3934
  %vm3936 = vweird.f32 %v3887
  %vm3937 = vweird.f32 %v3931
  %vm3938 = vmor %vm3936, %vm3937
  %v3939 = vsel %vm3938, %v3931, %v3935
  %v3940 = vand.u32 2147483647, %v3887
  %vm3941 = vcmp.eq.f32.partialorder %v3940, 8.507059e+37
  %v3942 = vand.u32 %v3887, 2147483648
  %v3943 = vor.u32 1.1754944e-38, %v3942
  %v3944 = vsel %vm3941, %v3943, %v3939
  %v3945 = vmul.f32 1.0, %v3944
  %v3946 = vrcp.pop %v3888
  %v3947 = vmul.f32 %v3888, %v3946
  %v3948 = vsub.f32 1.0, %v3947
  %v3949 = vmul.f32 %v3946, %v3948
  %v3950 = vadd.f32 %v3946, %v3949
  %vm3951 = vweird.f32 %v3888
  %vm3952 = vweird.f32 %v3946
  %vm3953 = vmor %vm3951, %vm3952
  %v3954 = vsel %vm3953, %v3946, %v3950
  %v3955 = vand.u32 2147483647, %v3888
  %vm3956 = vcmp.eq.f32.partialorder %v3955, 8.507059e+37
  %v3957 = vand.u32 %v3888, 2147483648
  %v3958 = vor.u32 1.1754944e-38, %v3957
  %v3959 = vsel %vm3956, %v3958, %v3954
  %v3960 = vmul.f32 1.0, %v3959
  %v3961 = vrcp.pop %v3889
  %v3962 = vmul.f32 %v3889, %v3961
  %v3963 = vsub.f32 1.0, %v3962
  %v3964 = vmul.f32 %v3961, %v3963
  %v3965 = vadd.f32 %v3961, %v3964
  %vm3966 = vweird.f32 %v3889
  %vm3967 = vweird.f32 %v3961
  %vm3968 = vmor %vm3966, %vm3967
  %v3969 = vsel %vm3968, %v3961, %v3965
  %v3970 = vand.u32 2147483647, %v3889
  %vm3971 = vcmp.eq.f32.partialorder %v3970, 8.507059e+37
  %v3972 = vand.u32 %v3889, 2147483648
  %v3973 = vor.u32 1.1754944e-38, %v3972
  %v3974 = vsel %vm3971, %v3973, %v3969
  %v3975 = vmul.f32 1.0, %v3974
  %v3976 = vrcp.pop %v3890
  %v3977 = vmul.f32 %v3890, %v3976
  %v3978 = vsub.f32 1.0, %v3977
  %v3979 = vmul.f32 %v3976, %v3978
  %v3980 = vadd.f32 %v3976, %v3979
  %vm3981 = vweird.f32 %v3890
  %vm3982 = vweird.f32 %v3976
  %vm3983 = vmor %vm3981, %vm3982
  %v3984 = vsel %vm3983, %v3976, %v3980
  %v3985 = vand.u32 2147483647, %v3890
  %vm3986 = vcmp.eq.f32.partialorder %v3985, 8.507059e+37
  %v3987 = vand.u32 %v3890, 2147483648
  %v3988 = vor.u32 1.1754944e-38, %v3987
  %v3989 = vsel %vm3986, %v3988, %v3984
  %v3990 = vmul.f32 1.0, %v3989
  %v3991 = vrcp.pop %v3891
  %v3992 = vmul.f32 %v3891, %v3991
  %v3993 = vsub.f32 1.0, %v3992
  %v3994 = vmul.f32 %v3991, %v3993
  %v3995 = vadd.f32 %v3991, %v3994
  %vm3996 = vweird.f32 %v3891
  %vm3997 = vweird.f32 %v3991
  %vm3998 = vmor %vm3996, %vm3997
  %v3999 = vsel %vm3998, %v3991, %v3995
  %v4000 = vand.u32 2147483647, %v3891
  %vm4001 = vcmp.eq.f32.partialorder %v4000, 8.507059e+37
  %v4002 = vand.u32 %v3891, 2147483648
  %v4003 = vor.u32 1.1754944e-38, %v4002
  %v4004 = vsel %vm4001, %v4003, %v3999
  %v4005 = vmul.f32 1.0, %v4004
  %v4006 = vrcp.pop %v3892
  %v4007 = vmul.f32 %v3892, %v4006
  %v4008 = vsub.f32 1.0, %v4007
  %v4009 = vmul.f32 %v4006, %v4008
  %v4010 = vadd.f32 %v4006, %v4009
  %vm4011 = vweird.f32 %v3892
  %vm4012 = vweird.f32 %v4006
  %vm4013 = vmor %vm4011, %vm4012
  %v4014 = vsel %vm4013, %v4006, %v4010
  %v4015 = vand.u32 2147483647, %v3892
  %vm4016 = vcmp.eq.f32.partialorder %v4015, 8.507059e+37
  %v4017 = vand.u32 %v3892, 2147483648
  %v4018 = vor.u32 1.1754944e-38, %v4017
  %v4019 = vsel %vm4016, %v4018, %v4014
  %v4020 = vmul.f32 1.0, %v4019
  %v4021 = vrcp.pop %v3893
  %v4022 = vmul.f32 %v3893, %v4021
  %v4023 = vsub.f32 1.0, %v4022
  %v4024 = vmul.f32 %v4021, %v4023
  %v4025 = vadd.f32 %v4021, %v4024
  %vm4026 = vweird.f32 %v3893
  %vm4027 = vweird.f32 %v4021
  %vm4028 = vmor %vm4026, %vm4027
  %v4029 = vsel %vm4028, %v4021, %v4025
  %v4030 = vand.u32 2147483647, %v3893
  %vm4031 = vcmp.eq.f32.partialorder %v4030, 8.507059e+37
  %v4032 = vand.u32 %v3893, 2147483648
  %v4033 = vor.u32 1.1754944e-38, %v4032
  %v4034 = vsel %vm4031, %v4033, %v4029
  %v4035 = vmul.f32 1.0, %v4034
  %v4036 = vrcp.pop %v3894
  %v4037 = vmul.f32 %v3894, %v4036
  %v4038 = vsub.f32 1.0, %v4037
  %v4039 = vmul.f32 %v4036, %v4038
  %v4040 = vadd.f32 %v4036, %v4039
  %vm4041 = vweird.f32 %v3894
  %vm4042 = vweird.f32 %v4036
  %vm4043 = vmor %vm4041, %vm4042
  %v4044 = vsel %vm4043, %v4036, %v4040
  %v4045 = vand.u32 2147483647, %v3894
  %vm4046 = vcmp.eq.f32.partialorder %v4045, 8.507059e+37
  %v4047 = vand.u32 %v3894, 2147483648
  %v4048 = vor.u32 1.1754944e-38, %v4047
  %v4049 = vsel %vm4046, %v4048, %v4044
  %v4050 = vmul.f32 1.0, %v4049
  %v4051 = vrcp.pop %v3895
  %v4052 = vmul.f32 %v3895, %v4051
  %v4053 = vsub.f32 1.0, %v4052
  %v4054 = vmul.f32 %v4051, %v4053
  %v4055 = vadd.f32 %v4051, %v4054
  %vm4056 = vweird.f32 %v3895
  %vm4057 = vweird.f32 %v4051
  %vm4058 = vmor %vm4056, %vm4057
  %v4059 = vsel %vm4058, %v4051, %v4055
  %v4060 = vand.u32 2147483647, %v3895
  %vm4061 = vcmp.eq.f32.partialorder %v4060, 8.507059e+37
  %v4062 = vand.u32 %v3895, 2147483648
  %v4063 = vor.u32 1.1754944e-38, %v4062
  %v4064 = vsel %vm4061, %v4063, %v4059
  %v4065 = vmul.f32 1.0, %v4064
  %v4066 = vrcp.pop %v3896
  %v4067 = vmul.f32 %v3896, %v4066
  %v4068 = vsub.f32 1.0, %v4067
  %v4069 = vmul.f32 %v4066, %v4068
  %v4070 = vadd.f32 %v4066, %v4069
  %vm4071 = vweird.f32 %v3896
  %vm4072 = vweird.f32 %v4066
  %vm4073 = vmor %vm4071, %vm4072
  %v4074 = vsel %vm4073, %v4066, %v4070
  %v4075 = vand.u32 2147483647, %v3896
  %vm4076 = vcmp.eq.f32.partialorder %v4075, 8.507059e+37
  %v4077 = vand.u32 %v3896, 2147483648
  %v4078 = vor.u32 1.1754944e-38, %v4077
  %v4079 = vsel %vm4076, %v4078, %v4074
  %v4080 = vmul.f32 1.0, %v4079
  %v4081 = vrcp.pop %v3897
  %v4082 = vmul.f32 %v3897, %v4081
  %v4083 = vsub.f32 1.0, %v4082
  %v4084 = vmul.f32 %v4081, %v4083
  %v4085 = vadd.f32 %v4081, %v4084
  %vm4086 = vweird.f32 %v3897
  %vm4087 = vweird.f32 %v4081
  %vm4088 = vmor %vm4086, %vm4087
  %v4089 = vsel %vm4088, %v4081, %v4085
  %v4090 = vand.u32 2147483647, %v3897
  %vm4091 = vcmp.eq.f32.partialorder %v4090, 8.507059e+37
  %v4092 = vand.u32 %v3897, 2147483648
  %v4093 = vor.u32 1.1754944e-38, %v4092
  %v4094 = vsel %vm4091, %v4093, %v4089
  %v4095 = vmul.f32 1.0, %v4094
  %v4096 = vrcp.pop %v3898
  %v4097 = vmul.f32 %v3898, %v4096
  %v4098 = vsub.f32 1.0, %v4097
  %v4099 = vmul.f32 %v4096, %v4098
  %v4100 = vadd.f32 %v4096, %v4099
  %vm4101 = vweird.f32 %v3898
  %vm4102 = vweird.f32 %v4096
  %vm4103 = vmor %vm4101, %vm4102
  %v4104 = vsel %vm4103, %v4096, %v4100
  %v4105 = vand.u32 2147483647, %v3898
  %vm4106 = vcmp.eq.f32.partialorder %v4105, 8.507059e+37
  %v4107 = vand.u32 %v3898, 2147483648
  %v4108 = vor.u32 1.1754944e-38, %v4107
  %v4109 = vsel %vm4106, %v4108, %v4104
  %v4110 = vmul.f32 1.0, %v4109
  %v4111 = vrcp.pop %v3899
  %v4112 = vmul.f32 %v3899, %v4111
  %v4113 = vsub.f32 1.0, %v4112
  %v4114 = vmul.f32 %v4111, %v4113
  %v4115 = vadd.f32 %v4111, %v4114
  %vm4116 = vweird.f32 %v3899
  %vm4117 = vweird.f32 %v4111
  %vm4118 = vmor %vm4116, %vm4117
  %v4119 = vsel %vm4118, %v4111, %v4115
  %v4120 = vand.u32 2147483647, %v3899
  %vm4121 = vcmp.eq.f32.partialorder %v4120, 8.507059e+37
  %v4122 = vand.u32 %v3899, 2147483648
  %v4123 = vor.u32 1.1754944e-38, %v4122
  %v4124 = vsel %vm4121, %v4123, %v4119
  %v4125 = vmul.f32 1.0, %v4124
  %v4126 = vrcp.pop %v3900
  %v4127 = vmul.f32 %v3900, %v4126
  %v4128 = vsub.f32 1.0, %v4127
  %v4129 = vmul.f32 %v4126, %v4128
  %v4130 = vadd.f32 %v4126, %v4129
  %vm4131 = vweird.f32 %v3900
  %vm4132 = vweird.f32 %v4126
  %vm4133 = vmor %vm4131, %vm4132
  %v4134 = vsel %vm4133, %v4126, %v4130
  %v4135 = vand.u32 2147483647, %v3900
  %vm4136 = vcmp.eq.f32.partialorder %v4135, 8.507059e+37
  %v4137 = vand.u32 %v3900, 2147483648
  %v4138 = vor.u32 1.1754944e-38, %v4137
  %v4139 = vsel %vm4136, %v4138, %v4134
  %v4140 = vmul.f32 1.0, %v4139
  %v4141 = vmul.f32 %v3774, %v3915
  %v4142 = vmul.f32 %v3777, %v3930
  %v4143 = vmul.f32 %v3780, %v3945
  %v4144 = vmul.f32 %v3783, %v3960
  %v4145 = vmul.f32 %v3786, %v3975
  %v4146 = vmul.f32 %v3789, %v3990
  %v4147 = vmul.f32 %v3792, %v4005
  %v4148 = vmul.f32 %v3795, %v4020
  %v4149 = vmul.f32 %v3798, %v4035
  %v4150 = vmul.f32 %v3801, %v4050
  %v4151 = vmul.f32 %v3804, %v4065
  %v4152 = vmul.f32 %v3807, %v4080
  %v4153 = vmul.f32 %v3810, %v4095
  %v4154 = vmul.f32 %v3813, %v4110
  %v4155 = vmul.f32 %v3816, %v4125
  %v4156 = vmul.f32 %v3819, %v4140
  %v4157 = vld [vmem:[%s23] sm:$0xff]
  %v4158 = vld [vmem:[%s23 + $0x8] sm:$0x3]
  %v4159 = vld [vmem:[%s24] sm:$0x1]
  %v4161 = vperm.slane %v4159, 0
  %vm4163 = vcmask 80896
  %v4165 = vsel %vm4163, %v4141, 0
  %v4168 = vsel %vm4163, %v4142, 0
  %v4171 = vsel %vm4163, %v4143, 0
  %v4174 = vsel %vm4163, %v4144, 0
  %v4177 = vsel %vm4163, %v4145, 0
  %v4180 = vsel %vm4163, %v4146, 0
  %v4183 = vsel %vm4163, %v4147, 0
  %v4186 = vsel %vm4163, %v4148, 0
  %v4189 = vsel %vm4163, %v4149, 0
  %v4192 = vsel %vm4163, %v4150, 0
  %v4195 = vsel %vm4163, %v4151, 0
  %v4198 = vsel %vm4163, %v4152, 0
  %v4201 = vsel %vm4163, %v4153, 0
  %v4204 = vsel %vm4163, %v4154, 0
  %v4207 = vsel %vm4163, %v4155, 0
  %v4210 = vsel %vm4163, %v4156, 0
  %vm4212 = vcmask 1041408
  %v4214 = vsel %vm4212, %v4158, 0
  %4216 = vmatpush.msra.mxu0 0.0
  %4217 = vmatpush.msra.mxu0 0.0
  %4218 = vmatpush.msra.mxu0 0.0
  %4219 = vmatpush.msra.mxu0 0.0
  %4220 = vmatpush.msra.mxu0 0.0
  %4221 = vmatpush.msra.mxu0 0.0
  %4222 = vmatpush.msra.mxu0 0.0
  %4223 = vmatpush.msra.mxu0 0.0
  %4224 = vmatpush.msra.mxu0 0.0
  %4225 = vmatpush.msra.mxu0 0.0
  %4226 = vmatpush.msra.mxu0 0.0
  %4227 = vmatpush.msra.mxu0 0.0
  %4228 = vmatpush.msra.mxu0 0.0
  %4229 = vmatpush.msra.mxu0 0.0
  %4230 = vmatpush.msra.mxu0 %v4214
  %4231 = vmatpush.msra.mxu0 %v4157
  %4232 = vmatmul.f32.gmra.mxu0 %v4165
  %v4233 = vpop.f32.mrf.mxu0
  %v4234 = vadd.f32 %v4161, %v4233
  %4235 = vmatmul.f32.gmra.mxu0 %v4168
  %v4236 = vpop.f32.mrf.mxu0
  %v4237 = vadd.f32 %v4161, %v4236
  %4238 = vmatmul.f32.gmra.mxu0 %v4171
  %v4239 = vpop.f32.mrf.mxu0
  %v4240 = vadd.f32 %v4161, %v4239
  %4241 = vmatmul.f32.gmra.mxu0 %v4174
  %v4242 = vpop.f32.mrf.mxu0
  %v4243 = vadd.f32 %v4161, %v4242
  %4244 = vmatmul.f32.gmra.mxu0 %v4177
  %v4245 = vpop.f32.mrf.mxu0
  %v4246 = vadd.f32 %v4161, %v4245
  %4247 = vmatmul.f32.gmra.mxu0 %v4180
  %v4248 = vpop.f32.mrf.mxu0
  %v4249 = vadd.f32 %v4161, %v4248
  %4250 = vmatmul.f32.gmra.mxu0 %v4183
  %v4251 = vpop.f32.mrf.mxu0
  %v4252 = vadd.f32 %v4161, %v4251
  %4253 = vmatmul.f32.gmra.mxu0 %v4186
  %v4254 = vpop.f32.mrf.mxu0
  %v4255 = vadd.f32 %v4161, %v4254
  %4256 = vmatmul.f32.gmra.mxu0 %v4189
  %v4257 = vpop.f32.mrf.mxu0
  %v4258 = vadd.f32 %v4161, %v4257
  %4259 = vmatmul.f32.gmra.mxu0 %v4192
  %v4260 = vpop.f32.mrf.mxu0
  %v4261 = vadd.f32 %v4161, %v4260
  %4262 = vmatmul.f32.gmra.mxu0 %v4195
  %v4263 = vpop.f32.mrf.mxu0
  %v4264 = vadd.f32 %v4161, %v4263
  %4265 = vmatmul.f32.gmra.mxu0 %v4198
  %v4266 = vpop.f32.mrf.mxu0
  %v4267 = vadd.f32 %v4161, %v4266
  %4268 = vmatmul.f32.gmra.mxu0 %v4201
  %v4269 = vpop.f32.mrf.mxu0
  %v4270 = vadd.f32 %v4161, %v4269
  %4271 = vmatmul.f32.gmra.mxu0 %v4204
  %v4272 = vpop.f32.mrf.mxu0
  %v4273 = vadd.f32 %v4161, %v4272
  %4274 = vmatmul.f32.gmra.mxu0 %v4207
  %v4275 = vpop.f32.mrf.mxu0
  %v4276 = vadd.f32 %v4161, %v4275
  %4277 = vmatmul.f32.gmra.mxu0 %v4210
  %v4278 = vpop.f32.mrf.mxu0
  %v4279 = vadd.f32 %v4161, %v4278
  %4280 = vdwg.mxu0
  %v4281 = vld [vmem:[#allocation2] sm:$0x1]
  %v4283 = vperm.slane %v4281, 0
  %4284 = vset.pattern.permute.xlu0 0
  %4285 = vperm.xlu0 %4284, %v4283
  %v4286 = vpop.permute.xlu0 %4285
  %v4288 = vmul.f32 %v4234, %v4286
  %v4289 = vmul.f32 %v4237, %v4286
  %v4290 = vmul.f32 %v4240, %v4286
  %v4291 = vmul.f32 %v4243, %v4286
  %v4292 = vmul.f32 %v4246, %v4286
  %v4293 = vmul.f32 %v4249, %v4286
  %v4294 = vmul.f32 %v4252, %v4286
  %v4295 = vmul.f32 %v4255, %v4286
  %v4296 = vmul.f32 %v4258, %v4286
  %v4297 = vmul.f32 %v4261, %v4286
  %v4298 = vmul.f32 %v4264, %v4286
  %v4299 = vmul.f32 %v4267, %v4286
  %v4300 = vmul.f32 %v4270, %v4286
  %v4301 = vmul.f32 %v4273, %v4286
  %v4302 = vmul.f32 %v4276, %v4286
  %v4303 = vmul.f32 %v4279, %v4286
  %v4304 = vadd.f32 %v2382, %v3653
  %v4305 = vadd.f32 %v2383, %v3656
  %v4306 = vadd.f32 %v2384, %v3659
  %v4307 = vadd.f32 %v2385, %v3662
  %v4308 = vadd.f32 %v2386, %v3665
  %v4309 = vadd.f32 %v2387, %v3668
  %v4310 = vadd.f32 %v2388, %v3671
  %v4311 = vadd.f32 %v2389, %v3674
  %v4312 = vadd.f32 %v2390, %v3677
  %v4313 = vadd.f32 %v2391, %v3680
  %v4314 = vadd.f32 %v2392, %v3683
  %v4315 = vadd.f32 %v2393, %v3686
  %v4316 = vadd.f32 %v2394, %v3689
  %v4317 = vadd.f32 %v2395, %v3692
  %v4318 = vadd.f32 %v2396, %v3695
  %v4319 = vadd.f32 %v2397, %v3698
  %v4320 = vadd.f32 %v4304, %v4288
  %v4321 = vadd.f32 %v4305, %v4289
  %v4322 = vadd.f32 %v4306, %v4290
  %v4323 = vadd.f32 %v4307, %v4291
  %v4324 = vadd.f32 %v4308, %v4292
  %v4325 = vadd.f32 %v4309, %v4293
  %v4326 = vadd.f32 %v4310, %v4294
  %v4327 = vadd.f32 %v4311, %v4295
  %v4328 = vadd.f32 %v4312, %v4296
  %v4329 = vadd.f32 %v4313, %v4297
  %v4330 = vadd.f32 %v4314, %v4298
  %v4331 = vadd.f32 %v4315, %v4299
  %v4332 = vadd.f32 %v4316, %v4300
  %v4333 = vadd.f32 %v4317, %v4301
  %v4334 = vadd.f32 %v4318, %v4302
  %v4335 = vadd.f32 %v4319, %v4303
  %4336 = vst.msk [vmem:[%s26] sm:$0xff] %vm103, %v4320
  %4337 = vst.msk [vmem:[%s26 + $0x8] sm:$0xff] %vm103, %v4321
  %4338 = vst.msk [vmem:[%s26 + $0x10] sm:$0xff] %vm103, %v4322
  %4339 = vst.msk [vmem:[%s26 + $0x18] sm:$0xff] %vm103, %v4323
  %4340 = vst.msk [vmem:[%s26 + $0x20] sm:$0xff] %vm103, %v4324
  %4341 = vst.msk [vmem:[%s26 + $0x28] sm:$0xff] %vm103, %v4325
  %4342 = vst.msk [vmem:[%s26 + $0x30] sm:$0xff] %vm103, %v4326
  %4343 = vst.msk [vmem:[%s26 + $0x38] sm:$0xff] %vm103, %v4327
  %4344 = vst.msk [vmem:[%s26 + $0x40] sm:$0xff] %vm103, %v4328
  %4345 = vst.msk [vmem:[%s26 + $0x48] sm:$0xff] %vm103, %v4329
  %4346 = vst.msk [vmem:[%s26 + $0x50] sm:$0xff] %vm103, %v4330
  %4347 = vst.msk [vmem:[%s26 + $0x58] sm:$0xff] %vm103, %v4331
  %4348 = vst.msk [vmem:[%s26 + $0x60] sm:$0xff] %vm103, %v4332
  %4349 = vst.msk [vmem:[%s26 + $0x68] sm:$0xff] %vm103, %v4333
  %4350 = vst.msk [vmem:[%s26 + $0x70] sm:$0xff] %vm103, %v4334
  %4351 = vst.msk [vmem:[%s26 + $0x78] sm:$0xff] %vm103, %v4335
  // Predicated region
  $region106: #{swin_forward.8} parent=0 // pred_check
    _
  $region107: #{swin_forward.8} parent=0 // pred_check_branch
    %4353 = sbr.rel (0) target = $region109
  $region108: #{swin_forward.8} parent=0 // pred_region
    _
  $region109: #{swin_forward.8} parent=0 // pred_fallthru
    _
  // Predicated region
  $region110: #{swin_forward.8} parent=0 // pred_check
    _
  $region111: #{swin_forward.8} parent=0 // pred_check_branch
    %4355 = sbr.rel (0) target = $region113
  $region112: #{swin_forward.8} parent=0 // pred_region
    _
  $region113: #{swin_forward.8} parent=0 // pred_fallthru
    _

// kernel: swin_forward.11
$region0: #{swin_forward.11}
  #allocation0 [shape = 'u32[]', space=smem, size = 0x4, offset = 0x4, fixed_abs, tag = 'smem constant byte address 0x4 - core index']
  #allocation1 [shape = 'u32[72,128]{1,0:T(1,128)}', space=vmem, size = 0x9000, scoped, tag = 'internal scratch']
  #allocation2 [shape = 'f32[1,1]{1,0:T(1,128)S(1)}', space=vmem, size = 0x200, scoped, tag = 'scoped memory for swin_forward.11']
  %s0 = inlined_call_operand.vmem [shape: f32[32,64], index: 0, kind: input, shape index: {}]
  %s1 = inlined_call_operand.vmem [shape: f32[1,64], index: 1, kind: input, shape index: {}]
  %s2 = inlined_call_operand.vmem [shape: f32[1,64], index: 2, kind: input, shape index: {}]
  %s3 = inlined_call_operand.vmem [shape: f32[4,64,16], index: 3, kind: input, shape index: {}]
  %s4 = inlined_call_operand.vmem [shape: f32[4,1,16], index: 4, kind: input, shape index: {}]
  %s5 = inlined_call_operand.vmem [shape: f32[4,64,16], index: 5, kind: input, shape index: {}]
  %s6 = inlined_call_operand.vmem [shape: f32[4,1,16], index: 6, kind: input, shape index: {}]
  %s7 = inlined_call_operand.vmem [shape: f32[4,64,16], index: 7, kind: input, shape index: {}]
  %s8 = inlined_call_operand.vmem [shape: f32[4,1,16], index: 8, kind: input, shape index: {}]
  %s9 = inlined_call_operand.vmem [shape: f32[4,32,32], index: 9, kind: input, shape index: {}]
  %s10 = inlined_call_operand.vmem [shape: f32[4,16,64], index: 10, kind: input, shape index: {}]
  %s11 = inlined_call_operand.vmem [shape: f32[1,64], index: 11, kind: input, shape index: {}]
  %s12 = inlined_call_operand.vmem [shape: f32[20,64], index: 12, kind: input, shape index: {}]
  %s13 = inlined_call_operand.vmem [shape: f32[20,32], index: 13, kind: input, shape index: {}]
  %s14 = inlined_call_operand.vmem [shape: f32[32,20], index: 14, kind: input, shape index: {}]
  %s15 = inlined_call_operand.vmem [shape: f32[1,64], index: 15, kind: input, shape index: {}]
  %s16 = inlined_call_operand.vmem [shape: f32[1,64], index: 16, kind: input, shape index: {}]
  %s17 = inlined_call_operand.vmem [shape: f32[64,256], index: 17, kind: input, shape index: {}]
  %s18 = inlined_call_operand.vmem [shape: f32[1,256], index: 18, kind: input, shape index: {}]
  %s19 = inlined_call_operand.vmem [shape: f32[256,64], index: 19, kind: input, shape index: {}]
  %s20 = inlined_call_operand.vmem [shape: f32[1,64], index: 20, kind: input, shape index: {}]
  %s21 = inlined_call_operand.vmem [shape: f32[64,10], index: 21, kind: input, shape index: {}]
  %s22 = inlined_call_operand.vmem [shape: f32[1,10], index: 22, kind: input, shape index: {}]
  %s23 = inlined_call_operand.vmem [shape: f32[10,64], index: 23, kind: input, shape index: {}]
  %s24 = inlined_call_operand.vmem [shape: f32[1,64], index: 24, kind: input, shape index: {}]
  %s25 = inlined_call_operand.<no memory space> [shape: f32[1,1], index: 25, kind: input, shape index: {}]
  %s26 = inlined_call_operand.vmem [shape: f32[32,64], index: 26, kind: output, shape index: {}]
  %s27 = sld [smem:[#allocation0]]
  $region114: #{swin_forward.11} parent=0
    _
  %s29 = ssub.s32 1, %s27
  %s30 = scalar_select 0, %s29, %s27
  %v31 = vstv %s25
  %32 = vst [vmem:[#allocation2] sm:$0x1] %v31
  // Predicated region
  $region2: #{swin_forward.11} parent=0 // pred_check
    _
  $region3: #{swin_forward.11} parent=0 // pred_check_branch
    %34 = sbr.rel (0) target = $region5
  $region4: #{swin_forward.11} parent=0 // pred_region
    _
  $region5: #{swin_forward.11} parent=0 // pred_fallthru
    _
  // Predicated region
  $region6: #{swin_forward.11} parent=0 // pred_check
    _
  $region7: #{swin_forward.11} parent=0 // pred_check_branch
    %36 = sbr.rel (0) target = $region9
  $region8: #{swin_forward.11} parent=0 // pred_region
    _
  $region9: #{swin_forward.11} parent=0 // pred_fallthru
    _
  // Predicated region
  $region10: #{swin_forward.11} parent=0 // pred_check
    _
  $region11: #{swin_forward.11} parent=0 // pred_check_branch
    %38 = sbr.rel (0) target = $region13
  $region12: #{swin_forward.11} parent=0 // pred_region
    _
  $region13: #{swin_forward.11} parent=0 // pred_fallthru
    _
  // Predicated region
  $region14: #{swin_forward.11} parent=0 // pred_check
    _
  $region15: #{swin_forward.11} parent=0 // pred_check_branch
    %40 = sbr.rel (0) target = $region17
  $region16: #{swin_forward.11} parent=0 // pred_region
    _
  $region17: #{swin_forward.11} parent=0 // pred_fallthru
    _
  // Predicated region
  $region18: #{swin_forward.11} parent=0 // pred_check
    _
  $region19: #{swin_forward.11} parent=0 // pred_check_branch
    %42 = sbr.rel (0) target = $region21
  $region20: #{swin_forward.11} parent=0 // pred_region
    _
  $region21: #{swin_forward.11} parent=0 // pred_fallthru
    _
  // Predicated region
  $region22: #{swin_forward.11} parent=0 // pred_check
    _
  $region23: #{swin_forward.11} parent=0 // pred_check_branch
    %44 = sbr.rel (0) target = $region25
  $region24: #{swin_forward.11} parent=0 // pred_region
    _
  $region25: #{swin_forward.11} parent=0 // pred_fallthru
    _
  // Predicated region
  $region26: #{swin_forward.11} parent=0 // pred_check
    _
  $region27: #{swin_forward.11} parent=0 // pred_check_branch
    %46 = sbr.rel (0) target = $region29
  $region28: #{swin_forward.11} parent=0 // pred_region
    _
  $region29: #{swin_forward.11} parent=0 // pred_fallthru
    _
  // Predicated region
  $region30: #{swin_forward.11} parent=0 // pred_check
    _
  $region31: #{swin_forward.11} parent=0 // pred_check_branch
    %48 = sbr.rel (0) target = $region33
  $region32: #{swin_forward.11} parent=0 // pred_region
    _
  $region33: #{swin_forward.11} parent=0 // pred_fallthru
    _
  // Predicated region
  $region34: #{swin_forward.11} parent=0 // pred_check
    _
  $region35: #{swin_forward.11} parent=0 // pred_check_branch
    %50 = sbr.rel (0) target = $region37
  $region36: #{swin_forward.11} parent=0 // pred_region
    _
  $region37: #{swin_forward.11} parent=0 // pred_fallthru
    _
  // Predicated region
  $region38: #{swin_forward.11} parent=0 // pred_check
    _
  $region39: #{swin_forward.11} parent=0 // pred_check_branch
    %52 = sbr.rel (0) target = $region41
  $region40: #{swin_forward.11} parent=0 // pred_region
    _
  $region41: #{swin_forward.11} parent=0 // pred_fallthru
    _
  // Predicated region
  $region42: #{swin_forward.11} parent=0 // pred_check
    _
  $region43: #{swin_forward.11} parent=0 // pred_check_branch
    %54 = sbr.rel (0) target = $region45
  $region44: #{swin_forward.11} parent=0 // pred_region
    _
  $region45: #{swin_forward.11} parent=0 // pred_fallthru
    _
  // Predicated region
  $region46: #{swin_forward.11} parent=0 // pred_check
    _
  $region47: #{swin_forward.11} parent=0 // pred_check_branch
    %56 = sbr.rel (0) target = $region49
  $region48: #{swin_forward.11} parent=0 // pred_region
    _
  $region49: #{swin_forward.11} parent=0 // pred_fallthru
    _
  // Predicated region
  $region50: #{swin_forward.11} parent=0 // pred_check
    _
  $region51: #{swin_forward.11} parent=0 // pred_check_branch
    %58 = sbr.rel (0) target = $region53
  $region52: #{swin_forward.11} parent=0 // pred_region
    _
  $region53: #{swin_forward.11} parent=0 // pred_fallthru
    _
  // Predicated region
  $region54: #{swin_forward.11} parent=0 // pred_check
    _
  $region55: #{swin_forward.11} parent=0 // pred_check_branch
    %60 = sbr.rel (0) target = $region57
  $region56: #{swin_forward.11} parent=0 // pred_region
    _
  $region57: #{swin_forward.11} parent=0 // pred_fallthru
    _
  // Predicated region
  $region58: #{swin_forward.11} parent=0 // pred_check
    _
  $region59: #{swin_forward.11} parent=0 // pred_check_branch
    %62 = sbr.rel (0) target = $region61
  $region60: #{swin_forward.11} parent=0 // pred_region
    _
  $region61: #{swin_forward.11} parent=0 // pred_fallthru
    _
  // Predicated region
  $region62: #{swin_forward.11} parent=0 // pred_check
    _
  $region63: #{swin_forward.11} parent=0 // pred_check_branch
    %64 = sbr.rel (0) target = $region65
  $region64: #{swin_forward.11} parent=0 // pred_region
    _
  $region65: #{swin_forward.11} parent=0 // pred_fallthru
    _
  // Predicated region
  $region66: #{swin_forward.11} parent=0 // pred_check
    _
  $region67: #{swin_forward.11} parent=0 // pred_check_branch
    %66 = sbr.rel (0) target = $region69
  $region68: #{swin_forward.11} parent=0 // pred_region
    _
  $region69: #{swin_forward.11} parent=0 // pred_fallthru
    _
  // Predicated region
  $region70: #{swin_forward.11} parent=0 // pred_check
    _
  $region71: #{swin_forward.11} parent=0 // pred_check_branch
    %68 = sbr.rel (0) target = $region73
  $region72: #{swin_forward.11} parent=0 // pred_region
    _
  $region73: #{swin_forward.11} parent=0 // pred_fallthru
    _
  // Predicated region
  $region74: #{swin_forward.11} parent=0 // pred_check
    _
  $region75: #{swin_forward.11} parent=0 // pred_check_branch
    %70 = sbr.rel (0) target = $region77
  $region76: #{swin_forward.11} parent=0 // pred_region
    _
  $region77: #{swin_forward.11} parent=0 // pred_fallthru
    _
  // Predicated region
  $region78: #{swin_forward.11} parent=0 // pred_check
    _
  $region79: #{swin_forward.11} parent=0 // pred_check_branch
    %72 = sbr.rel (0) target = $region81
  $region80: #{swin_forward.11} parent=0 // pred_region
    _
  $region81: #{swin_forward.11} parent=0 // pred_fallthru
    _
  // Predicated region
  $region82: #{swin_forward.11} parent=0 // pred_check
    _
  $region83: #{swin_forward.11} parent=0 // pred_check_branch
    %74 = sbr.rel (0) target = $region85
  $region84: #{swin_forward.11} parent=0 // pred_region
    _
  $region85: #{swin_forward.11} parent=0 // pred_fallthru
    _
  // Predicated region
  $region86: #{swin_forward.11} parent=0 // pred_check
    _
  $region87: #{swin_forward.11} parent=0 // pred_check_branch
    %76 = sbr.rel (0) target = $region89
  $region88: #{swin_forward.11} parent=0 // pred_region
    _
  $region89: #{swin_forward.11} parent=0 // pred_fallthru
    _
  // Predicated region
  $region90: #{swin_forward.11} parent=0 // pred_check
    _
  $region91: #{swin_forward.11} parent=0 // pred_check_branch
    %78 = sbr.rel (0) target = $region93
  $region92: #{swin_forward.11} parent=0 // pred_region
    _
  $region93: #{swin_forward.11} parent=0 // pred_fallthru
    _
  // Predicated region
  $region94: #{swin_forward.11} parent=0 // pred_check
    _
  $region95: #{swin_forward.11} parent=0 // pred_check_branch
    %80 = sbr.rel (0) target = $region97
  $region96: #{swin_forward.11} parent=0 // pred_region
    _
  $region97: #{swin_forward.11} parent=0 // pred_fallthru
    _
  // Predicated region
  $region98: #{swin_forward.11} parent=0 // pred_check
    _
  $region99: #{swin_forward.11} parent=0 // pred_check_branch
    %82 = sbr.rel (0) target = $region101
  $region100: #{swin_forward.11} parent=0 // pred_region
    _
  $region101: #{swin_forward.11} parent=0 // pred_fallthru
    _
  // Predicated region
  $region102: #{swin_forward.11} parent=0 // pred_check
    _
  $region103: #{swin_forward.11} parent=0 // pred_check_branch
    %84 = sbr.rel (0) target = $region105
  $region104: #{swin_forward.11} parent=0 // pred_region
    _
  $region105: #{swin_forward.11} parent=0 // pred_fallthru
    _
  %v85 = vld [vmem:[%s0] sm:$0xff]
  %v86 = vld [vmem:[%s0 + $0x8] sm:$0xff]
  %v87 = vld [vmem:[%s0 + $0x10] sm:$0xff]
  %v88 = vld [vmem:[%s0 + $0x18] sm:$0xff]
  %v89 = vld [vmem:[%s1] sm:$0x1]
  %v90 = vld [vmem:[%s2] sm:$0x1]
  %vm91 = vcmask 523264
  %v92 = vsel %vm91, %v85, 0.0
  %93 = vadd.xlane.f32.xlu0 %v92
  %v94 = vpop.xlane.xlu0 %93
  %v95 = vsel %vm91, %v86, 0.0
  %96 = vadd.xlane.f32.xlu0 %v95
  %v97 = vpop.xlane.xlu0 %96
  %v98 = vsel %vm91, %v87, 0.0
  %99 = vadd.xlane.f32.xlu0 %v98
  %v100 = vpop.xlane.xlu0 %99
  %v101 = vsel %vm91, %v88, 0.0
  %102 = vadd.xlane.f32.xlu0 %v101
  %v103 = vpop.xlane.xlu0 %102
  %v104 = vrcp.pop 64.0
  %v105 = vmul.f32 64.0, %v104
  %v106 = vsub.f32 1.0, %v105
  %v107 = vmul.f32 %v104, %v106
  %v108 = vadd.f32 %v104, %v107
  %vm109 = vweird.f32 %v104
  %v110 = vsel %vm109, %v104, %v108
  %v111 = vmul.f32 %v94, %v110
  %v112 = vmul.f32 %v97, %v110
  %v113 = vmul.f32 %v100, %v110
  %v114 = vmul.f32 %v103, %v110
  %v115 = vsub.f32 %v85, %v111
  %v116 = vsub.f32 %v86, %v112
  %v117 = vsub.f32 %v87, %v113
  %v118 = vsub.f32 %v88, %v114
  %v119 = vmul.f32 %v115, %v115
  %v120 = vmul.f32 %v116, %v116
  %v121 = vmul.f32 %v117, %v117
  %v122 = vmul.f32 %v118, %v118
  %v123 = vsel %vm91, %v119, 0.0
  %124 = vadd.xlane.f32.xlu0 %v123
  %v125 = vpop.xlane.xlu0 %124
  %v126 = vsel %vm91, %v120, 0.0
  %127 = vadd.xlane.f32.xlu0 %v126
  %v128 = vpop.xlane.xlu0 %127
  %v129 = vsel %vm91, %v121, 0.0
  %130 = vadd.xlane.f32.xlu0 %v129
  %v131 = vpop.xlane.xlu0 %130
  %v132 = vsel %vm91, %v122, 0.0
  %133 = vadd.xlane.f32.xlu0 %v132
  %v134 = vpop.xlane.xlu0 %133
  %v135 = vmul.f32 %v125, %v110
  %v136 = vmul.f32 %v128, %v110
  %v137 = vmul.f32 %v131, %v110
  %v138 = vmul.f32 %v134, %v110
  %v139 = vadd.f32 %v135, 1e-05
  %v140 = vadd.f32 %v136, 1e-05
  %v141 = vadd.f32 %v137, 1e-05
  %v142 = vadd.f32 %v138, 1e-05
  %v143 = vrsqrt.pop %v139
  %v144 = vmul.f32 %v143, %v139
  %v145 = vmul.f32 %v144, %v143
  %v146 = vmul.f32 0.5, %v145
  %v147 = vsub.f32 1.5, %v146
  %v148 = vmul.f32 %v143, %v147
  %vm149 = vweird.f32 %v139
  %vm150 = vweird.f32 %v143
  %vm151 = vmor %vm149, %vm150
  %v152 = vsel %vm151, %v143, %v148
  %v153 = vrsqrt.pop %v140
  %v154 = vmul.f32 %v153, %v140
  %v155 = vmul.f32 %v154, %v153
  %v156 = vmul.f32 0.5, %v155
  %v157 = vsub.f32 1.5, %v156
  %v158 = vmul.f32 %v153, %v157
  %vm159 = vweird.f32 %v140
  %vm160 = vweird.f32 %v153
  %vm161 = vmor %vm159, %vm160
  %v162 = vsel %vm161, %v153, %v158
  %v163 = vrsqrt.pop %v141
  %v164 = vmul.f32 %v163, %v141
  %v165 = vmul.f32 %v164, %v163
  %v166 = vmul.f32 0.5, %v165
  %v167 = vsub.f32 1.5, %v166
  %v168 = vmul.f32 %v163, %v167
  %vm169 = vweird.f32 %v141
  %vm170 = vweird.f32 %v163
  %vm171 = vmor %vm169, %vm170
  %v172 = vsel %vm171, %v163, %v168
  %v173 = vrsqrt.pop %v142
  %v174 = vmul.f32 %v173, %v142
  %v175 = vmul.f32 %v174, %v173
  %v176 = vmul.f32 0.5, %v175
  %v177 = vsub.f32 1.5, %v176
  %v178 = vmul.f32 %v173, %v177
  %vm179 = vweird.f32 %v142
  %vm180 = vweird.f32 %v173
  %vm181 = vmor %vm179, %vm180
  %v182 = vsel %vm181, %v173, %v178
  %v183 = vmul.f32 %v115, %v152
  %v184 = vmul.f32 %v116, %v162
  %v185 = vmul.f32 %v117, %v172
  %v186 = vmul.f32 %v118, %v182
  %v188 = vperm.slane %v89, 0
  %v190 = vmul.f32 %v183, %v188
  %v191 = vmul.f32 %v184, %v188
  %v192 = vmul.f32 %v185, %v188
  %v193 = vmul.f32 %v186, %v188
  %v195 = vperm.slane %v90, 0
  %v197 = vadd.f32 %v190, %v195
  %v198 = vadd.f32 %v191, %v195
  %v199 = vadd.f32 %v192, %v195
  %v200 = vadd.f32 %v193, %v195
  %v201 = vld [vmem:[%s3] sm:$0xff]
  %v202 = vld [vmem:[%s3 + $0x8] sm:$0xff]
  %v203 = vld [vmem:[%s3 + $0x10] sm:$0xff]
  %v204 = vld [vmem:[%s3 + $0x18] sm:$0xff]
  %v205 = vld [vmem:[%s3 + $0x20] sm:$0xff]
  %v206 = vld [vmem:[%s3 + $0x28] sm:$0xff]
  %v207 = vld [vmem:[%s3 + $0x30] sm:$0xff]
  %v208 = vld [vmem:[%s3 + $0x38] sm:$0xff]
  %v209 = vld [vmem:[%s4] sm:$0x1]
  %v211 = vperm.slane %v209, 0
  %v214 = vsel %vm91, %v197, 0
  %v217 = vsel %vm91, %v198, 0
  %v220 = vsel %vm91, %v199, 0
  %v223 = vsel %vm91, %v200, 0
  %225 = vmatpush.msra.mxu0 0.0
  %226 = vmatpush.msra.mxu0 0.0
  %227 = vmatpush.msra.mxu0 0.0
  %228 = vmatpush.msra.mxu0 0.0
  %229 = vmatpush.msra.mxu0 0.0
  %230 = vmatpush.msra.mxu0 0.0
  %231 = vmatpush.msra.mxu0 0.0
  %232 = vmatpush.msra.mxu0 0.0
  %233 = vmatpush.msra.mxu0 %v208
  %234 = vmatpush.msra.mxu0 %v207
  %235 = vmatpush.msra.mxu0 %v206
  %236 = vmatpush.msra.mxu0 %v205
  %237 = vmatpush.msra.mxu0 %v204
  %238 = vmatpush.msra.mxu0 %v203
  %239 = vmatpush.msra.mxu0 %v202
  %240 = vmatpush.msra.mxu0 %v201
  %241 = vmatmul.f32.gmra.mxu0 %v214
  %v242 = vpop.f32.mrf.mxu0
  %v243 = vadd.f32 %v211, %v242
  %244 = vmatmul.f32.gmra.mxu0 %v217
  %v245 = vpop.f32.mrf.mxu0
  %v246 = vadd.f32 %v211, %v245
  %247 = vmatmul.f32.gmra.mxu0 %v220
  %v248 = vpop.f32.mrf.mxu0
  %v249 = vadd.f32 %v211, %v248
  %250 = vmatmul.f32.gmra.mxu0 %v223
  %v251 = vpop.f32.mrf.mxu0
  %v252 = vadd.f32 %v211, %v251
  %253 = vdwg.mxu0
  %v254 = vld [vmem:[%s5] sm:$0xff]
  %v255 = vld [vmem:[%s5 + $0x8] sm:$0xff]
  %v256 = vld [vmem:[%s5 + $0x10] sm:$0xff]
  %v257 = vld [vmem:[%s5 + $0x18] sm:$0xff]
  %v258 = vld [vmem:[%s5 + $0x20] sm:$0xff]
  %v259 = vld [vmem:[%s5 + $0x28] sm:$0xff]
  %v260 = vld [vmem:[%s5 + $0x30] sm:$0xff]
  %v261 = vld [vmem:[%s5 + $0x38] sm:$0xff]
  %v262 = vld [vmem:[%s6] sm:$0x1]
  %v264 = vperm.slane %v262, 0
  %266 = vmatpush.msra.mxu0 0.0
  %267 = vmatpush.msra.mxu0 0.0
  %268 = vmatpush.msra.mxu0 0.0
  %269 = vmatpush.msra.mxu0 0.0
  %270 = vmatpush.msra.mxu0 0.0
  %271 = vmatpush.msra.mxu0 0.0
  %272 = vmatpush.msra.mxu0 0.0
  %273 = vmatpush.msra.mxu0 0.0
  %274 = vmatpush.msra.mxu0 %v261
  %275 = vmatpush.msra.mxu0 %v260
  %276 = vmatpush.msra.mxu0 %v259
  %277 = vmatpush.msra.mxu0 %v258
  %278 = vmatpush.msra.mxu0 %v257
  %279 = vmatpush.msra.mxu0 %v256
  %280 = vmatpush.msra.mxu0 %v255
  %281 = vmatpush.msra.mxu0 %v254
  %282 = vmatmul.f32.gmra.mxu0 %v214
  %v283 = vpop.f32.mrf.mxu0
  %v284 = vadd.f32 %v264, %v283
  %285 = vmatmul.f32.gmra.mxu0 %v217
  %v286 = vpop.f32.mrf.mxu0
  %v287 = vadd.f32 %v264, %v286
  %288 = vmatmul.f32.gmra.mxu0 %v220
  %v289 = vpop.f32.mrf.mxu0
  %v290 = vadd.f32 %v264, %v289
  %291 = vmatmul.f32.gmra.mxu0 %v223
  %v292 = vpop.f32.mrf.mxu0
  %v293 = vadd.f32 %v264, %v292
  %294 = vdwg.mxu0
  %v295 = vld [vmem:[%s7] sm:$0xff]
  %v296 = vld [vmem:[%s7 + $0x8] sm:$0xff]
  %v297 = vld [vmem:[%s7 + $0x10] sm:$0xff]
  %v298 = vld [vmem:[%s7 + $0x18] sm:$0xff]
  %v299 = vld [vmem:[%s7 + $0x20] sm:$0xff]
  %v300 = vld [vmem:[%s7 + $0x28] sm:$0xff]
  %v301 = vld [vmem:[%s7 + $0x30] sm:$0xff]
  %v302 = vld [vmem:[%s7 + $0x38] sm:$0xff]
  %v303 = vld [vmem:[%s8] sm:$0x1]
  %v305 = vperm.slane %v303, 0
  %307 = vmatpush.msra.mxu0 0.0
  %308 = vmatpush.msra.mxu0 0.0
  %309 = vmatpush.msra.mxu0 0.0
  %310 = vmatpush.msra.mxu0 0.0
  %311 = vmatpush.msra.mxu0 0.0
  %312 = vmatpush.msra.mxu0 0.0
  %313 = vmatpush.msra.mxu0 0.0
  %314 = vmatpush.msra.mxu0 0.0
  %315 = vmatpush.msra.mxu0 %v302
  %316 = vmatpush.msra.mxu0 %v301
  %317 = vmatpush.msra.mxu0 %v300
  %318 = vmatpush.msra.mxu0 %v299
  %319 = vmatpush.msra.mxu0 %v298
  %320 = vmatpush.msra.mxu0 %v297
  %321 = vmatpush.msra.mxu0 %v296
  %322 = vmatpush.msra.mxu0 %v295
  %323 = vmatmul.f32.gmra.mxu0 %v214
  %v324 = vpop.f32.mrf.mxu0
  %v325 = vadd.f32 %v305, %v324
  %326 = vmatmul.f32.gmra.mxu0 %v217
  %v327 = vpop.f32.mrf.mxu0
  %v328 = vadd.f32 %v305, %v327
  %329 = vmatmul.f32.gmra.mxu0 %v220
  %v330 = vpop.f32.mrf.mxu0
  %v331 = vadd.f32 %v305, %v330
  %332 = vmatmul.f32.gmra.mxu0 %v223
  %v333 = vpop.f32.mrf.mxu0
  %v334 = vadd.f32 %v305, %v333
  %335 = vdwg.mxu0
  %vm336 = vcmask 130048
  %v338 = vsel %vm336, %v243, 0
  %v341 = vsel %vm336, %v246, 0
  %v344 = vsel %vm336, %v249, 0
  %v347 = vsel %vm336, %v252, 0
  %v350 = vsel %vm336, %v284, 0
  %v353 = vsel %vm336, %v287, 0
  %v356 = vsel %vm336, %v290, 0
  %v359 = vsel %vm336, %v293, 0
  %361 = vmatpush.xpose.msra.mxu0 0.0
  %362 = vmatpush.xpose.msra.mxu0 0.0
  %363 = vmatpush.xpose.msra.mxu0 0.0
  %364 = vmatpush.xpose.msra.mxu0 0.0
  %365 = vmatpush.xpose.msra.mxu0 0.0
  %366 = vmatpush.xpose.msra.mxu0 0.0
  %367 = vmatpush.xpose.msra.mxu0 0.0
  %368 = vmatpush.xpose.msra.mxu0 0.0
  %369 = vmatpush.xpose.msra.mxu0 0.0
  %370 = vmatpush.xpose.msra.mxu0 0.0
  %371 = vmatpush.xpose.msra.mxu0 0.0
  %372 = vmatpush.xpose.msra.mxu0 0.0
  %373 = vmatpush.xpose.msra.mxu0 %v359
  %374 = vmatpush.xpose.msra.mxu0 %v356
  %375 = vmatpush.xpose.msra.mxu0 %v353
  %376 = vmatpush.xpose.msra.mxu0 %v350
  %377 = vmatmul.f32.gmra.mxu0 %v338
  %v378 = vpop.f32.mrf.mxu0
  %v379 = vadd.f32 0.0, %v378
  %380 = vmatmul.f32.gmra.mxu0 %v341
  %v381 = vpop.f32.mrf.mxu0
  %v382 = vadd.f32 0.0, %v381
  %383 = vmatmul.f32.gmra.mxu0 %v344
  %v384 = vpop.f32.mrf.mxu0
  %v385 = vadd.f32 0.0, %v384
  %386 = vmatmul.f32.gmra.mxu0 %v347
  %v387 = vpop.f32.mrf.mxu0
  %v388 = vadd.f32 0.0, %v387
  %389 = vdwg.mxu0
  %v390 = vmul.f32 %v379, 0.25
  %v391 = vmul.f32 %v382, 0.25
  %v392 = vmul.f32 %v385, 0.25
  %v393 = vmul.f32 %v388, 0.25
  %v394 = vld [vmem:[%s9] sm:$0xff]
  %v395 = vld [vmem:[%s9 + $0x8] sm:$0xff]
  %v396 = vld [vmem:[%s9 + $0x10] sm:$0xff]
  %v397 = vld [vmem:[%s9 + $0x18] sm:$0xff]
  %v398 = vadd.f32 %v390, %v394
  %v399 = vadd.f32 %v391, %v395
  %v400 = vadd.f32 %v392, %v396
  %v401 = vadd.f32 %v393, %v397
  %vm402 = vcmask 261120
  %v403 = vsel %vm402, %v398, -inf
  %404 = vmax.xlane.f32.xlu0 %v403
  %v405 = vpop.xlane.xlu0 %404
  %v406 = vsel %vm402, %v399, -inf
  %407 = vmax.xlane.f32.xlu0 %v406
  %v408 = vpop.xlane.xlu0 %407
  %v409 = vsel %vm402, %v400, -inf
  %410 = vmax.xlane.f32.xlu0 %v409
  %v411 = vpop.xlane.xlu0 %410
  %v412 = vsel %vm402, %v401, -inf
  %413 = vmax.xlane.f32.xlu0 %v412
  %v414 = vpop.xlane.xlu0 %413
  %v415 = vsub.f32 %v398, %v405
  %v416 = vsub.f32 %v399, %v408
  %v417 = vsub.f32 %v400, %v411
  %v418 = vsub.f32 %v401, %v414
  %v419 = vmul.f32 %v415, 1.442695
  %v420 = vpow.pop %v419
  %v421 = vmul.f32 %v416, 1.442695
  %v422 = vpow.pop %v421
  %v423 = vmul.f32 %v417, 1.442695
  %v424 = vpow.pop %v423
  %v425 = vmul.f32 %v418, 1.442695
  %v426 = vpow.pop %v425
  %v427 = vsel %vm402, %v420, 0.0
  %428 = vadd.xlane.f32.xlu0 %v427
  %v429 = vpop.xlane.xlu0 %428
  %v430 = vsel %vm402, %v422, 0.0
  %431 = vadd.xlane.f32.xlu0 %v430
  %v432 = vpop.xlane.xlu0 %431
  %v433 = vsel %vm402, %v424, 0.0
  %434 = vadd.xlane.f32.xlu0 %v433
  %v435 = vpop.xlane.xlu0 %434
  %v436 = vsel %vm402, %v426, 0.0
  %437 = vadd.xlane.f32.xlu0 %v436
  %v438 = vpop.xlane.xlu0 %437
  %v439 = vrcp.pop %v429
  %v440 = vrcp.pop %v432
  %v441 = vrcp.pop %v435
  %v442 = vrcp.pop %v438
  %v443 = vmul.f32 %v420, %v439
  %v444 = vmul.f32 %v422, %v440
  %v445 = vmul.f32 %v424, %v441
  %v446 = vmul.f32 %v426, %v442
  %v448 = vsel %vm402, %v443, 0
  %v451 = vsel %vm402, %v444, 0
  %v454 = vsel %vm402, %v445, 0
  %v457 = vsel %vm402, %v446, 0
  %459 = vmatpush.msra.mxu0 0.0
  %460 = vmatpush.msra.mxu0 0.0
  %461 = vmatpush.msra.mxu0 0.0
  %462 = vmatpush.msra.mxu0 0.0
  %463 = vmatpush.msra.mxu0 0.0
  %464 = vmatpush.msra.mxu0 0.0
  %465 = vmatpush.msra.mxu0 0.0
  %466 = vmatpush.msra.mxu0 0.0
  %467 = vmatpush.msra.mxu0 0.0
  %468 = vmatpush.msra.mxu0 0.0
  %469 = vmatpush.msra.mxu0 0.0
  %470 = vmatpush.msra.mxu0 0.0
  %471 = vmatpush.msra.mxu0 %v334
  %472 = vmatpush.msra.mxu0 %v331
  %473 = vmatpush.msra.mxu0 %v328
  %474 = vmatpush.msra.mxu0 %v325
  %475 = vmatmul.f32.gmra.mxu0 %v448
  %v476 = vpop.f32.mrf.mxu0
  %v477 = vadd.f32 0.0, %v476
  %478 = vmatmul.f32.gmra.mxu0 %v451
  %v479 = vpop.f32.mrf.mxu0
  %v480 = vadd.f32 0.0, %v479
  %481 = vmatmul.f32.gmra.mxu0 %v454
  %v482 = vpop.f32.mrf.mxu0
  %v483 = vadd.f32 0.0, %v482
  %484 = vmatmul.f32.gmra.mxu0 %v457
  %v485 = vpop.f32.mrf.mxu0
  %v486 = vadd.f32 0.0, %v485
  %487 = vdwg.mxu0
  %v488 = vld [vmem:[%s10] sm:$0xff]
  %v489 = vld [vmem:[%s10 + $0x8] sm:$0xff]
  %s490 = scalar_lea.vmem %s3, 64
  %v491 = vld [vmem:[%s490] sm:$0xff]
  %v492 = vld [vmem:[%s490 + $0x8] sm:$0xff]
  %v493 = vld [vmem:[%s490 + $0x10] sm:$0xff]
  %v494 = vld [vmem:[%s490 + $0x18] sm:$0xff]
  %v495 = vld [vmem:[%s490 + $0x20] sm:$0xff]
  %v496 = vld [vmem:[%s490 + $0x28] sm:$0xff]
  %v497 = vld [vmem:[%s490 + $0x30] sm:$0xff]
  %v498 = vld [vmem:[%s490 + $0x38] sm:$0xff]
  %s499 = scalar_lea.vmem %s4, 1
  %v500 = vld [vmem:[%s499] sm:$0x1]
  %v502 = vperm.slane %v500, 0
  %504 = vmatpush.msra.mxu0 0.0
  %505 = vmatpush.msra.mxu0 0.0
  %506 = vmatpush.msra.mxu0 0.0
  %507 = vmatpush.msra.mxu0 0.0
  %508 = vmatpush.msra.mxu0 0.0
  %509 = vmatpush.msra.mxu0 0.0
  %510 = vmatpush.msra.mxu0 0.0
  %511 = vmatpush.msra.mxu0 0.0
  %512 = vmatpush.msra.mxu0 %v498
  %513 = vmatpush.msra.mxu0 %v497
  %514 = vmatpush.msra.mxu0 %v496
  %515 = vmatpush.msra.mxu0 %v495
  %516 = vmatpush.msra.mxu0 %v494
  %517 = vmatpush.msra.mxu0 %v493
  %518 = vmatpush.msra.mxu0 %v492
  %519 = vmatpush.msra.mxu0 %v491
  %520 = vmatmul.f32.gmra.mxu0 %v214
  %v521 = vpop.f32.mrf.mxu0
  %v522 = vadd.f32 %v502, %v521
  %523 = vmatmul.f32.gmra.mxu0 %v217
  %v524 = vpop.f32.mrf.mxu0
  %v525 = vadd.f32 %v502, %v524
  %526 = vmatmul.f32.gmra.mxu0 %v220
  %v527 = vpop.f32.mrf.mxu0
  %v528 = vadd.f32 %v502, %v527
  %529 = vmatmul.f32.gmra.mxu0 %v223
  %v530 = vpop.f32.mrf.mxu0
  %v531 = vadd.f32 %v502, %v530
  %532 = vdwg.mxu0
  %s533 = scalar_lea.vmem %s5, 64
  %v534 = vld [vmem:[%s533] sm:$0xff]
  %v535 = vld [vmem:[%s533 + $0x8] sm:$0xff]
  %v536 = vld [vmem:[%s533 + $0x10] sm:$0xff]
  %v537 = vld [vmem:[%s533 + $0x18] sm:$0xff]
  %v538 = vld [vmem:[%s533 + $0x20] sm:$0xff]
  %v539 = vld [vmem:[%s533 + $0x28] sm:$0xff]
  %v540 = vld [vmem:[%s533 + $0x30] sm:$0xff]
  %v541 = vld [vmem:[%s533 + $0x38] sm:$0xff]
  %s542 = scalar_lea.vmem %s6, 1
  %v543 = vld [vmem:[%s542] sm:$0x1]
  %v545 = vperm.slane %v543, 0
  %547 = vmatpush.msra.mxu0 0.0
  %548 = vmatpush.msra.mxu0 0.0
  %549 = vmatpush.msra.mxu0 0.0
  %550 = vmatpush.msra.mxu0 0.0
  %551 = vmatpush.msra.mxu0 0.0
  %552 = vmatpush.msra.mxu0 0.0
  %553 = vmatpush.msra.mxu0 0.0
  %554 = vmatpush.msra.mxu0 0.0
  %555 = vmatpush.msra.mxu0 %v541
  %556 = vmatpush.msra.mxu0 %v540
  %557 = vmatpush.msra.mxu0 %v539
  %558 = vmatpush.msra.mxu0 %v538
  %559 = vmatpush.msra.mxu0 %v537
  %560 = vmatpush.msra.mxu0 %v536
  %561 = vmatpush.msra.mxu0 %v535
  %562 = vmatpush.msra.mxu0 %v534
  %563 = vmatmul.f32.gmra.mxu0 %v214
  %v564 = vpop.f32.mrf.mxu0
  %v565 = vadd.f32 %v545, %v564
  %566 = vmatmul.f32.gmra.mxu0 %v217
  %v567 = vpop.f32.mrf.mxu0
  %v568 = vadd.f32 %v545, %v567
  %569 = vmatmul.f32.gmra.mxu0 %v220
  %v570 = vpop.f32.mrf.mxu0
  %v571 = vadd.f32 %v545, %v570
  %572 = vmatmul.f32.gmra.mxu0 %v223
  %v573 = vpop.f32.mrf.mxu0
  %v574 = vadd.f32 %v545, %v573
  %575 = vdwg.mxu0
  %s576 = scalar_lea.vmem %s7, 64
  %v577 = vld [vmem:[%s576] sm:$0xff]
  %v578 = vld [vmem:[%s576 + $0x8] sm:$0xff]
  %v579 = vld [vmem:[%s576 + $0x10] sm:$0xff]
  %v580 = vld [vmem:[%s576 + $0x18] sm:$0xff]
  %v581 = vld [vmem:[%s576 + $0x20] sm:$0xff]
  %v582 = vld [vmem:[%s576 + $0x28] sm:$0xff]
  %v583 = vld [vmem:[%s576 + $0x30] sm:$0xff]
  %v584 = vld [vmem:[%s576 + $0x38] sm:$0xff]
  %s585 = scalar_lea.vmem %s8, 1
  %v586 = vld [vmem:[%s585] sm:$0x1]
  %v588 = vperm.slane %v586, 0
  %590 = vmatpush.msra.mxu0 0.0
  %591 = vmatpush.msra.mxu0 0.0
  %592 = vmatpush.msra.mxu0 0.0
  %593 = vmatpush.msra.mxu0 0.0
  %594 = vmatpush.msra.mxu0 0.0
  %595 = vmatpush.msra.mxu0 0.0
  %596 = vmatpush.msra.mxu0 0.0
  %597 = vmatpush.msra.mxu0 0.0
  %598 = vmatpush.msra.mxu0 %v584
  %599 = vmatpush.msra.mxu0 %v583
  %600 = vmatpush.msra.mxu0 %v582
  %601 = vmatpush.msra.mxu0 %v581
  %602 = vmatpush.msra.mxu0 %v580
  %603 = vmatpush.msra.mxu0 %v579
  %604 = vmatpush.msra.mxu0 %v578
  %605 = vmatpush.msra.mxu0 %v577
  %606 = vmatmul.f32.gmra.mxu0 %v214
  %v607 = vpop.f32.mrf.mxu0
  %v608 = vadd.f32 %v588, %v607
  %609 = vmatmul.f32.gmra.mxu0 %v217
  %v610 = vpop.f32.mrf.mxu0
  %v611 = vadd.f32 %v588, %v610
  %612 = vmatmul.f32.gmra.mxu0 %v220
  %v613 = vpop.f32.mrf.mxu0
  %v614 = vadd.f32 %v588, %v613
  %615 = vmatmul.f32.gmra.mxu0 %v223
  %v616 = vpop.f32.mrf.mxu0
  %v617 = vadd.f32 %v588, %v616
  %618 = vdwg.mxu0
  %v620 = vsel %vm336, %v522, 0
  %v623 = vsel %vm336, %v525, 0
  %v626 = vsel %vm336, %v528, 0
  %v629 = vsel %vm336, %v531, 0
  %v632 = vsel %vm336, %v565, 0
  %v635 = vsel %vm336, %v568, 0
  %v638 = vsel %vm336, %v571, 0
  %v641 = vsel %vm336, %v574, 0
  %643 = vmatpush.xpose.msra.mxu0 0.0
  %644 = vmatpush.xpose.msra.mxu0 0.0
  %645 = vmatpush.xpose.msra.mxu0 0.0
  %646 = vmatpush.xpose.msra.mxu0 0.0
  %647 = vmatpush.xpose.msra.mxu0 0.0
  %648 = vmatpush.xpose.msra.mxu0 0.0
  %649 = vmatpush.xpose.msra.mxu0 0.0
  %650 = vmatpush.xpose.msra.mxu0 0.0
  %651 = vmatpush.xpose.msra.mxu0 0.0
  %652 = vmatpush.xpose.msra.mxu0 0.0
  %653 = vmatpush.xpose.msra.mxu0 0.0
  %654 = vmatpush.xpose.msra.mxu0 0.0
  %655 = vmatpush.xpose.msra.mxu0 %v641
  %656 = vmatpush.xpose.msra.mxu0 %v638
  %657 = vmatpush.xpose.msra.mxu0 %v635
  %658 = vmatpush.xpose.msra.mxu0 %v632
  %659 = vmatmul.f32.gmra.mxu0 %v620
  %v660 = vpop.f32.mrf.mxu0
  %v661 = vadd.f32 0.0, %v660
  %662 = vmatmul.f32.gmra.mxu0 %v623
  %v663 = vpop.f32.mrf.mxu0
  %v664 = vadd.f32 0.0, %v663
  %665 = vmatmul.f32.gmra.mxu0 %v626
  %v666 = vpop.f32.mrf.mxu0
  %v667 = vadd.f32 0.0, %v666
  %668 = vmatmul.f32.gmra.mxu0 %v629
  %v669 = vpop.f32.mrf.mxu0
  %v670 = vadd.f32 0.0, %v669
  %671 = vdwg.mxu0
  %v672 = vmul.f32 %v661, 0.25
  %v673 = vmul.f32 %v664, 0.25
  %v674 = vmul.f32 %v667, 0.25
  %v675 = vmul.f32 %v670, 0.25
  %s676 = scalar_lea.vmem %s9, 32
  %v677 = vld [vmem:[%s676] sm:$0xff]
  %v678 = vld [vmem:[%s676 + $0x8] sm:$0xff]
  %v679 = vld [vmem:[%s676 + $0x10] sm:$0xff]
  %v680 = vld [vmem:[%s676 + $0x18] sm:$0xff]
  %v681 = vadd.f32 %v672, %v677
  %v682 = vadd.f32 %v673, %v678
  %v683 = vadd.f32 %v674, %v679
  %v684 = vadd.f32 %v675, %v680
  %v685 = vsel %vm402, %v681, -inf
  %686 = vmax.xlane.f32.xlu0 %v685
  %v687 = vpop.xlane.xlu0 %686
  %v688 = vsel %vm402, %v682, -inf
  %689 = vmax.xlane.f32.xlu0 %v688
  %v690 = vpop.xlane.xlu0 %689
  %v691 = vsel %vm402, %v683, -inf
  %692 = vmax.xlane.f32.xlu0 %v691
  %v693 = vpop.xlane.xlu0 %692
  %v694 = vsel %vm402, %v684, -inf
  %695 = vmax.xlane.f32.xlu0 %v694
  %v696 = vpop.xlane.xlu0 %695
  %v697 = vsub.f32 %v681, %v687
  %v698 = vsub.f32 %v682, %v690
  %v699 = vsub.f32 %v683, %v693
  %v700 = vsub.f32 %v684, %v696
  %v701 = vmul.f32 %v697, 1.442695
  %v702 = vpow.pop %v701
  %v703 = vmul.f32 %v698, 1.442695
  %v704 = vpow.pop %v703
  %v705 = vmul.f32 %v699, 1.442695
  %v706 = vpow.pop %v705
  %v707 = vmul.f32 %v700, 1.442695
  %v708 = vpow.pop %v707
  %v709 = vsel %vm402, %v702, 0.0
  %710 = vadd.xlane.f32.xlu0 %v709
  %v711 = vpop.xlane.xlu0 %710
  %v712 = vsel %vm402, %v704, 0.0
  %713 = vadd.xlane.f32.xlu0 %v712
  %v714 = vpop.xlane.xlu0 %713
  %v715 = vsel %vm402, %v706, 0.0
  %716 = vadd.xlane.f32.xlu0 %v715
  %v717 = vpop.xlane.xlu0 %716
  %v718 = vsel %vm402, %v708, 0.0
  %719 = vadd.xlane.f32.xlu0 %v718
  %v720 = vpop.xlane.xlu0 %719
  %v721 = vrcp.pop %v711
  %v722 = vrcp.pop %v714
  %v723 = vrcp.pop %v717
  %v724 = vrcp.pop %v720
  %v725 = vmul.f32 %v702, %v721
  %v726 = vmul.f32 %v704, %v722
  %v727 = vmul.f32 %v706, %v723
  %v728 = vmul.f32 %v708, %v724
  %v730 = vsel %vm402, %v725, 0
  %v733 = vsel %vm402, %v726, 0
  %v736 = vsel %vm402, %v727, 0
  %v739 = vsel %vm402, %v728, 0
  %741 = vmatpush.msra.mxu0 0.0
  %742 = vmatpush.msra.mxu0 0.0
  %743 = vmatpush.msra.mxu0 0.0
  %744 = vmatpush.msra.mxu0 0.0
  %745 = vmatpush.msra.mxu0 0.0
  %746 = vmatpush.msra.mxu0 0.0
  %747 = vmatpush.msra.mxu0 0.0
  %748 = vmatpush.msra.mxu0 0.0
  %749 = vmatpush.msra.mxu0 0.0
  %750 = vmatpush.msra.mxu0 0.0
  %751 = vmatpush.msra.mxu0 0.0
  %752 = vmatpush.msra.mxu0 0.0
  %753 = vmatpush.msra.mxu0 %v617
  %754 = vmatpush.msra.mxu0 %v614
  %755 = vmatpush.msra.mxu0 %v611
  %756 = vmatpush.msra.mxu0 %v608
  %757 = vmatmul.f32.gmra.mxu0 %v730
  %v758 = vpop.f32.mrf.mxu0
  %v759 = vadd.f32 0.0, %v758
  %760 = vmatmul.f32.gmra.mxu0 %v733
  %v761 = vpop.f32.mrf.mxu0
  %v762 = vadd.f32 0.0, %v761
  %763 = vmatmul.f32.gmra.mxu0 %v736
  %v764 = vpop.f32.mrf.mxu0
  %v765 = vadd.f32 0.0, %v764
  %766 = vmatmul.f32.gmra.mxu0 %v739
  %v767 = vpop.f32.mrf.mxu0
  %v768 = vadd.f32 0.0, %v767
  %769 = vdwg.mxu0
  %s770 = scalar_lea.vmem %s10, 16
  %v771 = vld [vmem:[%s770] sm:$0xff]
  %v772 = vld [vmem:[%s770 + $0x8] sm:$0xff]
  %v774 = vsel %vm336, %v759, 0
  %v777 = vsel %vm336, %v762, 0
  %v780 = vsel %vm336, %v765, 0
  %v783 = vsel %vm336, %v768, 0
  %785 = vmatpush.msra.mxu0 0.0
  %786 = vmatpush.msra.mxu0 0.0
  %787 = vmatpush.msra.mxu0 0.0
  %788 = vmatpush.msra.mxu0 0.0
  %789 = vmatpush.msra.mxu0 0.0
  %790 = vmatpush.msra.mxu0 0.0
  %791 = vmatpush.msra.mxu0 0.0
  %792 = vmatpush.msra.mxu0 0.0
  %793 = vmatpush.msra.mxu0 0.0
  %794 = vmatpush.msra.mxu0 0.0
  %795 = vmatpush.msra.mxu0 0.0
  %796 = vmatpush.msra.mxu0 0.0
  %797 = vmatpush.msra.mxu0 0.0
  %798 = vmatpush.msra.mxu0 0.0
  %799 = vmatpush.msra.mxu0 %v772
  %800 = vmatpush.msra.mxu0 %v771
  %801 = vmatmul.f32.gmra.mxu0 %v774
  %v802 = vpop.f32.mrf.mxu0
  %v803 = vadd.f32 0.0, %v802
  %804 = vmatmul.f32.gmra.mxu0 %v777
  %v805 = vpop.f32.mrf.mxu0
  %v806 = vadd.f32 0.0, %v805
  %807 = vmatmul.f32.gmra.mxu0 %v780
  %v808 = vpop.f32.mrf.mxu0
  %v809 = vadd.f32 0.0, %v808
  %810 = vmatmul.f32.gmra.mxu0 %v783
  %v811 = vpop.f32.mrf.mxu0
  %v812 = vadd.f32 0.0, %v811
  %813 = vdwg.mxu0
  %v815 = vsel %vm336, %v477, 0
  %v818 = vsel %vm336, %v480, 0
  %v821 = vsel %vm336, %v483, 0
  %v824 = vsel %vm336, %v486, 0
  %826 = vmatpush.msra.mxu0 0.0
  %827 = vmatpush.msra.mxu0 0.0
  %828 = vmatpush.msra.mxu0 0.0
  %829 = vmatpush.msra.mxu0 0.0
  %830 = vmatpush.msra.mxu0 0.0
  %831 = vmatpush.msra.mxu0 0.0
  %832 = vmatpush.msra.mxu0 0.0
  %833 = vmatpush.msra.mxu0 0.0
  %834 = vmatpush.msra.mxu0 0.0
  %835 = vmatpush.msra.mxu0 0.0
  %836 = vmatpush.msra.mxu0 0.0
  %837 = vmatpush.msra.mxu0 0.0
  %838 = vmatpush.msra.mxu0 0.0
  %839 = vmatpush.msra.mxu0 0.0
  %840 = vmatpush.msra.mxu0 %v489
  %841 = vmatpush.msra.mxu0 %v488
  %842 = vmatmul.f32.gmra.mxu0 %v815
  %v843 = vpop.f32.mrf.mxu0
  %v844 = vadd.f32 %v803, %v843
  %845 = vmatmul.f32.gmra.mxu0 %v818
  %v846 = vpop.f32.mrf.mxu0
  %v847 = vadd.f32 %v806, %v846
  %848 = vmatmul.f32.gmra.mxu0 %v821
  %v849 = vpop.f32.mrf.mxu0
  %v850 = vadd.f32 %v809, %v849
  %851 = vmatmul.f32.gmra.mxu0 %v824
  %v852 = vpop.f32.mrf.mxu0
  %v853 = vadd.f32 %v812, %v852
  %854 = vdwg.mxu0
  %s855 = scalar_lea.vmem %s3, 128
  %v856 = vld [vmem:[%s855] sm:$0xff]
  %v857 = vld [vmem:[%s855 + $0x8] sm:$0xff]
  %v858 = vld [vmem:[%s855 + $0x10] sm:$0xff]
  %v859 = vld [vmem:[%s855 + $0x18] sm:$0xff]
  %v860 = vld [vmem:[%s855 + $0x20] sm:$0xff]
  %v861 = vld [vmem:[%s855 + $0x28] sm:$0xff]
  %v862 = vld [vmem:[%s855 + $0x30] sm:$0xff]
  %v863 = vld [vmem:[%s855 + $0x38] sm:$0xff]
  %s864 = scalar_lea.vmem %s4, 2
  %v865 = vld [vmem:[%s864] sm:$0x1]
  %v867 = vperm.slane %v865, 0
  %869 = vmatpush.msra.mxu0 0.0
  %870 = vmatpush.msra.mxu0 0.0
  %871 = vmatpush.msra.mxu0 0.0
  %872 = vmatpush.msra.mxu0 0.0
  %873 = vmatpush.msra.mxu0 0.0
  %874 = vmatpush.msra.mxu0 0.0
  %875 = vmatpush.msra.mxu0 0.0
  %876 = vmatpush.msra.mxu0 0.0
  %877 = vmatpush.msra.mxu0 %v863
  %878 = vmatpush.msra.mxu0 %v862
  %879 = vmatpush.msra.mxu0 %v861
  %880 = vmatpush.msra.mxu0 %v860
  %881 = vmatpush.msra.mxu0 %v859
  %882 = vmatpush.msra.mxu0 %v858
  %883 = vmatpush.msra.mxu0 %v857
  %884 = vmatpush.msra.mxu0 %v856
  %885 = vmatmul.f32.gmra.mxu0 %v214
  %v886 = vpop.f32.mrf.mxu0
  %v887 = vadd.f32 %v867, %v886
  %888 = vmatmul.f32.gmra.mxu0 %v217
  %v889 = vpop.f32.mrf.mxu0
  %v890 = vadd.f32 %v867, %v889
  %891 = vmatmul.f32.gmra.mxu0 %v220
  %v892 = vpop.f32.mrf.mxu0
  %v893 = vadd.f32 %v867, %v892
  %894 = vmatmul.f32.gmra.mxu0 %v223
  %v895 = vpop.f32.mrf.mxu0
  %v896 = vadd.f32 %v867, %v895
  %897 = vdwg.mxu0
  %s898 = scalar_lea.vmem %s5, 128
  %v899 = vld [vmem:[%s898] sm:$0xff]
  %v900 = vld [vmem:[%s898 + $0x8] sm:$0xff]
  %v901 = vld [vmem:[%s898 + $0x10] sm:$0xff]
  %v902 = vld [vmem:[%s898 + $0x18] sm:$0xff]
  %v903 = vld [vmem:[%s898 + $0x20] sm:$0xff]
  %v904 = vld [vmem:[%s898 + $0x28] sm:$0xff]
  %v905 = vld [vmem:[%s898 + $0x30] sm:$0xff]
  %v906 = vld [vmem:[%s898 + $0x38] sm:$0xff]
  %s907 = scalar_lea.vmem %s6, 2
  %v908 = vld [vmem:[%s907] sm:$0x1]
  %v910 = vperm.slane %v908, 0
  %912 = vmatpush.msra.mxu0 0.0
  %913 = vmatpush.msra.mxu0 0.0
  %914 = vmatpush.msra.mxu0 0.0
  %915 = vmatpush.msra.mxu0 0.0
  %916 = vmatpush.msra.mxu0 0.0
  %917 = vmatpush.msra.mxu0 0.0
  %918 = vmatpush.msra.mxu0 0.0
  %919 = vmatpush.msra.mxu0 0.0
  %920 = vmatpush.msra.mxu0 %v906
  %921 = vmatpush.msra.mxu0 %v905
  %922 = vmatpush.msra.mxu0 %v904
  %923 = vmatpush.msra.mxu0 %v903
  %924 = vmatpush.msra.mxu0 %v902
  %925 = vmatpush.msra.mxu0 %v901
  %926 = vmatpush.msra.mxu0 %v900
  %927 = vmatpush.msra.mxu0 %v899
  %928 = vmatmul.f32.gmra.mxu0 %v214
  %v929 = vpop.f32.mrf.mxu0
  %v930 = vadd.f32 %v910, %v929
  %931 = vmatmul.f32.gmra.mxu0 %v217
  %v932 = vpop.f32.mrf.mxu0
  %v933 = vadd.f32 %v910, %v932
  %934 = vmatmul.f32.gmra.mxu0 %v220
  %v935 = vpop.f32.mrf.mxu0
  %v936 = vadd.f32 %v910, %v935
  %937 = vmatmul.f32.gmra.mxu0 %v223
  %v938 = vpop.f32.mrf.mxu0
  %v939 = vadd.f32 %v910, %v938
  %940 = vdwg.mxu0
  %s941 = scalar_lea.vmem %s7, 128
  %v942 = vld [vmem:[%s941] sm:$0xff]
  %v943 = vld [vmem:[%s941 + $0x8] sm:$0xff]
  %v944 = vld [vmem:[%s941 + $0x10] sm:$0xff]
  %v945 = vld [vmem:[%s941 + $0x18] sm:$0xff]
  %v946 = vld [vmem:[%s941 + $0x20] sm:$0xff]
  %v947 = vld [vmem:[%s941 + $0x28] sm:$0xff]
  %v948 = vld [vmem:[%s941 + $0x30] sm:$0xff]
  %v949 = vld [vmem:[%s941 + $0x38] sm:$0xff]
  %s950 = scalar_lea.vmem %s8, 2
  %v951 = vld [vmem:[%s950] sm:$0x1]
  %v953 = vperm.slane %v951, 0
  %955 = vmatpush.msra.mxu0 0.0
  %956 = vmatpush.msra.mxu0 0.0
  %957 = vmatpush.msra.mxu0 0.0
  %958 = vmatpush.msra.mxu0 0.0
  %959 = vmatpush.msra.mxu0 0.0
  %960 = vmatpush.msra.mxu0 0.0
  %961 = vmatpush.msra.mxu0 0.0
  %962 = vmatpush.msra.mxu0 0.0
  %963 = vmatpush.msra.mxu0 %v949
  %964 = vmatpush.msra.mxu0 %v948
  %965 = vmatpush.msra.mxu0 %v947
  %966 = vmatpush.msra.mxu0 %v946
  %967 = vmatpush.msra.mxu0 %v945
  %968 = vmatpush.msra.mxu0 %v944
  %969 = vmatpush.msra.mxu0 %v943
  %970 = vmatpush.msra.mxu0 %v942
  %971 = vmatmul.f32.gmra.mxu0 %v214
  %v972 = vpop.f32.mrf.mxu0
  %v973 = vadd.f32 %v953, %v972
  %974 = vmatmul.f32.gmra.mxu0 %v217
  %v975 = vpop.f32.mrf.mxu0
  %v976 = vadd.f32 %v953, %v975
  %977 = vmatmul.f32.gmra.mxu0 %v220
  %v978 = vpop.f32.mrf.mxu0
  %v979 = vadd.f32 %v953, %v978
  %980 = vmatmul.f32.gmra.mxu0 %v223
  %v981 = vpop.f32.mrf.mxu0
  %v982 = vadd.f32 %v953, %v981
  %983 = vdwg.mxu0
  %v985 = vsel %vm336, %v887, 0
  %v988 = vsel %vm336, %v890, 0
  %v991 = vsel %vm336, %v893, 0
  %v994 = vsel %vm336, %v896, 0
  %v997 = vsel %vm336, %v930, 0
  %v1000 = vsel %vm336, %v933, 0
  %v1003 = vsel %vm336, %v936, 0
  %v1006 = vsel %vm336, %v939, 0
  %1008 = vmatpush.xpose.msra.mxu0 0.0
  %1009 = vmatpush.xpose.msra.mxu0 0.0
  %1010 = vmatpush.xpose.msra.mxu0 0.0
  %1011 = vmatpush.xpose.msra.mxu0 0.0
  %1012 = vmatpush.xpose.msra.mxu0 0.0
  %1013 = vmatpush.xpose.msra.mxu0 0.0
  %1014 = vmatpush.xpose.msra.mxu0 0.0
  %1015 = vmatpush.xpose.msra.mxu0 0.0
  %1016 = vmatpush.xpose.msra.mxu0 0.0
  %1017 = vmatpush.xpose.msra.mxu0 0.0
  %1018 = vmatpush.xpose.msra.mxu0 0.0
  %1019 = vmatpush.xpose.msra.mxu0 0.0
  %1020 = vmatpush.xpose.msra.mxu0 %v1006
  %1021 = vmatpush.xpose.msra.mxu0 %v1003
  %1022 = vmatpush.xpose.msra.mxu0 %v1000
  %1023 = vmatpush.xpose.msra.mxu0 %v997
  %1024 = vmatmul.f32.gmra.mxu0 %v985
  %v1025 = vpop.f32.mrf.mxu0
  %v1026 = vadd.f32 0.0, %v1025
  %1027 = vmatmul.f32.gmra.mxu0 %v988
  %v1028 = vpop.f32.mrf.mxu0
  %v1029 = vadd.f32 0.0, %v1028
  %1030 = vmatmul.f32.gmra.mxu0 %v991
  %v1031 = vpop.f32.mrf.mxu0
  %v1032 = vadd.f32 0.0, %v1031
  %1033 = vmatmul.f32.gmra.mxu0 %v994
  %v1034 = vpop.f32.mrf.mxu0
  %v1035 = vadd.f32 0.0, %v1034
  %1036 = vdwg.mxu0
  %v1037 = vmul.f32 %v1026, 0.25
  %v1038 = vmul.f32 %v1029, 0.25
  %v1039 = vmul.f32 %v1032, 0.25
  %v1040 = vmul.f32 %v1035, 0.25
  %s1041 = scalar_lea.vmem %s9, 64
  %v1042 = vld [vmem:[%s1041] sm:$0xff]
  %v1043 = vld [vmem:[%s1041 + $0x8] sm:$0xff]
  %v1044 = vld [vmem:[%s1041 + $0x10] sm:$0xff]
  %v1045 = vld [vmem:[%s1041 + $0x18] sm:$0xff]
  %v1046 = vadd.f32 %v1037, %v1042
  %v1047 = vadd.f32 %v1038, %v1043
  %v1048 = vadd.f32 %v1039, %v1044
  %v1049 = vadd.f32 %v1040, %v1045
  %v1050 = vsel %vm402, %v1046, -inf
  %1051 = vmax.xlane.f32.xlu0 %v1050
  %v1052 = vpop.xlane.xlu0 %1051
  %v1053 = vsel %vm402, %v1047, -inf
  %1054 = vmax.xlane.f32.xlu0 %v1053
  %v1055 = vpop.xlane.xlu0 %1054
  %v1056 = vsel %vm402, %v1048, -inf
  %1057 = vmax.xlane.f32.xlu0 %v1056
  %v1058 = vpop.xlane.xlu0 %1057
  %v1059 = vsel %vm402, %v1049, -inf
  %1060 = vmax.xlane.f32.xlu0 %v1059
  %v1061 = vpop.xlane.xlu0 %1060
  %v1062 = vsub.f32 %v1046, %v1052
  %v1063 = vsub.f32 %v1047, %v1055
  %v1064 = vsub.f32 %v1048, %v1058
  %v1065 = vsub.f32 %v1049, %v1061
  %v1066 = vmul.f32 %v1062, 1.442695
  %v1067 = vpow.pop %v1066
  %v1068 = vmul.f32 %v1063, 1.442695
  %v1069 = vpow.pop %v1068
  %v1070 = vmul.f32 %v1064, 1.442695
  %v1071 = vpow.pop %v1070
  %v1072 = vmul.f32 %v1065, 1.442695
  %v1073 = vpow.pop %v1072
  %v1074 = vsel %vm402, %v1067, 0.0
  %1075 = vadd.xlane.f32.xlu0 %v1074
  %v1076 = vpop.xlane.xlu0 %1075
  %v1077 = vsel %vm402, %v1069, 0.0
  %1078 = vadd.xlane.f32.xlu0 %v1077
  %v1079 = vpop.xlane.xlu0 %1078
  %v1080 = vsel %vm402, %v1071, 0.0
  %1081 = vadd.xlane.f32.xlu0 %v1080
  %v1082 = vpop.xlane.xlu0 %1081
  %v1083 = vsel %vm402, %v1073, 0.0
  %1084 = vadd.xlane.f32.xlu0 %v1083
  %v1085 = vpop.xlane.xlu0 %1084
  %v1086 = vrcp.pop %v1076
  %v1087 = vrcp.pop %v1079
  %v1088 = vrcp.pop %v1082
  %v1089 = vrcp.pop %v1085
  %v1090 = vmul.f32 %v1067, %v1086
  %v1091 = vmul.f32 %v1069, %v1087
  %v1092 = vmul.f32 %v1071, %v1088
  %v1093 = vmul.f32 %v1073, %v1089
  %v1095 = vsel %vm402, %v1090, 0
  %v1098 = vsel %vm402, %v1091, 0
  %v1101 = vsel %vm402, %v1092, 0
  %v1104 = vsel %vm402, %v1093, 0
  %1106 = vmatpush.msra.mxu0 0.0
  %1107 = vmatpush.msra.mxu0 0.0
  %1108 = vmatpush.msra.mxu0 0.0
  %1109 = vmatpush.msra.mxu0 0.0
  %1110 = vmatpush.msra.mxu0 0.0
  %1111 = vmatpush.msra.mxu0 0.0
  %1112 = vmatpush.msra.mxu0 0.0
  %1113 = vmatpush.msra.mxu0 0.0
  %1114 = vmatpush.msra.mxu0 0.0
  %1115 = vmatpush.msra.mxu0 0.0
  %1116 = vmatpush.msra.mxu0 0.0
  %1117 = vmatpush.msra.mxu0 0.0
  %1118 = vmatpush.msra.mxu0 %v982
  %1119 = vmatpush.msra.mxu0 %v979
  %1120 = vmatpush.msra.mxu0 %v976
  %1121 = vmatpush.msra.mxu0 %v973
  %1122 = vmatmul.f32.gmra.mxu0 %v1095
  %v1123 = vpop.f32.mrf.mxu0
  %v1124 = vadd.f32 0.0, %v1123
  %1125 = vmatmul.f32.gmra.mxu0 %v1098
  %v1126 = vpop.f32.mrf.mxu0
  %v1127 = vadd.f32 0.0, %v1126
  %1128 = vmatmul.f32.gmra.mxu0 %v1101
  %v1129 = vpop.f32.mrf.mxu0
  %v1130 = vadd.f32 0.0, %v1129
  %1131 = vmatmul.f32.gmra.mxu0 %v1104
  %v1132 = vpop.f32.mrf.mxu0
  %v1133 = vadd.f32 0.0, %v1132
  %1134 = vdwg.mxu0
  %s1135 = scalar_lea.vmem %s10, 32
  %v1136 = vld [vmem:[%s1135] sm:$0xff]
  %v1137 = vld [vmem:[%s1135 + $0x8] sm:$0xff]
  %v1139 = vsel %vm336, %v1124, 0
  %v1142 = vsel %vm336, %v1127, 0
  %v1145 = vsel %vm336, %v1130, 0
  %v1148 = vsel %vm336, %v1133, 0
  %1150 = vmatpush.msra.mxu0 0.0
  %1151 = vmatpush.msra.mxu0 0.0
  %1152 = vmatpush.msra.mxu0 0.0
  %1153 = vmatpush.msra.mxu0 0.0
  %1154 = vmatpush.msra.mxu0 0.0
  %1155 = vmatpush.msra.mxu0 0.0
  %1156 = vmatpush.msra.mxu0 0.0
  %1157 = vmatpush.msra.mxu0 0.0
  %1158 = vmatpush.msra.mxu0 0.0
  %1159 = vmatpush.msra.mxu0 0.0
  %1160 = vmatpush.msra.mxu0 0.0
  %1161 = vmatpush.msra.mxu0 0.0
  %1162 = vmatpush.msra.mxu0 0.0
  %1163 = vmatpush.msra.mxu0 0.0
  %1164 = vmatpush.msra.mxu0 %v1137
  %1165 = vmatpush.msra.mxu0 %v1136
  %1166 = vmatmul.f32.gmra.mxu0 %v1139
  %v1167 = vpop.f32.mrf.mxu0
  %v1168 = vadd.f32 0.0, %v1167
  %1169 = vmatmul.f32.gmra.mxu0 %v1142
  %v1170 = vpop.f32.mrf.mxu0
  %v1171 = vadd.f32 0.0, %v1170
  %1172 = vmatmul.f32.gmra.mxu0 %v1145
  %v1173 = vpop.f32.mrf.mxu0
  %v1174 = vadd.f32 0.0, %v1173
  %1175 = vmatmul.f32.gmra.mxu0 %v1148
  %v1176 = vpop.f32.mrf.mxu0
  %v1177 = vadd.f32 0.0, %v1176
  %1178 = vdwg.mxu0
  %v1179 = vadd.f32 %v844, %v1168
  %v1180 = vadd.f32 %v847, %v1171
  %v1181 = vadd.f32 %v850, %v1174
  %v1182 = vadd.f32 %v853, %v1177
  %s1183 = scalar_lea.vmem %s3, 192
  %v1184 = vld [vmem:[%s1183] sm:$0xff]
  %v1185 = vld [vmem:[%s1183 + $0x8] sm:$0xff]
  %v1186 = vld [vmem:[%s1183 + $0x10] sm:$0xff]
  %v1187 = vld [vmem:[%s1183 + $0x18] sm:$0xff]
  %v1188 = vld [vmem:[%s1183 + $0x20] sm:$0xff]
  %v1189 = vld [vmem:[%s1183 + $0x28] sm:$0xff]
  %v1190 = vld [vmem:[%s1183 + $0x30] sm:$0xff]
  %v1191 = vld [vmem:[%s1183 + $0x38] sm:$0xff]
  %s1192 = scalar_lea.vmem %s4, 3
  %v1193 = vld [vmem:[%s1192] sm:$0x1]
  %v1195 = vperm.slane %v1193, 0
  %1197 = vmatpush.msra.mxu0 0.0
  %1198 = vmatpush.msra.mxu0 0.0
  %1199 = vmatpush.msra.mxu0 0.0
  %1200 = vmatpush.msra.mxu0 0.0
  %1201 = vmatpush.msra.mxu0 0.0
  %1202 = vmatpush.msra.mxu0 0.0
  %1203 = vmatpush.msra.mxu0 0.0
  %1204 = vmatpush.msra.mxu0 0.0
  %1205 = vmatpush.msra.mxu0 %v1191
  %1206 = vmatpush.msra.mxu0 %v1190
  %1207 = vmatpush.msra.mxu0 %v1189
  %1208 = vmatpush.msra.mxu0 %v1188
  %1209 = vmatpush.msra.mxu0 %v1187
  %1210 = vmatpush.msra.mxu0 %v1186
  %1211 = vmatpush.msra.mxu0 %v1185
  %1212 = vmatpush.msra.mxu0 %v1184
  %1213 = vmatmul.f32.gmra.mxu0 %v214
  %v1214 = vpop.f32.mrf.mxu0
  %v1215 = vadd.f32 %v1195, %v1214
  %1216 = vmatmul.f32.gmra.mxu0 %v217
  %v1217 = vpop.f32.mrf.mxu0
  %v1218 = vadd.f32 %v1195, %v1217
  %1219 = vmatmul.f32.gmra.mxu0 %v220
  %v1220 = vpop.f32.mrf.mxu0
  %v1221 = vadd.f32 %v1195, %v1220
  %1222 = vmatmul.f32.gmra.mxu0 %v223
  %v1223 = vpop.f32.mrf.mxu0
  %v1224 = vadd.f32 %v1195, %v1223
  %1225 = vdwg.mxu0
  %s1226 = scalar_lea.vmem %s5, 192
  %v1227 = vld [vmem:[%s1226] sm:$0xff]
  %v1228 = vld [vmem:[%s1226 + $0x8] sm:$0xff]
  %v1229 = vld [vmem:[%s1226 + $0x10] sm:$0xff]
  %v1230 = vld [vmem:[%s1226 + $0x18] sm:$0xff]
  %v1231 = vld [vmem:[%s1226 + $0x20] sm:$0xff]
  %v1232 = vld [vmem:[%s1226 + $0x28] sm:$0xff]
  %v1233 = vld [vmem:[%s1226 + $0x30] sm:$0xff]
  %v1234 = vld [vmem:[%s1226 + $0x38] sm:$0xff]
  %s1235 = scalar_lea.vmem %s6, 3
  %v1236 = vld [vmem:[%s1235] sm:$0x1]
  %v1238 = vperm.slane %v1236, 0
  %1240 = vmatpush.msra.mxu0 0.0
  %1241 = vmatpush.msra.mxu0 0.0
  %1242 = vmatpush.msra.mxu0 0.0
  %1243 = vmatpush.msra.mxu0 0.0
  %1244 = vmatpush.msra.mxu0 0.0
  %1245 = vmatpush.msra.mxu0 0.0
  %1246 = vmatpush.msra.mxu0 0.0
  %1247 = vmatpush.msra.mxu0 0.0
  %1248 = vmatpush.msra.mxu0 %v1234
  %1249 = vmatpush.msra.mxu0 %v1233
  %1250 = vmatpush.msra.mxu0 %v1232
  %1251 = vmatpush.msra.mxu0 %v1231
  %1252 = vmatpush.msra.mxu0 %v1230
  %1253 = vmatpush.msra.mxu0 %v1229
  %1254 = vmatpush.msra.mxu0 %v1228
  %1255 = vmatpush.msra.mxu0 %v1227
  %1256 = vmatmul.f32.gmra.mxu0 %v214
  %v1257 = vpop.f32.mrf.mxu0
  %v1258 = vadd.f32 %v1238, %v1257
  %1259 = vmatmul.f32.gmra.mxu0 %v217
  %v1260 = vpop.f32.mrf.mxu0
  %v1261 = vadd.f32 %v1238, %v1260
  %1262 = vmatmul.f32.gmra.mxu0 %v220
  %v1263 = vpop.f32.mrf.mxu0
  %v1264 = vadd.f32 %v1238, %v1263
  %1265 = vmatmul.f32.gmra.mxu0 %v223
  %v1266 = vpop.f32.mrf.mxu0
  %v1267 = vadd.f32 %v1238, %v1266
  %1268 = vdwg.mxu0
  %s1269 = scalar_lea.vmem %s7, 192
  %v1270 = vld [vmem:[%s1269] sm:$0xff]
  %v1271 = vld [vmem:[%s1269 + $0x8] sm:$0xff]
  %v1272 = vld [vmem:[%s1269 + $0x10] sm:$0xff]
  %v1273 = vld [vmem:[%s1269 + $0x18] sm:$0xff]
  %v1274 = vld [vmem:[%s1269 + $0x20] sm:$0xff]
  %v1275 = vld [vmem:[%s1269 + $0x28] sm:$0xff]
  %v1276 = vld [vmem:[%s1269 + $0x30] sm:$0xff]
  %v1277 = vld [vmem:[%s1269 + $0x38] sm:$0xff]
  %s1278 = scalar_lea.vmem %s8, 3
  %v1279 = vld [vmem:[%s1278] sm:$0x1]
  %v1281 = vperm.slane %v1279, 0
  %1283 = vmatpush.msra.mxu0 0.0
  %1284 = vmatpush.msra.mxu0 0.0
  %1285 = vmatpush.msra.mxu0 0.0
  %1286 = vmatpush.msra.mxu0 0.0
  %1287 = vmatpush.msra.mxu0 0.0
  %1288 = vmatpush.msra.mxu0 0.0
  %1289 = vmatpush.msra.mxu0 0.0
  %1290 = vmatpush.msra.mxu0 0.0
  %1291 = vmatpush.msra.mxu0 %v1277
  %1292 = vmatpush.msra.mxu0 %v1276
  %1293 = vmatpush.msra.mxu0 %v1275
  %1294 = vmatpush.msra.mxu0 %v1274
  %1295 = vmatpush.msra.mxu0 %v1273
  %1296 = vmatpush.msra.mxu0 %v1272
  %1297 = vmatpush.msra.mxu0 %v1271
  %1298 = vmatpush.msra.mxu0 %v1270
  %1299 = vmatmul.f32.gmra.mxu0 %v214
  %v1300 = vpop.f32.mrf.mxu0
  %v1301 = vadd.f32 %v1281, %v1300
  %1302 = vmatmul.f32.gmra.mxu0 %v217
  %v1303 = vpop.f32.mrf.mxu0
  %v1304 = vadd.f32 %v1281, %v1303
  %1305 = vmatmul.f32.gmra.mxu0 %v220
  %v1306 = vpop.f32.mrf.mxu0
  %v1307 = vadd.f32 %v1281, %v1306
  %1308 = vmatmul.f32.gmra.mxu0 %v223
  %v1309 = vpop.f32.mrf.mxu0
  %v1310 = vadd.f32 %v1281, %v1309
  %1311 = vdwg.mxu0
  %v1313 = vsel %vm336, %v1215, 0
  %v1316 = vsel %vm336, %v1218, 0
  %v1319 = vsel %vm336, %v1221, 0
  %v1322 = vsel %vm336, %v1224, 0
  %v1325 = vsel %vm336, %v1258, 0
  %v1328 = vsel %vm336, %v1261, 0
  %v1331 = vsel %vm336, %v1264, 0
  %v1334 = vsel %vm336, %v1267, 0
  %1336 = vmatpush.xpose.msra.mxu0 0.0
  %1337 = vmatpush.xpose.msra.mxu0 0.0
  %1338 = vmatpush.xpose.msra.mxu0 0.0
  %1339 = vmatpush.xpose.msra.mxu0 0.0
  %1340 = vmatpush.xpose.msra.mxu0 0.0
  %1341 = vmatpush.xpose.msra.mxu0 0.0
  %1342 = vmatpush.xpose.msra.mxu0 0.0
  %1343 = vmatpush.xpose.msra.mxu0 0.0
  %1344 = vmatpush.xpose.msra.mxu0 0.0
  %1345 = vmatpush.xpose.msra.mxu0 0.0
  %1346 = vmatpush.xpose.msra.mxu0 0.0
  %1347 = vmatpush.xpose.msra.mxu0 0.0
  %1348 = vmatpush.xpose.msra.mxu0 %v1334
  %1349 = vmatpush.xpose.msra.mxu0 %v1331
  %1350 = vmatpush.xpose.msra.mxu0 %v1328
  %1351 = vmatpush.xpose.msra.mxu0 %v1325
  %1352 = vmatmul.f32.gmra.mxu0 %v1313
  %v1353 = vpop.f32.mrf.mxu0
  %v1354 = vadd.f32 0.0, %v1353
  %1355 = vmatmul.f32.gmra.mxu0 %v1316
  %v1356 = vpop.f32.mrf.mxu0
  %v1357 = vadd.f32 0.0, %v1356
  %1358 = vmatmul.f32.gmra.mxu0 %v1319
  %v1359 = vpop.f32.mrf.mxu0
  %v1360 = vadd.f32 0.0, %v1359
  %1361 = vmatmul.f32.gmra.mxu0 %v1322
  %v1362 = vpop.f32.mrf.mxu0
  %v1363 = vadd.f32 0.0, %v1362
  %1364 = vdwg.mxu0
  %v1365 = vmul.f32 %v1354, 0.25
  %v1366 = vmul.f32 %v1357, 0.25
  %v1367 = vmul.f32 %v1360, 0.25
  %v1368 = vmul.f32 %v1363, 0.25
  %s1369 = scalar_lea.vmem %s9, 96
  %v1370 = vld [vmem:[%s1369] sm:$0xff]
  %v1371 = vld [vmem:[%s1369 + $0x8] sm:$0xff]
  %v1372 = vld [vmem:[%s1369 + $0x10] sm:$0xff]
  %v1373 = vld [vmem:[%s1369 + $0x18] sm:$0xff]
  %v1374 = vadd.f32 %v1365, %v1370
  %v1375 = vadd.f32 %v1366, %v1371
  %v1376 = vadd.f32 %v1367, %v1372
  %v1377 = vadd.f32 %v1368, %v1373
  %v1378 = vsel %vm402, %v1374, -inf
  %1379 = vmax.xlane.f32.xlu0 %v1378
  %v1380 = vpop.xlane.xlu0 %1379
  %v1381 = vsel %vm402, %v1375, -inf
  %1382 = vmax.xlane.f32.xlu0 %v1381
  %v1383 = vpop.xlane.xlu0 %1382
  %v1384 = vsel %vm402, %v1376, -inf
  %1385 = vmax.xlane.f32.xlu0 %v1384
  %v1386 = vpop.xlane.xlu0 %1385
  %v1387 = vsel %vm402, %v1377, -inf
  %1388 = vmax.xlane.f32.xlu0 %v1387
  %v1389 = vpop.xlane.xlu0 %1388
  %v1390 = vsub.f32 %v1374, %v1380
  %v1391 = vsub.f32 %v1375, %v1383
  %v1392 = vsub.f32 %v1376, %v1386
  %v1393 = vsub.f32 %v1377, %v1389
  %v1394 = vmul.f32 %v1390, 1.442695
  %v1395 = vpow.pop %v1394
  %v1396 = vmul.f32 %v1391, 1.442695
  %v1397 = vpow.pop %v1396
  %v1398 = vmul.f32 %v1392, 1.442695
  %v1399 = vpow.pop %v1398
  %v1400 = vmul.f32 %v1393, 1.442695
  %v1401 = vpow.pop %v1400
  %v1402 = vsel %vm402, %v1395, 0.0
  %1403 = vadd.xlane.f32.xlu0 %v1402
  %v1404 = vpop.xlane.xlu0 %1403
  %v1405 = vsel %vm402, %v1397, 0.0
  %1406 = vadd.xlane.f32.xlu0 %v1405
  %v1407 = vpop.xlane.xlu0 %1406
  %v1408 = vsel %vm402, %v1399, 0.0
  %1409 = vadd.xlane.f32.xlu0 %v1408
  %v1410 = vpop.xlane.xlu0 %1409
  %v1411 = vsel %vm402, %v1401, 0.0
  %1412 = vadd.xlane.f32.xlu0 %v1411
  %v1413 = vpop.xlane.xlu0 %1412
  %v1414 = vrcp.pop %v1404
  %v1415 = vrcp.pop %v1407
  %v1416 = vrcp.pop %v1410
  %v1417 = vrcp.pop %v1413
  %v1418 = vmul.f32 %v1395, %v1414
  %v1419 = vmul.f32 %v1397, %v1415
  %v1420 = vmul.f32 %v1399, %v1416
  %v1421 = vmul.f32 %v1401, %v1417
  %v1423 = vsel %vm402, %v1418, 0
  %v1426 = vsel %vm402, %v1419, 0
  %v1429 = vsel %vm402, %v1420, 0
  %v1432 = vsel %vm402, %v1421, 0
  %1434 = vmatpush.msra.mxu0 0.0
  %1435 = vmatpush.msra.mxu0 0.0
  %1436 = vmatpush.msra.mxu0 0.0
  %1437 = vmatpush.msra.mxu0 0.0
  %1438 = vmatpush.msra.mxu0 0.0
  %1439 = vmatpush.msra.mxu0 0.0
  %1440 = vmatpush.msra.mxu0 0.0
  %1441 = vmatpush.msra.mxu0 0.0
  %1442 = vmatpush.msra.mxu0 0.0
  %1443 = vmatpush.msra.mxu0 0.0
  %1444 = vmatpush.msra.mxu0 0.0
  %1445 = vmatpush.msra.mxu0 0.0
  %1446 = vmatpush.msra.mxu0 %v1310
  %1447 = vmatpush.msra.mxu0 %v1307
  %1448 = vmatpush.msra.mxu0 %v1304
  %1449 = vmatpush.msra.mxu0 %v1301
  %1450 = vmatmul.f32.gmra.mxu0 %v1423
  %v1451 = vpop.f32.mrf.mxu0
  %v1452 = vadd.f32 0.0, %v1451
  %1453 = vmatmul.f32.gmra.mxu0 %v1426
  %v1454 = vpop.f32.mrf.mxu0
  %v1455 = vadd.f32 0.0, %v1454
  %1456 = vmatmul.f32.gmra.mxu0 %v1429
  %v1457 = vpop.f32.mrf.mxu0
  %v1458 = vadd.f32 0.0, %v1457
  %1459 = vmatmul.f32.gmra.mxu0 %v1432
  %v1460 = vpop.f32.mrf.mxu0
  %v1461 = vadd.f32 0.0, %v1460
  %1462 = vdwg.mxu0
  %s1463 = scalar_lea.vmem %s10, 48
  %v1464 = vld [vmem:[%s1463] sm:$0xff]
  %v1465 = vld [vmem:[%s1463 + $0x8] sm:$0xff]
  %v1467 = vsel %vm336, %v1452, 0
  %v1470 = vsel %vm336, %v1455, 0
  %v1473 = vsel %vm336, %v1458, 0
  %v1476 = vsel %vm336, %v1461, 0
  %1478 = vmatpush.msra.mxu0 0.0
  %1479 = vmatpush.msra.mxu0 0.0
  %1480 = vmatpush.msra.mxu0 0.0
  %1481 = vmatpush.msra.mxu0 0.0
  %1482 = vmatpush.msra.mxu0 0.0
  %1483 = vmatpush.msra.mxu0 0.0
  %1484 = vmatpush.msra.mxu0 0.0
  %1485 = vmatpush.msra.mxu0 0.0
  %1486 = vmatpush.msra.mxu0 0.0
  %1487 = vmatpush.msra.mxu0 0.0
  %1488 = vmatpush.msra.mxu0 0.0
  %1489 = vmatpush.msra.mxu0 0.0
  %1490 = vmatpush.msra.mxu0 0.0
  %1491 = vmatpush.msra.mxu0 0.0
  %1492 = vmatpush.msra.mxu0 %v1465
  %1493 = vmatpush.msra.mxu0 %v1464
  %1494 = vmatmul.f32.gmra.mxu0 %v1467
  %v1495 = vpop.f32.mrf.mxu0
  %v1496 = vadd.f32 0.0, %v1495
  %1497 = vmatmul.f32.gmra.mxu0 %v1470
  %v1498 = vpop.f32.mrf.mxu0
  %v1499 = vadd.f32 0.0, %v1498
  %1500 = vmatmul.f32.gmra.mxu0 %v1473
  %v1501 = vpop.f32.mrf.mxu0
  %v1502 = vadd.f32 0.0, %v1501
  %1503 = vmatmul.f32.gmra.mxu0 %v1476
  %v1504 = vpop.f32.mrf.mxu0
  %v1505 = vadd.f32 0.0, %v1504
  %1506 = vdwg.mxu0
  %v1507 = vadd.f32 %v1179, %v1496
  %v1508 = vadd.f32 %v1180, %v1499
  %v1509 = vadd.f32 %v1181, %v1502
  %v1510 = vadd.f32 %v1182, %v1505
  %v1511 = vld [vmem:[%s11] sm:$0x1]
  %v1513 = vperm.slane %v1511, 0
  %v1515 = vadd.f32 %v1507, %v1513
  %v1516 = vadd.f32 %v1508, %v1513
  %v1517 = vadd.f32 %v1509, %v1513
  %v1518 = vadd.f32 %v1510, %v1513
  %v1519 = vld [vmem:[%s12] sm:$0xff]
  %v1520 = vld [vmem:[%s12 + $0x8] sm:$0xff]
  %v1521 = vld [vmem:[%s12 + $0x10] sm:$0xf]
  %v1523 = vsel %vm91, %v1519, 0
  %v1526 = vsel %vm91, %v1520, 0
  %v1529 = vsel %vm91, %v1521, 0
  %v1532 = vsel %vm91, %v1515, 0
  %v1535 = vsel %vm91, %v1516, 0
  %v1538 = vsel %vm91, %v1517, 0
  %v1541 = vsel %vm91, %v1518, 0
  %1543 = vmatpush.xpose.msra.mxu0 0.0
  %1544 = vmatpush.xpose.msra.mxu0 0.0
  %1545 = vmatpush.xpose.msra.mxu0 0.0
  %1546 = vmatpush.xpose.msra.mxu0 0.0
  %1547 = vmatpush.xpose.msra.mxu0 0.0
  %1548 = vmatpush.xpose.msra.mxu0 0.0
  %1549 = vmatpush.xpose.msra.mxu0 0.0
  %1550 = vmatpush.xpose.msra.mxu0 0.0
  %1551 = vmatpush.xpose.msra.mxu0 0.0
  %1552 = vmatpush.xpose.msra.mxu0 0.0
  %1553 = vmatpush.xpose.msra.mxu0 0.0
  %1554 = vmatpush.xpose.msra.mxu0 0.0
  %1555 = vmatpush.xpose.msra.mxu0 %v1541
  %1556 = vmatpush.xpose.msra.mxu0 %v1538
  %1557 = vmatpush.xpose.msra.mxu0 %v1535
  %1558 = vmatpush.xpose.msra.mxu0 %v1532
  %1559 = vmatmul.f32.gmra.mxu0 %v1523
  %v1560 = vpop.f32.mrf.mxu0
  %v1561 = vadd.f32 0.0, %v1560
  %1562 = vmatmul.f32.gmra.mxu0 %v1526
  %v1563 = vpop.f32.mrf.mxu0
  %v1564 = vadd.f32 0.0, %v1563
  %1565 = vmatmul.f32.gmra.mxu0 %v1529
  %v1566 = vpop.f32.mrf.mxu0
  %v1567 = vadd.f32 0.0, %v1566
  %1568 = vdwg.mxu0
  %v1569 = vmul.f32 %v1561, 0.125
  %v1570 = vmul.f32 %v1564, 0.125
  %v1571 = vmul.f32 %v1567, 0.125
  %v1572 = vld [vmem:[%s13] sm:$0xff]
  %v1573 = vld [vmem:[%s13 + $0x8] sm:$0xff]
  %v1574 = vld [vmem:[%s13 + $0x10] sm:$0xf]
  %v1575 = vadd.f32 %v1569, %v1572
  %v1576 = vadd.f32 %v1570, %v1573
  %v1577 = vadd.f32 %v1571, %v1574
  %v1578 = vsel %vm402, %v1575, -inf
  %1579 = vmax.xlane.f32.xlu0 %v1578
  %v1580 = vpop.xlane.xlu0 %1579
  %v1581 = vsel %vm402, %v1576, -inf
  %1582 = vmax.xlane.f32.xlu0 %v1581
  %v1583 = vpop.xlane.xlu0 %1582
  %vm1584 = vcmask 257024
  %v1585 = vsel %vm1584, %v1577, -inf
  %1586 = vmax.xlane.f32.xlu0 %v1585
  %v1587 = vpop.xlane.xlu0 %1586
  %v1588 = vsub.f32 %v1575, %v1580
  %v1589 = vsub.f32 %v1576, %v1583
  %v1590 = vsub.f32 %v1577, %v1587
  %v1591 = vmul.f32 %v1588, 1.442695
  %v1592 = vpow.pop %v1591
  %v1593 = vmul.f32 %v1589, 1.442695
  %v1594 = vpow.pop %v1593
  %v1595 = vmul.f32 %v1590, 1.442695
  %v1596 = vpow.pop %v1595
  %v1597 = vsel %vm402, %v1592, 0.0
  %1598 = vadd.xlane.f32.xlu0 %v1597
  %v1599 = vpop.xlane.xlu0 %1598
  %v1600 = vsel %vm402, %v1594, 0.0
  %1601 = vadd.xlane.f32.xlu0 %v1600
  %v1602 = vpop.xlane.xlu0 %1601
  %v1603 = vsel %vm1584, %v1596, 0.0
  %1604 = vadd.xlane.f32.xlu0 %v1603
  %v1605 = vpop.xlane.xlu0 %1604
  %v1606 = vrcp.pop %v1599
  %v1607 = vrcp.pop %v1602
  %v1608 = vrcp.pop %v1605
  %v1609 = vmul.f32 %v1592, %v1606
  %v1610 = vmul.f32 %v1594, %v1607
  %v1611 = vmul.f32 %v1596, %v1608
  %v1613 = vsel %vm402, %v1609, 0
  %v1616 = vsel %vm402, %v1610, 0
  %v1619 = vsel %vm402, %v1611, 0
  %1621 = vmatpush.msra.mxu0 0.0
  %1622 = vmatpush.msra.mxu0 0.0
  %1623 = vmatpush.msra.mxu0 0.0
  %1624 = vmatpush.msra.mxu0 0.0
  %1625 = vmatpush.msra.mxu0 0.0
  %1626 = vmatpush.msra.mxu0 0.0
  %1627 = vmatpush.msra.mxu0 0.0
  %1628 = vmatpush.msra.mxu0 0.0
  %1629 = vmatpush.msra.mxu0 0.0
  %1630 = vmatpush.msra.mxu0 0.0
  %1631 = vmatpush.msra.mxu0 0.0
  %1632 = vmatpush.msra.mxu0 0.0
  %1633 = vmatpush.msra.mxu0 %v1518
  %1634 = vmatpush.msra.mxu0 %v1517
  %1635 = vmatpush.msra.mxu0 %v1516
  %1636 = vmatpush.msra.mxu0 %v1515
  %1637 = vmatmul.f32.gmra.mxu0 %v1613
  %v1638 = vpop.f32.mrf.mxu0
  %v1639 = vadd.f32 0.0, %v1638
  %1640 = vmatmul.f32.gmra.mxu0 %v1616
  %v1641 = vpop.f32.mrf.mxu0
  %v1642 = vadd.f32 0.0, %v1641
  %1643 = vmatmul.f32.gmra.mxu0 %v1619
  %v1644 = vpop.f32.mrf.mxu0
  %v1645 = vadd.f32 0.0, %v1644
  %1646 = vdwg.mxu0
  %v1647 = vld [vmem:[%s14] sm:$0xff]
  %v1648 = vld [vmem:[%s14 + $0x8] sm:$0xff]
  %v1649 = vld [vmem:[%s14 + $0x10] sm:$0xff]
  %v1650 = vld [vmem:[%s14 + $0x18] sm:$0xff]
  %vm1651 = vcmask 162816
  %v1653 = vsel %vm1651, %v1647, 0
  %v1656 = vsel %vm1651, %v1648, 0
  %v1659 = vsel %vm1651, %v1649, 0
  %v1662 = vsel %vm1651, %v1650, 0
  %vm1664 = vcmask 1043456
  %v1666 = vsel %vm1664, %v1645, 0
  %1668 = vmatpush.msra.mxu0 0.0
  %1669 = vmatpush.msra.mxu0 0.0
  %1670 = vmatpush.msra.mxu0 0.0
  %1671 = vmatpush.msra.mxu0 0.0
  %1672 = vmatpush.msra.mxu0 0.0
  %1673 = vmatpush.msra.mxu0 0.0
  %1674 = vmatpush.msra.mxu0 0.0
  %1675 = vmatpush.msra.mxu0 0.0
  %1676 = vmatpush.msra.mxu0 0.0
  %1677 = vmatpush.msra.mxu0 0.0
  %1678 = vmatpush.msra.mxu0 0.0
  %1679 = vmatpush.msra.mxu0 0.0
  %1680 = vmatpush.msra.mxu0 0.0
  %1681 = vmatpush.msra.mxu0 %v1666
  %1682 = vmatpush.msra.mxu0 %v1642
  %1683 = vmatpush.msra.mxu0 %v1639
  %1684 = vmatmul.f32.gmra.mxu0 %v1653
  %v1685 = vpop.f32.mrf.mxu0
  %v1686 = vadd.f32 0.0, %v1685
  %1687 = vmatmul.f32.gmra.mxu0 %v1656
  %v1688 = vpop.f32.mrf.mxu0
  %v1689 = vadd.f32 0.0, %v1688
  %1690 = vmatmul.f32.gmra.mxu0 %v1659
  %v1691 = vpop.f32.mrf.mxu0
  %v1692 = vadd.f32 0.0, %v1691
  %1693 = vmatmul.f32.gmra.mxu0 %v1662
  %v1694 = vpop.f32.mrf.mxu0
  %v1695 = vadd.f32 0.0, %v1694
  %1696 = vdwg.mxu0
  %v1697 = vadd.f32 %v1515, %v1686
  %v1698 = vadd.f32 %v1516, %v1689
  %v1699 = vadd.f32 %v1517, %v1692
  %v1700 = vadd.f32 %v1518, %v1695
  %v1701 = vadd.f32 %v85, %v1697
  %v1702 = vadd.f32 %v86, %v1698
  %v1703 = vadd.f32 %v87, %v1699
  %v1704 = vadd.f32 %v88, %v1700
  %v1705 = vld [vmem:[%s15] sm:$0x1]
  %v1706 = vld [vmem:[%s16] sm:$0x1]
  %v1707 = vsel %vm91, %v1701, 0.0
  %1708 = vadd.xlane.f32.xlu0 %v1707
  %v1709 = vpop.xlane.xlu0 %1708
  %v1710 = vsel %vm91, %v1702, 0.0
  %1711 = vadd.xlane.f32.xlu0 %v1710
  %v1712 = vpop.xlane.xlu0 %1711
  %v1713 = vsel %vm91, %v1703, 0.0
  %1714 = vadd.xlane.f32.xlu0 %v1713
  %v1715 = vpop.xlane.xlu0 %1714
  %v1716 = vsel %vm91, %v1704, 0.0
  %1717 = vadd.xlane.f32.xlu0 %v1716
  %v1718 = vpop.xlane.xlu0 %1717
  %v1719 = vmul.f32 %v1709, %v110
  %v1720 = vmul.f32 %v1712, %v110
  %v1721 = vmul.f32 %v1715, %v110
  %v1722 = vmul.f32 %v1718, %v110
  %v1723 = vsub.f32 %v1701, %v1719
  %v1724 = vsub.f32 %v1702, %v1720
  %v1725 = vsub.f32 %v1703, %v1721
  %v1726 = vsub.f32 %v1704, %v1722
  %v1727 = vmul.f32 %v1723, %v1723
  %v1728 = vmul.f32 %v1724, %v1724
  %v1729 = vmul.f32 %v1725, %v1725
  %v1730 = vmul.f32 %v1726, %v1726
  %v1731 = vsel %vm91, %v1727, 0.0
  %1732 = vadd.xlane.f32.xlu0 %v1731
  %v1733 = vpop.xlane.xlu0 %1732
  %v1734 = vsel %vm91, %v1728, 0.0
  %1735 = vadd.xlane.f32.xlu0 %v1734
  %v1736 = vpop.xlane.xlu0 %1735
  %v1737 = vsel %vm91, %v1729, 0.0
  %1738 = vadd.xlane.f32.xlu0 %v1737
  %v1739 = vpop.xlane.xlu0 %1738
  %v1740 = vsel %vm91, %v1730, 0.0
  %1741 = vadd.xlane.f32.xlu0 %v1740
  %v1742 = vpop.xlane.xlu0 %1741
  %v1743 = vmul.f32 %v1733, %v110
  %v1744 = vmul.f32 %v1736, %v110
  %v1745 = vmul.f32 %v1739, %v110
  %v1746 = vmul.f32 %v1742, %v110
  %v1747 = vadd.f32 %v1743, 1e-05
  %v1748 = vadd.f32 %v1744, 1e-05
  %v1749 = vadd.f32 %v1745, 1e-05
  %v1750 = vadd.f32 %v1746, 1e-05
  %v1751 = vrsqrt.pop %v1747
  %v1752 = vmul.f32 %v1751, %v1747
  %v1753 = vmul.f32 %v1752, %v1751
  %v1754 = vmul.f32 0.5, %v1753
  %v1755 = vsub.f32 1.5, %v1754
  %v1756 = vmul.f32 %v1751, %v1755
  %vm1757 = vweird.f32 %v1747
  %vm1758 = vweird.f32 %v1751
  %vm1759 = vmor %vm1757, %vm1758
  %v1760 = vsel %vm1759, %v1751, %v1756
  %v1761 = vrsqrt.pop %v1748
  %v1762 = vmul.f32 %v1761, %v1748
  %v1763 = vmul.f32 %v1762, %v1761
  %v1764 = vmul.f32 0.5, %v1763
  %v1765 = vsub.f32 1.5, %v1764
  %v1766 = vmul.f32 %v1761, %v1765
  %vm1767 = vweird.f32 %v1748
  %vm1768 = vweird.f32 %v1761
  %vm1769 = vmor %vm1767, %vm1768
  %v1770 = vsel %vm1769, %v1761, %v1766
  %v1771 = vrsqrt.pop %v1749
  %v1772 = vmul.f32 %v1771, %v1749
  %v1773 = vmul.f32 %v1772, %v1771
  %v1774 = vmul.f32 0.5, %v1773
  %v1775 = vsub.f32 1.5, %v1774
  %v1776 = vmul.f32 %v1771, %v1775
  %vm1777 = vweird.f32 %v1749
  %vm1778 = vweird.f32 %v1771
  %vm1779 = vmor %vm1777, %vm1778
  %v1780 = vsel %vm1779, %v1771, %v1776
  %v1781 = vrsqrt.pop %v1750
  %v1782 = vmul.f32 %v1781, %v1750
  %v1783 = vmul.f32 %v1782, %v1781
  %v1784 = vmul.f32 0.5, %v1783
  %v1785 = vsub.f32 1.5, %v1784
  %v1786 = vmul.f32 %v1781, %v1785
  %vm1787 = vweird.f32 %v1750
  %vm1788 = vweird.f32 %v1781
  %vm1789 = vmor %vm1787, %vm1788
  %v1790 = vsel %vm1789, %v1781, %v1786
  %v1791 = vmul.f32 %v1723, %v1760
  %v1792 = vmul.f32 %v1724, %v1770
  %v1793 = vmul.f32 %v1725, %v1780
  %v1794 = vmul.f32 %v1726, %v1790
  %v1796 = vperm.slane %v1705, 0
  %v1798 = vmul.f32 %v1791, %v1796
  %v1799 = vmul.f32 %v1792, %v1796
  %v1800 = vmul.f32 %v1793, %v1796
  %v1801 = vmul.f32 %v1794, %v1796
  %v1803 = vperm.slane %v1706, 0
  %v1805 = vadd.f32 %v1798, %v1803
  %v1806 = vadd.f32 %v1799, %v1803
  %v1807 = vadd.f32 %v1800, %v1803
  %v1808 = vadd.f32 %v1801, %v1803
  %v1809 = vld [vmem:[%s17] sm:$0xff]
  %v1810 = vld [vmem:[%s17 + $0x8] sm:$0xff]
  %v1811 = vld [vmem:[%s17 + $0x10] sm:$0xff]
  %v1812 = vld [vmem:[%s17 + $0x18] sm:$0xff]
  %v1813 = vld [vmem:[%s17 + $0x20] sm:$0xff]
  %v1814 = vld [vmem:[%s17 + $0x28] sm:$0xff]
  %v1815 = vld [vmem:[%s17 + $0x30] sm:$0xff]
  %v1816 = vld [vmem:[%s17 + $0x38] sm:$0xff]
  %v1817 = vld [vmem:[%s17 + $0x40] sm:$0xff]
  %v1818 = vld [vmem:[%s17 + $0x48] sm:$0xff]
  %v1819 = vld [vmem:[%s17 + $0x50] sm:$0xff]
  %v1820 = vld [vmem:[%s17 + $0x58] sm:$0xff]
  %v1821 = vld [vmem:[%s17 + $0x60] sm:$0xff]
  %v1822 = vld [vmem:[%s17 + $0x68] sm:$0xff]
  %v1823 = vld [vmem:[%s17 + $0x70] sm:$0xff]
  %v1824 = vld [vmem:[%s17 + $0x78] sm:$0xff]
  %v1825 = vld [vmem:[%s18] sm:$0x3]
  %v1827 = vperm.slane %v1825, 0
  %v1828 = vperm.slane %v1825, 1
  %v1832 = vsel %vm91, %v1805, 0
  %v1835 = vsel %vm91, %v1806, 0
  %v1838 = vsel %vm91, %v1807, 0
  %v1841 = vsel %vm91, %v1808, 0
  %1843 = vmatpush.msra.mxu0 0.0
  %1844 = vmatpush.msra.mxu0 0.0
  %1845 = vmatpush.msra.mxu0 0.0
  %1846 = vmatpush.msra.mxu0 0.0
  %1847 = vmatpush.msra.mxu0 0.0
  %1848 = vmatpush.msra.mxu0 0.0
  %1849 = vmatpush.msra.mxu0 0.0
  %1850 = vmatpush.msra.mxu0 0.0
  %1851 = vmatpush.msra.mxu0 %v1823
  %1852 = vmatpush.msra.mxu0 %v1821
  %1853 = vmatpush.msra.mxu0 %v1819
  %1854 = vmatpush.msra.mxu0 %v1817
  %1855 = vmatpush.msra.mxu0 %v1815
  %1856 = vmatpush.msra.mxu0 %v1813
  %1857 = vmatpush.msra.mxu0 %v1811
  %1858 = vmatpush.msra.mxu0 %v1809
  %1859 = vmatmul.f32.gmra.mxu0 %v1832
  %v1860 = vpop.f32.mrf.mxu0
  %v1861 = vadd.f32 %v1827, %v1860
  %1862 = vmatmul.f32.gmra.mxu0 %v1835
  %v1863 = vpop.f32.mrf.mxu0
  %v1864 = vadd.f32 %v1827, %v1863
  %1865 = vmatmul.f32.gmra.mxu0 %v1838
  %v1866 = vpop.f32.mrf.mxu0
  %v1867 = vadd.f32 %v1827, %v1866
  %1868 = vmatmul.f32.gmra.mxu0 %v1841
  %v1869 = vpop.f32.mrf.mxu0
  %v1870 = vadd.f32 %v1827, %v1869
  %1871 = vdwg.mxu0
  %1872 = vmatpush.msra.mxu0 0.0
  %1873 = vmatpush.msra.mxu0 0.0
  %1874 = vmatpush.msra.mxu0 0.0
  %1875 = vmatpush.msra.mxu0 0.0
  %1876 = vmatpush.msra.mxu0 0.0
  %1877 = vmatpush.msra.mxu0 0.0
  %1878 = vmatpush.msra.mxu0 0.0
  %1879 = vmatpush.msra.mxu0 0.0
  %1880 = vmatpush.msra.mxu0 %v1824
  %1881 = vmatpush.msra.mxu0 %v1822
  %1882 = vmatpush.msra.mxu0 %v1820
  %1883 = vmatpush.msra.mxu0 %v1818
  %1884 = vmatpush.msra.mxu0 %v1816
  %1885 = vmatpush.msra.mxu0 %v1814
  %1886 = vmatpush.msra.mxu0 %v1812
  %1887 = vmatpush.msra.mxu0 %v1810
  %1888 = vmatmul.f32.gmra.mxu0 %v1832
  %v1889 = vpop.f32.mrf.mxu0
  %v1890 = vadd.f32 %v1828, %v1889
  %1891 = vmatmul.f32.gmra.mxu0 %v1835
  %v1892 = vpop.f32.mrf.mxu0
  %v1893 = vadd.f32 %v1828, %v1892
  %1894 = vmatmul.f32.gmra.mxu0 %v1838
  %v1895 = vpop.f32.mrf.mxu0
  %v1896 = vadd.f32 %v1828, %v1895
  %1897 = vmatmul.f32.gmra.mxu0 %v1841
  %v1898 = vpop.f32.mrf.mxu0
  %v1899 = vadd.f32 %v1828, %v1898
  %1900 = vdwg.mxu0
  %v1901 = vmul.f32 %v1861, 0.5
  %v1902 = vmul.f32 %v1890, 0.5
  %v1903 = vmul.f32 %v1864, 0.5
  %v1904 = vmul.f32 %v1893, 0.5
  %v1905 = vmul.f32 %v1867, 0.5
  %v1906 = vmul.f32 %v1896, 0.5
  %v1907 = vmul.f32 %v1870, 0.5
  %v1908 = vmul.f32 %v1899, 0.5
  %v1909 = vmul.f32 %v1861, 0.70710677
  %v1910 = vmul.f32 %v1890, 0.70710677
  %v1911 = vmul.f32 %v1864, 0.70710677
  %v1912 = vmul.f32 %v1893, 0.70710677
  %v1913 = vmul.f32 %v1867, 0.70710677
  %v1914 = vmul.f32 %v1896, 0.70710677
  %v1915 = vmul.f32 %v1870, 0.70710677
  %v1916 = vmul.f32 %v1899, 0.70710677
  %v1917 = vmul.f32 %v1909, %v1909
  %v1918 = vmin.f32 16.0, %v1917
  %v1919 = vmul.f32 %v1918, 2.1237322e-06
  %v1920 = vadd.f32 %v1919, 0.00028619796
  %v1921 = vmul.f32 %v1918, %v1920
  %v1922 = vadd.f32 %v1921, 0.0036580483
  %v1923 = vmul.f32 %v1918, %v1922
  %v1924 = vadd.f32 %v1923, 0.05243302
  %v1925 = vmul.f32 %v1918, %v1924
  %v1926 = vadd.f32 %v1925, 0.18741608
  %v1927 = vmul.f32 %v1918, %v1926
  %v1928 = vadd.f32 %v1927, 1.1283791
  %v1929 = vmul.f32 %v1909, %v1928
  %v1930 = vmul.f32 %v1918, 3.8918573e-05
  %v1931 = vadd.f32 %v1930, 0.001143296
  %v1932 = vmul.f32 %v1918, %v1931
  %v1933 = vadd.f32 %v1932, 0.014752088
  %v1934 = vmul.f32 %v1918, %v1933
  %v1935 = vadd.f32 %v1934, 0.112945676
  %v1936 = vmul.f32 %v1918, %v1935
  %v1937 = vadd.f32 %v1936, 0.4994258
  %v1938 = vmul.f32 %v1918, %v1937
  %v1939 = vadd.f32 %v1938, 1.0
  %v1940 = vrcp.pop %v1939
  %v1941 = vmul.f32 %v1939, %v1940
  %v1942 = vsub.f32 1.0, %v1941
  %v1943 = vmul.f32 %v1940, %v1942
  %v1944 = vadd.f32 %v1940, %v1943
  %vm1945 = vweird.f32 %v1939
  %vm1946 = vweird.f32 %v1940
  %vm1947 = vmor %vm1945, %vm1946
  %v1948 = vsel %vm1947, %v1940, %v1944
  %v1949 = vand.u32 2147483647, %v1939
  %vm1950 = vcmp.eq.f32.partialorder %v1949, 8.507059e+37
  %v1951 = vand.u32 %v1939, 2147483648
  %v1952 = vor.u32 1.1754944e-38, %v1951
  %v1953 = vsel %vm1950, %v1952, %v1948
  %v1954 = vmul.f32 %v1929, %v1953
  %v1955 = vmin.f32 %v1954, 1.0
  %v1956 = vmax.f32 %v1955, -1.0
  %v1957 = vmul.f32 %v1910, %v1910
  %v1958 = vmin.f32 16.0, %v1957
  %v1959 = vmul.f32 %v1958, 2.1237322e-06
  %v1960 = vadd.f32 %v1959, 0.00028619796
  %v1961 = vmul.f32 %v1958, %v1960
  %v1962 = vadd.f32 %v1961, 0.0036580483
  %v1963 = vmul.f32 %v1958, %v1962
  %v1964 = vadd.f32 %v1963, 0.05243302
  %v1965 = vmul.f32 %v1958, %v1964
  %v1966 = vadd.f32 %v1965, 0.18741608
  %v1967 = vmul.f32 %v1958, %v1966
  %v1968 = vadd.f32 %v1967, 1.1283791
  %v1969 = vmul.f32 %v1910, %v1968
  %v1970 = vmul.f32 %v1958, 3.8918573e-05
  %v1971 = vadd.f32 %v1970, 0.001143296
  %v1972 = vmul.f32 %v1958, %v1971
  %v1973 = vadd.f32 %v1972, 0.014752088
  %v1974 = vmul.f32 %v1958, %v1973
  %v1975 = vadd.f32 %v1974, 0.112945676
  %v1976 = vmul.f32 %v1958, %v1975
  %v1977 = vadd.f32 %v1976, 0.4994258
  %v1978 = vmul.f32 %v1958, %v1977
  %v1979 = vadd.f32 %v1978, 1.0
  %v1980 = vrcp.pop %v1979
  %v1981 = vmul.f32 %v1979, %v1980
  %v1982 = vsub.f32 1.0, %v1981
  %v1983 = vmul.f32 %v1980, %v1982
  %v1984 = vadd.f32 %v1980, %v1983
  %vm1985 = vweird.f32 %v1979
  %vm1986 = vweird.f32 %v1980
  %vm1987 = vmor %vm1985, %vm1986
  %v1988 = vsel %vm1987, %v1980, %v1984
  %v1989 = vand.u32 2147483647, %v1979
  %vm1990 = vcmp.eq.f32.partialorder %v1989, 8.507059e+37
  %v1991 = vand.u32 %v1979, 2147483648
  %v1992 = vor.u32 1.1754944e-38, %v1991
  %v1993 = vsel %vm1990, %v1992, %v1988
  %v1994 = vmul.f32 %v1969, %v1993
  %v1995 = vmin.f32 %v1994, 1.0
  %v1996 = vmax.f32 %v1995, -1.0
  %v1997 = vmul.f32 %v1911, %v1911
  %v1998 = vmin.f32 16.0, %v1997
  %v1999 = vmul.f32 %v1998, 2.1237322e-06
  %v2000 = vadd.f32 %v1999, 0.00028619796
  %v2001 = vmul.f32 %v1998, %v2000
  %v2002 = vadd.f32 %v2001, 0.0036580483
  %v2003 = vmul.f32 %v1998, %v2002
  %v2004 = vadd.f32 %v2003, 0.05243302
  %v2005 = vmul.f32 %v1998, %v2004
  %v2006 = vadd.f32 %v2005, 0.18741608
  %v2007 = vmul.f32 %v1998, %v2006
  %v2008 = vadd.f32 %v2007, 1.1283791
  %v2009 = vmul.f32 %v1911, %v2008
  %v2010 = vmul.f32 %v1998, 3.8918573e-05
  %v2011 = vadd.f32 %v2010, 0.001143296
  %v2012 = vmul.f32 %v1998, %v2011
  %v2013 = vadd.f32 %v2012, 0.014752088
  %v2014 = vmul.f32 %v1998, %v2013
  %v2015 = vadd.f32 %v2014, 0.112945676
  %v2016 = vmul.f32 %v1998, %v2015
  %v2017 = vadd.f32 %v2016, 0.4994258
  %v2018 = vmul.f32 %v1998, %v2017
  %v2019 = vadd.f32 %v2018, 1.0
  %v2020 = vrcp.pop %v2019
  %v2021 = vmul.f32 %v2019, %v2020
  %v2022 = vsub.f32 1.0, %v2021
  %v2023 = vmul.f32 %v2020, %v2022
  %v2024 = vadd.f32 %v2020, %v2023
  %vm2025 = vweird.f32 %v2019
  %vm2026 = vweird.f32 %v2020
  %vm2027 = vmor %vm2025, %vm2026
  %v2028 = vsel %vm2027, %v2020, %v2024
  %v2029 = vand.u32 2147483647, %v2019
  %vm2030 = vcmp.eq.f32.partialorder %v2029, 8.507059e+37
  %v2031 = vand.u32 %v2019, 2147483648
  %v2032 = vor.u32 1.1754944e-38, %v2031
  %v2033 = vsel %vm2030, %v2032, %v2028
  %v2034 = vmul.f32 %v2009, %v2033
  %v2035 = vmin.f32 %v2034, 1.0
  %v2036 = vmax.f32 %v2035, -1.0
  %v2037 = vmul.f32 %v1912, %v1912
  %v2038 = vmin.f32 16.0, %v2037
  %v2039 = vmul.f32 %v2038, 2.1237322e-06
  %v2040 = vadd.f32 %v2039, 0.00028619796
  %v2041 = vmul.f32 %v2038, %v2040
  %v2042 = vadd.f32 %v2041, 0.0036580483
  %v2043 = vmul.f32 %v2038, %v2042
  %v2044 = vadd.f32 %v2043, 0.05243302
  %v2045 = vmul.f32 %v2038, %v2044
  %v2046 = vadd.f32 %v2045, 0.18741608
  %v2047 = vmul.f32 %v2038, %v2046
  %v2048 = vadd.f32 %v2047, 1.1283791
  %v2049 = vmul.f32 %v1912, %v2048
  %v2050 = vmul.f32 %v2038, 3.8918573e-05
  %v2051 = vadd.f32 %v2050, 0.001143296
  %v2052 = vmul.f32 %v2038, %v2051
  %v2053 = vadd.f32 %v2052, 0.014752088
  %v2054 = vmul.f32 %v2038, %v2053
  %v2055 = vadd.f32 %v2054, 0.112945676
  %v2056 = vmul.f32 %v2038, %v2055
  %v2057 = vadd.f32 %v2056, 0.4994258
  %v2058 = vmul.f32 %v2038, %v2057
  %v2059 = vadd.f32 %v2058, 1.0
  %v2060 = vrcp.pop %v2059
  %v2061 = vmul.f32 %v2059, %v2060
  %v2062 = vsub.f32 1.0, %v2061
  %v2063 = vmul.f32 %v2060, %v2062
  %v2064 = vadd.f32 %v2060, %v2063
  %vm2065 = vweird.f32 %v2059
  %vm2066 = vweird.f32 %v2060
  %vm2067 = vmor %vm2065, %vm2066
  %v2068 = vsel %vm2067, %v2060, %v2064
  %v2069 = vand.u32 2147483647, %v2059
  %vm2070 = vcmp.eq.f32.partialorder %v2069, 8.507059e+37
  %v2071 = vand.u32 %v2059, 2147483648
  %v2072 = vor.u32 1.1754944e-38, %v2071
  %v2073 = vsel %vm2070, %v2072, %v2068
  %v2074 = vmul.f32 %v2049, %v2073
  %v2075 = vmin.f32 %v2074, 1.0
  %v2076 = vmax.f32 %v2075, -1.0
  %v2077 = vmul.f32 %v1913, %v1913
  %v2078 = vmin.f32 16.0, %v2077
  %v2079 = vmul.f32 %v2078, 2.1237322e-06
  %v2080 = vadd.f32 %v2079, 0.00028619796
  %v2081 = vmul.f32 %v2078, %v2080
  %v2082 = vadd.f32 %v2081, 0.0036580483
  %v2083 = vmul.f32 %v2078, %v2082
  %v2084 = vadd.f32 %v2083, 0.05243302
  %v2085 = vmul.f32 %v2078, %v2084
  %v2086 = vadd.f32 %v2085, 0.18741608
  %v2087 = vmul.f32 %v2078, %v2086
  %v2088 = vadd.f32 %v2087, 1.1283791
  %v2089 = vmul.f32 %v1913, %v2088
  %v2090 = vmul.f32 %v2078, 3.8918573e-05
  %v2091 = vadd.f32 %v2090, 0.001143296
  %v2092 = vmul.f32 %v2078, %v2091
  %v2093 = vadd.f32 %v2092, 0.014752088
  %v2094 = vmul.f32 %v2078, %v2093
  %v2095 = vadd.f32 %v2094, 0.112945676
  %v2096 = vmul.f32 %v2078, %v2095
  %v2097 = vadd.f32 %v2096, 0.4994258
  %v2098 = vmul.f32 %v2078, %v2097
  %v2099 = vadd.f32 %v2098, 1.0
  %v2100 = vrcp.pop %v2099
  %v2101 = vmul.f32 %v2099, %v2100
  %v2102 = vsub.f32 1.0, %v2101
  %v2103 = vmul.f32 %v2100, %v2102
  %v2104 = vadd.f32 %v2100, %v2103
  %vm2105 = vweird.f32 %v2099
  %vm2106 = vweird.f32 %v2100
  %vm2107 = vmor %vm2105, %vm2106
  %v2108 = vsel %vm2107, %v2100, %v2104
  %v2109 = vand.u32 2147483647, %v2099
  %vm2110 = vcmp.eq.f32.partialorder %v2109, 8.507059e+37
  %v2111 = vand.u32 %v2099, 2147483648
  %v2112 = vor.u32 1.1754944e-38, %v2111
  %v2113 = vsel %vm2110, %v2112, %v2108
  %v2114 = vmul.f32 %v2089, %v2113
  %v2115 = vmin.f32 %v2114, 1.0
  %v2116 = vmax.f32 %v2115, -1.0
  %v2117 = vmul.f32 %v1914, %v1914
  %v2118 = vmin.f32 16.0, %v2117
  %v2119 = vmul.f32 %v2118, 2.1237322e-06
  %v2120 = vadd.f32 %v2119, 0.00028619796
  %v2121 = vmul.f32 %v2118, %v2120
  %v2122 = vadd.f32 %v2121, 0.0036580483
  %v2123 = vmul.f32 %v2118, %v2122
  %v2124 = vadd.f32 %v2123, 0.05243302
  %v2125 = vmul.f32 %v2118, %v2124
  %v2126 = vadd.f32 %v2125, 0.18741608
  %v2127 = vmul.f32 %v2118, %v2126
  %v2128 = vadd.f32 %v2127, 1.1283791
  %v2129 = vmul.f32 %v1914, %v2128
  %v2130 = vmul.f32 %v2118, 3.8918573e-05
  %v2131 = vadd.f32 %v2130, 0.001143296
  %v2132 = vmul.f32 %v2118, %v2131
  %v2133 = vadd.f32 %v2132, 0.014752088
  %v2134 = vmul.f32 %v2118, %v2133
  %v2135 = vadd.f32 %v2134, 0.112945676
  %v2136 = vmul.f32 %v2118, %v2135
  %v2137 = vadd.f32 %v2136, 0.4994258
  %v2138 = vmul.f32 %v2118, %v2137
  %v2139 = vadd.f32 %v2138, 1.0
  %v2140 = vrcp.pop %v2139
  %v2141 = vmul.f32 %v2139, %v2140
  %v2142 = vsub.f32 1.0, %v2141
  %v2143 = vmul.f32 %v2140, %v2142
  %v2144 = vadd.f32 %v2140, %v2143
  %vm2145 = vweird.f32 %v2139
  %vm2146 = vweird.f32 %v2140
  %vm2147 = vmor %vm2145, %vm2146
  %v2148 = vsel %vm2147, %v2140, %v2144
  %v2149 = vand.u32 2147483647, %v2139
  %vm2150 = vcmp.eq.f32.partialorder %v2149, 8.507059e+37
  %v2151 = vand.u32 %v2139, 2147483648
  %v2152 = vor.u32 1.1754944e-38, %v2151
  %v2153 = vsel %vm2150, %v2152, %v2148
  %v2154 = vmul.f32 %v2129, %v2153
  %v2155 = vmin.f32 %v2154, 1.0
  %v2156 = vmax.f32 %v2155, -1.0
  %v2157 = vmul.f32 %v1915, %v1915
  %v2158 = vmin.f32 16.0, %v2157
  %v2159 = vmul.f32 %v2158, 2.1237322e-06
  %v2160 = vadd.f32 %v2159, 0.00028619796
  %v2161 = vmul.f32 %v2158, %v2160
  %v2162 = vadd.f32 %v2161, 0.0036580483
  %v2163 = vmul.f32 %v2158, %v2162
  %v2164 = vadd.f32 %v2163, 0.05243302
  %v2165 = vmul.f32 %v2158, %v2164
  %v2166 = vadd.f32 %v2165, 0.18741608
  %v2167 = vmul.f32 %v2158, %v2166
  %v2168 = vadd.f32 %v2167, 1.1283791
  %v2169 = vmul.f32 %v1915, %v2168
  %v2170 = vmul.f32 %v2158, 3.8918573e-05
  %v2171 = vadd.f32 %v2170, 0.001143296
  %v2172 = vmul.f32 %v2158, %v2171
  %v2173 = vadd.f32 %v2172, 0.014752088
  %v2174 = vmul.f32 %v2158, %v2173
  %v2175 = vadd.f32 %v2174, 0.112945676
  %v2176 = vmul.f32 %v2158, %v2175
  %v2177 = vadd.f32 %v2176, 0.4994258
  %v2178 = vmul.f32 %v2158, %v2177
  %v2179 = vadd.f32 %v2178, 1.0
  %v2180 = vrcp.pop %v2179
  %v2181 = vmul.f32 %v2179, %v2180
  %v2182 = vsub.f32 1.0, %v2181
  %v2183 = vmul.f32 %v2180, %v2182
  %v2184 = vadd.f32 %v2180, %v2183
  %vm2185 = vweird.f32 %v2179
  %vm2186 = vweird.f32 %v2180
  %vm2187 = vmor %vm2185, %vm2186
  %v2188 = vsel %vm2187, %v2180, %v2184
  %v2189 = vand.u32 2147483647, %v2179
  %vm2190 = vcmp.eq.f32.partialorder %v2189, 8.507059e+37
  %v2191 = vand.u32 %v2179, 2147483648
  %v2192 = vor.u32 1.1754944e-38, %v2191
  %v2193 = vsel %vm2190, %v2192, %v2188
  %v2194 = vmul.f32 %v2169, %v2193
  %v2195 = vmin.f32 %v2194, 1.0
  %v2196 = vmax.f32 %v2195, -1.0
  %v2197 = vmul.f32 %v1916, %v1916
  %v2198 = vmin.f32 16.0, %v2197
  %v2199 = vmul.f32 %v2198, 2.1237322e-06
  %v2200 = vadd.f32 %v2199, 0.00028619796
  %v2201 = vmul.f32 %v2198, %v2200
  %v2202 = vadd.f32 %v2201, 0.0036580483
  %v2203 = vmul.f32 %v2198, %v2202
  %v2204 = vadd.f32 %v2203, 0.05243302
  %v2205 = vmul.f32 %v2198, %v2204
  %v2206 = vadd.f32 %v2205, 0.18741608
  %v2207 = vmul.f32 %v2198, %v2206
  %v2208 = vadd.f32 %v2207, 1.1283791
  %v2209 = vmul.f32 %v1916, %v2208
  %v2210 = vmul.f32 %v2198, 3.8918573e-05
  %v2211 = vadd.f32 %v2210, 0.001143296
  %v2212 = vmul.f32 %v2198, %v2211
  %v2213 = vadd.f32 %v2212, 0.014752088
  %v2214 = vmul.f32 %v2198, %v2213
  %v2215 = vadd.f32 %v2214, 0.112945676
  %v2216 = vmul.f32 %v2198, %v2215
  %v2217 = vadd.f32 %v2216, 0.4994258
  %v2218 = vmul.f32 %v2198, %v2217
  %v2219 = vadd.f32 %v2218, 1.0
  %v2220 = vrcp.pop %v2219
  %v2221 = vmul.f32 %v2219, %v2220
  %v2222 = vsub.f32 1.0, %v2221
  %v2223 = vmul.f32 %v2220, %v2222
  %v2224 = vadd.f32 %v2220, %v2223
  %vm2225 = vweird.f32 %v2219
  %vm2226 = vweird.f32 %v2220
  %vm2227 = vmor %vm2225, %vm2226
  %v2228 = vsel %vm2227, %v2220, %v2224
  %v2229 = vand.u32 2147483647, %v2219
  %vm2230 = vcmp.eq.f32.partialorder %v2229, 8.507059e+37
  %v2231 = vand.u32 %v2219, 2147483648
  %v2232 = vor.u32 1.1754944e-38, %v2231
  %v2233 = vsel %vm2230, %v2232, %v2228
  %v2234 = vmul.f32 %v2209, %v2233
  %v2235 = vmin.f32 %v2234, 1.0
  %v2236 = vmax.f32 %v2235, -1.0
  %v2237 = vadd.f32 %v1956, 1.0
  %v2238 = vadd.f32 %v1996, 1.0
  %v2239 = vadd.f32 %v2036, 1.0
  %v2240 = vadd.f32 %v2076, 1.0
  %v2241 = vadd.f32 %v2116, 1.0
  %v2242 = vadd.f32 %v2156, 1.0
  %v2243 = vadd.f32 %v2196, 1.0
  %v2244 = vadd.f32 %v2236, 1.0
  %v2245 = vmul.f32 %v1901, %v2237
  %v2246 = vmul.f32 %v1902, %v2238
  %v2247 = vmul.f32 %v1903, %v2239
  %v2248 = vmul.f32 %v1904, %v2240
  %v2249 = vmul.f32 %v1905, %v2241
  %v2250 = vmul.f32 %v1906, %v2242
  %v2251 = vmul.f32 %v1907, %v2243
  %v2252 = vmul.f32 %v1908, %v2244
  %v2253 = vld [vmem:[%s19] sm:$0xff]
  %v2254 = vld [vmem:[%s19 + $0x8] sm:$0xff]
  %v2255 = vld [vmem:[%s19 + $0x10] sm:$0xff]
  %v2256 = vld [vmem:[%s19 + $0x18] sm:$0xff]
  %v2257 = vld [vmem:[%s19 + $0x20] sm:$0xff]
  %v2258 = vld [vmem:[%s19 + $0x28] sm:$0xff]
  %v2259 = vld [vmem:[%s19 + $0x30] sm:$0xff]
  %v2260 = vld [vmem:[%s19 + $0x38] sm:$0xff]
  %v2261 = vld [vmem:[%s19 + $0x40] sm:$0xff]
  %v2262 = vld [vmem:[%s19 + $0x48] sm:$0xff]
  %v2263 = vld [vmem:[%s19 + $0x50] sm:$0xff]
  %v2264 = vld [vmem:[%s19 + $0x58] sm:$0xff]
  %v2265 = vld [vmem:[%s19 + $0x60] sm:$0xff]
  %v2266 = vld [vmem:[%s19 + $0x68] sm:$0xff]
  %v2267 = vld [vmem:[%s19 + $0x70] sm:$0xff]
  %v2268 = vld [vmem:[%s19 + $0x78] sm:$0xff]
  %v2269 = vld [vmem:[%s19 + $0x80] sm:$0xff]
  %v2270 = vld [vmem:[%s19 + $0x88] sm:$0xff]
  %v2271 = vld [vmem:[%s19 + $0x90] sm:$0xff]
  %v2272 = vld [vmem:[%s19 + $0x98] sm:$0xff]
  %v2273 = vld [vmem:[%s19 + $0xa0] sm:$0xff]
  %v2274 = vld [vmem:[%s19 + $0xa8] sm:$0xff]
  %v2275 = vld [vmem:[%s19 + $0xb0] sm:$0xff]
  %v2276 = vld [vmem:[%s19 + $0xb8] sm:$0xff]
  %v2277 = vld [vmem:[%s19 + $0xc0] sm:$0xff]
  %v2278 = vld [vmem:[%s19 + $0xc8] sm:$0xff]
  %v2279 = vld [vmem:[%s19 + $0xd0] sm:$0xff]
  %v2280 = vld [vmem:[%s19 + $0xd8] sm:$0xff]
  %v2281 = vld [vmem:[%s19 + $0xe0] sm:$0xff]
  %v2282 = vld [vmem:[%s19 + $0xe8] sm:$0xff]
  %v2283 = vld [vmem:[%s19 + $0xf0] sm:$0xff]
  %v2284 = vld [vmem:[%s19 + $0xf8] sm:$0xff]
  %v2285 = vld [vmem:[%s20] sm:$0x1]
  %v2287 = vperm.slane %v2285, 0
  %2289 = vmatpush.msra.mxu0 %v2268
  %2290 = vmatpush.msra.mxu0 %v2267
  %2291 = vmatpush.msra.mxu0 %v2266
  %2292 = vmatpush.msra.mxu0 %v2265
  %2293 = vmatpush.msra.mxu0 %v2264
  %2294 = vmatpush.msra.mxu0 %v2263
  %2295 = vmatpush.msra.mxu0 %v2262
  %2296 = vmatpush.msra.mxu0 %v2261
  %2297 = vmatpush.msra.mxu0 %v2260
  %2298 = vmatpush.msra.mxu0 %v2259
  %2299 = vmatpush.msra.mxu0 %v2258
  %2300 = vmatpush.msra.mxu0 %v2257
  %2301 = vmatpush.msra.mxu0 %v2256
  %2302 = vmatpush.msra.mxu0 %v2255
  %2303 = vmatpush.msra.mxu0 %v2254
  %2304 = vmatpush.msra.mxu0 %v2253
  %2305 = vmatmul.f32.gmra.mxu0 %v2245
  %v2306 = vpop.f32.mrf.mxu0
  %v2307 = vadd.f32 %v2287, %v2306
  %2308 = vmatmul.f32.gmra.mxu0 %v2247
  %v2309 = vpop.f32.mrf.mxu0
  %v2310 = vadd.f32 %v2287, %v2309
  %2311 = vmatmul.f32.gmra.mxu0 %v2249
  %v2312 = vpop.f32.mrf.mxu0
  %v2313 = vadd.f32 %v2287, %v2312
  %2314 = vmatmul.f32.gmra.mxu0 %v2251
  %v2315 = vpop.f32.mrf.mxu0
  %v2316 = vadd.f32 %v2287, %v2315
  %2317 = vdwg.mxu0
  %2318 = vmatpush.msra.mxu0 %v2284
  %2319 = vmatpush.msra.mxu0 %v2283
  %2320 = vmatpush.msra.mxu0 %v2282
  %2321 = vmatpush.msra.mxu0 %v2281
  %2322 = vmatpush.msra.mxu0 %v2280
  %2323 = vmatpush.msra.mxu0 %v2279
  %2324 = vmatpush.msra.mxu0 %v2278
  %2325 = vmatpush.msra.mxu0 %v2277
  %2326 = vmatpush.msra.mxu0 %v2276
  %2327 = vmatpush.msra.mxu0 %v2275
  %2328 = vmatpush.msra.mxu0 %v2274
  %2329 = vmatpush.msra.mxu0 %v2273
  %2330 = vmatpush.msra.mxu0 %v2272
  %2331 = vmatpush.msra.mxu0 %v2271
  %2332 = vmatpush.msra.mxu0 %v2270
  %2333 = vmatpush.msra.mxu0 %v2269
  %2334 = vmatmul.f32.gmra.mxu0 %v2246
  %v2335 = vpop.f32.mrf.mxu0
  %v2336 = vadd.f32 %v2307, %v2335
  %2337 = vmatmul.f32.gmra.mxu0 %v2248
  %v2338 = vpop.f32.mrf.mxu0
  %v2339 = vadd.f32 %v2310, %v2338
  %2340 = vmatmul.f32.gmra.mxu0 %v2250
  %v2341 = vpop.f32.mrf.mxu0
  %v2342 = vadd.f32 %v2313, %v2341
  %2343 = vmatmul.f32.gmra.mxu0 %v2252
  %v2344 = vpop.f32.mrf.mxu0
  %v2345 = vadd.f32 %v2316, %v2344
  %2346 = vdwg.mxu0
  %v2347 = vld [vmem:[%s21] sm:$0xff]
  %v2348 = vld [vmem:[%s21 + $0x8] sm:$0xff]
  %v2349 = vld [vmem:[%s21 + $0x10] sm:$0xff]
  %v2350 = vld [vmem:[%s21 + $0x18] sm:$0xff]
  %v2351 = vld [vmem:[%s21 + $0x20] sm:$0xff]
  %v2352 = vld [vmem:[%s21 + $0x28] sm:$0xff]
  %v2353 = vld [vmem:[%s21 + $0x30] sm:$0xff]
  %v2354 = vld [vmem:[%s21 + $0x38] sm:$0xff]
  %v2355 = vld [vmem:[%s22] sm:$0x1]
  %v2357 = vperm.slane %v2355, 0
  %v2360 = vsel %vm91, %v1701, 0
  %v2363 = vsel %vm91, %v1702, 0
  %v2366 = vsel %vm91, %v1703, 0
  %v2369 = vsel %vm91, %v1704, 0
  %2371 = vmatpush.msra.mxu0 0.0
  %2372 = vmatpush.msra.mxu0 0.0
  %2373 = vmatpush.msra.mxu0 0.0
  %2374 = vmatpush.msra.mxu0 0.0
  %2375 = vmatpush.msra.mxu0 0.0
  %2376 = vmatpush.msra.mxu0 0.0
  %2377 = vmatpush.msra.mxu0 0.0
  %2378 = vmatpush.msra.mxu0 0.0
  %2379 = vmatpush.msra.mxu0 %v2354
  %2380 = vmatpush.msra.mxu0 %v2353
  %2381 = vmatpush.msra.mxu0 %v2352
  %2382 = vmatpush.msra.mxu0 %v2351
  %2383 = vmatpush.msra.mxu0 %v2350
  %2384 = vmatpush.msra.mxu0 %v2349
  %2385 = vmatpush.msra.mxu0 %v2348
  %2386 = vmatpush.msra.mxu0 %v2347
  %2387 = vmatmul.f32.gmra.mxu0 %v2360
  %v2388 = vpop.f32.mrf.mxu0
  %v2389 = vadd.f32 %v2357, %v2388
  %2390 = vmatmul.f32.gmra.mxu0 %v2363
  %v2391 = vpop.f32.mrf.mxu0
  %v2392 = vadd.f32 %v2357, %v2391
  %2393 = vmatmul.f32.gmra.mxu0 %v2366
  %v2394 = vpop.f32.mrf.mxu0
  %v2395 = vadd.f32 %v2357, %v2394
  %2396 = vmatmul.f32.gmra.mxu0 %v2369
  %v2397 = vpop.f32.mrf.mxu0
  %v2398 = vadd.f32 %v2357, %v2397
  %2399 = vdwg.mxu0
  %v2400 = vmul.f32 %v2389, 1.702
  %v2401 = vmul.f32 %v2392, 1.702
  %v2402 = vmul.f32 %v2395, 1.702
  %v2403 = vmul.f32 %v2398, 1.702
  %v2404 = vxor.u32 %v2400, 2147483648
  %v2405 = vxor.u32 %v2401, 2147483648
  %v2406 = vxor.u32 %v2402, 2147483648
  %v2407 = vxor.u32 %v2403, 2147483648
  %v2408 = vmul.f32 %v2404, 1.442695
  %v2409 = vpow.pop %v2408
  %v2410 = vmul.f32 %v2405, 1.442695
  %v2411 = vpow.pop %v2410
  %v2412 = vmul.f32 %v2406, 1.442695
  %v2413 = vpow.pop %v2412
  %v2414 = vmul.f32 %v2407, 1.442695
  %v2415 = vpow.pop %v2414
  %v2416 = vadd.f32 %v2409, 1.0
  %v2417 = vadd.f32 %v2411, 1.0
  %v2418 = vadd.f32 %v2413, 1.0
  %v2419 = vadd.f32 %v2415, 1.0
  %v2420 = vrcp.pop %v2416
  %v2421 = vmul.f32 %v2416, %v2420
  %v2422 = vsub.f32 1.0, %v2421
  %v2423 = vmul.f32 %v2420, %v2422
  %v2424 = vadd.f32 %v2420, %v2423
  %vm2425 = vweird.f32 %v2416
  %vm2426 = vweird.f32 %v2420
  %vm2427 = vmor %vm2425, %vm2426
  %v2428 = vsel %vm2427, %v2420, %v2424
  %v2429 = vand.u32 2147483647, %v2416
  %vm2430 = vcmp.eq.f32.partialorder %v2429, 8.507059e+37
  %v2431 = vand.u32 %v2416, 2147483648
  %v2432 = vor.u32 1.1754944e-38, %v2431
  %v2433 = vsel %vm2430, %v2432, %v2428
  %v2434 = vmul.f32 1.0, %v2433
  %v2435 = vrcp.pop %v2417
  %v2436 = vmul.f32 %v2417, %v2435
  %v2437 = vsub.f32 1.0, %v2436
  %v2438 = vmul.f32 %v2435, %v2437
  %v2439 = vadd.f32 %v2435, %v2438
  %vm2440 = vweird.f32 %v2417
  %vm2441 = vweird.f32 %v2435
  %vm2442 = vmor %vm2440, %vm2441
  %v2443 = vsel %vm2442, %v2435, %v2439
  %v2444 = vand.u32 2147483647, %v2417
  %vm2445 = vcmp.eq.f32.partialorder %v2444, 8.507059e+37
  %v2446 = vand.u32 %v2417, 2147483648
  %v2447 = vor.u32 1.1754944e-38, %v2446
  %v2448 = vsel %vm2445, %v2447, %v2443
  %v2449 = vmul.f32 1.0, %v2448
  %v2450 = vrcp.pop %v2418
  %v2451 = vmul.f32 %v2418, %v2450
  %v2452 = vsub.f32 1.0, %v2451
  %v2453 = vmul.f32 %v2450, %v2452
  %v2454 = vadd.f32 %v2450, %v2453
  %vm2455 = vweird.f32 %v2418
  %vm2456 = vweird.f32 %v2450
  %vm2457 = vmor %vm2455, %vm2456
  %v2458 = vsel %vm2457, %v2450, %v2454
  %v2459 = vand.u32 2147483647, %v2418
  %vm2460 = vcmp.eq.f32.partialorder %v2459, 8.507059e+37
  %v2461 = vand.u32 %v2418, 2147483648
  %v2462 = vor.u32 1.1754944e-38, %v2461
  %v2463 = vsel %vm2460, %v2462, %v2458
  %v2464 = vmul.f32 1.0, %v2463
  %v2465 = vrcp.pop %v2419
  %v2466 = vmul.f32 %v2419, %v2465
  %v2467 = vsub.f32 1.0, %v2466
  %v2468 = vmul.f32 %v2465, %v2467
  %v2469 = vadd.f32 %v2465, %v2468
  %vm2470 = vweird.f32 %v2419
  %vm2471 = vweird.f32 %v2465
  %vm2472 = vmor %vm2470, %vm2471
  %v2473 = vsel %vm2472, %v2465, %v2469
  %v2474 = vand.u32 2147483647, %v2419
  %vm2475 = vcmp.eq.f32.partialorder %v2474, 8.507059e+37
  %v2476 = vand.u32 %v2419, 2147483648
  %v2477 = vor.u32 1.1754944e-38, %v2476
  %v2478 = vsel %vm2475, %v2477, %v2473
  %v2479 = vmul.f32 1.0, %v2478
  %v2480 = vmul.f32 %v2389, %v2434
  %v2481 = vmul.f32 %v2392, %v2449
  %v2482 = vmul.f32 %v2395, %v2464
  %v2483 = vmul.f32 %v2398, %v2479
  %v2484 = vld [vmem:[%s23] sm:$0xff]
  %v2485 = vld [vmem:[%s23 + $0x8] sm:$0x3]
  %v2486 = vld [vmem:[%s24] sm:$0x1]
  %v2488 = vperm.slane %v2486, 0
  %vm2490 = vcmask 80896
  %v2492 = vsel %vm2490, %v2480, 0
  %v2495 = vsel %vm2490, %v2481, 0
  %v2498 = vsel %vm2490, %v2482, 0
  %v2501 = vsel %vm2490, %v2483, 0
  %vm2503 = vcmask 1041408
  %v2505 = vsel %vm2503, %v2485, 0
  %2507 = vmatpush.msra.mxu0 0.0
  %2508 = vmatpush.msra.mxu0 0.0
  %2509 = vmatpush.msra.mxu0 0.0
  %2510 = vmatpush.msra.mxu0 0.0
  %2511 = vmatpush.msra.mxu0 0.0
  %2512 = vmatpush.msra.mxu0 0.0
  %2513 = vmatpush.msra.mxu0 0.0
  %2514 = vmatpush.msra.mxu0 0.0
  %2515 = vmatpush.msra.mxu0 0.0
  %2516 = vmatpush.msra.mxu0 0.0
  %2517 = vmatpush.msra.mxu0 0.0
  %2518 = vmatpush.msra.mxu0 0.0
  %2519 = vmatpush.msra.mxu0 0.0
  %2520 = vmatpush.msra.mxu0 0.0
  %2521 = vmatpush.msra.mxu0 %v2505
  %2522 = vmatpush.msra.mxu0 %v2484
  %2523 = vmatmul.f32.gmra.mxu0 %v2492
  %v2524 = vpop.f32.mrf.mxu0
  %v2525 = vadd.f32 %v2488, %v2524
  %2526 = vmatmul.f32.gmra.mxu0 %v2495
  %v2527 = vpop.f32.mrf.mxu0
  %v2528 = vadd.f32 %v2488, %v2527
  %2529 = vmatmul.f32.gmra.mxu0 %v2498
  %v2530 = vpop.f32.mrf.mxu0
  %v2531 = vadd.f32 %v2488, %v2530
  %2532 = vmatmul.f32.gmra.mxu0 %v2501
  %v2533 = vpop.f32.mrf.mxu0
  %v2534 = vadd.f32 %v2488, %v2533
  %2535 = vdwg.mxu0
  %v2536 = vld [vmem:[#allocation2] sm:$0x1]
  %v2538 = vperm.slane %v2536, 0
  %2539 = vset.pattern.permute.xlu0 0
  %2540 = vperm.xlu0 %2539, %v2538
  %v2541 = vpop.permute.xlu0 %2540
  %v2543 = vmul.f32 %v2525, %v2541
  %v2544 = vmul.f32 %v2528, %v2541
  %v2545 = vmul.f32 %v2531, %v2541
  %v2546 = vmul.f32 %v2534, %v2541
  %v2547 = vadd.f32 %v1701, %v2336
  %v2548 = vadd.f32 %v1702, %v2339
  %v2549 = vadd.f32 %v1703, %v2342
  %v2550 = vadd.f32 %v1704, %v2345
  %v2551 = vadd.f32 %v2547, %v2543
  %v2552 = vadd.f32 %v2548, %v2544
  %v2553 = vadd.f32 %v2549, %v2545
  %v2554 = vadd.f32 %v2550, %v2546
  %2555 = vst.msk [vmem:[%s26] sm:$0xff] %vm91, %v2551
  %2556 = vst.msk [vmem:[%s26 + $0x8] sm:$0xff] %vm91, %v2552
  %2557 = vst.msk [vmem:[%s26 + $0x10] sm:$0xff] %vm91, %v2553
  %2558 = vst.msk [vmem:[%s26 + $0x18] sm:$0xff] %vm91, %v2554
  // Predicated region
  $region106: #{swin_forward.11} parent=0 // pred_check
    _
  $region107: #{swin_forward.11} parent=0 // pred_check_branch
    %2560 = sbr.rel (0) target = $region109
  $region108: #{swin_forward.11} parent=0 // pred_region
    _
  $region109: #{swin_forward.11} parent=0 // pred_fallthru
    _
  // Predicated region
  $region110: #{swin_forward.11} parent=0 // pred_check
    _
  $region111: #{swin_forward.11} parent=0 // pred_check_branch
    %2562 = sbr.rel (0) target = $region113
  $region112: #{swin_forward.11} parent=0 // pred_region
    _
  $region113: #{swin_forward.11} parent=0 // pred_fallthru
    _

</llo_original>
